<compile_context>
chip_gen: v6e
topology: v6e:2x2x1
jax: 0.10.0
libtpu: 0.0.40
codegen_flags: <defaults>
</compile_context>

<pallas_src>
import functools

import jax
import jax.numpy as jnp
from jax.experimental import pallas as pl
from jax.experimental.pallas import tpu as pltpu

C_IN = 2048          # Conv1d in channels (hard-coded in the module)
C_OUT = 512          # Conv1d out channels / slot dim
NUM_CLASSES = 10     # model_cfg.NUM_CLASSES (number of slots)

_LANE = 128          # TPU lane width
_SUBLANE = 8         # f32 sublane tile


# ---------------------------------------------------------------------------
# Fused kernel: conv1x1 + bias + mask + ReLU  ->  slot attention  ->  out*mask
# One grid step per batch element; h / k_feat / v_feat live entirely in VMEM.
# ---------------------------------------------------------------------------
def _i3d_fused_kernel(x_ref, m_ref, w_ref, b_ref, slots_ref, wq_ref, wk_ref,
                      wv_ref, attn_ref, out_ref, *, num_slots):
    x = x_ref[...]                                                      # (C_in, Tp)
    m = m_ref[...]                                                      # (1,    Tp)

    # ---- conv1x1 (pointwise) + bias + mask + ReLU; h stays in VMEM ----------
    h = jnp.dot(w_ref[...], x, preferred_element_type=jnp.float32)     # (C_out, Tp)
    h = jnp.maximum((h + b_ref[...]) * m, 0.0)

    # ---- slot attention projections -----------------------------------------
    k_feat = jnp.dot(wk_ref[...], h, preferred_element_type=jnp.float32)   # (C_out, Tp)
    v_feat = jnp.dot(wv_ref[...], h, preferred_element_type=jnp.float32)   # (C_out, Tp)
    q = jnp.dot(slots_ref[...], wq_ref[...],
                preferred_element_type=jnp.float32)                        # (Kp, C_out)

    scale = jax.lax.rsqrt(jnp.float32(C_OUT))
    dots = jnp.dot(q, k_feat, preferred_element_type=jnp.float32) * scale  # (Kp, Tp)

    # Mask out padded slot rows (Kp > num_slots) and padded / invalid frames.
    slot_valid = jax.lax.broadcasted_iota(jnp.int32, dots.shape, 0) < num_slots
    valid = jnp.logical_and(slot_valid, m > 0.0)
    dots = jnp.where(valid, dots, jnp.float32(-1e30))

    # Softmax over slots (slots compete per frame).
    dots = dots - jnp.max(dots, axis=0, keepdims=True)
    e = jnp.exp(dots)
    inv_den = pl.reciprocal(jnp.sum(e, axis=0, keepdims=True), approx=True)
    attn = e * inv_den                                                     # (Kp, Tp)
    attn = attn * m                                                        # zero padded frames
    attn_ref[0] = attn

    # Weighted mean over (valid) time -> slot updates.
    inv_t = pl.reciprocal(jnp.sum(attn, axis=1, keepdims=True) + 1e-8, approx=True)
    attn_w = attn * inv_t                                                  # (Kp, Tp)
    # Contract the T axes directly; no transpose of the (C_out, Tp) operand.
    updates = jax.lax.dot_general(
        attn_w, v_feat,
        dimension_numbers=(((1,), (1,)), ((), ())),
        preferred_element_type=jnp.float32)                                # (Kp, C_out)

    # Per-frame slot scores, fused with the final  x = x * mask[:, 0:1, :].
    out = jnp.dot(updates, k_feat, preferred_element_type=jnp.float32)     # (Kp, Tp)
    out_ref[0] = out * m


def i3d_forward_fused(x, mask, params):
    B, c_in, T = x.shape
    c_out = params["conv1_w"].shape[0]
    K = params["slots"].shape[0]

    t_pad = pl.cdiv(T, _LANE) * _LANE                     # lane-dense length
    k_pad = pl.cdiv(K, _SUBLANE) * _SUBLANE               # sublane-dense slot dim

    x_p = jnp.pad(x, ((0, 0), (0, 0), (0, t_pad - T)))
    m_p = jnp.pad(mask, ((0, 0), (0, 0), (0, t_pad - T)))
    slots_p = jnp.pad(params["slots"], ((0, k_pad - K), (0, 0)))

    kernel = functools.partial(_i3d_fused_kernel, num_slots=K)

    attn, out = pl.pallas_call(
        kernel,
        out_shape=(
            jax.ShapeDtypeStruct((B, k_pad, t_pad), jnp.float32),   # attn
            jax.ShapeDtypeStruct((B, k_pad, t_pad), jnp.float32),   # x (masked)
        ),
        grid_spec=pltpu.PrefetchScalarGridSpec(
            num_scalar_prefetch=0,
            grid=(B,),
            in_specs=[
                pl.BlockSpec((None, c_in, t_pad), lambda b: (b, 0, 0)),  # x  (batch squeezed)
                pl.BlockSpec((None, 1, t_pad), lambda b: (b, 0, 0)),     # mask
                pl.BlockSpec((c_out, c_in), lambda b: (0, 0)),           # conv1_w
                pl.BlockSpec((c_out, 1), lambda b: (0, 0)),              # conv1_b
                pl.BlockSpec((k_pad, c_out), lambda b: (0, 0)),          # slots
                pl.BlockSpec((c_out, c_out), lambda b: (0, 0)),          # wq
                pl.BlockSpec((c_out, c_out), lambda b: (0, 0)),          # wk
                pl.BlockSpec((c_out, c_out), lambda b: (0, 0)),          # wv
            ],
            out_specs=[
                pl.BlockSpec((1, k_pad, t_pad), lambda b: (b, 0, 0)),
                pl.BlockSpec((1, k_pad, t_pad), lambda b: (b, 0, 0)),
            ],
        ),
        compiler_params=pltpu.CompilerParams(
            dimension_semantics=("parallel",),
            vmem_limit_bytes=32 * 1024 * 1024,   # fits v5e scoped limit / v7x physical
        ),
    )(x_p, m_p, params["conv1_w"], params["conv1_b"], slots_p,
      params["wq"], params["wk"], params["wv"])

    # Strip the K / T padding (cheap XLA slice in the wrapper).
    return attn[:, :K, :T], out[:, :K, :T]


# ---------------------------------------------------------------------------
# Parameter init (deterministic, synthetic) + jitted forward
# ---------------------------------------------------------------------------
def init_params(key):
    ks = jax.random.split(key, 6)
    return {
        "conv1_w": jax.random.normal(ks[0], (C_OUT, C_IN), jnp.float32) * (1.0 / jnp.sqrt(C_IN)),
        "conv1_b": jax.random.normal(ks[1], (C_OUT, 1), jnp.float32) * 0.01,
        "slots":   jax.random.normal(ks[2], (NUM_CLASSES, C_OUT), jnp.float32) * (1.0 / jnp.sqrt(C_OUT)),
        "wq":      jax.random.normal(ks[3], (C_OUT, C_OUT), jnp.float32) * (1.0 / jnp.sqrt(C_OUT)),
        "wk":      jax.random.normal(ks[4], (C_OUT, C_OUT), jnp.float32) * (1.0 / jnp.sqrt(C_OUT)),
        "wv":      jax.random.normal(ks[5], (C_OUT, C_OUT), jnp.float32) * (1.0 / jnp.sqrt(C_OUT)),
    }


@jax.jit
def i3d_forward(x, mask, params):
    return i3d_forward_fused(x, mask, params)


if __name__ == "__main__":
    key = jax.random.PRNGKey(0)
    k_x, k_p = jax.random.split(key)

    B, T = 2, 64
    x = jax.random.normal(k_x, (B, C_IN, T), jnp.float32)
    lengths = jnp.array([T, T // 2], dtype=jnp.int32)
    mask = (jnp.arange(T)[None, None, :] < lengths[:, None, None]).astype(jnp.float32)  # (B,1,T)

    params = init_params(k_p)

    attn, out = i3d_forward(x, mask, params)
    jax.block_until_ready((attn, out))

    assert attn.shape == (B, NUM_CLASSES, T)
    assert out.shape == (B, NUM_CLASSES, T)
    assert bool(jnp.all(jnp.isfinite(attn)))
    assert bool(jnp.all(jnp.isfinite(out)))
    # padded frames must be zeroed by the fused final mask multiply
    assert float(jnp.abs(out[1, :, T // 2:]).max()) == 0.0
    assert float(jnp.abs(attn[1, :, T // 2:]).max()) == 0.0

    print("KERNEL_OK")
</pallas_src>

<mosaic_0001>
module attributes {stable_mosaic.version = 11 : i64} {
  func.func @_i3d_fused_kernel(%arg0: i32, %arg1: memref<1x2048x128xf32, #tpu.memory_space<vmem>>, %arg2: memref<1x1x128xf32, #tpu.memory_space<vmem>>, %arg3: memref<512x2048xf32, #tpu.memory_space<vmem>>, %arg4: memref<512x1xf32, #tpu.memory_space<vmem>>, %arg5: memref<16x512xf32, #tpu.memory_space<vmem>>, %arg6: memref<512x512xf32, #tpu.memory_space<vmem>>, %arg7: memref<512x512xf32, #tpu.memory_space<vmem>>, %arg8: memref<512x512xf32, #tpu.memory_space<vmem>>, %arg9: memref<1x16x128xf32, #tpu.memory_space<vmem>>, %arg10: memref<1x16x128xf32, #tpu.memory_space<vmem>>) attributes {dimension_semantics = [#tpu.dimension_semantics<parallel>], iteration_bounds = array<i64: 2>, scalar_prefetch = 0 : i64, scratch_operands = 0 : i64, tpu.core_type = #tpu.core_type<tc>, window_params = [{transform_indices = @transform_0, window_bounds = array<i64: 1, 2048, 128>}, {transform_indices = @transform_1, window_bounds = array<i64: 1, 1, 128>}, {pipeline_mode = #tpu.pipeline_mode<synchronous>, transform_indices = @transform_2, window_bounds = array<i64: 512, 2048>}, {pipeline_mode = #tpu.pipeline_mode<synchronous>, transform_indices = @transform_3, window_bounds = array<i64: 512, 1>}, {pipeline_mode = #tpu.pipeline_mode<synchronous>, transform_indices = @transform_4, window_bounds = array<i64: 16, 512>}, {pipeline_mode = #tpu.pipeline_mode<synchronous>, transform_indices = @transform_5, window_bounds = array<i64: 512, 512>}, {pipeline_mode = #tpu.pipeline_mode<synchronous>, transform_indices = @transform_6, window_bounds = array<i64: 512, 512>}, {pipeline_mode = #tpu.pipeline_mode<synchronous>, transform_indices = @transform_7, window_bounds = array<i64: 512, 512>}, {transform_indices = @transform_8, window_bounds = array<i64: 1, 16, 128>}, {transform_indices = @transform_9, window_bounds = array<i64: 1, 16, 128>}]} {
    %c0 = arith.constant 0 : index
    %c0_0 = arith.constant 0 : index
    %c0_1 = arith.constant 0 : index
    %0 = vector.load %arg1[%c0, %c0_0, %c0_1] : memref<1x2048x128xf32, #tpu.memory_space<vmem>>, vector<1x2048x128xf32>
    %1 = vector.shape_cast %0 : vector<1x2048x128xf32> to vector<2048x128xf32>
    %c0_2 = arith.constant 0 : index
    %c0_3 = arith.constant 0 : index
    %c0_4 = arith.constant 0 : index
    %2 = vector.load %arg2[%c0_2, %c0_3, %c0_4] : memref<1x1x128xf32, #tpu.memory_space<vmem>>, vector<1x1x128xf32>
    %3 = vector.shape_cast %2 : vector<1x1x128xf32> to vector<1x128xf32>
    %c0_5 = arith.constant 0 : index
    %c0_6 = arith.constant 0 : index
    %4 = vector.load %arg3[%c0_5, %c0_6] : memref<512x2048xf32, #tpu.memory_space<vmem>>, vector<512x2048xf32>
    %cst = arith.constant dense<0.000000e+00> : vector<512x128xf32>
    %5 = tpu.matmul %4, %1, %cst {dimension_numbers = #tpu.dot_dimension_numbers<[1], [0], [0], [1], [0, 0, 1, 1], [], []>} : vector<512x2048xf32>, vector<2048x128xf32>, vector<512x128xf32> -> vector<512x128xf32>
    %c0_7 = arith.constant 0 : index
    %c0_8 = arith.constant 0 : index
    %6 = vector.load %arg4[%c0_7, %c0_8] : memref<512x1xf32, #tpu.memory_space<vmem>>, vector<512x1xf32>
    %7 = vector.broadcast %6 : vector<512x1xf32> to vector<512x128xf32>
    %8 = arith.addf %5, %7 : vector<512x128xf32>
    %9 = vector.broadcast %3 : vector<1x128xf32> to vector<512x128xf32>
    %10 = arith.mulf %8, %9 : vector<512x128xf32>
    %cst_9 = arith.constant 0.000000e+00 : f32
    %11 = vector.broadcast %cst_9 : f32 to vector<512x128xf32>
    %12 = arith.maximumf %10, %11 : vector<512x128xf32>
    %c0_10 = arith.constant 0 : index
    %c0_11 = arith.constant 0 : index
    %13 = vector.load %arg7[%c0_10, %c0_11] : memref<512x512xf32, #tpu.memory_space<vmem>>, vector<512x512xf32>
    %cst_12 = arith.constant dense<0.000000e+00> : vector<512x128xf32>
    %14 = tpu.matmul %13, %12, %cst_12 {dimension_numbers = #tpu.dot_dimension_numbers<[1], [0], [0], [1], [0, 0, 1, 1], [], []>} : vector<512x512xf32>, vector<512x128xf32>, vector<512x128xf32> -> vector<512x128xf32>
    %c0_13 = arith.constant 0 : index
    %c0_14 = arith.constant 0 : index
    %15 = vector.load %arg8[%c0_13, %c0_14] : memref<512x512xf32, #tpu.memory_space<vmem>>, vector<512x512xf32>
    %cst_15 = arith.constant dense<0.000000e+00> : vector<512x128xf32>
    %16 = tpu.matmul %15, %12, %cst_15 {dimension_numbers = #tpu.dot_dimension_numbers<[1], [0], [0], [1], [0, 0, 1, 1], [], []>} : vector<512x512xf32>, vector<512x128xf32>, vector<512x128xf32> -> vector<512x128xf32>
    %c0_16 = arith.constant 0 : index
    %c0_17 = arith.constant 0 : index
    %17 = vector.load %arg5[%c0_16, %c0_17] : memref<16x512xf32, #tpu.memory_space<vmem>>, vector<16x512xf32>
    %c0_18 = arith.constant 0 : index
    %c0_19 = arith.constant 0 : index
    %18 = vector.load %arg6[%c0_18, %c0_19] : memref<512x512xf32, #tpu.memory_space<vmem>>, vector<512x512xf32>
    %cst_20 = arith.constant dense<0.000000e+00> : vector<16x512xf32>
    %19 = tpu.matmul %17, %18, %cst_20 {dimension_numbers = #tpu.dot_dimension_numbers<[1], [0], [0], [1], [0, 0, 1, 1], [], []>} : vector<16x512xf32>, vector<512x512xf32>, vector<16x512xf32> -> vector<16x512xf32>
    %cst_21 = arith.constant 5.120000e+02 : f32
    %20 = math.rsqrt %cst_21 : f32
    %cst_22 = arith.constant dense<0.000000e+00> : vector<16x128xf32>
    %21 = tpu.matmul %19, %14, %cst_22 {dimension_numbers = #tpu.dot_dimension_numbers<[1], [0], [0], [1], [0, 0, 1, 1], [], []>} : vector<16x512xf32>, vector<512x128xf32>, vector<16x128xf32> -> vector<16x128xf32>
    %22 = vector.broadcast %20 : f32 to vector<16x128xf32>
    %23 = arith.mulf %21, %22 : vector<16x128xf32>
    %24 = tpu.iota {dimensions = array<i32: 0>} : vector<16x128xi32>
    %c10_i32 = arith.constant 10 : i32
    %25 = vector.broadcast %c10_i32 : i32 to vector<16x128xi32>
    %26 = arith.cmpi slt, %24, %25 : vector<16x128xi32>
    %cst_23 = arith.constant 0.000000e+00 : f32
    %27 = vector.broadcast %cst_23 : f32 to vector<1x128xf32>
    %28 = arith.cmpf ogt, %3, %27 : vector<1x128xf32>
    %29 = vector.broadcast %28 : vector<1x128xi1> to vector<16x128xi1>
    %30 = arith.andi %26, %29 : vector<16x128xi1>
    %cst_24 = arith.constant -1.000000e+30 : f32
    %31 = vector.broadcast %cst_24 : f32 to vector<16x128xf32>
    %32 = arith.select %30, %23, %31 : vector<16x128xi1>, vector<16x128xf32>
    %cst_25 = arith.constant dense<0xFF800000> : vector<128xf32>
    %33 = vector.multi_reduction <maximumf>, %32, %cst_25 [0] : vector<16x128xf32> to vector<128xf32>
    %34 = vector.shape_cast %33 : vector<128xf32> to vector<1x128xf32>
    %35 = vector.broadcast %34 : vector<1x128xf32> to vector<16x128xf32>
    %36 = arith.subf %32, %35 : vector<16x128xf32>
    %37 = math.exp %36 : vector<16x128xf32>
    %cst_26 = arith.constant dense<0.000000e+00> : vector<128xf32>
    %38 = vector.multi_reduction <add>, %37, %cst_26 [0] : vector<16x128xf32> to vector<128xf32>
    %39 = vector.shape_cast %38 : vector<128xf32> to vector<1x128xf32>
    %40 = tpu.reciprocal %39 {approx = true} : vector<1x128xf32> -> vector<1x128xf32>
    %41 = vector.broadcast %40 : vector<1x128xf32> to vector<16x128xf32>
    %42 = arith.mulf %37, %41 : vector<16x128xf32>
    %43 = vector.broadcast %3 : vector<1x128xf32> to vector<16x128xf32>
    %44 = arith.mulf %42, %43 : vector<16x128xf32>
    %c0_27 = arith.constant 0 : index
    %c0_28 = arith.constant 0 : index
    %c0_29 = arith.constant 0 : index
    %45 = vector.load %arg9[%c0_27, %c0_28, %c0_29] : memref<1x16x128xf32, #tpu.memory_space<vmem>>, vector<1x16x128xf32>
    %46 = vector.shape_cast %45 : vector<1x16x128xf32> to vector<16x128xf32>
    %47 = vector.shape_cast %44 : vector<16x128xf32> to vector<1x16x128xf32>
    tpu.vector_store %arg9[%c0_27, %c0_28, %c0_29], %47 {strides = array<i32>} : memref<1x16x128xf32, #tpu.memory_space<vmem>>, vector<1x16x128xf32>,
    %cst_30 = arith.constant dense<0.000000e+00> : vector<16xf32>
    %48 = vector.multi_reduction <add>, %44, %cst_30 [1] : vector<16x128xf32> to vector<16xf32>
    %49 = vector.shape_cast %48 : vector<16xf32> to vector<16x1xf32>
    %cst_31 = arith.constant 9.99999993E-9 : f32
    %50 = vector.broadcast %cst_31 : f32 to vector<16x1xf32>
    %51 = arith.addf %49, %50 : vector<16x1xf32>
    %52 = tpu.reciprocal %51 {approx = true} : vector<16x1xf32> -> vector<16x1xf32>
    %53 = vector.broadcast %52 : vector<16x1xf32> to vector<16x128xf32>
    %54 = arith.mulf %44, %53 : vector<16x128xf32>
    %cst_32 = arith.constant dense<0.000000e+00> : vector<16x512xf32>
    %55 = tpu.matmul %54, %16, %cst_32 {dimension_numbers = #tpu.dot_dimension_numbers<[1], [1], [0], [0], [0, 0, 1, 0], [], []>} : vector<16x128xf32>, vector<512x128xf32>, vector<16x512xf32> -> vector<16x512xf32>
    %cst_33 = arith.constant dense<0.000000e+00> : vector<16x128xf32>
    %56 = tpu.matmul %55, %14, %cst_33 {dimension_numbers = #tpu.dot_dimension_numbers<[1], [0], [0], [1], [0, 0, 1, 1], [], []>} : vector<16x512xf32>, vector<512x128xf32>, vector<16x128xf32> -> vector<16x128xf32>
    %57 = vector.broadcast %3 : vector<1x128xf32> to vector<16x128xf32>
    %58 = arith.mulf %56, %57 : vector<16x128xf32>
    %c0_34 = arith.constant 0 : index
    %c0_35 = arith.constant 0 : index
    %c0_36 = arith.constant 0 : index
    %59 = vector.load %arg10[%c0_34, %c0_35, %c0_36] : memref<1x16x128xf32, #tpu.memory_space<vmem>>, vector<1x16x128xf32>
    %60 = vector.shape_cast %59 : vector<1x16x128xf32> to vector<16x128xf32>
    %61 = vector.shape_cast %58 : vector<16x128xf32> to vector<1x16x128xf32>
    tpu.vector_store %arg10[%c0_34, %c0_35, %c0_36], %61 {strides = array<i32>} : memref<1x16x128xf32, #tpu.memory_space<vmem>>, vector<1x16x128xf32>,
    return
  }
  func.func @transform_0(%arg0: i32) -> (i32, i32, i32) {
    %c0_i32 = arith.constant 0 : i32
    %c0_i32_0 = arith.constant 0 : i32
    %c0_i32_1 = arith.constant 0 : i32
    return %arg0, %c0_i32, %c0_i32_0 : i32, i32, i32
  }
  func.func @transform_1(%arg0: i32) -> (i32, i32, i32) {
    %c0_i32 = arith.constant 0 : i32
    %c0_i32_0 = arith.constant 0 : i32
    %c0_i32_1 = arith.constant 0 : i32
    return %arg0, %c0_i32, %c0_i32_0 : i32, i32, i32
  }
  func.func @transform_2(%arg0: i32) -> (i32, i32) {
    %c0_i32 = arith.constant 0 : i32
    %c0_i32_0 = arith.constant 0 : i32
    %c0_i32_1 = arith.constant 0 : i32
    return %c0_i32, %c0_i32_0 : i32, i32
  }
  func.func @transform_3(%arg0: i32) -> (i32, i32) {
    %c0_i32 = arith.constant 0 : i32
    %c0_i32_0 = arith.constant 0 : i32
    %c0_i32_1 = arith.constant 0 : i32
    return %c0_i32, %c0_i32_0 : i32, i32
  }
  func.func @transform_4(%arg0: i32) -> (i32, i32) {
    %c0_i32 = arith.constant 0 : i32
    %c0_i32_0 = arith.constant 0 : i32
    %c0_i32_1 = arith.constant 0 : i32
    return %c0_i32, %c0_i32_0 : i32, i32
  }
  func.func @transform_5(%arg0: i32) -> (i32, i32) {
    %c0_i32 = arith.constant 0 : i32
    %c0_i32_0 = arith.constant 0 : i32
    %c0_i32_1 = arith.constant 0 : i32
    return %c0_i32, %c0_i32_0 : i32, i32
  }
  func.func @transform_6(%arg0: i32) -> (i32, i32) {
    %c0_i32 = arith.constant 0 : i32
    %c0_i32_0 = arith.constant 0 : i32
    %c0_i32_1 = arith.constant 0 : i32
    return %c0_i32, %c0_i32_0 : i32, i32
  }
  func.func @transform_7(%arg0: i32) -> (i32, i32) {
    %c0_i32 = arith.constant 0 : i32
    %c0_i32_0 = arith.constant 0 : i32
    %c0_i32_1 = arith.constant 0 : i32
    return %c0_i32, %c0_i32_0 : i32, i32
  }
  func.func @transform_8(%arg0: i32) -> (i32, i32, i32) {
    %c0_i32 = arith.constant 0 : i32
    %c0_i32_0 = arith.constant 0 : i32
    %c0_i32_1 = arith.constant 0 : i32
    return %arg0, %c0_i32, %c0_i32_0 : i32, i32, i32
  }
  func.func @transform_9(%arg0: i32) -> (i32, i32, i32) {
    %c0_i32 = arith.constant 0 : i32
    %c0_i32_0 = arith.constant 0 : i32
    %c0_i32_1 = arith.constant 0 : i32
    return %arg0, %c0_i32, %c0_i32_0 : i32, i32, i32
  }
}

</mosaic_0001>

<llo_original>
// kernel: i3d_forward.1
$region0: #{i3d_forward.1}
  #allocation0 [shape = 'u32[]', space=smem, size = 0x4, offset = 0x4, fixed_abs, tag = 'smem constant byte address 0x4 - core index']
  #allocation1 [shape = 'u32[144,128]{1,0:T(1,128)}', space=vmem, size = 0x12000, scoped, tag = 'internal scratch']
  %s0 = inlined_call_operand.vmem [shape: f32[2,2048,128], index: 0, kind: input, shape index: {}]
  %s1 = inlined_call_operand.vmem [shape: f32[2,1,128], index: 1, kind: input, shape index: {}]
  %s2 = inlined_call_operand.vmem [shape: f32[512,2048], index: 2, kind: input, shape index: {}]
  %s3 = inlined_call_operand.vmem [shape: f32[512,1], index: 3, kind: input, shape index: {}]
  %s4 = inlined_call_operand.vmem [shape: f32[16,512], index: 4, kind: input, shape index: {}]
  %s5 = inlined_call_operand.vmem [shape: f32[512,512], index: 5, kind: input, shape index: {}]
  %s6 = inlined_call_operand.vmem [shape: f32[512,512], index: 6, kind: input, shape index: {}]
  %s7 = inlined_call_operand.vmem [shape: f32[512,512], index: 7, kind: input, shape index: {}]
  %s8 = inlined_call_operand.vmem [shape: f32[2,16,128], index: 8, kind: output, shape index: {0}]
  %s9 = inlined_call_operand.vmem [shape: f32[2,16,128], index: 9, kind: output, shape index: {1}]
  %10 = xla_tuple %s8, %s9
  %s11 = sld [smem:[#allocation0]]
  $region73: #{i3d_forward.1} parent=0
    _
  %s13 = ssub.s32 1, %s11
  %s14 = scalar_select 0, %s13, %s11
  loop: start=0, step=1, limit=4
  $region2: #{i3d_forward.1} parent=0 // loop_pre_header
    _
  $region3: #{i3d_forward.1} parent=0 // loop_header
    %s16 = sphi 0, %s20
    %p17 = scmp.ge.s32.totalorder %s16, 4
    %s26 = sphi 0, %s28
    %s29 = sphi 0, %s26
    %s30 = sphi 0, %s29
    %s46 = sphi 0, %s30
    %s52 = sphi 0, %s54
    %s55 = sphi 0, %s52
    %s56 = sphi 0, %s55
    %s72 = sphi 0, %s56
    %s76 = sphi 0, %s76
    %s78 = sphi 0, %s76
    %s79 = sphi 0, %s78
    %s93 = sphi 0, %s79
    %s97 = sphi 0, %s97
    %s99 = sphi 0, %s97
    %s100 = sphi 0, %s99
    %s114 = sphi 0, %s100
    %s118 = sphi 0, %s118
    %s120 = sphi 0, %s118
    %s121 = sphi 0, %s120
    %s135 = sphi 0, %s121
    %s139 = sphi 0, %s139
    %s141 = sphi 0, %s139
    %s142 = sphi 0, %s141
    %s156 = sphi 0, %s142
    %s160 = sphi 0, %s160
    %s162 = sphi 0, %s160
    %s163 = sphi 0, %s162
    %s177 = sphi 0, %s163
    %s181 = sphi 0, %s181
    %s183 = sphi 0, %s181
    %s184 = sphi 0, %s183
    %s198 = sphi 0, %s184
    %s204 = sphi 0, %s206
    %s207 = sphi 0, %s204
    %s208 = sphi 0, %s207
    %s224 = sphi 0, %s208
    %s230 = sphi 0, %s232
    %s233 = sphi 0, %s230
    %s234 = sphi 0, %s233
    %s250 = sphi 0, %s234
  $region4: #{i3d_forward.1} parent=0 // loop_header_branch
    %19 = sbr.rel (%p17) target = $region8
  $region5: #{i3d_forward.1} parent=0 // loop_body
    %s21 = ssub.s32 %s16, 1
    %s22 = ssub.s32 %s16, 2
    %s23 = sadd.s32 %s16, 1
    %s24 = ssub.s32 %s16, %s23
    %p25 = scmp.eq.s32.totalorder %s24, 0
    %s27 = sadd.s32 %s26, 1
    %s28 = scalar_select %p25, %s26, %s27
    %p31 = pneg %p25
    %p32 = scmp.eq.s32.totalorder %s16, 1
    %p33 = por %p31, %p32
    %p34 = scmp.ne.s32.totalorder %s26, %s29
    %p35 = scmp.eq.s32.totalorder %s16, 0
    %p36 = por %p34, %p35
    %p37 = scmp.ne.s32.totalorder %s26, %s29
    %p38 = scmp.eq.s32.totalorder %s21, 1
    %p39 = por %p37, %p38
    %p40 = scmp.ne.s32.totalorder %s29, %s30
    %p41 = scmp.eq.s32.totalorder %s21, 0
    %p42 = por %p40, %p41
    %p43 = scmp.ne.s32.totalorder %s29, %s30
    %p44 = scmp.eq.s32.totalorder %s22, 1
    %p45 = por %p43, %p44
    %p47 = scmp.ne.s32.totalorder %s30, %s46
    %p48 = scmp.eq.s32.totalorder %s22, 0
    %p49 = por %p47, %p48
    %s50 = ssub.s32 %s16, %s23
    %p51 = scmp.eq.s32.totalorder %s50, 0
    %s53 = sadd.s32 %s52, 1
    %s54 = scalar_select %p51, %s52, %s53
    %p57 = pneg %p51
    %p58 = scmp.eq.s32.totalorder %s16, 1
    %p59 = por %p57, %p58
    %p60 = scmp.ne.s32.totalorder %s52, %s55
    %p61 = scmp.eq.s32.totalorder %s16, 0
    %p62 = por %p60, %p61
    %p63 = scmp.ne.s32.totalorder %s52, %s55
    %p64 = scmp.eq.s32.totalorder %s21, 1
    %p65 = por %p63, %p64
    %p66 = scmp.ne.s32.totalorder %s55, %s56
    %p67 = scmp.eq.s32.totalorder %s21, 0
    %p68 = por %p66, %p67
    %p69 = scmp.ne.s32.totalorder %s55, %s56
    %p70 = scmp.eq.s32.totalorder %s22, 1
    %p71 = por %p69, %p70
    %p73 = scmp.ne.s32.totalorder %s56, %s72
    %p74 = scmp.eq.s32.totalorder %s22, 0
    %p75 = por %p73, %p74
    %s77 = sadd.s32 %s76, 1
    %p80 = scmp.eq.s32.totalorder %s16, 1
    %p81 = scmp.ne.s32.totalorder %s76, %s78
    %p82 = scmp.eq.s32.totalorder %s16, 0
    %p83 = por %p81, %p82
    %p84 = scmp.ne.s32.totalorder %s76, %s78
    %p85 = scmp.eq.s32.totalorder %s21, 1
    %p86 = por %p84, %p85
    %p87 = scmp.ne.s32.totalorder %s78, %s79
    %p88 = scmp.eq.s32.totalorder %s21, 0
    %p89 = por %p87, %p88
    %p90 = scmp.ne.s32.totalorder %s78, %s79
    %p91 = scmp.eq.s32.totalorder %s22, 1
    %p92 = por %p90, %p91
    %p94 = scmp.ne.s32.totalorder %s79, %s93
    %p95 = scmp.eq.s32.totalorder %s22, 0
    %p96 = por %p94, %p95
    %s98 = sadd.s32 %s97, 1
    %p101 = scmp.eq.s32.totalorder %s16, 1
    %p102 = scmp.ne.s32.totalorder %s97, %s99
    %p103 = scmp.eq.s32.totalorder %s16, 0
    %p104 = por %p102, %p103
    %p105 = scmp.ne.s32.totalorder %s97, %s99
    %p106 = scmp.eq.s32.totalorder %s21, 1
    %p107 = por %p105, %p106
    %p108 = scmp.ne.s32.totalorder %s99, %s100
    %p109 = scmp.eq.s32.totalorder %s21, 0
    %p110 = por %p108, %p109
    %p111 = scmp.ne.s32.totalorder %s99, %s100
    %p112 = scmp.eq.s32.totalorder %s22, 1
    %p113 = por %p111, %p112
    %p115 = scmp.ne.s32.totalorder %s100, %s114
    %p116 = scmp.eq.s32.totalorder %s22, 0
    %p117 = por %p115, %p116
    %s119 = sadd.s32 %s118, 1
    %p122 = scmp.eq.s32.totalorder %s16, 1
    %p123 = scmp.ne.s32.totalorder %s118, %s120
    %p124 = scmp.eq.s32.totalorder %s16, 0
    %p125 = por %p123, %p124
    %p126 = scmp.ne.s32.totalorder %s118, %s120
    %p127 = scmp.eq.s32.totalorder %s21, 1
    %p128 = por %p126, %p127
    %p129 = scmp.ne.s32.totalorder %s120, %s121
    %p130 = scmp.eq.s32.totalorder %s21, 0
    %p131 = por %p129, %p130
    %p132 = scmp.ne.s32.totalorder %s120, %s121
    %p133 = scmp.eq.s32.totalorder %s22, 1
    %p134 = por %p132, %p133
    %p136 = scmp.ne.s32.totalorder %s121, %s135
    %p137 = scmp.eq.s32.totalorder %s22, 0
    %p138 = por %p136, %p137
    %s140 = sadd.s32 %s139, 1
    %p143 = scmp.eq.s32.totalorder %s16, 1
    %p144 = scmp.ne.s32.totalorder %s139, %s141
    %p145 = scmp.eq.s32.totalorder %s16, 0
    %p146 = por %p144, %p145
    %p147 = scmp.ne.s32.totalorder %s139, %s141
    %p148 = scmp.eq.s32.totalorder %s21, 1
    %p149 = por %p147, %p148
    %p150 = scmp.ne.s32.totalorder %s141, %s142
    %p151 = scmp.eq.s32.totalorder %s21, 0
    %p152 = por %p150, %p151
    %p153 = scmp.ne.s32.totalorder %s141, %s142
    %p154 = scmp.eq.s32.totalorder %s22, 1
    %p155 = por %p153, %p154
    %p157 = scmp.ne.s32.totalorder %s142, %s156
    %p158 = scmp.eq.s32.totalorder %s22, 0
    %p159 = por %p157, %p158
    %s161 = sadd.s32 %s160, 1
    %p164 = scmp.eq.s32.totalorder %s16, 1
    %p165 = scmp.ne.s32.totalorder %s160, %s162
    %p166 = scmp.eq.s32.totalorder %s16, 0
    %p167 = por %p165, %p166
    %p168 = scmp.ne.s32.totalorder %s160, %s162
    %p169 = scmp.eq.s32.totalorder %s21, 1
    %p170 = por %p168, %p169
    %p171 = scmp.ne.s32.totalorder %s162, %s163
    %p172 = scmp.eq.s32.totalorder %s21, 0
    %p173 = por %p171, %p172
    %p174 = scmp.ne.s32.totalorder %s162, %s163
    %p175 = scmp.eq.s32.totalorder %s22, 1
    %p176 = por %p174, %p175
    %p178 = scmp.ne.s32.totalorder %s163, %s177
    %p179 = scmp.eq.s32.totalorder %s22, 0
    %p180 = por %p178, %p179
    %s182 = sadd.s32 %s181, 1
    %p185 = scmp.eq.s32.totalorder %s16, 1
    %p186 = scmp.ne.s32.totalorder %s181, %s183
    %p187 = scmp.eq.s32.totalorder %s16, 0
    %p188 = por %p186, %p187
    %p189 = scmp.ne.s32.totalorder %s181, %s183
    %p190 = scmp.eq.s32.totalorder %s21, 1
    %p191 = por %p189, %p190
    %p192 = scmp.ne.s32.totalorder %s183, %s184
    %p193 = scmp.eq.s32.totalorder %s21, 0
    %p194 = por %p192, %p193
    %p195 = scmp.ne.s32.totalorder %s183, %s184
    %p196 = scmp.eq.s32.totalorder %s22, 1
    %p197 = por %p195, %p196
    %p199 = scmp.ne.s32.totalorder %s184, %s198
    %p200 = scmp.eq.s32.totalorder %s22, 0
    %p201 = por %p199, %p200
    %s202 = ssub.s32 %s16, %s23
    %p203 = scmp.eq.s32.totalorder %s202, 0
    %s205 = sadd.s32 %s204, 1
    %s206 = scalar_select %p203, %s204, %s205
    %p209 = pneg %p203
    %p210 = scmp.eq.s32.totalorder %s16, 1
    %p211 = por %p209, %p210
    %p212 = scmp.ne.s32.totalorder %s204, %s207
    %p213 = scmp.eq.s32.totalorder %s16, 0
    %p214 = por %p212, %p213
    %p215 = scmp.ne.s32.totalorder %s204, %s207
    %p216 = scmp.eq.s32.totalorder %s21, 1
    %p217 = por %p215, %p216
    %p218 = scmp.ne.s32.totalorder %s207, %s208
    %p219 = scmp.eq.s32.totalorder %s21, 0
    %p220 = por %p218, %p219
    %p221 = scmp.ne.s32.totalorder %s207, %s208
    %p222 = scmp.eq.s32.totalorder %s22, 1
    %p223 = por %p221, %p222
    %p225 = scmp.ne.s32.totalorder %s208, %s224
    %p226 = scmp.eq.s32.totalorder %s22, 0
    %p227 = por %p225, %p226
    %s228 = ssub.s32 %s16, %s23
    %p229 = scmp.eq.s32.totalorder %s228, 0
    %s231 = sadd.s32 %s230, 1
    %s232 = scalar_select %p229, %s230, %s231
    %p235 = pneg %p229
    %p236 = scmp.eq.s32.totalorder %s16, 1
    %p237 = por %p235, %p236
    %p238 = scmp.ne.s32.totalorder %s230, %s233
    %p239 = scmp.eq.s32.totalorder %s16, 0
    %p240 = por %p238, %p239
    %p241 = scmp.ne.s32.totalorder %s230, %s233
    %p242 = scmp.eq.s32.totalorder %s21, 1
    %p243 = por %p241, %p242
    %p244 = scmp.ne.s32.totalorder %s233, %s234
    %p245 = scmp.eq.s32.totalorder %s21, 0
    %p246 = por %p244, %p245
    %p247 = scmp.ne.s32.totalorder %s233, %s234
    %p248 = scmp.eq.s32.totalorder %s22, 1
    %p249 = por %p247, %p248
    %p251 = scmp.ne.s32.totalorder %s234, %s250
    %p252 = scmp.eq.s32.totalorder %s22, 0
    %p253 = por %p251, %p252
    %p254 = scmp.le.s32.totalorder 1, %s16
    %p255 = scmp.lt.s32.totalorder %s16, 3
    %p256 = pnand %p254, %p255
    %p257 = pneg %p256
    // Predicated region
    $region9: #{i3d_forward.1} parent=5 // pred_check
      _
    $region10: #{i3d_forward.1} parent=5 // pred_check_branch
      %259 = sbr.rel (%p256) target = $region12
    $region11: #{i3d_forward.1} parent=5 // pred_region
      %s260 = ssub.s32 %s16, 1
      // Predicated region
      $region13: #{i3d_forward.1} parent=11 // pred_check
        %p261 = pneg %p89
      $region14: #{i3d_forward.1} parent=11 // pred_check_branch
        %263 = sbr.rel (%p261) target = $region16
      $region15: #{i3d_forward.1} parent=11 // pred_region
        _
      $region16: #{i3d_forward.1} parent=11 // pred_fallthru
        _
      // Predicated region
      $region17: #{i3d_forward.1} parent=11 // pred_check
        %p264 = pneg %p110
      $region18: #{i3d_forward.1} parent=11 // pred_check_branch
        %266 = sbr.rel (%p264) target = $region20
      $region19: #{i3d_forward.1} parent=11 // pred_region
        _
      $region20: #{i3d_forward.1} parent=11 // pred_fallthru
        _
      // Predicated region
      $region21: #{i3d_forward.1} parent=11 // pred_check
        %p267 = pneg %p131
      $region22: #{i3d_forward.1} parent=11 // pred_check_branch
        %269 = sbr.rel (%p267) target = $region24
      $region23: #{i3d_forward.1} parent=11 // pred_region
        _
      $region24: #{i3d_forward.1} parent=11 // pred_fallthru
        _
      // Predicated region
      $region25: #{i3d_forward.1} parent=11 // pred_check
        %p270 = pneg %p152
      $region26: #{i3d_forward.1} parent=11 // pred_check_branch
        %272 = sbr.rel (%p270) target = $region28
      $region27: #{i3d_forward.1} parent=11 // pred_region
        _
      $region28: #{i3d_forward.1} parent=11 // pred_fallthru
        _
      // Predicated region
      $region29: #{i3d_forward.1} parent=11 // pred_check
        %p273 = pneg %p173
      $region30: #{i3d_forward.1} parent=11 // pred_check_branch
        %275 = sbr.rel (%p273) target = $region32
      $region31: #{i3d_forward.1} parent=11 // pred_region
        _
      $region32: #{i3d_forward.1} parent=11 // pred_fallthru
        _
      // Predicated region
      $region33: #{i3d_forward.1} parent=11 // pred_check
        %p276 = pneg %p194
      $region34: #{i3d_forward.1} parent=11 // pred_check_branch
        %278 = sbr.rel (%p276) target = $region36
      $region35: #{i3d_forward.1} parent=11 // pred_region
        _
      $region36: #{i3d_forward.1} parent=11 // pred_fallthru
        _
    $region12: #{i3d_forward.1} parent=5 // pred_fallthru
      _
    %p279 = scmp.lt.s32.totalorder %s16, 2
    // Predicated region
    $region37: #{i3d_forward.1} parent=5 // pred_check
      %p280 = pneg %p279
    $region38: #{i3d_forward.1} parent=5 // pred_check_branch
      %282 = sbr.rel (%p280) target = $region40
    $region39: #{i3d_forward.1} parent=5 // pred_region
      // Predicated region
      $region41: #{i3d_forward.1} parent=39 // pred_check
        %p283 = pneg %p36
      $region42: #{i3d_forward.1} parent=39 // pred_check_branch
        %285 = sbr.rel (%p283) target = $region44
      $region43: #{i3d_forward.1} parent=39 // pred_region
        %p286 = scmp.lt.s32.totalorder %s16, 1
        %s287 = scalar_select %p286, %s16, 1
        %s288 = smul.addr %s287, 256
        %s289 = smul.addr %s288, 8
        %s290 = scalar_lea.vmem %s0, %s289
      $region44: #{i3d_forward.1} parent=39 // pred_fallthru
        _
      // Predicated region
      $region45: #{i3d_forward.1} parent=39 // pred_check
        %p291 = pneg %p62
      $region46: #{i3d_forward.1} parent=39 // pred_check_branch
        %293 = sbr.rel (%p291) target = $region48
      $region47: #{i3d_forward.1} parent=39 // pred_region
        %p294 = scmp.lt.s32.totalorder %s16, 1
        %s295 = scalar_select %p294, %s16, 1
        %s296 = scalar_lea.vmem %s1, %s295
      $region48: #{i3d_forward.1} parent=39 // pred_fallthru
        _
    $region40: #{i3d_forward.1} parent=5 // pred_fallthru
      _
    %p297 = scmp.le.s32.totalorder 1, %s16
    %p298 = scmp.lt.s32.totalorder %s16, 3
    %p299 = pnand %p297, %p298
    %p300 = pneg %p299
    // Predicated region
    $region49: #{i3d_forward.1} parent=5 // pred_check
      _
    $region50: #{i3d_forward.1} parent=5 // pred_check_branch
      %302 = sbr.rel (%p299) target = $region52
    $region51: #{i3d_forward.1} parent=5 // pred_region
      %s303 = ssub.s32 %s16, 1
      %p304 = scmp.lt.s32.totalorder %s21, 1
      %s305 = scalar_select %p304, %s21, 1
      %s306 = smul.addr %s305, 256
      %s307 = smul.addr %s306, 8
      %s308 = scalar_lea.vmem %s0, %s307
      %p309 = pneg %p42
      %p310 = pneg %p39
      %p311 = scmp.lt.s32.totalorder %s21, 1
      %s312 = scalar_select %p311, %s21, 1
      %s313 = scalar_lea.vmem %s1, %s312
      %p314 = pneg %p68
      %p315 = pneg %p65
      %p316 = pneg %p89
      %p317 = pneg %p86
      %p318 = pneg %p110
      %p319 = pneg %p107
      %p320 = pneg %p131
      %p321 = pneg %p128
      %p322 = pneg %p152
      %p323 = pneg %p149
      %p324 = pneg %p173
      %p325 = pneg %p170
      %p326 = pneg %p194
      %p327 = pneg %p191
      %p328 = pneg %p220
      %p329 = pneg %p217
      %p330 = scmp.lt.s32.totalorder %s21, 1
      %s331 = scalar_select %p330, %s21, 1
      %s332 = smul.addr %s331, 2
      %s333 = smul.addr %s332, 8
      %s334 = scalar_lea.vmem %s8, %s333
      %p335 = pneg %p246
      %p336 = pneg %p243
      %p337 = scmp.lt.s32.totalorder %s21, 1
      %s338 = scalar_select %p337, %s21, 1
      %s339 = smul.addr %s338, 2
      %s340 = smul.addr %s339, 8
      %s341 = scalar_lea.vmem %s9, %s340
      %p342 = scmp.lt.s32.totalorder %s21, 1
      %s343 = scalar_select %p342, %s21, 1
      %s344 = smul.addr %s343, 256
      %s345 = smul.addr %s344, 8
      %s346 = scalar_lea.vmem %s0, %s345
      %p347 = scmp.lt.s32.totalorder %s21, 1
      %s348 = scalar_select %p347, %s21, 1
      %s349 = scalar_lea.vmem %s1, %s348
      %p350 = scmp.lt.s32.totalorder %s21, 1
      %s351 = scalar_select %p350, %s21, 1
      %s352 = smul.addr %s351, 2
      %s353 = smul.addr %s352, 8
      %s354 = scalar_lea.vmem %s8, %s353
      %p355 = scmp.lt.s32.totalorder %s21, 1
      %s356 = scalar_select %p355, %s21, 1
      %s357 = smul.addr %s356, 2
      %s358 = smul.addr %s357, 8
      %s359 = scalar_lea.vmem %s9, %s358
      %v360 = vld [vmem:[%s346] sm:$0xff]
      %v361 = vld [vmem:[%s346 + $0x8] sm:$0xff]
      %v362 = vld [vmem:[%s346 + $0x10] sm:$0xff]
      %v363 = vld [vmem:[%s346 + $0x18] sm:$0xff]
      %v364 = vld [vmem:[%s346 + $0x20] sm:$0xff]
      %v365 = vld [vmem:[%s346 + $0x28] sm:$0xff]
      %v366 = vld [vmem:[%s346 + $0x30] sm:$0xff]
      %v367 = vld [vmem:[%s346 + $0x38] sm:$0xff]
      %v368 = vld [vmem:[%s346 + $0x40] sm:$0xff]
      %v369 = vld [vmem:[%s346 + $0x48] sm:$0xff]
      %v370 = vld [vmem:[%s346 + $0x50] sm:$0xff]
      %v371 = vld [vmem:[%s346 + $0x58] sm:$0xff]
      %v372 = vld [vmem:[%s346 + $0x60] sm:$0xff]
      %v373 = vld [vmem:[%s346 + $0x68] sm:$0xff]
      %v374 = vld [vmem:[%s346 + $0x70] sm:$0xff]
      %v375 = vld [vmem:[%s346 + $0x78] sm:$0xff]
      %v376 = vld [vmem:[%s346 + $0x80] sm:$0xff]
      %v377 = vld [vmem:[%s346 + $0x88] sm:$0xff]
      %v378 = vld [vmem:[%s346 + $0x90] sm:$0xff]
      %v379 = vld [vmem:[%s346 + $0x98] sm:$0xff]
      %v380 = vld [vmem:[%s346 + $0xa0] sm:$0xff]
      %v381 = vld [vmem:[%s346 + $0xa8] sm:$0xff]
      %v382 = vld [vmem:[%s346 + $0xb0] sm:$0xff]
      %v383 = vld [vmem:[%s346 + $0xb8] sm:$0xff]
      %v384 = vld [vmem:[%s346 + $0xc0] sm:$0xff]
      %v385 = vld [vmem:[%s346 + $0xc8] sm:$0xff]
      %v386 = vld [vmem:[%s346 + $0xd0] sm:$0xff]
      %v387 = vld [vmem:[%s346 + $0xd8] sm:$0xff]
      %v388 = vld [vmem:[%s346 + $0xe0] sm:$0xff]
      %v389 = vld [vmem:[%s346 + $0xe8] sm:$0xff]
      %v390 = vld [vmem:[%s346 + $0xf0] sm:$0xff]
      %v391 = vld [vmem:[%s346 + $0xf8] sm:$0xff]
      %v392 = vld [vmem:[%s346 + $0x100] sm:$0xff]
      %v393 = vld [vmem:[%s346 + $0x108] sm:$0xff]
      %v394 = vld [vmem:[%s346 + $0x110] sm:$0xff]
      %v395 = vld [vmem:[%s346 + $0x118] sm:$0xff]
      %v396 = vld [vmem:[%s346 + $0x120] sm:$0xff]
      %v397 = vld [vmem:[%s346 + $0x128] sm:$0xff]
      %v398 = vld [vmem:[%s346 + $0x130] sm:$0xff]
      %v399 = vld [vmem:[%s346 + $0x138] sm:$0xff]
      %v400 = vld [vmem:[%s346 + $0x140] sm:$0xff]
      %v401 = vld [vmem:[%s346 + $0x148] sm:$0xff]
      %v402 = vld [vmem:[%s346 + $0x150] sm:$0xff]
      %v403 = vld [vmem:[%s346 + $0x158] sm:$0xff]
      %v404 = vld [vmem:[%s346 + $0x160] sm:$0xff]
      %v405 = vld [vmem:[%s346 + $0x168] sm:$0xff]
      %v406 = vld [vmem:[%s346 + $0x170] sm:$0xff]
      %v407 = vld [vmem:[%s346 + $0x178] sm:$0xff]
      %v408 = vld [vmem:[%s346 + $0x180] sm:$0xff]
      %v409 = vld [vmem:[%s346 + $0x188] sm:$0xff]
      %v410 = vld [vmem:[%s346 + $0x190] sm:$0xff]
      %v411 = vld [vmem:[%s346 + $0x198] sm:$0xff]
      %v412 = vld [vmem:[%s346 + $0x1a0] sm:$0xff]
      %v413 = vld [vmem:[%s346 + $0x1a8] sm:$0xff]
      %v414 = vld [vmem:[%s346 + $0x1b0] sm:$0xff]
      %v415 = vld [vmem:[%s346 + $0x1b8] sm:$0xff]
      %v416 = vld [vmem:[%s346 + $0x1c0] sm:$0xff]
      %v417 = vld [vmem:[%s346 + $0x1c8] sm:$0xff]
      %v418 = vld [vmem:[%s346 + $0x1d0] sm:$0xff]
      %v419 = vld [vmem:[%s346 + $0x1d8] sm:$0xff]
      %v420 = vld [vmem:[%s346 + $0x1e0] sm:$0xff]
      %v421 = vld [vmem:[%s346 + $0x1e8] sm:$0xff]
      %v422 = vld [vmem:[%s346 + $0x1f0] sm:$0xff]
      %v423 = vld [vmem:[%s346 + $0x1f8] sm:$0xff]
      %v424 = vld [vmem:[%s346 + $0x200] sm:$0xff]
      %v425 = vld [vmem:[%s346 + $0x208] sm:$0xff]
      %v426 = vld [vmem:[%s346 + $0x210] sm:$0xff]
      %v427 = vld [vmem:[%s346 + $0x218] sm:$0xff]
      %v428 = vld [vmem:[%s346 + $0x220] sm:$0xff]
      %v429 = vld [vmem:[%s346 + $0x228] sm:$0xff]
      %v430 = vld [vmem:[%s346 + $0x230] sm:$0xff]
      %v431 = vld [vmem:[%s346 + $0x238] sm:$0xff]
      %v432 = vld [vmem:[%s346 + $0x240] sm:$0xff]
      %v433 = vld [vmem:[%s346 + $0x248] sm:$0xff]
      %v434 = vld [vmem:[%s346 + $0x250] sm:$0xff]
      %v435 = vld [vmem:[%s346 + $0x258] sm:$0xff]
      %v436 = vld [vmem:[%s346 + $0x260] sm:$0xff]
      %v437 = vld [vmem:[%s346 + $0x268] sm:$0xff]
      %v438 = vld [vmem:[%s346 + $0x270] sm:$0xff]
      %v439 = vld [vmem:[%s346 + $0x278] sm:$0xff]
      %v440 = vld [vmem:[%s346 + $0x280] sm:$0xff]
      %v441 = vld [vmem:[%s346 + $0x288] sm:$0xff]
      %v442 = vld [vmem:[%s346 + $0x290] sm:$0xff]
      %v443 = vld [vmem:[%s346 + $0x298] sm:$0xff]
      %v444 = vld [vmem:[%s346 + $0x2a0] sm:$0xff]
      %v445 = vld [vmem:[%s346 + $0x2a8] sm:$0xff]
      %v446 = vld [vmem:[%s346 + $0x2b0] sm:$0xff]
      %v447 = vld [vmem:[%s346 + $0x2b8] sm:$0xff]
      %v448 = vld [vmem:[%s346 + $0x2c0] sm:$0xff]
      %v449 = vld [vmem:[%s346 + $0x2c8] sm:$0xff]
      %v450 = vld [vmem:[%s346 + $0x2d0] sm:$0xff]
      %v451 = vld [vmem:[%s346 + $0x2d8] sm:$0xff]
      %v452 = vld [vmem:[%s346 + $0x2e0] sm:$0xff]
      %v453 = vld [vmem:[%s346 + $0x2e8] sm:$0xff]
      %v454 = vld [vmem:[%s346 + $0x2f0] sm:$0xff]
      %v455 = vld [vmem:[%s346 + $0x2f8] sm:$0xff]
      %v456 = vld [vmem:[%s346 + $0x300] sm:$0xff]
      %v457 = vld [vmem:[%s346 + $0x308] sm:$0xff]
      %v458 = vld [vmem:[%s346 + $0x310] sm:$0xff]
      %v459 = vld [vmem:[%s346 + $0x318] sm:$0xff]
      %v460 = vld [vmem:[%s346 + $0x320] sm:$0xff]
      %v461 = vld [vmem:[%s346 + $0x328] sm:$0xff]
      %v462 = vld [vmem:[%s346 + $0x330] sm:$0xff]
      %v463 = vld [vmem:[%s346 + $0x338] sm:$0xff]
      %v464 = vld [vmem:[%s346 + $0x340] sm:$0xff]
      %v465 = vld [vmem:[%s346 + $0x348] sm:$0xff]
      %v466 = vld [vmem:[%s346 + $0x350] sm:$0xff]
      %v467 = vld [vmem:[%s346 + $0x358] sm:$0xff]
      %v468 = vld [vmem:[%s346 + $0x360] sm:$0xff]
      %v469 = vld [vmem:[%s346 + $0x368] sm:$0xff]
      %v470 = vld [vmem:[%s346 + $0x370] sm:$0xff]
      %v471 = vld [vmem:[%s346 + $0x378] sm:$0xff]
      %v472 = vld [vmem:[%s346 + $0x380] sm:$0xff]
      %v473 = vld [vmem:[%s346 + $0x388] sm:$0xff]
      %v474 = vld [vmem:[%s346 + $0x390] sm:$0xff]
      %v475 = vld [vmem:[%s346 + $0x398] sm:$0xff]
      %v476 = vld [vmem:[%s346 + $0x3a0] sm:$0xff]
      %v477 = vld [vmem:[%s346 + $0x3a8] sm:$0xff]
      %v478 = vld [vmem:[%s346 + $0x3b0] sm:$0xff]
      %v479 = vld [vmem:[%s346 + $0x3b8] sm:$0xff]
      %v480 = vld [vmem:[%s346 + $0x3c0] sm:$0xff]
      %v481 = vld [vmem:[%s346 + $0x3c8] sm:$0xff]
      %v482 = vld [vmem:[%s346 + $0x3d0] sm:$0xff]
      %v483 = vld [vmem:[%s346 + $0x3d8] sm:$0xff]
      %v484 = vld [vmem:[%s346 + $0x3e0] sm:$0xff]
      %v485 = vld [vmem:[%s346 + $0x3e8] sm:$0xff]
      %v486 = vld [vmem:[%s346 + $0x3f0] sm:$0xff]
      %v487 = vld [vmem:[%s346 + $0x3f8] sm:$0xff]
      %v488 = vld [vmem:[%s346 + $0x400] sm:$0xff]
      %v489 = vld [vmem:[%s346 + $0x408] sm:$0xff]
      %v490 = vld [vmem:[%s346 + $0x410] sm:$0xff]
      %v491 = vld [vmem:[%s346 + $0x418] sm:$0xff]
      %v492 = vld [vmem:[%s346 + $0x420] sm:$0xff]
      %v493 = vld [vmem:[%s346 + $0x428] sm:$0xff]
      %v494 = vld [vmem:[%s346 + $0x430] sm:$0xff]
      %v495 = vld [vmem:[%s346 + $0x438] sm:$0xff]
      %v496 = vld [vmem:[%s346 + $0x440] sm:$0xff]
      %v497 = vld [vmem:[%s346 + $0x448] sm:$0xff]
      %v498 = vld [vmem:[%s346 + $0x450] sm:$0xff]
      %v499 = vld [vmem:[%s346 + $0x458] sm:$0xff]
      %v500 = vld [vmem:[%s346 + $0x460] sm:$0xff]
      %v501 = vld [vmem:[%s346 + $0x468] sm:$0xff]
      %v502 = vld [vmem:[%s346 + $0x470] sm:$0xff]
      %v503 = vld [vmem:[%s346 + $0x478] sm:$0xff]
      %v504 = vld [vmem:[%s346 + $0x480] sm:$0xff]
      %v505 = vld [vmem:[%s346 + $0x488] sm:$0xff]
      %v506 = vld [vmem:[%s346 + $0x490] sm:$0xff]
      %v507 = vld [vmem:[%s346 + $0x498] sm:$0xff]
      %v508 = vld [vmem:[%s346 + $0x4a0] sm:$0xff]
      %v509 = vld [vmem:[%s346 + $0x4a8] sm:$0xff]
      %v510 = vld [vmem:[%s346 + $0x4b0] sm:$0xff]
      %v511 = vld [vmem:[%s346 + $0x4b8] sm:$0xff]
      %v512 = vld [vmem:[%s346 + $0x4c0] sm:$0xff]
      %v513 = vld [vmem:[%s346 + $0x4c8] sm:$0xff]
      %v514 = vld [vmem:[%s346 + $0x4d0] sm:$0xff]
      %v515 = vld [vmem:[%s346 + $0x4d8] sm:$0xff]
      %v516 = vld [vmem:[%s346 + $0x4e0] sm:$0xff]
      %v517 = vld [vmem:[%s346 + $0x4e8] sm:$0xff]
      %v518 = vld [vmem:[%s346 + $0x4f0] sm:$0xff]
      %v519 = vld [vmem:[%s346 + $0x4f8] sm:$0xff]
      %v520 = vld [vmem:[%s346 + $0x500] sm:$0xff]
      %v521 = vld [vmem:[%s346 + $0x508] sm:$0xff]
      %v522 = vld [vmem:[%s346 + $0x510] sm:$0xff]
      %v523 = vld [vmem:[%s346 + $0x518] sm:$0xff]
      %v524 = vld [vmem:[%s346 + $0x520] sm:$0xff]
      %v525 = vld [vmem:[%s346 + $0x528] sm:$0xff]
      %v526 = vld [vmem:[%s346 + $0x530] sm:$0xff]
      %v527 = vld [vmem:[%s346 + $0x538] sm:$0xff]
      %v528 = vld [vmem:[%s346 + $0x540] sm:$0xff]
      %v529 = vld [vmem:[%s346 + $0x548] sm:$0xff]
      %v530 = vld [vmem:[%s346 + $0x550] sm:$0xff]
      %v531 = vld [vmem:[%s346 + $0x558] sm:$0xff]
      %v532 = vld [vmem:[%s346 + $0x560] sm:$0xff]
      %v533 = vld [vmem:[%s346 + $0x568] sm:$0xff]
      %v534 = vld [vmem:[%s346 + $0x570] sm:$0xff]
      %v535 = vld [vmem:[%s346 + $0x578] sm:$0xff]
      %v536 = vld [vmem:[%s346 + $0x580] sm:$0xff]
      %v537 = vld [vmem:[%s346 + $0x588] sm:$0xff]
      %v538 = vld [vmem:[%s346 + $0x590] sm:$0xff]
      %v539 = vld [vmem:[%s346 + $0x598] sm:$0xff]
      %v540 = vld [vmem:[%s346 + $0x5a0] sm:$0xff]
      %v541 = vld [vmem:[%s346 + $0x5a8] sm:$0xff]
      %v542 = vld [vmem:[%s346 + $0x5b0] sm:$0xff]
      %v543 = vld [vmem:[%s346 + $0x5b8] sm:$0xff]
      %v544 = vld [vmem:[%s346 + $0x5c0] sm:$0xff]
      %v545 = vld [vmem:[%s346 + $0x5c8] sm:$0xff]
      %v546 = vld [vmem:[%s346 + $0x5d0] sm:$0xff]
      %v547 = vld [vmem:[%s346 + $0x5d8] sm:$0xff]
      %v548 = vld [vmem:[%s346 + $0x5e0] sm:$0xff]
      %v549 = vld [vmem:[%s346 + $0x5e8] sm:$0xff]
      %v550 = vld [vmem:[%s346 + $0x5f0] sm:$0xff]
      %v551 = vld [vmem:[%s346 + $0x5f8] sm:$0xff]
      %v552 = vld [vmem:[%s346 + $0x600] sm:$0xff]
      %v553 = vld [vmem:[%s346 + $0x608] sm:$0xff]
      %v554 = vld [vmem:[%s346 + $0x610] sm:$0xff]
      %v555 = vld [vmem:[%s346 + $0x618] sm:$0xff]
      %v556 = vld [vmem:[%s346 + $0x620] sm:$0xff]
      %v557 = vld [vmem:[%s346 + $0x628] sm:$0xff]
      %v558 = vld [vmem:[%s346 + $0x630] sm:$0xff]
      %v559 = vld [vmem:[%s346 + $0x638] sm:$0xff]
      %v560 = vld [vmem:[%s346 + $0x640] sm:$0xff]
      %v561 = vld [vmem:[%s346 + $0x648] sm:$0xff]
      %v562 = vld [vmem:[%s346 + $0x650] sm:$0xff]
      %v563 = vld [vmem:[%s346 + $0x658] sm:$0xff]
      %v564 = vld [vmem:[%s346 + $0x660] sm:$0xff]
      %v565 = vld [vmem:[%s346 + $0x668] sm:$0xff]
      %v566 = vld [vmem:[%s346 + $0x670] sm:$0xff]
      %v567 = vld [vmem:[%s346 + $0x678] sm:$0xff]
      %v568 = vld [vmem:[%s346 + $0x680] sm:$0xff]
      %v569 = vld [vmem:[%s346 + $0x688] sm:$0xff]
      %v570 = vld [vmem:[%s346 + $0x690] sm:$0xff]
      %v571 = vld [vmem:[%s346 + $0x698] sm:$0xff]
      %v572 = vld [vmem:[%s346 + $0x6a0] sm:$0xff]
      %v573 = vld [vmem:[%s346 + $0x6a8] sm:$0xff]
      %v574 = vld [vmem:[%s346 + $0x6b0] sm:$0xff]
      %v575 = vld [vmem:[%s346 + $0x6b8] sm:$0xff]
      %v576 = vld [vmem:[%s346 + $0x6c0] sm:$0xff]
      %v577 = vld [vmem:[%s346 + $0x6c8] sm:$0xff]
      %v578 = vld [vmem:[%s346 + $0x6d0] sm:$0xff]
      %v579 = vld [vmem:[%s346 + $0x6d8] sm:$0xff]
      %v580 = vld [vmem:[%s346 + $0x6e0] sm:$0xff]
      %v581 = vld [vmem:[%s346 + $0x6e8] sm:$0xff]
      %v582 = vld [vmem:[%s346 + $0x6f0] sm:$0xff]
      %v583 = vld [vmem:[%s346 + $0x6f8] sm:$0xff]
      %v584 = vld [vmem:[%s346 + $0x700] sm:$0xff]
      %v585 = vld [vmem:[%s346 + $0x708] sm:$0xff]
      %v586 = vld [vmem:[%s346 + $0x710] sm:$0xff]
      %v587 = vld [vmem:[%s346 + $0x718] sm:$0xff]
      %v588 = vld [vmem:[%s346 + $0x720] sm:$0xff]
      %v589 = vld [vmem:[%s346 + $0x728] sm:$0xff]
      %v590 = vld [vmem:[%s346 + $0x730] sm:$0xff]
      %v591 = vld [vmem:[%s346 + $0x738] sm:$0xff]
      %v592 = vld [vmem:[%s346 + $0x740] sm:$0xff]
      %v593 = vld [vmem:[%s346 + $0x748] sm:$0xff]
      %v594 = vld [vmem:[%s346 + $0x750] sm:$0xff]
      %v595 = vld [vmem:[%s346 + $0x758] sm:$0xff]
      %v596 = vld [vmem:[%s346 + $0x760] sm:$0xff]
      %v597 = vld [vmem:[%s346 + $0x768] sm:$0xff]
      %v598 = vld [vmem:[%s346 + $0x770] sm:$0xff]
      %v599 = vld [vmem:[%s346 + $0x778] sm:$0xff]
      %v600 = vld [vmem:[%s346 + $0x780] sm:$0xff]
      %v601 = vld [vmem:[%s346 + $0x788] sm:$0xff]
      %v602 = vld [vmem:[%s346 + $0x790] sm:$0xff]
      %v603 = vld [vmem:[%s346 + $0x798] sm:$0xff]
      %v604 = vld [vmem:[%s346 + $0x7a0] sm:$0xff]
      %v605 = vld [vmem:[%s346 + $0x7a8] sm:$0xff]
      %v606 = vld [vmem:[%s346 + $0x7b0] sm:$0xff]
      %v607 = vld [vmem:[%s346 + $0x7b8] sm:$0xff]
      %v608 = vld [vmem:[%s346 + $0x7c0] sm:$0xff]
      %v609 = vld [vmem:[%s346 + $0x7c8] sm:$0xff]
      %v610 = vld [vmem:[%s346 + $0x7d0] sm:$0xff]
      %v611 = vld [vmem:[%s346 + $0x7d8] sm:$0xff]
      %v612 = vld [vmem:[%s346 + $0x7e0] sm:$0xff]
      %v613 = vld [vmem:[%s346 + $0x7e8] sm:$0xff]
      %v614 = vld [vmem:[%s346 + $0x7f0] sm:$0xff]
      %v615 = vld [vmem:[%s346 + $0x7f8] sm:$0xff]
      %v616 = vld [vmem:[%s349] sm:$0x1]
      %v617 = vld [vmem:[%s2] sm:$0xff]
      %v618 = vld [vmem:[%s2 + $0x8] sm:$0xff]
      %v619 = vld [vmem:[%s2 + $0x10] sm:$0xff]
      %v620 = vld [vmem:[%s2 + $0x18] sm:$0xff]
      %v621 = vld [vmem:[%s2 + $0x20] sm:$0xff]
      %v622 = vld [vmem:[%s2 + $0x28] sm:$0xff]
      %v623 = vld [vmem:[%s2 + $0x30] sm:$0xff]
      %v624 = vld [vmem:[%s2 + $0x38] sm:$0xff]
      %v625 = vld [vmem:[%s2 + $0x40] sm:$0xff]
      %v626 = vld [vmem:[%s2 + $0x48] sm:$0xff]
      %v627 = vld [vmem:[%s2 + $0x50] sm:$0xff]
      %v628 = vld [vmem:[%s2 + $0x58] sm:$0xff]
      %v629 = vld [vmem:[%s2 + $0x60] sm:$0xff]
      %v630 = vld [vmem:[%s2 + $0x68] sm:$0xff]
      %v631 = vld [vmem:[%s2 + $0x70] sm:$0xff]
      %v632 = vld [vmem:[%s2 + $0x78] sm:$0xff]
      %v633 = vld [vmem:[%s2 + $0x80] sm:$0xff]
      %v634 = vld [vmem:[%s2 + $0x88] sm:$0xff]
      %v635 = vld [vmem:[%s2 + $0x90] sm:$0xff]
      %v636 = vld [vmem:[%s2 + $0x98] sm:$0xff]
      %v637 = vld [vmem:[%s2 + $0xa0] sm:$0xff]
      %v638 = vld [vmem:[%s2 + $0xa8] sm:$0xff]
      %v639 = vld [vmem:[%s2 + $0xb0] sm:$0xff]
      %v640 = vld [vmem:[%s2 + $0xb8] sm:$0xff]
      %v641 = vld [vmem:[%s2 + $0xc0] sm:$0xff]
      %v642 = vld [vmem:[%s2 + $0xc8] sm:$0xff]
      %v643 = vld [vmem:[%s2 + $0xd0] sm:$0xff]
      %v644 = vld [vmem:[%s2 + $0xd8] sm:$0xff]
      %v645 = vld [vmem:[%s2 + $0xe0] sm:$0xff]
      %v646 = vld [vmem:[%s2 + $0xe8] sm:$0xff]
      %v647 = vld [vmem:[%s2 + $0xf0] sm:$0xff]
      %v648 = vld [vmem:[%s2 + $0xf8] sm:$0xff]
      %v649 = vld [vmem:[%s2 + $0x100] sm:$0xff]
      %v650 = vld [vmem:[%s2 + $0x108] sm:$0xff]
      %v651 = vld [vmem:[%s2 + $0x110] sm:$0xff]
      %v652 = vld [vmem:[%s2 + $0x118] sm:$0xff]
      %v653 = vld [vmem:[%s2 + $0x120] sm:$0xff]
      %v654 = vld [vmem:[%s2 + $0x128] sm:$0xff]
      %v655 = vld [vmem:[%s2 + $0x130] sm:$0xff]
      %v656 = vld [vmem:[%s2 + $0x138] sm:$0xff]
      %v657 = vld [vmem:[%s2 + $0x140] sm:$0xff]
      %v658 = vld [vmem:[%s2 + $0x148] sm:$0xff]
      %v659 = vld [vmem:[%s2 + $0x150] sm:$0xff]
      %v660 = vld [vmem:[%s2 + $0x158] sm:$0xff]
      %v661 = vld [vmem:[%s2 + $0x160] sm:$0xff]
      %v662 = vld [vmem:[%s2 + $0x168] sm:$0xff]
      %v663 = vld [vmem:[%s2 + $0x170] sm:$0xff]
      %v664 = vld [vmem:[%s2 + $0x178] sm:$0xff]
      %v665 = vld [vmem:[%s2 + $0x180] sm:$0xff]
      %v666 = vld [vmem:[%s2 + $0x188] sm:$0xff]
      %v667 = vld [vmem:[%s2 + $0x190] sm:$0xff]
      %v668 = vld [vmem:[%s2 + $0x198] sm:$0xff]
      %v669 = vld [vmem:[%s2 + $0x1a0] sm:$0xff]
      %v670 = vld [vmem:[%s2 + $0x1a8] sm:$0xff]
      %v671 = vld [vmem:[%s2 + $0x1b0] sm:$0xff]
      %v672 = vld [vmem:[%s2 + $0x1b8] sm:$0xff]
      %v673 = vld [vmem:[%s2 + $0x1c0] sm:$0xff]
      %v674 = vld [vmem:[%s2 + $0x1c8] sm:$0xff]
      %v675 = vld [vmem:[%s2 + $0x1d0] sm:$0xff]
      %v676 = vld [vmem:[%s2 + $0x1d8] sm:$0xff]
      %v677 = vld [vmem:[%s2 + $0x1e0] sm:$0xff]
      %v678 = vld [vmem:[%s2 + $0x1e8] sm:$0xff]
      %v679 = vld [vmem:[%s2 + $0x1f0] sm:$0xff]
      %v680 = vld [vmem:[%s2 + $0x1f8] sm:$0xff]
      %v681 = vld [vmem:[%s2 + $0x200] sm:$0xff]
      %v682 = vld [vmem:[%s2 + $0x208] sm:$0xff]
      %v683 = vld [vmem:[%s2 + $0x210] sm:$0xff]
      %v684 = vld [vmem:[%s2 + $0x218] sm:$0xff]
      %v685 = vld [vmem:[%s2 + $0x220] sm:$0xff]
      %v686 = vld [vmem:[%s2 + $0x228] sm:$0xff]
      %v687 = vld [vmem:[%s2 + $0x230] sm:$0xff]
      %v688 = vld [vmem:[%s2 + $0x238] sm:$0xff]
      %v689 = vld [vmem:[%s2 + $0x240] sm:$0xff]
      %v690 = vld [vmem:[%s2 + $0x248] sm:$0xff]
      %v691 = vld [vmem:[%s2 + $0x250] sm:$0xff]
      %v692 = vld [vmem:[%s2 + $0x258] sm:$0xff]
      %v693 = vld [vmem:[%s2 + $0x260] sm:$0xff]
      %v694 = vld [vmem:[%s2 + $0x268] sm:$0xff]
      %v695 = vld [vmem:[%s2 + $0x270] sm:$0xff]
      %v696 = vld [vmem:[%s2 + $0x278] sm:$0xff]
      %v697 = vld [vmem:[%s2 + $0x280] sm:$0xff]
      %v698 = vld [vmem:[%s2 + $0x288] sm:$0xff]
      %v699 = vld [vmem:[%s2 + $0x290] sm:$0xff]
      %v700 = vld [vmem:[%s2 + $0x298] sm:$0xff]
      %v701 = vld [vmem:[%s2 + $0x2a0] sm:$0xff]
      %v702 = vld [vmem:[%s2 + $0x2a8] sm:$0xff]
      %v703 = vld [vmem:[%s2 + $0x2b0] sm:$0xff]
      %v704 = vld [vmem:[%s2 + $0x2b8] sm:$0xff]
      %v705 = vld [vmem:[%s2 + $0x2c0] sm:$0xff]
      %v706 = vld [vmem:[%s2 + $0x2c8] sm:$0xff]
      %v707 = vld [vmem:[%s2 + $0x2d0] sm:$0xff]
      %v708 = vld [vmem:[%s2 + $0x2d8] sm:$0xff]
      %v709 = vld [vmem:[%s2 + $0x2e0] sm:$0xff]
      %v710 = vld [vmem:[%s2 + $0x2e8] sm:$0xff]
      %v711 = vld [vmem:[%s2 + $0x2f0] sm:$0xff]
      %v712 = vld [vmem:[%s2 + $0x2f8] sm:$0xff]
      %v713 = vld [vmem:[%s2 + $0x300] sm:$0xff]
      %v714 = vld [vmem:[%s2 + $0x308] sm:$0xff]
      %v715 = vld [vmem:[%s2 + $0x310] sm:$0xff]
      %v716 = vld [vmem:[%s2 + $0x318] sm:$0xff]
      %v717 = vld [vmem:[%s2 + $0x320] sm:$0xff]
      %v718 = vld [vmem:[%s2 + $0x328] sm:$0xff]
      %v719 = vld [vmem:[%s2 + $0x330] sm:$0xff]
      %v720 = vld [vmem:[%s2 + $0x338] sm:$0xff]
      %v721 = vld [vmem:[%s2 + $0x340] sm:$0xff]
      %v722 = vld [vmem:[%s2 + $0x348] sm:$0xff]
      %v723 = vld [vmem:[%s2 + $0x350] sm:$0xff]
      %v724 = vld [vmem:[%s2 + $0x358] sm:$0xff]
      %v725 = vld [vmem:[%s2 + $0x360] sm:$0xff]
      %v726 = vld [vmem:[%s2 + $0x368] sm:$0xff]
      %v727 = vld [vmem:[%s2 + $0x370] sm:$0xff]
      %v728 = vld [vmem:[%s2 + $0x378] sm:$0xff]
      %v729 = vld [vmem:[%s2 + $0x380] sm:$0xff]
      %v730 = vld [vmem:[%s2 + $0x388] sm:$0xff]
      %v731 = vld [vmem:[%s2 + $0x390] sm:$0xff]
      %v732 = vld [vmem:[%s2 + $0x398] sm:$0xff]
      %v733 = vld [vmem:[%s2 + $0x3a0] sm:$0xff]
      %v734 = vld [vmem:[%s2 + $0x3a8] sm:$0xff]
      %v735 = vld [vmem:[%s2 + $0x3b0] sm:$0xff]
      %v736 = vld [vmem:[%s2 + $0x3b8] sm:$0xff]
      %v737 = vld [vmem:[%s2 + $0x3c0] sm:$0xff]
      %v738 = vld [vmem:[%s2 + $0x3c8] sm:$0xff]
      %v739 = vld [vmem:[%s2 + $0x3d0] sm:$0xff]
      %v740 = vld [vmem:[%s2 + $0x3d8] sm:$0xff]
      %v741 = vld [vmem:[%s2 + $0x3e0] sm:$0xff]
      %v742 = vld [vmem:[%s2 + $0x3e8] sm:$0xff]
      %v743 = vld [vmem:[%s2 + $0x3f0] sm:$0xff]
      %v744 = vld [vmem:[%s2 + $0x3f8] sm:$0xff]
      %v745 = vld [vmem:[%s2 + $0x400] sm:$0xff]
      %v746 = vld [vmem:[%s2 + $0x408] sm:$0xff]
      %v747 = vld [vmem:[%s2 + $0x410] sm:$0xff]
      %v748 = vld [vmem:[%s2 + $0x418] sm:$0xff]
      %v749 = vld [vmem:[%s2 + $0x420] sm:$0xff]
      %v750 = vld [vmem:[%s2 + $0x428] sm:$0xff]
      %v751 = vld [vmem:[%s2 + $0x430] sm:$0xff]
      %v752 = vld [vmem:[%s2 + $0x438] sm:$0xff]
      %v753 = vld [vmem:[%s2 + $0x440] sm:$0xff]
      %v754 = vld [vmem:[%s2 + $0x448] sm:$0xff]
      %v755 = vld [vmem:[%s2 + $0x450] sm:$0xff]
      %v756 = vld [vmem:[%s2 + $0x458] sm:$0xff]
      %v757 = vld [vmem:[%s2 + $0x460] sm:$0xff]
      %v758 = vld [vmem:[%s2 + $0x468] sm:$0xff]
      %v759 = vld [vmem:[%s2 + $0x470] sm:$0xff]
      %v760 = vld [vmem:[%s2 + $0x478] sm:$0xff]
      %v761 = vld [vmem:[%s2 + $0x480] sm:$0xff]
      %v762 = vld [vmem:[%s2 + $0x488] sm:$0xff]
      %v763 = vld [vmem:[%s2 + $0x490] sm:$0xff]
      %v764 = vld [vmem:[%s2 + $0x498] sm:$0xff]
      %v765 = vld [vmem:[%s2 + $0x4a0] sm:$0xff]
      %v766 = vld [vmem:[%s2 + $0x4a8] sm:$0xff]
      %v767 = vld [vmem:[%s2 + $0x4b0] sm:$0xff]
      %v768 = vld [vmem:[%s2 + $0x4b8] sm:$0xff]
      %v769 = vld [vmem:[%s2 + $0x4c0] sm:$0xff]
      %v770 = vld [vmem:[%s2 + $0x4c8] sm:$0xff]
      %v771 = vld [vmem:[%s2 + $0x4d0] sm:$0xff]
      %v772 = vld [vmem:[%s2 + $0x4d8] sm:$0xff]
      %v773 = vld [vmem:[%s2 + $0x4e0] sm:$0xff]
      %v774 = vld [vmem:[%s2 + $0x4e8] sm:$0xff]
      %v775 = vld [vmem:[%s2 + $0x4f0] sm:$0xff]
      %v776 = vld [vmem:[%s2 + $0x4f8] sm:$0xff]
      %v777 = vld [vmem:[%s2 + $0x500] sm:$0xff]
      %v778 = vld [vmem:[%s2 + $0x508] sm:$0xff]
      %v779 = vld [vmem:[%s2 + $0x510] sm:$0xff]
      %v780 = vld [vmem:[%s2 + $0x518] sm:$0xff]
      %v781 = vld [vmem:[%s2 + $0x520] sm:$0xff]
      %v782 = vld [vmem:[%s2 + $0x528] sm:$0xff]
      %v783 = vld [vmem:[%s2 + $0x530] sm:$0xff]
      %v784 = vld [vmem:[%s2 + $0x538] sm:$0xff]
      %v785 = vld [vmem:[%s2 + $0x540] sm:$0xff]
      %v786 = vld [vmem:[%s2 + $0x548] sm:$0xff]
      %v787 = vld [vmem:[%s2 + $0x550] sm:$0xff]
      %v788 = vld [vmem:[%s2 + $0x558] sm:$0xff]
      %v789 = vld [vmem:[%s2 + $0x560] sm:$0xff]
      %v790 = vld [vmem:[%s2 + $0x568] sm:$0xff]
      %v791 = vld [vmem:[%s2 + $0x570] sm:$0xff]
      %v792 = vld [vmem:[%s2 + $0x578] sm:$0xff]
      %v793 = vld [vmem:[%s2 + $0x580] sm:$0xff]
      %v794 = vld [vmem:[%s2 + $0x588] sm:$0xff]
      %v795 = vld [vmem:[%s2 + $0x590] sm:$0xff]
      %v796 = vld [vmem:[%s2 + $0x598] sm:$0xff]
      %v797 = vld [vmem:[%s2 + $0x5a0] sm:$0xff]
      %v798 = vld [vmem:[%s2 + $0x5a8] sm:$0xff]
      %v799 = vld [vmem:[%s2 + $0x5b0] sm:$0xff]
      %v800 = vld [vmem:[%s2 + $0x5b8] sm:$0xff]
      %v801 = vld [vmem:[%s2 + $0x5c0] sm:$0xff]
      %v802 = vld [vmem:[%s2 + $0x5c8] sm:$0xff]
      %v803 = vld [vmem:[%s2 + $0x5d0] sm:$0xff]
      %v804 = vld [vmem:[%s2 + $0x5d8] sm:$0xff]
      %v805 = vld [vmem:[%s2 + $0x5e0] sm:$0xff]
      %v806 = vld [vmem:[%s2 + $0x5e8] sm:$0xff]
      %v807 = vld [vmem:[%s2 + $0x5f0] sm:$0xff]
      %v808 = vld [vmem:[%s2 + $0x5f8] sm:$0xff]
      %v809 = vld [vmem:[%s2 + $0x600] sm:$0xff]
      %v810 = vld [vmem:[%s2 + $0x608] sm:$0xff]
      %v811 = vld [vmem:[%s2 + $0x610] sm:$0xff]
      %v812 = vld [vmem:[%s2 + $0x618] sm:$0xff]
      %v813 = vld [vmem:[%s2 + $0x620] sm:$0xff]
      %v814 = vld [vmem:[%s2 + $0x628] sm:$0xff]
      %v815 = vld [vmem:[%s2 + $0x630] sm:$0xff]
      %v816 = vld [vmem:[%s2 + $0x638] sm:$0xff]
      %v817 = vld [vmem:[%s2 + $0x640] sm:$0xff]
      %v818 = vld [vmem:[%s2 + $0x648] sm:$0xff]
      %v819 = vld [vmem:[%s2 + $0x650] sm:$0xff]
      %v820 = vld [vmem:[%s2 + $0x658] sm:$0xff]
      %v821 = vld [vmem:[%s2 + $0x660] sm:$0xff]
      %v822 = vld [vmem:[%s2 + $0x668] sm:$0xff]
      %v823 = vld [vmem:[%s2 + $0x670] sm:$0xff]
      %v824 = vld [vmem:[%s2 + $0x678] sm:$0xff]
      %v825 = vld [vmem:[%s2 + $0x680] sm:$0xff]
      %v826 = vld [vmem:[%s2 + $0x688] sm:$0xff]
      %v827 = vld [vmem:[%s2 + $0x690] sm:$0xff]
      %v828 = vld [vmem:[%s2 + $0x698] sm:$0xff]
      %v829 = vld [vmem:[%s2 + $0x6a0] sm:$0xff]
      %v830 = vld [vmem:[%s2 + $0x6a8] sm:$0xff]
      %v831 = vld [vmem:[%s2 + $0x6b0] sm:$0xff]
      %v832 = vld [vmem:[%s2 + $0x6b8] sm:$0xff]
      %v833 = vld [vmem:[%s2 + $0x6c0] sm:$0xff]
      %v834 = vld [vmem:[%s2 + $0x6c8] sm:$0xff]
      %v835 = vld [vmem:[%s2 + $0x6d0] sm:$0xff]
      %v836 = vld [vmem:[%s2 + $0x6d8] sm:$0xff]
      %v837 = vld [vmem:[%s2 + $0x6e0] sm:$0xff]
      %v838 = vld [vmem:[%s2 + $0x6e8] sm:$0xff]
      %v839 = vld [vmem:[%s2 + $0x6f0] sm:$0xff]
      %v840 = vld [vmem:[%s2 + $0x6f8] sm:$0xff]
      %v841 = vld [vmem:[%s2 + $0x700] sm:$0xff]
      %v842 = vld [vmem:[%s2 + $0x708] sm:$0xff]
      %v843 = vld [vmem:[%s2 + $0x710] sm:$0xff]
      %v844 = vld [vmem:[%s2 + $0x718] sm:$0xff]
      %v845 = vld [vmem:[%s2 + $0x720] sm:$0xff]
      %v846 = vld [vmem:[%s2 + $0x728] sm:$0xff]
      %v847 = vld [vmem:[%s2 + $0x730] sm:$0xff]
      %v848 = vld [vmem:[%s2 + $0x738] sm:$0xff]
      %v849 = vld [vmem:[%s2 + $0x740] sm:$0xff]
      %v850 = vld [vmem:[%s2 + $0x748] sm:$0xff]
      %v851 = vld [vmem:[%s2 + $0x750] sm:$0xff]
      %v852 = vld [vmem:[%s2 + $0x758] sm:$0xff]
      %v853 = vld [vmem:[%s2 + $0x760] sm:$0xff]
      %v854 = vld [vmem:[%s2 + $0x768] sm:$0xff]
      %v855 = vld [vmem:[%s2 + $0x770] sm:$0xff]
      %v856 = vld [vmem:[%s2 + $0x778] sm:$0xff]
      %v857 = vld [vmem:[%s2 + $0x780] sm:$0xff]
      %v858 = vld [vmem:[%s2 + $0x788] sm:$0xff]
      %v859 = vld [vmem:[%s2 + $0x790] sm:$0xff]
      %v860 = vld [vmem:[%s2 + $0x798] sm:$0xff]
      %v861 = vld [vmem:[%s2 + $0x7a0] sm:$0xff]
      %v862 = vld [vmem:[%s2 + $0x7a8] sm:$0xff]
      %v863 = vld [vmem:[%s2 + $0x7b0] sm:$0xff]
      %v864 = vld [vmem:[%s2 + $0x7b8] sm:$0xff]
      %v865 = vld [vmem:[%s2 + $0x7c0] sm:$0xff]
      %v866 = vld [vmem:[%s2 + $0x7c8] sm:$0xff]
      %v867 = vld [vmem:[%s2 + $0x7d0] sm:$0xff]
      %v868 = vld [vmem:[%s2 + $0x7d8] sm:$0xff]
      %v869 = vld [vmem:[%s2 + $0x7e0] sm:$0xff]
      %v870 = vld [vmem:[%s2 + $0x7e8] sm:$0xff]
      %v871 = vld [vmem:[%s2 + $0x7f0] sm:$0xff]
      %v872 = vld [vmem:[%s2 + $0x7f8] sm:$0xff]
      %v873 = vld [vmem:[%s2 + $0x800] sm:$0xff]
      %v874 = vld [vmem:[%s2 + $0x808] sm:$0xff]
      %v875 = vld [vmem:[%s2 + $0x810] sm:$0xff]
      %v876 = vld [vmem:[%s2 + $0x818] sm:$0xff]
      %v877 = vld [vmem:[%s2 + $0x820] sm:$0xff]
      %v878 = vld [vmem:[%s2 + $0x828] sm:$0xff]
      %v879 = vld [vmem:[%s2 + $0x830] sm:$0xff]
      %v880 = vld [vmem:[%s2 + $0x838] sm:$0xff]
      %v881 = vld [vmem:[%s2 + $0x840] sm:$0xff]
      %v882 = vld [vmem:[%s2 + $0x848] sm:$0xff]
      %v883 = vld [vmem:[%s2 + $0x850] sm:$0xff]
      %v884 = vld [vmem:[%s2 + $0x858] sm:$0xff]
      %v885 = vld [vmem:[%s2 + $0x860] sm:$0xff]
      %v886 = vld [vmem:[%s2 + $0x868] sm:$0xff]
      %v887 = vld [vmem:[%s2 + $0x870] sm:$0xff]
      %v888 = vld [vmem:[%s2 + $0x878] sm:$0xff]
      %v889 = vld [vmem:[%s2 + $0x880] sm:$0xff]
      %v890 = vld [vmem:[%s2 + $0x888] sm:$0xff]
      %v891 = vld [vmem:[%s2 + $0x890] sm:$0xff]
      %v892 = vld [vmem:[%s2 + $0x898] sm:$0xff]
      %v893 = vld [vmem:[%s2 + $0x8a0] sm:$0xff]
      %v894 = vld [vmem:[%s2 + $0x8a8] sm:$0xff]
      %v895 = vld [vmem:[%s2 + $0x8b0] sm:$0xff]
      %v896 = vld [vmem:[%s2 + $0x8b8] sm:$0xff]
      %v897 = vld [vmem:[%s2 + $0x8c0] sm:$0xff]
      %v898 = vld [vmem:[%s2 + $0x8c8] sm:$0xff]
      %v899 = vld [vmem:[%s2 + $0x8d0] sm:$0xff]
      %v900 = vld [vmem:[%s2 + $0x8d8] sm:$0xff]
      %v901 = vld [vmem:[%s2 + $0x8e0] sm:$0xff]
      %v902 = vld [vmem:[%s2 + $0x8e8] sm:$0xff]
      %v903 = vld [vmem:[%s2 + $0x8f0] sm:$0xff]
      %v904 = vld [vmem:[%s2 + $0x8f8] sm:$0xff]
      %v905 = vld [vmem:[%s2 + $0x900] sm:$0xff]
      %v906 = vld [vmem:[%s2 + $0x908] sm:$0xff]
      %v907 = vld [vmem:[%s2 + $0x910] sm:$0xff]
      %v908 = vld [vmem:[%s2 + $0x918] sm:$0xff]
      %v909 = vld [vmem:[%s2 + $0x920] sm:$0xff]
      %v910 = vld [vmem:[%s2 + $0x928] sm:$0xff]
      %v911 = vld [vmem:[%s2 + $0x930] sm:$0xff]
      %v912 = vld [vmem:[%s2 + $0x938] sm:$0xff]
      %v913 = vld [vmem:[%s2 + $0x940] sm:$0xff]
      %v914 = vld [vmem:[%s2 + $0x948] sm:$0xff]
      %v915 = vld [vmem:[%s2 + $0x950] sm:$0xff]
      %v916 = vld [vmem:[%s2 + $0x958] sm:$0xff]
      %v917 = vld [vmem:[%s2 + $0x960] sm:$0xff]
      %v918 = vld [vmem:[%s2 + $0x968] sm:$0xff]
      %v919 = vld [vmem:[%s2 + $0x970] sm:$0xff]
      %v920 = vld [vmem:[%s2 + $0x978] sm:$0xff]
      %v921 = vld [vmem:[%s2 + $0x980] sm:$0xff]
      %v922 = vld [vmem:[%s2 + $0x988] sm:$0xff]
      %v923 = vld [vmem:[%s2 + $0x990] sm:$0xff]
      %v924 = vld [vmem:[%s2 + $0x998] sm:$0xff]
      %v925 = vld [vmem:[%s2 + $0x9a0] sm:$0xff]
      %v926 = vld [vmem:[%s2 + $0x9a8] sm:$0xff]
      %v927 = vld [vmem:[%s2 + $0x9b0] sm:$0xff]
      %v928 = vld [vmem:[%s2 + $0x9b8] sm:$0xff]
      %v929 = vld [vmem:[%s2 + $0x9c0] sm:$0xff]
      %v930 = vld [vmem:[%s2 + $0x9c8] sm:$0xff]
      %v931 = vld [vmem:[%s2 + $0x9d0] sm:$0xff]
      %v932 = vld [vmem:[%s2 + $0x9d8] sm:$0xff]
      %v933 = vld [vmem:[%s2 + $0x9e0] sm:$0xff]
      %v934 = vld [vmem:[%s2 + $0x9e8] sm:$0xff]
      %v935 = vld [vmem:[%s2 + $0x9f0] sm:$0xff]
      %v936 = vld [vmem:[%s2 + $0x9f8] sm:$0xff]
      %v937 = vld [vmem:[%s2 + $0xa00] sm:$0xff]
      %v938 = vld [vmem:[%s2 + $0xa08] sm:$0xff]
      %v939 = vld [vmem:[%s2 + $0xa10] sm:$0xff]
      %v940 = vld [vmem:[%s2 + $0xa18] sm:$0xff]
      %v941 = vld [vmem:[%s2 + $0xa20] sm:$0xff]
      %v942 = vld [vmem:[%s2 + $0xa28] sm:$0xff]
      %v943 = vld [vmem:[%s2 + $0xa30] sm:$0xff]
      %v944 = vld [vmem:[%s2 + $0xa38] sm:$0xff]
      %v945 = vld [vmem:[%s2 + $0xa40] sm:$0xff]
      %v946 = vld [vmem:[%s2 + $0xa48] sm:$0xff]
      %v947 = vld [vmem:[%s2 + $0xa50] sm:$0xff]
      %v948 = vld [vmem:[%s2 + $0xa58] sm:$0xff]
      %v949 = vld [vmem:[%s2 + $0xa60] sm:$0xff]
      %v950 = vld [vmem:[%s2 + $0xa68] sm:$0xff]
      %v951 = vld [vmem:[%s2 + $0xa70] sm:$0xff]
      %v952 = vld [vmem:[%s2 + $0xa78] sm:$0xff]
      %v953 = vld [vmem:[%s2 + $0xa80] sm:$0xff]
      %v954 = vld [vmem:[%s2 + $0xa88] sm:$0xff]
      %v955 = vld [vmem:[%s2 + $0xa90] sm:$0xff]
      %v956 = vld [vmem:[%s2 + $0xa98] sm:$0xff]
      %v957 = vld [vmem:[%s2 + $0xaa0] sm:$0xff]
      %v958 = vld [vmem:[%s2 + $0xaa8] sm:$0xff]
      %v959 = vld [vmem:[%s2 + $0xab0] sm:$0xff]
      %v960 = vld [vmem:[%s2 + $0xab8] sm:$0xff]
      %v961 = vld [vmem:[%s2 + $0xac0] sm:$0xff]
      %v962 = vld [vmem:[%s2 + $0xac8] sm:$0xff]
      %v963 = vld [vmem:[%s2 + $0xad0] sm:$0xff]
      %v964 = vld [vmem:[%s2 + $0xad8] sm:$0xff]
      %v965 = vld [vmem:[%s2 + $0xae0] sm:$0xff]
      %v966 = vld [vmem:[%s2 + $0xae8] sm:$0xff]
      %v967 = vld [vmem:[%s2 + $0xaf0] sm:$0xff]
      %v968 = vld [vmem:[%s2 + $0xaf8] sm:$0xff]
      %v969 = vld [vmem:[%s2 + $0xb00] sm:$0xff]
      %v970 = vld [vmem:[%s2 + $0xb08] sm:$0xff]
      %v971 = vld [vmem:[%s2 + $0xb10] sm:$0xff]
      %v972 = vld [vmem:[%s2 + $0xb18] sm:$0xff]
      %v973 = vld [vmem:[%s2 + $0xb20] sm:$0xff]
      %v974 = vld [vmem:[%s2 + $0xb28] sm:$0xff]
      %v975 = vld [vmem:[%s2 + $0xb30] sm:$0xff]
      %v976 = vld [vmem:[%s2 + $0xb38] sm:$0xff]
      %v977 = vld [vmem:[%s2 + $0xb40] sm:$0xff]
      %v978 = vld [vmem:[%s2 + $0xb48] sm:$0xff]
      %v979 = vld [vmem:[%s2 + $0xb50] sm:$0xff]
      %v980 = vld [vmem:[%s2 + $0xb58] sm:$0xff]
      %v981 = vld [vmem:[%s2 + $0xb60] sm:$0xff]
      %v982 = vld [vmem:[%s2 + $0xb68] sm:$0xff]
      %v983 = vld [vmem:[%s2 + $0xb70] sm:$0xff]
      %v984 = vld [vmem:[%s2 + $0xb78] sm:$0xff]
      %v985 = vld [vmem:[%s2 + $0xb80] sm:$0xff]
      %v986 = vld [vmem:[%s2 + $0xb88] sm:$0xff]
      %v987 = vld [vmem:[%s2 + $0xb90] sm:$0xff]
      %v988 = vld [vmem:[%s2 + $0xb98] sm:$0xff]
      %v989 = vld [vmem:[%s2 + $0xba0] sm:$0xff]
      %v990 = vld [vmem:[%s2 + $0xba8] sm:$0xff]
      %v991 = vld [vmem:[%s2 + $0xbb0] sm:$0xff]
      %v992 = vld [vmem:[%s2 + $0xbb8] sm:$0xff]
      %v993 = vld [vmem:[%s2 + $0xbc0] sm:$0xff]
      %v994 = vld [vmem:[%s2 + $0xbc8] sm:$0xff]
      %v995 = vld [vmem:[%s2 + $0xbd0] sm:$0xff]
      %v996 = vld [vmem:[%s2 + $0xbd8] sm:$0xff]
      %v997 = vld [vmem:[%s2 + $0xbe0] sm:$0xff]
      %v998 = vld [vmem:[%s2 + $0xbe8] sm:$0xff]
      %v999 = vld [vmem:[%s2 + $0xbf0] sm:$0xff]
      %v1000 = vld [vmem:[%s2 + $0xbf8] sm:$0xff]
      %v1001 = vld [vmem:[%s2 + $0xc00] sm:$0xff]
      %v1002 = vld [vmem:[%s2 + $0xc08] sm:$0xff]
      %v1003 = vld [vmem:[%s2 + $0xc10] sm:$0xff]
      %v1004 = vld [vmem:[%s2 + $0xc18] sm:$0xff]
      %v1005 = vld [vmem:[%s2 + $0xc20] sm:$0xff]
      %v1006 = vld [vmem:[%s2 + $0xc28] sm:$0xff]
      %v1007 = vld [vmem:[%s2 + $0xc30] sm:$0xff]
      %v1008 = vld [vmem:[%s2 + $0xc38] sm:$0xff]
      %v1009 = vld [vmem:[%s2 + $0xc40] sm:$0xff]
      %v1010 = vld [vmem:[%s2 + $0xc48] sm:$0xff]
      %v1011 = vld [vmem:[%s2 + $0xc50] sm:$0xff]
      %v1012 = vld [vmem:[%s2 + $0xc58] sm:$0xff]
      %v1013 = vld [vmem:[%s2 + $0xc60] sm:$0xff]
      %v1014 = vld [vmem:[%s2 + $0xc68] sm:$0xff]
      %v1015 = vld [vmem:[%s2 + $0xc70] sm:$0xff]
      %v1016 = vld [vmem:[%s2 + $0xc78] sm:$0xff]
      %v1017 = vld [vmem:[%s2 + $0xc80] sm:$0xff]
      %v1018 = vld [vmem:[%s2 + $0xc88] sm:$0xff]
      %v1019 = vld [vmem:[%s2 + $0xc90] sm:$0xff]
      %v1020 = vld [vmem:[%s2 + $0xc98] sm:$0xff]
      %v1021 = vld [vmem:[%s2 + $0xca0] sm:$0xff]
      %v1022 = vld [vmem:[%s2 + $0xca8] sm:$0xff]
      %v1023 = vld [vmem:[%s2 + $0xcb0] sm:$0xff]
      %v1024 = vld [vmem:[%s2 + $0xcb8] sm:$0xff]
      %v1025 = vld [vmem:[%s2 + $0xcc0] sm:$0xff]
      %v1026 = vld [vmem:[%s2 + $0xcc8] sm:$0xff]
      %v1027 = vld [vmem:[%s2 + $0xcd0] sm:$0xff]
      %v1028 = vld [vmem:[%s2 + $0xcd8] sm:$0xff]
      %v1029 = vld [vmem:[%s2 + $0xce0] sm:$0xff]
      %v1030 = vld [vmem:[%s2 + $0xce8] sm:$0xff]
      %v1031 = vld [vmem:[%s2 + $0xcf0] sm:$0xff]
      %v1032 = vld [vmem:[%s2 + $0xcf8] sm:$0xff]
      %v1033 = vld [vmem:[%s2 + $0xd00] sm:$0xff]
      %v1034 = vld [vmem:[%s2 + $0xd08] sm:$0xff]
      %v1035 = vld [vmem:[%s2 + $0xd10] sm:$0xff]
      %v1036 = vld [vmem:[%s2 + $0xd18] sm:$0xff]
      %v1037 = vld [vmem:[%s2 + $0xd20] sm:$0xff]
      %v1038 = vld [vmem:[%s2 + $0xd28] sm:$0xff]
      %v1039 = vld [vmem:[%s2 + $0xd30] sm:$0xff]
      %v1040 = vld [vmem:[%s2 + $0xd38] sm:$0xff]
      %v1041 = vld [vmem:[%s2 + $0xd40] sm:$0xff]
      %v1042 = vld [vmem:[%s2 + $0xd48] sm:$0xff]
      %v1043 = vld [vmem:[%s2 + $0xd50] sm:$0xff]
      %v1044 = vld [vmem:[%s2 + $0xd58] sm:$0xff]
      %v1045 = vld [vmem:[%s2 + $0xd60] sm:$0xff]
      %v1046 = vld [vmem:[%s2 + $0xd68] sm:$0xff]
      %v1047 = vld [vmem:[%s2 + $0xd70] sm:$0xff]
      %v1048 = vld [vmem:[%s2 + $0xd78] sm:$0xff]
      %v1049 = vld [vmem:[%s2 + $0xd80] sm:$0xff]
      %v1050 = vld [vmem:[%s2 + $0xd88] sm:$0xff]
      %v1051 = vld [vmem:[%s2 + $0xd90] sm:$0xff]
      %v1052 = vld [vmem:[%s2 + $0xd98] sm:$0xff]
      %v1053 = vld [vmem:[%s2 + $0xda0] sm:$0xff]
      %v1054 = vld [vmem:[%s2 + $0xda8] sm:$0xff]
      %v1055 = vld [vmem:[%s2 + $0xdb0] sm:$0xff]
      %v1056 = vld [vmem:[%s2 + $0xdb8] sm:$0xff]
      %v1057 = vld [vmem:[%s2 + $0xdc0] sm:$0xff]
      %v1058 = vld [vmem:[%s2 + $0xdc8] sm:$0xff]
      %v1059 = vld [vmem:[%s2 + $0xdd0] sm:$0xff]
      %v1060 = vld [vmem:[%s2 + $0xdd8] sm:$0xff]
      %v1061 = vld [vmem:[%s2 + $0xde0] sm:$0xff]
      %v1062 = vld [vmem:[%s2 + $0xde8] sm:$0xff]
      %v1063 = vld [vmem:[%s2 + $0xdf0] sm:$0xff]
      %v1064 = vld [vmem:[%s2 + $0xdf8] sm:$0xff]
      %v1065 = vld [vmem:[%s2 + $0xe00] sm:$0xff]
      %v1066 = vld [vmem:[%s2 + $0xe08] sm:$0xff]
      %v1067 = vld [vmem:[%s2 + $0xe10] sm:$0xff]
      %v1068 = vld [vmem:[%s2 + $0xe18] sm:$0xff]
      %v1069 = vld [vmem:[%s2 + $0xe20] sm:$0xff]
      %v1070 = vld [vmem:[%s2 + $0xe28] sm:$0xff]
      %v1071 = vld [vmem:[%s2 + $0xe30] sm:$0xff]
      %v1072 = vld [vmem:[%s2 + $0xe38] sm:$0xff]
      %v1073 = vld [vmem:[%s2 + $0xe40] sm:$0xff]
      %v1074 = vld [vmem:[%s2 + $0xe48] sm:$0xff]
      %v1075 = vld [vmem:[%s2 + $0xe50] sm:$0xff]
      %v1076 = vld [vmem:[%s2 + $0xe58] sm:$0xff]
      %v1077 = vld [vmem:[%s2 + $0xe60] sm:$0xff]
      %v1078 = vld [vmem:[%s2 + $0xe68] sm:$0xff]
      %v1079 = vld [vmem:[%s2 + $0xe70] sm:$0xff]
      %v1080 = vld [vmem:[%s2 + $0xe78] sm:$0xff]
      %v1081 = vld [vmem:[%s2 + $0xe80] sm:$0xff]
      %v1082 = vld [vmem:[%s2 + $0xe88] sm:$0xff]
      %v1083 = vld [vmem:[%s2 + $0xe90] sm:$0xff]
      %v1084 = vld [vmem:[%s2 + $0xe98] sm:$0xff]
      %v1085 = vld [vmem:[%s2 + $0xea0] sm:$0xff]
      %v1086 = vld [vmem:[%s2 + $0xea8] sm:$0xff]
      %v1087 = vld [vmem:[%s2 + $0xeb0] sm:$0xff]
      %v1088 = vld [vmem:[%s2 + $0xeb8] sm:$0xff]
      %v1089 = vld [vmem:[%s2 + $0xec0] sm:$0xff]
      %v1090 = vld [vmem:[%s2 + $0xec8] sm:$0xff]
      %v1091 = vld [vmem:[%s2 + $0xed0] sm:$0xff]
      %v1092 = vld [vmem:[%s2 + $0xed8] sm:$0xff]
      %v1093 = vld [vmem:[%s2 + $0xee0] sm:$0xff]
      %v1094 = vld [vmem:[%s2 + $0xee8] sm:$0xff]
      %v1095 = vld [vmem:[%s2 + $0xef0] sm:$0xff]
      %v1096 = vld [vmem:[%s2 + $0xef8] sm:$0xff]
      %v1097 = vld [vmem:[%s2 + $0xf00] sm:$0xff]
      %v1098 = vld [vmem:[%s2 + $0xf08] sm:$0xff]
      %v1099 = vld [vmem:[%s2 + $0xf10] sm:$0xff]
      %v1100 = vld [vmem:[%s2 + $0xf18] sm:$0xff]
      %v1101 = vld [vmem:[%s2 + $0xf20] sm:$0xff]
      %v1102 = vld [vmem:[%s2 + $0xf28] sm:$0xff]
      %v1103 = vld [vmem:[%s2 + $0xf30] sm:$0xff]
      %v1104 = vld [vmem:[%s2 + $0xf38] sm:$0xff]
      %v1105 = vld [vmem:[%s2 + $0xf40] sm:$0xff]
      %v1106 = vld [vmem:[%s2 + $0xf48] sm:$0xff]
      %v1107 = vld [vmem:[%s2 + $0xf50] sm:$0xff]
      %v1108 = vld [vmem:[%s2 + $0xf58] sm:$0xff]
      %v1109 = vld [vmem:[%s2 + $0xf60] sm:$0xff]
      %v1110 = vld [vmem:[%s2 + $0xf68] sm:$0xff]
      %v1111 = vld [vmem:[%s2 + $0xf70] sm:$0xff]
      %v1112 = vld [vmem:[%s2 + $0xf78] sm:$0xff]
      %v1113 = vld [vmem:[%s2 + $0xf80] sm:$0xff]
      %v1114 = vld [vmem:[%s2 + $0xf88] sm:$0xff]
      %v1115 = vld [vmem:[%s2 + $0xf90] sm:$0xff]
      %v1116 = vld [vmem:[%s2 + $0xf98] sm:$0xff]
      %v1117 = vld [vmem:[%s2 + $0xfa0] sm:$0xff]
      %v1118 = vld [vmem:[%s2 + $0xfa8] sm:$0xff]
      %v1119 = vld [vmem:[%s2 + $0xfb0] sm:$0xff]
      %v1120 = vld [vmem:[%s2 + $0xfb8] sm:$0xff]
      %v1121 = vld [vmem:[%s2 + $0xfc0] sm:$0xff]
      %v1122 = vld [vmem:[%s2 + $0xfc8] sm:$0xff]
      %v1123 = vld [vmem:[%s2 + $0xfd0] sm:$0xff]
      %v1124 = vld [vmem:[%s2 + $0xfd8] sm:$0xff]
      %v1125 = vld [vmem:[%s2 + $0xfe0] sm:$0xff]
      %v1126 = vld [vmem:[%s2 + $0xfe8] sm:$0xff]
      %v1127 = vld [vmem:[%s2 + $0xff0] sm:$0xff]
      %v1128 = vld [vmem:[%s2 + $0xff8] sm:$0xff]
      %v1129 = vld [vmem:[%s2 + $0x1000] sm:$0xff]
      %v1130 = vld [vmem:[%s2 + $0x1008] sm:$0xff]
      %v1131 = vld [vmem:[%s2 + $0x1010] sm:$0xff]
      %v1132 = vld [vmem:[%s2 + $0x1018] sm:$0xff]
      %v1133 = vld [vmem:[%s2 + $0x1020] sm:$0xff]
      %v1134 = vld [vmem:[%s2 + $0x1028] sm:$0xff]
      %v1135 = vld [vmem:[%s2 + $0x1030] sm:$0xff]
      %v1136 = vld [vmem:[%s2 + $0x1038] sm:$0xff]
      %v1137 = vld [vmem:[%s2 + $0x1040] sm:$0xff]
      %v1138 = vld [vmem:[%s2 + $0x1048] sm:$0xff]
      %v1139 = vld [vmem:[%s2 + $0x1050] sm:$0xff]
      %v1140 = vld [vmem:[%s2 + $0x1058] sm:$0xff]
      %v1141 = vld [vmem:[%s2 + $0x1060] sm:$0xff]
      %v1142 = vld [vmem:[%s2 + $0x1068] sm:$0xff]
      %v1143 = vld [vmem:[%s2 + $0x1070] sm:$0xff]
      %v1144 = vld [vmem:[%s2 + $0x1078] sm:$0xff]
      %v1145 = vld [vmem:[%s2 + $0x1080] sm:$0xff]
      %v1146 = vld [vmem:[%s2 + $0x1088] sm:$0xff]
      %v1147 = vld [vmem:[%s2 + $0x1090] sm:$0xff]
      %v1148 = vld [vmem:[%s2 + $0x1098] sm:$0xff]
      %v1149 = vld [vmem:[%s2 + $0x10a0] sm:$0xff]
      %v1150 = vld [vmem:[%s2 + $0x10a8] sm:$0xff]
      %v1151 = vld [vmem:[%s2 + $0x10b0] sm:$0xff]
      %v1152 = vld [vmem:[%s2 + $0x10b8] sm:$0xff]
      %v1153 = vld [vmem:[%s2 + $0x10c0] sm:$0xff]
      %v1154 = vld [vmem:[%s2 + $0x10c8] sm:$0xff]
      %v1155 = vld [vmem:[%s2 + $0x10d0] sm:$0xff]
      %v1156 = vld [vmem:[%s2 + $0x10d8] sm:$0xff]
      %v1157 = vld [vmem:[%s2 + $0x10e0] sm:$0xff]
      %v1158 = vld [vmem:[%s2 + $0x10e8] sm:$0xff]
      %v1159 = vld [vmem:[%s2 + $0x10f0] sm:$0xff]
      %v1160 = vld [vmem:[%s2 + $0x10f8] sm:$0xff]
      %v1161 = vld [vmem:[%s2 + $0x1100] sm:$0xff]
      %v1162 = vld [vmem:[%s2 + $0x1108] sm:$0xff]
      %v1163 = vld [vmem:[%s2 + $0x1110] sm:$0xff]
      %v1164 = vld [vmem:[%s2 + $0x1118] sm:$0xff]
      %v1165 = vld [vmem:[%s2 + $0x1120] sm:$0xff]
      %v1166 = vld [vmem:[%s2 + $0x1128] sm:$0xff]
      %v1167 = vld [vmem:[%s2 + $0x1130] sm:$0xff]
      %v1168 = vld [vmem:[%s2 + $0x1138] sm:$0xff]
      %v1169 = vld [vmem:[%s2 + $0x1140] sm:$0xff]
      %v1170 = vld [vmem:[%s2 + $0x1148] sm:$0xff]
      %v1171 = vld [vmem:[%s2 + $0x1150] sm:$0xff]
      %v1172 = vld [vmem:[%s2 + $0x1158] sm:$0xff]
      %v1173 = vld [vmem:[%s2 + $0x1160] sm:$0xff]
      %v1174 = vld [vmem:[%s2 + $0x1168] sm:$0xff]
      %v1175 = vld [vmem:[%s2 + $0x1170] sm:$0xff]
      %v1176 = vld [vmem:[%s2 + $0x1178] sm:$0xff]
      %v1177 = vld [vmem:[%s2 + $0x1180] sm:$0xff]
      %v1178 = vld [vmem:[%s2 + $0x1188] sm:$0xff]
      %v1179 = vld [vmem:[%s2 + $0x1190] sm:$0xff]
      %v1180 = vld [vmem:[%s2 + $0x1198] sm:$0xff]
      %v1181 = vld [vmem:[%s2 + $0x11a0] sm:$0xff]
      %v1182 = vld [vmem:[%s2 + $0x11a8] sm:$0xff]
      %v1183 = vld [vmem:[%s2 + $0x11b0] sm:$0xff]
      %v1184 = vld [vmem:[%s2 + $0x11b8] sm:$0xff]
      %v1185 = vld [vmem:[%s2 + $0x11c0] sm:$0xff]
      %v1186 = vld [vmem:[%s2 + $0x11c8] sm:$0xff]
      %v1187 = vld [vmem:[%s2 + $0x11d0] sm:$0xff]
      %v1188 = vld [vmem:[%s2 + $0x11d8] sm:$0xff]
      %v1189 = vld [vmem:[%s2 + $0x11e0] sm:$0xff]
      %v1190 = vld [vmem:[%s2 + $0x11e8] sm:$0xff]
      %v1191 = vld [vmem:[%s2 + $0x11f0] sm:$0xff]
      %v1192 = vld [vmem:[%s2 + $0x11f8] sm:$0xff]
      %v1193 = vld [vmem:[%s2 + $0x1200] sm:$0xff]
      %v1194 = vld [vmem:[%s2 + $0x1208] sm:$0xff]
      %v1195 = vld [vmem:[%s2 + $0x1210] sm:$0xff]
      %v1196 = vld [vmem:[%s2 + $0x1218] sm:$0xff]
      %v1197 = vld [vmem:[%s2 + $0x1220] sm:$0xff]
      %v1198 = vld [vmem:[%s2 + $0x1228] sm:$0xff]
      %v1199 = vld [vmem:[%s2 + $0x1230] sm:$0xff]
      %v1200 = vld [vmem:[%s2 + $0x1238] sm:$0xff]
      %v1201 = vld [vmem:[%s2 + $0x1240] sm:$0xff]
      %v1202 = vld [vmem:[%s2 + $0x1248] sm:$0xff]
      %v1203 = vld [vmem:[%s2 + $0x1250] sm:$0xff]
      %v1204 = vld [vmem:[%s2 + $0x1258] sm:$0xff]
      %v1205 = vld [vmem:[%s2 + $0x1260] sm:$0xff]
      %v1206 = vld [vmem:[%s2 + $0x1268] sm:$0xff]
      %v1207 = vld [vmem:[%s2 + $0x1270] sm:$0xff]
      %v1208 = vld [vmem:[%s2 + $0x1278] sm:$0xff]
      %v1209 = vld [vmem:[%s2 + $0x1280] sm:$0xff]
      %v1210 = vld [vmem:[%s2 + $0x1288] sm:$0xff]
      %v1211 = vld [vmem:[%s2 + $0x1290] sm:$0xff]
      %v1212 = vld [vmem:[%s2 + $0x1298] sm:$0xff]
      %v1213 = vld [vmem:[%s2 + $0x12a0] sm:$0xff]
      %v1214 = vld [vmem:[%s2 + $0x12a8] sm:$0xff]
      %v1215 = vld [vmem:[%s2 + $0x12b0] sm:$0xff]
      %v1216 = vld [vmem:[%s2 + $0x12b8] sm:$0xff]
      %v1217 = vld [vmem:[%s2 + $0x12c0] sm:$0xff]
      %v1218 = vld [vmem:[%s2 + $0x12c8] sm:$0xff]
      %v1219 = vld [vmem:[%s2 + $0x12d0] sm:$0xff]
      %v1220 = vld [vmem:[%s2 + $0x12d8] sm:$0xff]
      %v1221 = vld [vmem:[%s2 + $0x12e0] sm:$0xff]
      %v1222 = vld [vmem:[%s2 + $0x12e8] sm:$0xff]
      %v1223 = vld [vmem:[%s2 + $0x12f0] sm:$0xff]
      %v1224 = vld [vmem:[%s2 + $0x12f8] sm:$0xff]
      %v1225 = vld [vmem:[%s2 + $0x1300] sm:$0xff]
      %v1226 = vld [vmem:[%s2 + $0x1308] sm:$0xff]
      %v1227 = vld [vmem:[%s2 + $0x1310] sm:$0xff]
      %v1228 = vld [vmem:[%s2 + $0x1318] sm:$0xff]
      %v1229 = vld [vmem:[%s2 + $0x1320] sm:$0xff]
      %v1230 = vld [vmem:[%s2 + $0x1328] sm:$0xff]
      %v1231 = vld [vmem:[%s2 + $0x1330] sm:$0xff]
      %v1232 = vld [vmem:[%s2 + $0x1338] sm:$0xff]
      %v1233 = vld [vmem:[%s2 + $0x1340] sm:$0xff]
      %v1234 = vld [vmem:[%s2 + $0x1348] sm:$0xff]
      %v1235 = vld [vmem:[%s2 + $0x1350] sm:$0xff]
      %v1236 = vld [vmem:[%s2 + $0x1358] sm:$0xff]
      %v1237 = vld [vmem:[%s2 + $0x1360] sm:$0xff]
      %v1238 = vld [vmem:[%s2 + $0x1368] sm:$0xff]
      %v1239 = vld [vmem:[%s2 + $0x1370] sm:$0xff]
      %v1240 = vld [vmem:[%s2 + $0x1378] sm:$0xff]
      %v1241 = vld [vmem:[%s2 + $0x1380] sm:$0xff]
      %v1242 = vld [vmem:[%s2 + $0x1388] sm:$0xff]
      %v1243 = vld [vmem:[%s2 + $0x1390] sm:$0xff]
      %v1244 = vld [vmem:[%s2 + $0x1398] sm:$0xff]
      %v1245 = vld [vmem:[%s2 + $0x13a0] sm:$0xff]
      %v1246 = vld [vmem:[%s2 + $0x13a8] sm:$0xff]
      %v1247 = vld [vmem:[%s2 + $0x13b0] sm:$0xff]
      %v1248 = vld [vmem:[%s2 + $0x13b8] sm:$0xff]
      %v1249 = vld [vmem:[%s2 + $0x13c0] sm:$0xff]
      %v1250 = vld [vmem:[%s2 + $0x13c8] sm:$0xff]
      %v1251 = vld [vmem:[%s2 + $0x13d0] sm:$0xff]
      %v1252 = vld [vmem:[%s2 + $0x13d8] sm:$0xff]
      %v1253 = vld [vmem:[%s2 + $0x13e0] sm:$0xff]
      %v1254 = vld [vmem:[%s2 + $0x13e8] sm:$0xff]
      %v1255 = vld [vmem:[%s2 + $0x13f0] sm:$0xff]
      %v1256 = vld [vmem:[%s2 + $0x13f8] sm:$0xff]
      %v1257 = vld [vmem:[%s2 + $0x1400] sm:$0xff]
      %v1258 = vld [vmem:[%s2 + $0x1408] sm:$0xff]
      %v1259 = vld [vmem:[%s2 + $0x1410] sm:$0xff]
      %v1260 = vld [vmem:[%s2 + $0x1418] sm:$0xff]
      %v1261 = vld [vmem:[%s2 + $0x1420] sm:$0xff]
      %v1262 = vld [vmem:[%s2 + $0x1428] sm:$0xff]
      %v1263 = vld [vmem:[%s2 + $0x1430] sm:$0xff]
      %v1264 = vld [vmem:[%s2 + $0x1438] sm:$0xff]
      %v1265 = vld [vmem:[%s2 + $0x1440] sm:$0xff]
      %v1266 = vld [vmem:[%s2 + $0x1448] sm:$0xff]
      %v1267 = vld [vmem:[%s2 + $0x1450] sm:$0xff]
      %v1268 = vld [vmem:[%s2 + $0x1458] sm:$0xff]
      %v1269 = vld [vmem:[%s2 + $0x1460] sm:$0xff]
      %v1270 = vld [vmem:[%s2 + $0x1468] sm:$0xff]
      %v1271 = vld [vmem:[%s2 + $0x1470] sm:$0xff]
      %v1272 = vld [vmem:[%s2 + $0x1478] sm:$0xff]
      %v1273 = vld [vmem:[%s2 + $0x1480] sm:$0xff]
      %v1274 = vld [vmem:[%s2 + $0x1488] sm:$0xff]
      %v1275 = vld [vmem:[%s2 + $0x1490] sm:$0xff]
      %v1276 = vld [vmem:[%s2 + $0x1498] sm:$0xff]
      %v1277 = vld [vmem:[%s2 + $0x14a0] sm:$0xff]
      %v1278 = vld [vmem:[%s2 + $0x14a8] sm:$0xff]
      %v1279 = vld [vmem:[%s2 + $0x14b0] sm:$0xff]
      %v1280 = vld [vmem:[%s2 + $0x14b8] sm:$0xff]
      %v1281 = vld [vmem:[%s2 + $0x14c0] sm:$0xff]
      %v1282 = vld [vmem:[%s2 + $0x14c8] sm:$0xff]
      %v1283 = vld [vmem:[%s2 + $0x14d0] sm:$0xff]
      %v1284 = vld [vmem:[%s2 + $0x14d8] sm:$0xff]
      %v1285 = vld [vmem:[%s2 + $0x14e0] sm:$0xff]
      %v1286 = vld [vmem:[%s2 + $0x14e8] sm:$0xff]
      %v1287 = vld [vmem:[%s2 + $0x14f0] sm:$0xff]
      %v1288 = vld [vmem:[%s2 + $0x14f8] sm:$0xff]
      %v1289 = vld [vmem:[%s2 + $0x1500] sm:$0xff]
      %v1290 = vld [vmem:[%s2 + $0x1508] sm:$0xff]
      %v1291 = vld [vmem:[%s2 + $0x1510] sm:$0xff]
      %v1292 = vld [vmem:[%s2 + $0x1518] sm:$0xff]
      %v1293 = vld [vmem:[%s2 + $0x1520] sm:$0xff]
      %v1294 = vld [vmem:[%s2 + $0x1528] sm:$0xff]
      %v1295 = vld [vmem:[%s2 + $0x1530] sm:$0xff]
      %v1296 = vld [vmem:[%s2 + $0x1538] sm:$0xff]
      %v1297 = vld [vmem:[%s2 + $0x1540] sm:$0xff]
      %v1298 = vld [vmem:[%s2 + $0x1548] sm:$0xff]
      %v1299 = vld [vmem:[%s2 + $0x1550] sm:$0xff]
      %v1300 = vld [vmem:[%s2 + $0x1558] sm:$0xff]
      %v1301 = vld [vmem:[%s2 + $0x1560] sm:$0xff]
      %v1302 = vld [vmem:[%s2 + $0x1568] sm:$0xff]
      %v1303 = vld [vmem:[%s2 + $0x1570] sm:$0xff]
      %v1304 = vld [vmem:[%s2 + $0x1578] sm:$0xff]
      %v1305 = vld [vmem:[%s2 + $0x1580] sm:$0xff]
      %v1306 = vld [vmem:[%s2 + $0x1588] sm:$0xff]
      %v1307 = vld [vmem:[%s2 + $0x1590] sm:$0xff]
      %v1308 = vld [vmem:[%s2 + $0x1598] sm:$0xff]
      %v1309 = vld [vmem:[%s2 + $0x15a0] sm:$0xff]
      %v1310 = vld [vmem:[%s2 + $0x15a8] sm:$0xff]
      %v1311 = vld [vmem:[%s2 + $0x15b0] sm:$0xff]
      %v1312 = vld [vmem:[%s2 + $0x15b8] sm:$0xff]
      %v1313 = vld [vmem:[%s2 + $0x15c0] sm:$0xff]
      %v1314 = vld [vmem:[%s2 + $0x15c8] sm:$0xff]
      %v1315 = vld [vmem:[%s2 + $0x15d0] sm:$0xff]
      %v1316 = vld [vmem:[%s2 + $0x15d8] sm:$0xff]
      %v1317 = vld [vmem:[%s2 + $0x15e0] sm:$0xff]
      %v1318 = vld [vmem:[%s2 + $0x15e8] sm:$0xff]
      %v1319 = vld [vmem:[%s2 + $0x15f0] sm:$0xff]
      %v1320 = vld [vmem:[%s2 + $0x15f8] sm:$0xff]
      %v1321 = vld [vmem:[%s2 + $0x1600] sm:$0xff]
      %v1322 = vld [vmem:[%s2 + $0x1608] sm:$0xff]
      %v1323 = vld [vmem:[%s2 + $0x1610] sm:$0xff]
      %v1324 = vld [vmem:[%s2 + $0x1618] sm:$0xff]
      %v1325 = vld [vmem:[%s2 + $0x1620] sm:$0xff]
      %v1326 = vld [vmem:[%s2 + $0x1628] sm:$0xff]
      %v1327 = vld [vmem:[%s2 + $0x1630] sm:$0xff]
      %v1328 = vld [vmem:[%s2 + $0x1638] sm:$0xff]
      %v1329 = vld [vmem:[%s2 + $0x1640] sm:$0xff]
      %v1330 = vld [vmem:[%s2 + $0x1648] sm:$0xff]
      %v1331 = vld [vmem:[%s2 + $0x1650] sm:$0xff]
      %v1332 = vld [vmem:[%s2 + $0x1658] sm:$0xff]
      %v1333 = vld [vmem:[%s2 + $0x1660] sm:$0xff]
      %v1334 = vld [vmem:[%s2 + $0x1668] sm:$0xff]
      %v1335 = vld [vmem:[%s2 + $0x1670] sm:$0xff]
      %v1336 = vld [vmem:[%s2 + $0x1678] sm:$0xff]
      %v1337 = vld [vmem:[%s2 + $0x1680] sm:$0xff]
      %v1338 = vld [vmem:[%s2 + $0x1688] sm:$0xff]
      %v1339 = vld [vmem:[%s2 + $0x1690] sm:$0xff]
      %v1340 = vld [vmem:[%s2 + $0x1698] sm:$0xff]
      %v1341 = vld [vmem:[%s2 + $0x16a0] sm:$0xff]
      %v1342 = vld [vmem:[%s2 + $0x16a8] sm:$0xff]
      %v1343 = vld [vmem:[%s2 + $0x16b0] sm:$0xff]
      %v1344 = vld [vmem:[%s2 + $0x16b8] sm:$0xff]
      %v1345 = vld [vmem:[%s2 + $0x16c0] sm:$0xff]
      %v1346 = vld [vmem:[%s2 + $0x16c8] sm:$0xff]
      %v1347 = vld [vmem:[%s2 + $0x16d0] sm:$0xff]
      %v1348 = vld [vmem:[%s2 + $0x16d8] sm:$0xff]
      %v1349 = vld [vmem:[%s2 + $0x16e0] sm:$0xff]
      %v1350 = vld [vmem:[%s2 + $0x16e8] sm:$0xff]
      %v1351 = vld [vmem:[%s2 + $0x16f0] sm:$0xff]
      %v1352 = vld [vmem:[%s2 + $0x16f8] sm:$0xff]
      %v1353 = vld [vmem:[%s2 + $0x1700] sm:$0xff]
      %v1354 = vld [vmem:[%s2 + $0x1708] sm:$0xff]
      %v1355 = vld [vmem:[%s2 + $0x1710] sm:$0xff]
      %v1356 = vld [vmem:[%s2 + $0x1718] sm:$0xff]
      %v1357 = vld [vmem:[%s2 + $0x1720] sm:$0xff]
      %v1358 = vld [vmem:[%s2 + $0x1728] sm:$0xff]
      %v1359 = vld [vmem:[%s2 + $0x1730] sm:$0xff]
      %v1360 = vld [vmem:[%s2 + $0x1738] sm:$0xff]
      %v1361 = vld [vmem:[%s2 + $0x1740] sm:$0xff]
      %v1362 = vld [vmem:[%s2 + $0x1748] sm:$0xff]
      %v1363 = vld [vmem:[%s2 + $0x1750] sm:$0xff]
      %v1364 = vld [vmem:[%s2 + $0x1758] sm:$0xff]
      %v1365 = vld [vmem:[%s2 + $0x1760] sm:$0xff]
      %v1366 = vld [vmem:[%s2 + $0x1768] sm:$0xff]
      %v1367 = vld [vmem:[%s2 + $0x1770] sm:$0xff]
      %v1368 = vld [vmem:[%s2 + $0x1778] sm:$0xff]
      %v1369 = vld [vmem:[%s2 + $0x1780] sm:$0xff]
      %v1370 = vld [vmem:[%s2 + $0x1788] sm:$0xff]
      %v1371 = vld [vmem:[%s2 + $0x1790] sm:$0xff]
      %v1372 = vld [vmem:[%s2 + $0x1798] sm:$0xff]
      %v1373 = vld [vmem:[%s2 + $0x17a0] sm:$0xff]
      %v1374 = vld [vmem:[%s2 + $0x17a8] sm:$0xff]
      %v1375 = vld [vmem:[%s2 + $0x17b0] sm:$0xff]
      %v1376 = vld [vmem:[%s2 + $0x17b8] sm:$0xff]
      %v1377 = vld [vmem:[%s2 + $0x17c0] sm:$0xff]
      %v1378 = vld [vmem:[%s2 + $0x17c8] sm:$0xff]
      %v1379 = vld [vmem:[%s2 + $0x17d0] sm:$0xff]
      %v1380 = vld [vmem:[%s2 + $0x17d8] sm:$0xff]
      %v1381 = vld [vmem:[%s2 + $0x17e0] sm:$0xff]
      %v1382 = vld [vmem:[%s2 + $0x17e8] sm:$0xff]
      %v1383 = vld [vmem:[%s2 + $0x17f0] sm:$0xff]
      %v1384 = vld [vmem:[%s2 + $0x17f8] sm:$0xff]
      %v1385 = vld [vmem:[%s2 + $0x1800] sm:$0xff]
      %v1386 = vld [vmem:[%s2 + $0x1808] sm:$0xff]
      %v1387 = vld [vmem:[%s2 + $0x1810] sm:$0xff]
      %v1388 = vld [vmem:[%s2 + $0x1818] sm:$0xff]
      %v1389 = vld [vmem:[%s2 + $0x1820] sm:$0xff]
      %v1390 = vld [vmem:[%s2 + $0x1828] sm:$0xff]
      %v1391 = vld [vmem:[%s2 + $0x1830] sm:$0xff]
      %v1392 = vld [vmem:[%s2 + $0x1838] sm:$0xff]
      %v1393 = vld [vmem:[%s2 + $0x1840] sm:$0xff]
      %v1394 = vld [vmem:[%s2 + $0x1848] sm:$0xff]
      %v1395 = vld [vmem:[%s2 + $0x1850] sm:$0xff]
      %v1396 = vld [vmem:[%s2 + $0x1858] sm:$0xff]
      %v1397 = vld [vmem:[%s2 + $0x1860] sm:$0xff]
      %v1398 = vld [vmem:[%s2 + $0x1868] sm:$0xff]
      %v1399 = vld [vmem:[%s2 + $0x1870] sm:$0xff]
      %v1400 = vld [vmem:[%s2 + $0x1878] sm:$0xff]
      %v1401 = vld [vmem:[%s2 + $0x1880] sm:$0xff]
      %v1402 = vld [vmem:[%s2 + $0x1888] sm:$0xff]
      %v1403 = vld [vmem:[%s2 + $0x1890] sm:$0xff]
      %v1404 = vld [vmem:[%s2 + $0x1898] sm:$0xff]
      %v1405 = vld [vmem:[%s2 + $0x18a0] sm:$0xff]
      %v1406 = vld [vmem:[%s2 + $0x18a8] sm:$0xff]
      %v1407 = vld [vmem:[%s2 + $0x18b0] sm:$0xff]
      %v1408 = vld [vmem:[%s2 + $0x18b8] sm:$0xff]
      %v1409 = vld [vmem:[%s2 + $0x18c0] sm:$0xff]
      %v1410 = vld [vmem:[%s2 + $0x18c8] sm:$0xff]
      %v1411 = vld [vmem:[%s2 + $0x18d0] sm:$0xff]
      %v1412 = vld [vmem:[%s2 + $0x18d8] sm:$0xff]
      %v1413 = vld [vmem:[%s2 + $0x18e0] sm:$0xff]
      %v1414 = vld [vmem:[%s2 + $0x18e8] sm:$0xff]
      %v1415 = vld [vmem:[%s2 + $0x18f0] sm:$0xff]
      %v1416 = vld [vmem:[%s2 + $0x18f8] sm:$0xff]
      %v1417 = vld [vmem:[%s2 + $0x1900] sm:$0xff]
      %v1418 = vld [vmem:[%s2 + $0x1908] sm:$0xff]
      %v1419 = vld [vmem:[%s2 + $0x1910] sm:$0xff]
      %v1420 = vld [vmem:[%s2 + $0x1918] sm:$0xff]
      %v1421 = vld [vmem:[%s2 + $0x1920] sm:$0xff]
      %v1422 = vld [vmem:[%s2 + $0x1928] sm:$0xff]
      %v1423 = vld [vmem:[%s2 + $0x1930] sm:$0xff]
      %v1424 = vld [vmem:[%s2 + $0x1938] sm:$0xff]
      %v1425 = vld [vmem:[%s2 + $0x1940] sm:$0xff]
      %v1426 = vld [vmem:[%s2 + $0x1948] sm:$0xff]
      %v1427 = vld [vmem:[%s2 + $0x1950] sm:$0xff]
      %v1428 = vld [vmem:[%s2 + $0x1958] sm:$0xff]
      %v1429 = vld [vmem:[%s2 + $0x1960] sm:$0xff]
      %v1430 = vld [vmem:[%s2 + $0x1968] sm:$0xff]
      %v1431 = vld [vmem:[%s2 + $0x1970] sm:$0xff]
      %v1432 = vld [vmem:[%s2 + $0x1978] sm:$0xff]
      %v1433 = vld [vmem:[%s2 + $0x1980] sm:$0xff]
      %v1434 = vld [vmem:[%s2 + $0x1988] sm:$0xff]
      %v1435 = vld [vmem:[%s2 + $0x1990] sm:$0xff]
      %v1436 = vld [vmem:[%s2 + $0x1998] sm:$0xff]
      %v1437 = vld [vmem:[%s2 + $0x19a0] sm:$0xff]
      %v1438 = vld [vmem:[%s2 + $0x19a8] sm:$0xff]
      %v1439 = vld [vmem:[%s2 + $0x19b0] sm:$0xff]
      %v1440 = vld [vmem:[%s2 + $0x19b8] sm:$0xff]
      %v1441 = vld [vmem:[%s2 + $0x19c0] sm:$0xff]
      %v1442 = vld [vmem:[%s2 + $0x19c8] sm:$0xff]
      %v1443 = vld [vmem:[%s2 + $0x19d0] sm:$0xff]
      %v1444 = vld [vmem:[%s2 + $0x19d8] sm:$0xff]
      %v1445 = vld [vmem:[%s2 + $0x19e0] sm:$0xff]
      %v1446 = vld [vmem:[%s2 + $0x19e8] sm:$0xff]
      %v1447 = vld [vmem:[%s2 + $0x19f0] sm:$0xff]
      %v1448 = vld [vmem:[%s2 + $0x19f8] sm:$0xff]
      %v1449 = vld [vmem:[%s2 + $0x1a00] sm:$0xff]
      %v1450 = vld [vmem:[%s2 + $0x1a08] sm:$0xff]
      %v1451 = vld [vmem:[%s2 + $0x1a10] sm:$0xff]
      %v1452 = vld [vmem:[%s2 + $0x1a18] sm:$0xff]
      %v1453 = vld [vmem:[%s2 + $0x1a20] sm:$0xff]
      %v1454 = vld [vmem:[%s2 + $0x1a28] sm:$0xff]
      %v1455 = vld [vmem:[%s2 + $0x1a30] sm:$0xff]
      %v1456 = vld [vmem:[%s2 + $0x1a38] sm:$0xff]
      %v1457 = vld [vmem:[%s2 + $0x1a40] sm:$0xff]
      %v1458 = vld [vmem:[%s2 + $0x1a48] sm:$0xff]
      %v1459 = vld [vmem:[%s2 + $0x1a50] sm:$0xff]
      %v1460 = vld [vmem:[%s2 + $0x1a58] sm:$0xff]
      %v1461 = vld [vmem:[%s2 + $0x1a60] sm:$0xff]
      %v1462 = vld [vmem:[%s2 + $0x1a68] sm:$0xff]
      %v1463 = vld [vmem:[%s2 + $0x1a70] sm:$0xff]
      %v1464 = vld [vmem:[%s2 + $0x1a78] sm:$0xff]
      %v1465 = vld [vmem:[%s2 + $0x1a80] sm:$0xff]
      %v1466 = vld [vmem:[%s2 + $0x1a88] sm:$0xff]
      %v1467 = vld [vmem:[%s2 + $0x1a90] sm:$0xff]
      %v1468 = vld [vmem:[%s2 + $0x1a98] sm:$0xff]
      %v1469 = vld [vmem:[%s2 + $0x1aa0] sm:$0xff]
      %v1470 = vld [vmem:[%s2 + $0x1aa8] sm:$0xff]
      %v1471 = vld [vmem:[%s2 + $0x1ab0] sm:$0xff]
      %v1472 = vld [vmem:[%s2 + $0x1ab8] sm:$0xff]
      %v1473 = vld [vmem:[%s2 + $0x1ac0] sm:$0xff]
      %v1474 = vld [vmem:[%s2 + $0x1ac8] sm:$0xff]
      %v1475 = vld [vmem:[%s2 + $0x1ad0] sm:$0xff]
      %v1476 = vld [vmem:[%s2 + $0x1ad8] sm:$0xff]
      %v1477 = vld [vmem:[%s2 + $0x1ae0] sm:$0xff]
      %v1478 = vld [vmem:[%s2 + $0x1ae8] sm:$0xff]
      %v1479 = vld [vmem:[%s2 + $0x1af0] sm:$0xff]
      %v1480 = vld [vmem:[%s2 + $0x1af8] sm:$0xff]
      %v1481 = vld [vmem:[%s2 + $0x1b00] sm:$0xff]
      %v1482 = vld [vmem:[%s2 + $0x1b08] sm:$0xff]
      %v1483 = vld [vmem:[%s2 + $0x1b10] sm:$0xff]
      %v1484 = vld [vmem:[%s2 + $0x1b18] sm:$0xff]
      %v1485 = vld [vmem:[%s2 + $0x1b20] sm:$0xff]
      %v1486 = vld [vmem:[%s2 + $0x1b28] sm:$0xff]
      %v1487 = vld [vmem:[%s2 + $0x1b30] sm:$0xff]
      %v1488 = vld [vmem:[%s2 + $0x1b38] sm:$0xff]
      %v1489 = vld [vmem:[%s2 + $0x1b40] sm:$0xff]
      %v1490 = vld [vmem:[%s2 + $0x1b48] sm:$0xff]
      %v1491 = vld [vmem:[%s2 + $0x1b50] sm:$0xff]
      %v1492 = vld [vmem:[%s2 + $0x1b58] sm:$0xff]
      %v1493 = vld [vmem:[%s2 + $0x1b60] sm:$0xff]
      %v1494 = vld [vmem:[%s2 + $0x1b68] sm:$0xff]
      %v1495 = vld [vmem:[%s2 + $0x1b70] sm:$0xff]
      %v1496 = vld [vmem:[%s2 + $0x1b78] sm:$0xff]
      %v1497 = vld [vmem:[%s2 + $0x1b80] sm:$0xff]
      %v1498 = vld [vmem:[%s2 + $0x1b88] sm:$0xff]
      %v1499 = vld [vmem:[%s2 + $0x1b90] sm:$0xff]
      %v1500 = vld [vmem:[%s2 + $0x1b98] sm:$0xff]
      %v1501 = vld [vmem:[%s2 + $0x1ba0] sm:$0xff]
      %v1502 = vld [vmem:[%s2 + $0x1ba8] sm:$0xff]
      %v1503 = vld [vmem:[%s2 + $0x1bb0] sm:$0xff]
      %v1504 = vld [vmem:[%s2 + $0x1bb8] sm:$0xff]
      %v1505 = vld [vmem:[%s2 + $0x1bc0] sm:$0xff]
      %v1506 = vld [vmem:[%s2 + $0x1bc8] sm:$0xff]
      %v1507 = vld [vmem:[%s2 + $0x1bd0] sm:$0xff]
      %v1508 = vld [vmem:[%s2 + $0x1bd8] sm:$0xff]
      %v1509 = vld [vmem:[%s2 + $0x1be0] sm:$0xff]
      %v1510 = vld [vmem:[%s2 + $0x1be8] sm:$0xff]
      %v1511 = vld [vmem:[%s2 + $0x1bf0] sm:$0xff]
      %v1512 = vld [vmem:[%s2 + $0x1bf8] sm:$0xff]
      %v1513 = vld [vmem:[%s2 + $0x1c00] sm:$0xff]
      %v1514 = vld [vmem:[%s2 + $0x1c08] sm:$0xff]
      %v1515 = vld [vmem:[%s2 + $0x1c10] sm:$0xff]
      %v1516 = vld [vmem:[%s2 + $0x1c18] sm:$0xff]
      %v1517 = vld [vmem:[%s2 + $0x1c20] sm:$0xff]
      %v1518 = vld [vmem:[%s2 + $0x1c28] sm:$0xff]
      %v1519 = vld [vmem:[%s2 + $0x1c30] sm:$0xff]
      %v1520 = vld [vmem:[%s2 + $0x1c38] sm:$0xff]
      %v1521 = vld [vmem:[%s2 + $0x1c40] sm:$0xff]
      %v1522 = vld [vmem:[%s2 + $0x1c48] sm:$0xff]
      %v1523 = vld [vmem:[%s2 + $0x1c50] sm:$0xff]
      %v1524 = vld [vmem:[%s2 + $0x1c58] sm:$0xff]
      %v1525 = vld [vmem:[%s2 + $0x1c60] sm:$0xff]
      %v1526 = vld [vmem:[%s2 + $0x1c68] sm:$0xff]
      %v1527 = vld [vmem:[%s2 + $0x1c70] sm:$0xff]
      %v1528 = vld [vmem:[%s2 + $0x1c78] sm:$0xff]
      %v1529 = vld [vmem:[%s2 + $0x1c80] sm:$0xff]
      %v1530 = vld [vmem:[%s2 + $0x1c88] sm:$0xff]
      %v1531 = vld [vmem:[%s2 + $0x1c90] sm:$0xff]
      %v1532 = vld [vmem:[%s2 + $0x1c98] sm:$0xff]
      %v1533 = vld [vmem:[%s2 + $0x1ca0] sm:$0xff]
      %v1534 = vld [vmem:[%s2 + $0x1ca8] sm:$0xff]
      %v1535 = vld [vmem:[%s2 + $0x1cb0] sm:$0xff]
      %v1536 = vld [vmem:[%s2 + $0x1cb8] sm:$0xff]
      %v1537 = vld [vmem:[%s2 + $0x1cc0] sm:$0xff]
      %v1538 = vld [vmem:[%s2 + $0x1cc8] sm:$0xff]
      %v1539 = vld [vmem:[%s2 + $0x1cd0] sm:$0xff]
      %v1540 = vld [vmem:[%s2 + $0x1cd8] sm:$0xff]
      %v1541 = vld [vmem:[%s2 + $0x1ce0] sm:$0xff]
      %v1542 = vld [vmem:[%s2 + $0x1ce8] sm:$0xff]
      %v1543 = vld [vmem:[%s2 + $0x1cf0] sm:$0xff]
      %v1544 = vld [vmem:[%s2 + $0x1cf8] sm:$0xff]
      %v1545 = vld [vmem:[%s2 + $0x1d00] sm:$0xff]
      %v1546 = vld [vmem:[%s2 + $0x1d08] sm:$0xff]
      %v1547 = vld [vmem:[%s2 + $0x1d10] sm:$0xff]
      %v1548 = vld [vmem:[%s2 + $0x1d18] sm:$0xff]
      %v1549 = vld [vmem:[%s2 + $0x1d20] sm:$0xff]
      %v1550 = vld [vmem:[%s2 + $0x1d28] sm:$0xff]
      %v1551 = vld [vmem:[%s2 + $0x1d30] sm:$0xff]
      %v1552 = vld [vmem:[%s2 + $0x1d38] sm:$0xff]
      %v1553 = vld [vmem:[%s2 + $0x1d40] sm:$0xff]
      %v1554 = vld [vmem:[%s2 + $0x1d48] sm:$0xff]
      %v1555 = vld [vmem:[%s2 + $0x1d50] sm:$0xff]
      %v1556 = vld [vmem:[%s2 + $0x1d58] sm:$0xff]
      %v1557 = vld [vmem:[%s2 + $0x1d60] sm:$0xff]
      %v1558 = vld [vmem:[%s2 + $0x1d68] sm:$0xff]
      %v1559 = vld [vmem:[%s2 + $0x1d70] sm:$0xff]
      %v1560 = vld [vmem:[%s2 + $0x1d78] sm:$0xff]
      %v1561 = vld [vmem:[%s2 + $0x1d80] sm:$0xff]
      %v1562 = vld [vmem:[%s2 + $0x1d88] sm:$0xff]
      %v1563 = vld [vmem:[%s2 + $0x1d90] sm:$0xff]
      %v1564 = vld [vmem:[%s2 + $0x1d98] sm:$0xff]
      %v1565 = vld [vmem:[%s2 + $0x1da0] sm:$0xff]
      %v1566 = vld [vmem:[%s2 + $0x1da8] sm:$0xff]
      %v1567 = vld [vmem:[%s2 + $0x1db0] sm:$0xff]
      %v1568 = vld [vmem:[%s2 + $0x1db8] sm:$0xff]
      %v1569 = vld [vmem:[%s2 + $0x1dc0] sm:$0xff]
      %v1570 = vld [vmem:[%s2 + $0x1dc8] sm:$0xff]
      %v1571 = vld [vmem:[%s2 + $0x1dd0] sm:$0xff]
      %v1572 = vld [vmem:[%s2 + $0x1dd8] sm:$0xff]
      %v1573 = vld [vmem:[%s2 + $0x1de0] sm:$0xff]
      %v1574 = vld [vmem:[%s2 + $0x1de8] sm:$0xff]
      %v1575 = vld [vmem:[%s2 + $0x1df0] sm:$0xff]
      %v1576 = vld [vmem:[%s2 + $0x1df8] sm:$0xff]
      %v1577 = vld [vmem:[%s2 + $0x1e00] sm:$0xff]
      %v1578 = vld [vmem:[%s2 + $0x1e08] sm:$0xff]
      %v1579 = vld [vmem:[%s2 + $0x1e10] sm:$0xff]
      %v1580 = vld [vmem:[%s2 + $0x1e18] sm:$0xff]
      %v1581 = vld [vmem:[%s2 + $0x1e20] sm:$0xff]
      %v1582 = vld [vmem:[%s2 + $0x1e28] sm:$0xff]
      %v1583 = vld [vmem:[%s2 + $0x1e30] sm:$0xff]
      %v1584 = vld [vmem:[%s2 + $0x1e38] sm:$0xff]
      %v1585 = vld [vmem:[%s2 + $0x1e40] sm:$0xff]
      %v1586 = vld [vmem:[%s2 + $0x1e48] sm:$0xff]
      %v1587 = vld [vmem:[%s2 + $0x1e50] sm:$0xff]
      %v1588 = vld [vmem:[%s2 + $0x1e58] sm:$0xff]
      %v1589 = vld [vmem:[%s2 + $0x1e60] sm:$0xff]
      %v1590 = vld [vmem:[%s2 + $0x1e68] sm:$0xff]
      %v1591 = vld [vmem:[%s2 + $0x1e70] sm:$0xff]
      %v1592 = vld [vmem:[%s2 + $0x1e78] sm:$0xff]
      %v1593 = vld [vmem:[%s2 + $0x1e80] sm:$0xff]
      %v1594 = vld [vmem:[%s2 + $0x1e88] sm:$0xff]
      %v1595 = vld [vmem:[%s2 + $0x1e90] sm:$0xff]
      %v1596 = vld [vmem:[%s2 + $0x1e98] sm:$0xff]
      %v1597 = vld [vmem:[%s2 + $0x1ea0] sm:$0xff]
      %v1598 = vld [vmem:[%s2 + $0x1ea8] sm:$0xff]
      %v1599 = vld [vmem:[%s2 + $0x1eb0] sm:$0xff]
      %v1600 = vld [vmem:[%s2 + $0x1eb8] sm:$0xff]
      %v1601 = vld [vmem:[%s2 + $0x1ec0] sm:$0xff]
      %v1602 = vld [vmem:[%s2 + $0x1ec8] sm:$0xff]
      %v1603 = vld [vmem:[%s2 + $0x1ed0] sm:$0xff]
      %v1604 = vld [vmem:[%s2 + $0x1ed8] sm:$0xff]
      %v1605 = vld [vmem:[%s2 + $0x1ee0] sm:$0xff]
      %v1606 = vld [vmem:[%s2 + $0x1ee8] sm:$0xff]
      %v1607 = vld [vmem:[%s2 + $0x1ef0] sm:$0xff]
      %v1608 = vld [vmem:[%s2 + $0x1ef8] sm:$0xff]
      %v1609 = vld [vmem:[%s2 + $0x1f00] sm:$0xff]
      %v1610 = vld [vmem:[%s2 + $0x1f08] sm:$0xff]
      %v1611 = vld [vmem:[%s2 + $0x1f10] sm:$0xff]
      %v1612 = vld [vmem:[%s2 + $0x1f18] sm:$0xff]
      %v1613 = vld [vmem:[%s2 + $0x1f20] sm:$0xff]
      %v1614 = vld [vmem:[%s2 + $0x1f28] sm:$0xff]
      %v1615 = vld [vmem:[%s2 + $0x1f30] sm:$0xff]
      %v1616 = vld [vmem:[%s2 + $0x1f38] sm:$0xff]
      %v1617 = vld [vmem:[%s2 + $0x1f40] sm:$0xff]
      %v1618 = vld [vmem:[%s2 + $0x1f48] sm:$0xff]
      %v1619 = vld [vmem:[%s2 + $0x1f50] sm:$0xff]
      %v1620 = vld [vmem:[%s2 + $0x1f58] sm:$0xff]
      %v1621 = vld [vmem:[%s2 + $0x1f60] sm:$0xff]
      %v1622 = vld [vmem:[%s2 + $0x1f68] sm:$0xff]
      %v1623 = vld [vmem:[%s2 + $0x1f70] sm:$0xff]
      %v1624 = vld [vmem:[%s2 + $0x1f78] sm:$0xff]
      %v1625 = vld [vmem:[%s2 + $0x1f80] sm:$0xff]
      %v1626 = vld [vmem:[%s2 + $0x1f88] sm:$0xff]
      %v1627 = vld [vmem:[%s2 + $0x1f90] sm:$0xff]
      %v1628 = vld [vmem:[%s2 + $0x1f98] sm:$0xff]
      %v1629 = vld [vmem:[%s2 + $0x1fa0] sm:$0xff]
      %v1630 = vld [vmem:[%s2 + $0x1fa8] sm:$0xff]
      %v1631 = vld [vmem:[%s2 + $0x1fb0] sm:$0xff]
      %v1632 = vld [vmem:[%s2 + $0x1fb8] sm:$0xff]
      %v1633 = vld [vmem:[%s2 + $0x1fc0] sm:$0xff]
      %v1634 = vld [vmem:[%s2 + $0x1fc8] sm:$0xff]
      %v1635 = vld [vmem:[%s2 + $0x1fd0] sm:$0xff]
      %v1636 = vld [vmem:[%s2 + $0x1fd8] sm:$0xff]
      %v1637 = vld [vmem:[%s2 + $0x1fe0] sm:$0xff]
      %v1638 = vld [vmem:[%s2 + $0x1fe8] sm:$0xff]
      %v1639 = vld [vmem:[%s2 + $0x1ff0] sm:$0xff]
      %v1640 = vld [vmem:[%s2 + $0x1ff8] sm:$0xff]
      %v1641 = vld [vmem:[%s3] sm:$0xff]
      %v1642 = vld [vmem:[%s3 + $0x8] sm:$0xff]
      %v1643 = vld [vmem:[%s3 + $0x10] sm:$0xff]
      %v1644 = vld [vmem:[%s3 + $0x18] sm:$0xff]
      %v1645 = vld [vmem:[%s3 + $0x20] sm:$0xff]
      %v1646 = vld [vmem:[%s3 + $0x28] sm:$0xff]
      %v1647 = vld [vmem:[%s3 + $0x30] sm:$0xff]
      %v1648 = vld [vmem:[%s3 + $0x38] sm:$0xff]
      %v1649 = vld [vmem:[%s3 + $0x40] sm:$0xff]
      %v1650 = vld [vmem:[%s3 + $0x48] sm:$0xff]
      %v1651 = vld [vmem:[%s3 + $0x50] sm:$0xff]
      %v1652 = vld [vmem:[%s3 + $0x58] sm:$0xff]
      %v1653 = vld [vmem:[%s3 + $0x60] sm:$0xff]
      %v1654 = vld [vmem:[%s3 + $0x68] sm:$0xff]
      %v1655 = vld [vmem:[%s3 + $0x70] sm:$0xff]
      %v1656 = vld [vmem:[%s3 + $0x78] sm:$0xff]
      %v1657 = vld [vmem:[%s3 + $0x80] sm:$0xff]
      %v1658 = vld [vmem:[%s3 + $0x88] sm:$0xff]
      %v1659 = vld [vmem:[%s3 + $0x90] sm:$0xff]
      %v1660 = vld [vmem:[%s3 + $0x98] sm:$0xff]
      %v1661 = vld [vmem:[%s3 + $0xa0] sm:$0xff]
      %v1662 = vld [vmem:[%s3 + $0xa8] sm:$0xff]
      %v1663 = vld [vmem:[%s3 + $0xb0] sm:$0xff]
      %v1664 = vld [vmem:[%s3 + $0xb8] sm:$0xff]
      %v1665 = vld [vmem:[%s3 + $0xc0] sm:$0xff]
      %v1666 = vld [vmem:[%s3 + $0xc8] sm:$0xff]
      %v1667 = vld [vmem:[%s3 + $0xd0] sm:$0xff]
      %v1668 = vld [vmem:[%s3 + $0xd8] sm:$0xff]
      %v1669 = vld [vmem:[%s3 + $0xe0] sm:$0xff]
      %v1670 = vld [vmem:[%s3 + $0xe8] sm:$0xff]
      %v1671 = vld [vmem:[%s3 + $0xf0] sm:$0xff]
      %v1672 = vld [vmem:[%s3 + $0xf8] sm:$0xff]
      %v1673 = vld [vmem:[%s3 + $0x100] sm:$0xff]
      %v1674 = vld [vmem:[%s3 + $0x108] sm:$0xff]
      %v1675 = vld [vmem:[%s3 + $0x110] sm:$0xff]
      %v1676 = vld [vmem:[%s3 + $0x118] sm:$0xff]
      %v1677 = vld [vmem:[%s3 + $0x120] sm:$0xff]
      %v1678 = vld [vmem:[%s3 + $0x128] sm:$0xff]
      %v1679 = vld [vmem:[%s3 + $0x130] sm:$0xff]
      %v1680 = vld [vmem:[%s3 + $0x138] sm:$0xff]
      %v1681 = vld [vmem:[%s3 + $0x140] sm:$0xff]
      %v1682 = vld [vmem:[%s3 + $0x148] sm:$0xff]
      %v1683 = vld [vmem:[%s3 + $0x150] sm:$0xff]
      %v1684 = vld [vmem:[%s3 + $0x158] sm:$0xff]
      %v1685 = vld [vmem:[%s3 + $0x160] sm:$0xff]
      %v1686 = vld [vmem:[%s3 + $0x168] sm:$0xff]
      %v1687 = vld [vmem:[%s3 + $0x170] sm:$0xff]
      %v1688 = vld [vmem:[%s3 + $0x178] sm:$0xff]
      %v1689 = vld [vmem:[%s3 + $0x180] sm:$0xff]
      %v1690 = vld [vmem:[%s3 + $0x188] sm:$0xff]
      %v1691 = vld [vmem:[%s3 + $0x190] sm:$0xff]
      %v1692 = vld [vmem:[%s3 + $0x198] sm:$0xff]
      %v1693 = vld [vmem:[%s3 + $0x1a0] sm:$0xff]
      %v1694 = vld [vmem:[%s3 + $0x1a8] sm:$0xff]
      %v1695 = vld [vmem:[%s3 + $0x1b0] sm:$0xff]
      %v1696 = vld [vmem:[%s3 + $0x1b8] sm:$0xff]
      %v1697 = vld [vmem:[%s3 + $0x1c0] sm:$0xff]
      %v1698 = vld [vmem:[%s3 + $0x1c8] sm:$0xff]
      %v1699 = vld [vmem:[%s3 + $0x1d0] sm:$0xff]
      %v1700 = vld [vmem:[%s3 + $0x1d8] sm:$0xff]
      %v1701 = vld [vmem:[%s3 + $0x1e0] sm:$0xff]
      %v1702 = vld [vmem:[%s3 + $0x1e8] sm:$0xff]
      %v1703 = vld [vmem:[%s3 + $0x1f0] sm:$0xff]
      %v1704 = vld [vmem:[%s3 + $0x1f8] sm:$0xff]
      %1706 = vset.pattern.permute.xlu0 0
      %1707 = vperm.xlu0 %1706, %v1641
      %v1708 = vpop.permute.xlu0 %1707
      %1711 = vset.pattern.permute.xlu0 0
      %1712 = vperm.xlu0 %1711, %v1642
      %v1713 = vpop.permute.xlu0 %1712
      %1716 = vset.pattern.permute.xlu0 0
      %1717 = vperm.xlu0 %1716, %v1643
      %v1718 = vpop.permute.xlu0 %1717
      %1721 = vset.pattern.permute.xlu0 0
      %1722 = vperm.xlu0 %1721, %v1644
      %v1723 = vpop.permute.xlu0 %1722
      %1726 = vset.pattern.permute.xlu0 0
      %1727 = vperm.xlu0 %1726, %v1645
      %v1728 = vpop.permute.xlu0 %1727
      %1731 = vset.pattern.permute.xlu0 0
      %1732 = vperm.xlu0 %1731, %v1646
      %v1733 = vpop.permute.xlu0 %1732
      %1736 = vset.pattern.permute.xlu0 0
      %1737 = vperm.xlu0 %1736, %v1647
      %v1738 = vpop.permute.xlu0 %1737
      %1741 = vset.pattern.permute.xlu0 0
      %1742 = vperm.xlu0 %1741, %v1648
      %v1743 = vpop.permute.xlu0 %1742
      %1746 = vset.pattern.permute.xlu0 0
      %1747 = vperm.xlu0 %1746, %v1649
      %v1748 = vpop.permute.xlu0 %1747
      %1751 = vset.pattern.permute.xlu0 0
      %1752 = vperm.xlu0 %1751, %v1650
      %v1753 = vpop.permute.xlu0 %1752
      %1756 = vset.pattern.permute.xlu0 0
      %1757 = vperm.xlu0 %1756, %v1651
      %v1758 = vpop.permute.xlu0 %1757
      %1761 = vset.pattern.permute.xlu0 0
      %1762 = vperm.xlu0 %1761, %v1652
      %v1763 = vpop.permute.xlu0 %1762
      %1766 = vset.pattern.permute.xlu0 0
      %1767 = vperm.xlu0 %1766, %v1653
      %v1768 = vpop.permute.xlu0 %1767
      %1771 = vset.pattern.permute.xlu0 0
      %1772 = vperm.xlu0 %1771, %v1654
      %v1773 = vpop.permute.xlu0 %1772
      %1776 = vset.pattern.permute.xlu0 0
      %1777 = vperm.xlu0 %1776, %v1655
      %v1778 = vpop.permute.xlu0 %1777
      %1781 = vset.pattern.permute.xlu0 0
      %1782 = vperm.xlu0 %1781, %v1656
      %v1783 = vpop.permute.xlu0 %1782
      %1786 = vset.pattern.permute.xlu0 0
      %1787 = vperm.xlu0 %1786, %v1657
      %v1788 = vpop.permute.xlu0 %1787
      %1791 = vset.pattern.permute.xlu0 0
      %1792 = vperm.xlu0 %1791, %v1658
      %v1793 = vpop.permute.xlu0 %1792
      %1796 = vset.pattern.permute.xlu0 0
      %1797 = vperm.xlu0 %1796, %v1659
      %v1798 = vpop.permute.xlu0 %1797
      %1801 = vset.pattern.permute.xlu0 0
      %1802 = vperm.xlu0 %1801, %v1660
      %v1803 = vpop.permute.xlu0 %1802
      %1806 = vset.pattern.permute.xlu0 0
      %1807 = vperm.xlu0 %1806, %v1661
      %v1808 = vpop.permute.xlu0 %1807
      %1811 = vset.pattern.permute.xlu0 0
      %1812 = vperm.xlu0 %1811, %v1662
      %v1813 = vpop.permute.xlu0 %1812
      %1816 = vset.pattern.permute.xlu0 0
      %1817 = vperm.xlu0 %1816, %v1663
      %v1818 = vpop.permute.xlu0 %1817
      %1821 = vset.pattern.permute.xlu0 0
      %1822 = vperm.xlu0 %1821, %v1664
      %v1823 = vpop.permute.xlu0 %1822
      %1826 = vset.pattern.permute.xlu0 0
      %1827 = vperm.xlu0 %1826, %v1665
      %v1828 = vpop.permute.xlu0 %1827
      %1831 = vset.pattern.permute.xlu0 0
      %1832 = vperm.xlu0 %1831, %v1666
      %v1833 = vpop.permute.xlu0 %1832
      %1836 = vset.pattern.permute.xlu0 0
      %1837 = vperm.xlu0 %1836, %v1667
      %v1838 = vpop.permute.xlu0 %1837
      %1841 = vset.pattern.permute.xlu0 0
      %1842 = vperm.xlu0 %1841, %v1668
      %v1843 = vpop.permute.xlu0 %1842
      %1846 = vset.pattern.permute.xlu0 0
      %1847 = vperm.xlu0 %1846, %v1669
      %v1848 = vpop.permute.xlu0 %1847
      %1851 = vset.pattern.permute.xlu0 0
      %1852 = vperm.xlu0 %1851, %v1670
      %v1853 = vpop.permute.xlu0 %1852
      %1856 = vset.pattern.permute.xlu0 0
      %1857 = vperm.xlu0 %1856, %v1671
      %v1858 = vpop.permute.xlu0 %1857
      %1861 = vset.pattern.permute.xlu0 0
      %1862 = vperm.xlu0 %1861, %v1672
      %v1863 = vpop.permute.xlu0 %1862
      %1866 = vset.pattern.permute.xlu0 0
      %1867 = vperm.xlu0 %1866, %v1673
      %v1868 = vpop.permute.xlu0 %1867
      %1871 = vset.pattern.permute.xlu0 0
      %1872 = vperm.xlu0 %1871, %v1674
      %v1873 = vpop.permute.xlu0 %1872
      %1876 = vset.pattern.permute.xlu0 0
      %1877 = vperm.xlu0 %1876, %v1675
      %v1878 = vpop.permute.xlu0 %1877
      %1881 = vset.pattern.permute.xlu0 0
      %1882 = vperm.xlu0 %1881, %v1676
      %v1883 = vpop.permute.xlu0 %1882
      %1886 = vset.pattern.permute.xlu0 0
      %1887 = vperm.xlu0 %1886, %v1677
      %v1888 = vpop.permute.xlu0 %1887
      %1891 = vset.pattern.permute.xlu0 0
      %1892 = vperm.xlu0 %1891, %v1678
      %v1893 = vpop.permute.xlu0 %1892
      %1896 = vset.pattern.permute.xlu0 0
      %1897 = vperm.xlu0 %1896, %v1679
      %v1898 = vpop.permute.xlu0 %1897
      %1901 = vset.pattern.permute.xlu0 0
      %1902 = vperm.xlu0 %1901, %v1680
      %v1903 = vpop.permute.xlu0 %1902
      %1906 = vset.pattern.permute.xlu0 0
      %1907 = vperm.xlu0 %1906, %v1681
      %v1908 = vpop.permute.xlu0 %1907
      %1911 = vset.pattern.permute.xlu0 0
      %1912 = vperm.xlu0 %1911, %v1682
      %v1913 = vpop.permute.xlu0 %1912
      %1916 = vset.pattern.permute.xlu0 0
      %1917 = vperm.xlu0 %1916, %v1683
      %v1918 = vpop.permute.xlu0 %1917
      %1921 = vset.pattern.permute.xlu0 0
      %1922 = vperm.xlu0 %1921, %v1684
      %v1923 = vpop.permute.xlu0 %1922
      %1926 = vset.pattern.permute.xlu0 0
      %1927 = vperm.xlu0 %1926, %v1685
      %v1928 = vpop.permute.xlu0 %1927
      %1931 = vset.pattern.permute.xlu0 0
      %1932 = vperm.xlu0 %1931, %v1686
      %v1933 = vpop.permute.xlu0 %1932
      %1936 = vset.pattern.permute.xlu0 0
      %1937 = vperm.xlu0 %1936, %v1687
      %v1938 = vpop.permute.xlu0 %1937
      %1941 = vset.pattern.permute.xlu0 0
      %1942 = vperm.xlu0 %1941, %v1688
      %v1943 = vpop.permute.xlu0 %1942
      %1946 = vset.pattern.permute.xlu0 0
      %1947 = vperm.xlu0 %1946, %v1689
      %v1948 = vpop.permute.xlu0 %1947
      %1951 = vset.pattern.permute.xlu0 0
      %1952 = vperm.xlu0 %1951, %v1690
      %v1953 = vpop.permute.xlu0 %1952
      %1956 = vset.pattern.permute.xlu0 0
      %1957 = vperm.xlu0 %1956, %v1691
      %v1958 = vpop.permute.xlu0 %1957
      %1961 = vset.pattern.permute.xlu0 0
      %1962 = vperm.xlu0 %1961, %v1692
      %v1963 = vpop.permute.xlu0 %1962
      %1966 = vset.pattern.permute.xlu0 0
      %1967 = vperm.xlu0 %1966, %v1693
      %v1968 = vpop.permute.xlu0 %1967
      %1971 = vset.pattern.permute.xlu0 0
      %1972 = vperm.xlu0 %1971, %v1694
      %v1973 = vpop.permute.xlu0 %1972
      %1976 = vset.pattern.permute.xlu0 0
      %1977 = vperm.xlu0 %1976, %v1695
      %v1978 = vpop.permute.xlu0 %1977
      %1981 = vset.pattern.permute.xlu0 0
      %1982 = vperm.xlu0 %1981, %v1696
      %v1983 = vpop.permute.xlu0 %1982
      %1986 = vset.pattern.permute.xlu0 0
      %1987 = vperm.xlu0 %1986, %v1697
      %v1988 = vpop.permute.xlu0 %1987
      %1991 = vset.pattern.permute.xlu0 0
      %1992 = vperm.xlu0 %1991, %v1698
      %v1993 = vpop.permute.xlu0 %1992
      %1996 = vset.pattern.permute.xlu0 0
      %1997 = vperm.xlu0 %1996, %v1699
      %v1998 = vpop.permute.xlu0 %1997
      %2001 = vset.pattern.permute.xlu0 0
      %2002 = vperm.xlu0 %2001, %v1700
      %v2003 = vpop.permute.xlu0 %2002
      %2006 = vset.pattern.permute.xlu0 0
      %2007 = vperm.xlu0 %2006, %v1701
      %v2008 = vpop.permute.xlu0 %2007
      %2011 = vset.pattern.permute.xlu0 0
      %2012 = vperm.xlu0 %2011, %v1702
      %v2013 = vpop.permute.xlu0 %2012
      %2016 = vset.pattern.permute.xlu0 0
      %2017 = vperm.xlu0 %2016, %v1703
      %v2018 = vpop.permute.xlu0 %2017
      %2021 = vset.pattern.permute.xlu0 0
      %2022 = vperm.xlu0 %2021, %v1704
      %v2023 = vpop.permute.xlu0 %2022
      %2025 = vmatprep.subr.mxu0 0.0
      %2026 = vmatpush1.msra.mxu0 %v375
      %2027 = vmatprep.subr.mxu0 0.0
      %2028 = vmatpush1.msra.mxu0 %v374
      %2029 = vmatprep.subr.mxu0 0.0
      %2030 = vmatpush1.msra.mxu0 %v373
      %2031 = vmatprep.subr.mxu0 0.0
      %2032 = vmatpush1.msra.mxu0 %v372
      %2033 = vmatprep.subr.mxu0 0.0
      %2034 = vmatpush1.msra.mxu0 %v371
      %2035 = vmatprep.subr.mxu0 0.0
      %2036 = vmatpush1.msra.mxu0 %v370
      %2037 = vmatprep.subr.mxu0 0.0
      %2038 = vmatpush1.msra.mxu0 %v369
      %2039 = vmatprep.subr.mxu0 0.0
      %2040 = vmatpush1.msra.mxu0 %v368
      %2041 = vmatprep.subr.mxu0 0.0
      %2042 = vmatpush1.msra.mxu0 %v367
      %2043 = vmatprep.subr.mxu0 0.0
      %2044 = vmatpush1.msra.mxu0 %v366
      %2045 = vmatprep.subr.mxu0 0.0
      %2046 = vmatpush1.msra.mxu0 %v365
      %2047 = vmatprep.subr.mxu0 0.0
      %2048 = vmatpush1.msra.mxu0 %v364
      %2049 = vmatprep.subr.mxu0 0.0
      %2050 = vmatpush1.msra.mxu0 %v363
      %2051 = vmatprep.subr.mxu0 0.0
      %2052 = vmatpush1.msra.mxu0 %v362
      %2053 = vmatprep.subr.mxu0 0.0
      %2054 = vmatpush1.msra.mxu0 %v361
      %2055 = vmatprep.subr.mxu0 0.0
      %2056 = vmatpush1.msra.mxu0 %v360
      %2057 = vmatprep.subr.mxu0 0.0
      %2058 = vmatpush2.msra.mxu0 %v391
      %2059 = vmatprep.subr.mxu0 0.0
      %2060 = vmatpush2.msra.mxu0 %v390
      %2061 = vmatprep.subr.mxu0 0.0
      %2062 = vmatpush2.msra.mxu0 %v389
      %2063 = vmatprep.subr.mxu0 0.0
      %2064 = vmatpush2.msra.mxu0 %v388
      %2065 = vmatprep.subr.mxu0 0.0
      %2066 = vmatpush2.msra.mxu0 %v387
      %2067 = vmatprep.subr.mxu0 0.0
      %2068 = vmatpush2.msra.mxu0 %v386
      %2069 = vmatprep.subr.mxu0 0.0
      %2070 = vmatpush2.msra.mxu0 %v385
      %2071 = vmatprep.subr.mxu0 0.0
      %2072 = vmatpush2.msra.mxu0 %v384
      %2073 = vmatprep.subr.mxu0 0.0
      %2074 = vmatpush2.msra.mxu0 %v383
      %2075 = vmatprep.subr.mxu0 0.0
      %2076 = vmatpush2.msra.mxu0 %v382
      %2077 = vmatprep.subr.mxu0 0.0
      %2078 = vmatpush2.msra.mxu0 %v381
      %2079 = vmatprep.subr.mxu0 0.0
      %2080 = vmatpush2.msra.mxu0 %v380
      %2081 = vmatprep.subr.mxu0 0.0
      %2082 = vmatpush2.msra.mxu0 %v379
      %2083 = vmatprep.subr.mxu0 0.0
      %2084 = vmatpush2.msra.mxu0 %v378
      %2085 = vmatprep.subr.mxu0 0.0
      %2086 = vmatpush2.msra.mxu0 %v377
      %2087 = vmatprep.subr.mxu0 0.0
      %2088 = vmatpush2.msra.mxu0 %v376
      %2089 = vmatprep.mubr.f32.mxu0 %v618
      %2090 = vmatmul.mubr.f32.gmra.mxu0 %v617
      %v2091 = vpop.f32.mrf.mxu0
      %v2092 = vadd.f32 %v1708, %v2091
      %v2093 = vpop.f32.mrf.mxu0
      %2094 = vmatprep.mubr.f32.mxu0 %v634
      %2095 = vmatmul.mubr.f32.gmra.mxu0 %v633
      %v2096 = vpop.f32.mrf.mxu0
      %v2097 = vadd.f32 %v1713, %v2096
      %v2098 = vpop.f32.mrf.mxu0
      %2099 = vmatprep.mubr.f32.mxu0 %v650
      %2100 = vmatmul.mubr.f32.gmra.mxu0 %v649
      %v2101 = vpop.f32.mrf.mxu0
      %v2102 = vadd.f32 %v1718, %v2101
      %v2103 = vpop.f32.mrf.mxu0
      %2104 = vmatprep.mubr.f32.mxu0 %v666
      %2105 = vmatmul.mubr.f32.gmra.mxu0 %v665
      %v2106 = vpop.f32.mrf.mxu0
      %v2107 = vadd.f32 %v1723, %v2106
      %v2108 = vpop.f32.mrf.mxu0
      %2109 = vmatprep.mubr.f32.mxu0 %v682
      %2110 = vmatmul.mubr.f32.gmra.mxu0 %v681
      %v2111 = vpop.f32.mrf.mxu0
      %v2112 = vadd.f32 %v1728, %v2111
      %v2113 = vpop.f32.mrf.mxu0
      %2114 = vmatprep.mubr.f32.mxu0 %v698
      %2115 = vmatmul.mubr.f32.gmra.mxu0 %v697
      %v2116 = vpop.f32.mrf.mxu0
      %v2117 = vadd.f32 %v1733, %v2116
      %v2118 = vpop.f32.mrf.mxu0
      %2119 = vmatprep.mubr.f32.mxu0 %v714
      %2120 = vmatmul.mubr.f32.gmra.mxu0 %v713
      %v2121 = vpop.f32.mrf.mxu0
      %v2122 = vadd.f32 %v1738, %v2121
      %v2123 = vpop.f32.mrf.mxu0
      %2124 = vmatprep.mubr.f32.mxu0 %v730
      %2125 = vmatmul.mubr.f32.gmra.mxu0 %v729
      %v2126 = vpop.f32.mrf.mxu0
      %v2127 = vadd.f32 %v1743, %v2126
      %v2128 = vpop.f32.mrf.mxu0
      %2129 = vmatprep.mubr.f32.mxu0 %v746
      %2130 = vmatmul.mubr.f32.gmra.mxu0 %v745
      %v2131 = vpop.f32.mrf.mxu0
      %v2132 = vadd.f32 %v1748, %v2131
      %v2133 = vpop.f32.mrf.mxu0
      %2134 = vmatprep.mubr.f32.mxu0 %v762
      %2135 = vmatmul.mubr.f32.gmra.mxu0 %v761
      %v2136 = vpop.f32.mrf.mxu0
      %v2137 = vadd.f32 %v1753, %v2136
      %v2138 = vpop.f32.mrf.mxu0
      %2139 = vmatprep.mubr.f32.mxu0 %v778
      %2140 = vmatmul.mubr.f32.gmra.mxu0 %v777
      %v2141 = vpop.f32.mrf.mxu0
      %v2142 = vadd.f32 %v1758, %v2141
      %v2143 = vpop.f32.mrf.mxu0
      %2144 = vmatprep.mubr.f32.mxu0 %v794
      %2145 = vmatmul.mubr.f32.gmra.mxu0 %v793
      %v2146 = vpop.f32.mrf.mxu0
      %v2147 = vadd.f32 %v1763, %v2146
      %v2148 = vpop.f32.mrf.mxu0
      %2149 = vmatprep.mubr.f32.mxu0 %v810
      %2150 = vmatmul.mubr.f32.gmra.mxu0 %v809
      %v2151 = vpop.f32.mrf.mxu0
      %v2152 = vadd.f32 %v1768, %v2151
      %v2153 = vpop.f32.mrf.mxu0
      %2154 = vmatprep.mubr.f32.mxu0 %v826
      %2155 = vmatmul.mubr.f32.gmra.mxu0 %v825
      %v2156 = vpop.f32.mrf.mxu0
      %v2157 = vadd.f32 %v1773, %v2156
      %v2158 = vpop.f32.mrf.mxu0
      %2159 = vmatprep.mubr.f32.mxu0 %v842
      %2160 = vmatmul.mubr.f32.gmra.mxu0 %v841
      %v2161 = vpop.f32.mrf.mxu0
      %v2162 = vadd.f32 %v1778, %v2161
      %v2163 = vpop.f32.mrf.mxu0
      %2164 = vmatprep.mubr.f32.mxu0 %v858
      %2165 = vmatmul.mubr.f32.gmra.mxu0 %v857
      %v2166 = vpop.f32.mrf.mxu0
      %v2167 = vadd.f32 %v1783, %v2166
      %v2168 = vpop.f32.mrf.mxu0
      %2169 = vmatprep.mubr.f32.mxu0 %v874
      %2170 = vmatmul.mubr.f32.gmra.mxu0 %v873
      %v2171 = vpop.f32.mrf.mxu0
      %v2172 = vadd.f32 %v1788, %v2171
      %v2173 = vpop.f32.mrf.mxu0
      %2174 = vmatprep.mubr.f32.mxu0 %v890
      %2175 = vmatmul.mubr.f32.gmra.mxu0 %v889
      %v2176 = vpop.f32.mrf.mxu0
      %v2177 = vadd.f32 %v1793, %v2176
      %v2178 = vpop.f32.mrf.mxu0
      %2179 = vmatprep.mubr.f32.mxu0 %v906
      %2180 = vmatmul.mubr.f32.gmra.mxu0 %v905
      %v2181 = vpop.f32.mrf.mxu0
      %v2182 = vadd.f32 %v1798, %v2181
      %v2183 = vpop.f32.mrf.mxu0
      %2184 = vmatprep.mubr.f32.mxu0 %v922
      %2185 = vmatmul.mubr.f32.gmra.mxu0 %v921
      %v2186 = vpop.f32.mrf.mxu0
      %v2187 = vadd.f32 %v1803, %v2186
      %v2188 = vpop.f32.mrf.mxu0
      %2189 = vmatprep.mubr.f32.mxu0 %v938
      %2190 = vmatmul.mubr.f32.gmra.mxu0 %v937
      %v2191 = vpop.f32.mrf.mxu0
      %v2192 = vadd.f32 %v1808, %v2191
      %v2193 = vpop.f32.mrf.mxu0
      %2194 = vmatprep.mubr.f32.mxu0 %v954
      %2195 = vmatmul.mubr.f32.gmra.mxu0 %v953
      %v2196 = vpop.f32.mrf.mxu0
      %v2197 = vadd.f32 %v1813, %v2196
      %v2198 = vpop.f32.mrf.mxu0
      %2199 = vmatprep.mubr.f32.mxu0 %v970
      %2200 = vmatmul.mubr.f32.gmra.mxu0 %v969
      %v2201 = vpop.f32.mrf.mxu0
      %v2202 = vadd.f32 %v1818, %v2201
      %v2203 = vpop.f32.mrf.mxu0
      %2204 = vmatprep.mubr.f32.mxu0 %v986
      %2205 = vmatmul.mubr.f32.gmra.mxu0 %v985
      %v2206 = vpop.f32.mrf.mxu0
      %v2207 = vadd.f32 %v1823, %v2206
      %v2208 = vpop.f32.mrf.mxu0
      %2209 = vmatprep.mubr.f32.mxu0 %v1002
      %2210 = vmatmul.mubr.f32.gmra.mxu0 %v1001
      %v2211 = vpop.f32.mrf.mxu0
      %v2212 = vadd.f32 %v1828, %v2211
      %v2213 = vpop.f32.mrf.mxu0
      %2214 = vmatprep.mubr.f32.mxu0 %v1018
      %2215 = vmatmul.mubr.f32.gmra.mxu0 %v1017
      %v2216 = vpop.f32.mrf.mxu0
      %v2217 = vadd.f32 %v1833, %v2216
      %v2218 = vpop.f32.mrf.mxu0
      %2219 = vmatprep.mubr.f32.mxu0 %v1034
      %2220 = vmatmul.mubr.f32.gmra.mxu0 %v1033
      %v2221 = vpop.f32.mrf.mxu0
      %v2222 = vadd.f32 %v1838, %v2221
      %v2223 = vpop.f32.mrf.mxu0
      %2224 = vmatprep.mubr.f32.mxu0 %v1050
      %2225 = vmatmul.mubr.f32.gmra.mxu0 %v1049
      %v2226 = vpop.f32.mrf.mxu0
      %v2227 = vadd.f32 %v1843, %v2226
      %v2228 = vpop.f32.mrf.mxu0
      %2229 = vmatprep.mubr.f32.mxu0 %v1066
      %2230 = vmatmul.mubr.f32.gmra.mxu0 %v1065
      %v2231 = vpop.f32.mrf.mxu0
      %v2232 = vadd.f32 %v1848, %v2231
      %v2233 = vpop.f32.mrf.mxu0
      %2234 = vmatprep.mubr.f32.mxu0 %v1082
      %2235 = vmatmul.mubr.f32.gmra.mxu0 %v1081
      %v2236 = vpop.f32.mrf.mxu0
      %v2237 = vadd.f32 %v1853, %v2236
      %v2238 = vpop.f32.mrf.mxu0
      %2239 = vmatprep.mubr.f32.mxu0 %v1098
      %2240 = vmatmul.mubr.f32.gmra.mxu0 %v1097
      %v2241 = vpop.f32.mrf.mxu0
      %v2242 = vadd.f32 %v1858, %v2241
      %v2243 = vpop.f32.mrf.mxu0
      %2244 = vmatprep.mubr.f32.mxu0 %v1114
      %2245 = vmatmul.mubr.f32.gmra.mxu0 %v1113
      %v2246 = vpop.f32.mrf.mxu0
      %v2247 = vadd.f32 %v1863, %v2246
      %v2248 = vpop.f32.mrf.mxu0
      %2249 = vmatprep.mubr.f32.mxu0 %v1130
      %2250 = vmatmul.mubr.f32.gmra.mxu0 %v1129
      %v2251 = vpop.f32.mrf.mxu0
      %v2252 = vadd.f32 %v1868, %v2251
      %v2253 = vpop.f32.mrf.mxu0
      %2254 = vmatprep.mubr.f32.mxu0 %v1146
      %2255 = vmatmul.mubr.f32.gmra.mxu0 %v1145
      %v2256 = vpop.f32.mrf.mxu0
      %v2257 = vadd.f32 %v1873, %v2256
      %v2258 = vpop.f32.mrf.mxu0
      %2259 = vmatprep.mubr.f32.mxu0 %v1162
      %2260 = vmatmul.mubr.f32.gmra.mxu0 %v1161
      %v2261 = vpop.f32.mrf.mxu0
      %v2262 = vadd.f32 %v1878, %v2261
      %v2263 = vpop.f32.mrf.mxu0
      %2264 = vmatprep.mubr.f32.mxu0 %v1178
      %2265 = vmatmul.mubr.f32.gmra.mxu0 %v1177
      %v2266 = vpop.f32.mrf.mxu0
      %v2267 = vadd.f32 %v1883, %v2266
      %v2268 = vpop.f32.mrf.mxu0
      %2269 = vmatprep.mubr.f32.mxu0 %v1194
      %2270 = vmatmul.mubr.f32.gmra.mxu0 %v1193
      %v2271 = vpop.f32.mrf.mxu0
      %v2272 = vadd.f32 %v1888, %v2271
      %v2273 = vpop.f32.mrf.mxu0
      %2274 = vmatprep.mubr.f32.mxu0 %v1210
      %2275 = vmatmul.mubr.f32.gmra.mxu0 %v1209
      %v2276 = vpop.f32.mrf.mxu0
      %v2277 = vadd.f32 %v1893, %v2276
      %v2278 = vpop.f32.mrf.mxu0
      %2279 = vmatprep.mubr.f32.mxu0 %v1226
      %2280 = vmatmul.mubr.f32.gmra.mxu0 %v1225
      %v2281 = vpop.f32.mrf.mxu0
      %v2282 = vadd.f32 %v1898, %v2281
      %v2283 = vpop.f32.mrf.mxu0
      %2284 = vmatprep.mubr.f32.mxu0 %v1242
      %2285 = vmatmul.mubr.f32.gmra.mxu0 %v1241
      %v2286 = vpop.f32.mrf.mxu0
      %v2287 = vadd.f32 %v1903, %v2286
      %v2288 = vpop.f32.mrf.mxu0
      %2289 = vmatprep.mubr.f32.mxu0 %v1258
      %2290 = vmatmul.mubr.f32.gmra.mxu0 %v1257
      %v2291 = vpop.f32.mrf.mxu0
      %v2292 = vadd.f32 %v1908, %v2291
      %v2293 = vpop.f32.mrf.mxu0
      %2294 = vmatprep.mubr.f32.mxu0 %v1274
      %2295 = vmatmul.mubr.f32.gmra.mxu0 %v1273
      %v2296 = vpop.f32.mrf.mxu0
      %v2297 = vadd.f32 %v1913, %v2296
      %v2298 = vpop.f32.mrf.mxu0
      %2299 = vmatprep.mubr.f32.mxu0 %v1290
      %2300 = vmatmul.mubr.f32.gmra.mxu0 %v1289
      %v2301 = vpop.f32.mrf.mxu0
      %v2302 = vadd.f32 %v1918, %v2301
      %v2303 = vpop.f32.mrf.mxu0
      %2304 = vmatprep.mubr.f32.mxu0 %v1306
      %2305 = vmatmul.mubr.f32.gmra.mxu0 %v1305
      %v2306 = vpop.f32.mrf.mxu0
      %v2307 = vadd.f32 %v1923, %v2306
      %v2308 = vpop.f32.mrf.mxu0
      %2309 = vmatprep.mubr.f32.mxu0 %v1322
      %2310 = vmatmul.mubr.f32.gmra.mxu0 %v1321
      %v2311 = vpop.f32.mrf.mxu0
      %v2312 = vadd.f32 %v1928, %v2311
      %v2313 = vpop.f32.mrf.mxu0
      %2314 = vmatprep.mubr.f32.mxu0 %v1338
      %2315 = vmatmul.mubr.f32.gmra.mxu0 %v1337
      %v2316 = vpop.f32.mrf.mxu0
      %v2317 = vadd.f32 %v1933, %v2316
      %v2318 = vpop.f32.mrf.mxu0
      %2319 = vmatprep.mubr.f32.mxu0 %v1354
      %2320 = vmatmul.mubr.f32.gmra.mxu0 %v1353
      %v2321 = vpop.f32.mrf.mxu0
      %v2322 = vadd.f32 %v1938, %v2321
      %v2323 = vpop.f32.mrf.mxu0
      %2324 = vmatprep.mubr.f32.mxu0 %v1370
      %2325 = vmatmul.mubr.f32.gmra.mxu0 %v1369
      %v2326 = vpop.f32.mrf.mxu0
      %v2327 = vadd.f32 %v1943, %v2326
      %v2328 = vpop.f32.mrf.mxu0
      %2329 = vmatprep.mubr.f32.mxu0 %v1386
      %2330 = vmatmul.mubr.f32.gmra.mxu0 %v1385
      %v2331 = vpop.f32.mrf.mxu0
      %v2332 = vadd.f32 %v1948, %v2331
      %v2333 = vpop.f32.mrf.mxu0
      %2334 = vmatprep.mubr.f32.mxu0 %v1402
      %2335 = vmatmul.mubr.f32.gmra.mxu0 %v1401
      %v2336 = vpop.f32.mrf.mxu0
      %v2337 = vadd.f32 %v1953, %v2336
      %v2338 = vpop.f32.mrf.mxu0
      %2339 = vmatprep.mubr.f32.mxu0 %v1418
      %2340 = vmatmul.mubr.f32.gmra.mxu0 %v1417
      %v2341 = vpop.f32.mrf.mxu0
      %v2342 = vadd.f32 %v1958, %v2341
      %v2343 = vpop.f32.mrf.mxu0
      %2344 = vmatprep.mubr.f32.mxu0 %v1434
      %2345 = vmatmul.mubr.f32.gmra.mxu0 %v1433
      %v2346 = vpop.f32.mrf.mxu0
      %v2347 = vadd.f32 %v1963, %v2346
      %v2348 = vpop.f32.mrf.mxu0
      %2349 = vmatprep.mubr.f32.mxu0 %v1450
      %2350 = vmatmul.mubr.f32.gmra.mxu0 %v1449
      %v2351 = vpop.f32.mrf.mxu0
      %v2352 = vadd.f32 %v1968, %v2351
      %v2353 = vpop.f32.mrf.mxu0
      %2354 = vmatprep.mubr.f32.mxu0 %v1466
      %2355 = vmatmul.mubr.f32.gmra.mxu0 %v1465
      %v2356 = vpop.f32.mrf.mxu0
      %v2357 = vadd.f32 %v1973, %v2356
      %v2358 = vpop.f32.mrf.mxu0
      %2359 = vmatprep.mubr.f32.mxu0 %v1482
      %2360 = vmatmul.mubr.f32.gmra.mxu0 %v1481
      %v2361 = vpop.f32.mrf.mxu0
      %v2362 = vadd.f32 %v1978, %v2361
      %v2363 = vpop.f32.mrf.mxu0
      %2364 = vmatprep.mubr.f32.mxu0 %v1498
      %2365 = vmatmul.mubr.f32.gmra.mxu0 %v1497
      %v2366 = vpop.f32.mrf.mxu0
      %v2367 = vadd.f32 %v1983, %v2366
      %v2368 = vpop.f32.mrf.mxu0
      %2369 = vmatprep.mubr.f32.mxu0 %v1514
      %2370 = vmatmul.mubr.f32.gmra.mxu0 %v1513
      %v2371 = vpop.f32.mrf.mxu0
      %v2372 = vadd.f32 %v1988, %v2371
      %v2373 = vpop.f32.mrf.mxu0
      %2374 = vmatprep.mubr.f32.mxu0 %v1530
      %2375 = vmatmul.mubr.f32.gmra.mxu0 %v1529
      %v2376 = vpop.f32.mrf.mxu0
      %v2377 = vadd.f32 %v1993, %v2376
      %v2378 = vpop.f32.mrf.mxu0
      %2379 = vmatprep.mubr.f32.mxu0 %v1546
      %2380 = vmatmul.mubr.f32.gmra.mxu0 %v1545
      %v2381 = vpop.f32.mrf.mxu0
      %v2382 = vadd.f32 %v1998, %v2381
      %v2383 = vpop.f32.mrf.mxu0
      %2384 = vmatprep.mubr.f32.mxu0 %v1562
      %2385 = vmatmul.mubr.f32.gmra.mxu0 %v1561
      %v2386 = vpop.f32.mrf.mxu0
      %v2387 = vadd.f32 %v2003, %v2386
      %v2388 = vpop.f32.mrf.mxu0
      %2389 = vmatprep.mubr.f32.mxu0 %v1578
      %2390 = vmatmul.mubr.f32.gmra.mxu0 %v1577
      %v2391 = vpop.f32.mrf.mxu0
      %v2392 = vadd.f32 %v2008, %v2391
      %v2393 = vpop.f32.mrf.mxu0
      %2394 = vmatprep.mubr.f32.mxu0 %v1594
      %2395 = vmatmul.mubr.f32.gmra.mxu0 %v1593
      %v2396 = vpop.f32.mrf.mxu0
      %v2397 = vadd.f32 %v2013, %v2396
      %v2398 = vpop.f32.mrf.mxu0
      %2399 = vmatprep.mubr.f32.mxu0 %v1610
      %2400 = vmatmul.mubr.f32.gmra.mxu0 %v1609
      %v2401 = vpop.f32.mrf.mxu0
      %v2402 = vadd.f32 %v2018, %v2401
      %v2403 = vpop.f32.mrf.mxu0
      %2404 = vmatprep.mubr.f32.mxu0 %v1626
      %2405 = vmatmul.mubr.f32.gmra.mxu0 %v1625
      %v2406 = vpop.f32.mrf.mxu0
      %v2407 = vadd.f32 %v2023, %v2406
      %v2408 = vpop.f32.mrf.mxu0
      %2409 = vdwg.mxu0
      %2410 = vmatprep.subr.mxu0 0.0
      %2411 = vmatpush1.msra.mxu0 %v407
      %2412 = vmatprep.subr.mxu0 0.0
      %2413 = vmatpush1.msra.mxu0 %v406
      %2414 = vmatprep.subr.mxu0 0.0
      %2415 = vmatpush1.msra.mxu0 %v405
      %2416 = vmatprep.subr.mxu0 0.0
      %2417 = vmatpush1.msra.mxu0 %v404
      %2418 = vmatprep.subr.mxu0 0.0
      %2419 = vmatpush1.msra.mxu0 %v403
      %2420 = vmatprep.subr.mxu0 0.0
      %2421 = vmatpush1.msra.mxu0 %v402
      %2422 = vmatprep.subr.mxu0 0.0
      %2423 = vmatpush1.msra.mxu0 %v401
      %2424 = vmatprep.subr.mxu0 0.0
      %2425 = vmatpush1.msra.mxu0 %v400
      %2426 = vmatprep.subr.mxu0 0.0
      %2427 = vmatpush1.msra.mxu0 %v399
      %2428 = vmatprep.subr.mxu0 0.0
      %2429 = vmatpush1.msra.mxu0 %v398
      %2430 = vmatprep.subr.mxu0 0.0
      %2431 = vmatpush1.msra.mxu0 %v397
      %2432 = vmatprep.subr.mxu0 0.0
      %2433 = vmatpush1.msra.mxu0 %v396
      %2434 = vmatprep.subr.mxu0 0.0
      %2435 = vmatpush1.msra.mxu0 %v395
      %2436 = vmatprep.subr.mxu0 0.0
      %2437 = vmatpush1.msra.mxu0 %v394
      %2438 = vmatprep.subr.mxu0 0.0
      %2439 = vmatpush1.msra.mxu0 %v393
      %2440 = vmatprep.subr.mxu0 0.0
      %2441 = vmatpush1.msra.mxu0 %v392
      %2442 = vmatprep.subr.mxu0 0.0
      %2443 = vmatpush2.msra.mxu0 %v423
      %2444 = vmatprep.subr.mxu0 0.0
      %2445 = vmatpush2.msra.mxu0 %v422
      %2446 = vmatprep.subr.mxu0 0.0
      %2447 = vmatpush2.msra.mxu0 %v421
      %2448 = vmatprep.subr.mxu0 0.0
      %2449 = vmatpush2.msra.mxu0 %v420
      %2450 = vmatprep.subr.mxu0 0.0
      %2451 = vmatpush2.msra.mxu0 %v419
      %2452 = vmatprep.subr.mxu0 0.0
      %2453 = vmatpush2.msra.mxu0 %v418
      %2454 = vmatprep.subr.mxu0 0.0
      %2455 = vmatpush2.msra.mxu0 %v417
      %2456 = vmatprep.subr.mxu0 0.0
      %2457 = vmatpush2.msra.mxu0 %v416
      %2458 = vmatprep.subr.mxu0 0.0
      %2459 = vmatpush2.msra.mxu0 %v415
      %2460 = vmatprep.subr.mxu0 0.0
      %2461 = vmatpush2.msra.mxu0 %v414
      %2462 = vmatprep.subr.mxu0 0.0
      %2463 = vmatpush2.msra.mxu0 %v413
      %2464 = vmatprep.subr.mxu0 0.0
      %2465 = vmatpush2.msra.mxu0 %v412
      %2466 = vmatprep.subr.mxu0 0.0
      %2467 = vmatpush2.msra.mxu0 %v411
      %2468 = vmatprep.subr.mxu0 0.0
      %2469 = vmatpush2.msra.mxu0 %v410
      %2470 = vmatprep.subr.mxu0 0.0
      %2471 = vmatpush2.msra.mxu0 %v409
      %2472 = vmatprep.subr.mxu0 0.0
      %2473 = vmatpush2.msra.mxu0 %v408
      %2474 = vmatprep.mubr.f32.mxu0 %v620
      %2475 = vmatmul.mubr.f32.gmra.mxu0 %v619
      %v2476 = vpop.f32.mrf.mxu0
      %v2477 = vadd.f32 %v2092, %v2476
      %v2478 = vpop.f32.mrf.mxu0
      %2479 = vmatprep.mubr.f32.mxu0 %v636
      %2480 = vmatmul.mubr.f32.gmra.mxu0 %v635
      %v2481 = vpop.f32.mrf.mxu0
      %v2482 = vadd.f32 %v2097, %v2481
      %v2483 = vpop.f32.mrf.mxu0
      %2484 = vmatprep.mubr.f32.mxu0 %v652
      %2485 = vmatmul.mubr.f32.gmra.mxu0 %v651
      %v2486 = vpop.f32.mrf.mxu0
      %v2487 = vadd.f32 %v2102, %v2486
      %v2488 = vpop.f32.mrf.mxu0
      %2489 = vmatprep.mubr.f32.mxu0 %v668
      %2490 = vmatmul.mubr.f32.gmra.mxu0 %v667
      %v2491 = vpop.f32.mrf.mxu0
      %v2492 = vadd.f32 %v2107, %v2491
      %v2493 = vpop.f32.mrf.mxu0
      %2494 = vmatprep.mubr.f32.mxu0 %v684
      %2495 = vmatmul.mubr.f32.gmra.mxu0 %v683
      %v2496 = vpop.f32.mrf.mxu0
      %v2497 = vadd.f32 %v2112, %v2496
      %v2498 = vpop.f32.mrf.mxu0
      %2499 = vmatprep.mubr.f32.mxu0 %v700
      %2500 = vmatmul.mubr.f32.gmra.mxu0 %v699
      %v2501 = vpop.f32.mrf.mxu0
      %v2502 = vadd.f32 %v2117, %v2501
      %v2503 = vpop.f32.mrf.mxu0
      %2504 = vmatprep.mubr.f32.mxu0 %v716
      %2505 = vmatmul.mubr.f32.gmra.mxu0 %v715
      %v2506 = vpop.f32.mrf.mxu0
      %v2507 = vadd.f32 %v2122, %v2506
      %v2508 = vpop.f32.mrf.mxu0
      %2509 = vmatprep.mubr.f32.mxu0 %v732
      %2510 = vmatmul.mubr.f32.gmra.mxu0 %v731
      %v2511 = vpop.f32.mrf.mxu0
      %v2512 = vadd.f32 %v2127, %v2511
      %v2513 = vpop.f32.mrf.mxu0
      %2514 = vmatprep.mubr.f32.mxu0 %v748
      %2515 = vmatmul.mubr.f32.gmra.mxu0 %v747
      %v2516 = vpop.f32.mrf.mxu0
      %v2517 = vadd.f32 %v2132, %v2516
      %v2518 = vpop.f32.mrf.mxu0
      %2519 = vmatprep.mubr.f32.mxu0 %v764
      %2520 = vmatmul.mubr.f32.gmra.mxu0 %v763
      %v2521 = vpop.f32.mrf.mxu0
      %v2522 = vadd.f32 %v2137, %v2521
      %v2523 = vpop.f32.mrf.mxu0
      %2524 = vmatprep.mubr.f32.mxu0 %v780
      %2525 = vmatmul.mubr.f32.gmra.mxu0 %v779
      %v2526 = vpop.f32.mrf.mxu0
      %v2527 = vadd.f32 %v2142, %v2526
      %v2528 = vpop.f32.mrf.mxu0
      %2529 = vmatprep.mubr.f32.mxu0 %v796
      %2530 = vmatmul.mubr.f32.gmra.mxu0 %v795
      %v2531 = vpop.f32.mrf.mxu0
      %v2532 = vadd.f32 %v2147, %v2531
      %v2533 = vpop.f32.mrf.mxu0
      %2534 = vmatprep.mubr.f32.mxu0 %v812
      %2535 = vmatmul.mubr.f32.gmra.mxu0 %v811
      %v2536 = vpop.f32.mrf.mxu0
      %v2537 = vadd.f32 %v2152, %v2536
      %v2538 = vpop.f32.mrf.mxu0
      %2539 = vmatprep.mubr.f32.mxu0 %v828
      %2540 = vmatmul.mubr.f32.gmra.mxu0 %v827
      %v2541 = vpop.f32.mrf.mxu0
      %v2542 = vadd.f32 %v2157, %v2541
      %v2543 = vpop.f32.mrf.mxu0
      %2544 = vmatprep.mubr.f32.mxu0 %v844
      %2545 = vmatmul.mubr.f32.gmra.mxu0 %v843
      %v2546 = vpop.f32.mrf.mxu0
      %v2547 = vadd.f32 %v2162, %v2546
      %v2548 = vpop.f32.mrf.mxu0
      %2549 = vmatprep.mubr.f32.mxu0 %v860
      %2550 = vmatmul.mubr.f32.gmra.mxu0 %v859
      %v2551 = vpop.f32.mrf.mxu0
      %v2552 = vadd.f32 %v2167, %v2551
      %v2553 = vpop.f32.mrf.mxu0
      %2554 = vmatprep.mubr.f32.mxu0 %v876
      %2555 = vmatmul.mubr.f32.gmra.mxu0 %v875
      %v2556 = vpop.f32.mrf.mxu0
      %v2557 = vadd.f32 %v2172, %v2556
      %v2558 = vpop.f32.mrf.mxu0
      %2559 = vmatprep.mubr.f32.mxu0 %v892
      %2560 = vmatmul.mubr.f32.gmra.mxu0 %v891
      %v2561 = vpop.f32.mrf.mxu0
      %v2562 = vadd.f32 %v2177, %v2561
      %v2563 = vpop.f32.mrf.mxu0
      %2564 = vmatprep.mubr.f32.mxu0 %v908
      %2565 = vmatmul.mubr.f32.gmra.mxu0 %v907
      %v2566 = vpop.f32.mrf.mxu0
      %v2567 = vadd.f32 %v2182, %v2566
      %v2568 = vpop.f32.mrf.mxu0
      %2569 = vmatprep.mubr.f32.mxu0 %v924
      %2570 = vmatmul.mubr.f32.gmra.mxu0 %v923
      %v2571 = vpop.f32.mrf.mxu0
      %v2572 = vadd.f32 %v2187, %v2571
      %v2573 = vpop.f32.mrf.mxu0
      %2574 = vmatprep.mubr.f32.mxu0 %v940
      %2575 = vmatmul.mubr.f32.gmra.mxu0 %v939
      %v2576 = vpop.f32.mrf.mxu0
      %v2577 = vadd.f32 %v2192, %v2576
      %v2578 = vpop.f32.mrf.mxu0
      %2579 = vmatprep.mubr.f32.mxu0 %v956
      %2580 = vmatmul.mubr.f32.gmra.mxu0 %v955
      %v2581 = vpop.f32.mrf.mxu0
      %v2582 = vadd.f32 %v2197, %v2581
      %v2583 = vpop.f32.mrf.mxu0
      %2584 = vmatprep.mubr.f32.mxu0 %v972
      %2585 = vmatmul.mubr.f32.gmra.mxu0 %v971
      %v2586 = vpop.f32.mrf.mxu0
      %v2587 = vadd.f32 %v2202, %v2586
      %v2588 = vpop.f32.mrf.mxu0
      %2589 = vmatprep.mubr.f32.mxu0 %v988
      %2590 = vmatmul.mubr.f32.gmra.mxu0 %v987
      %v2591 = vpop.f32.mrf.mxu0
      %v2592 = vadd.f32 %v2207, %v2591
      %v2593 = vpop.f32.mrf.mxu0
      %2594 = vmatprep.mubr.f32.mxu0 %v1004
      %2595 = vmatmul.mubr.f32.gmra.mxu0 %v1003
      %v2596 = vpop.f32.mrf.mxu0
      %v2597 = vadd.f32 %v2212, %v2596
      %v2598 = vpop.f32.mrf.mxu0
      %2599 = vmatprep.mubr.f32.mxu0 %v1020
      %2600 = vmatmul.mubr.f32.gmra.mxu0 %v1019
      %v2601 = vpop.f32.mrf.mxu0
      %v2602 = vadd.f32 %v2217, %v2601
      %v2603 = vpop.f32.mrf.mxu0
      %2604 = vmatprep.mubr.f32.mxu0 %v1036
      %2605 = vmatmul.mubr.f32.gmra.mxu0 %v1035
      %v2606 = vpop.f32.mrf.mxu0
      %v2607 = vadd.f32 %v2222, %v2606
      %v2608 = vpop.f32.mrf.mxu0
      %2609 = vmatprep.mubr.f32.mxu0 %v1052
      %2610 = vmatmul.mubr.f32.gmra.mxu0 %v1051
      %v2611 = vpop.f32.mrf.mxu0
      %v2612 = vadd.f32 %v2227, %v2611
      %v2613 = vpop.f32.mrf.mxu0
      %2614 = vmatprep.mubr.f32.mxu0 %v1068
      %2615 = vmatmul.mubr.f32.gmra.mxu0 %v1067
      %v2616 = vpop.f32.mrf.mxu0
      %v2617 = vadd.f32 %v2232, %v2616
      %v2618 = vpop.f32.mrf.mxu0
      %2619 = vmatprep.mubr.f32.mxu0 %v1084
      %2620 = vmatmul.mubr.f32.gmra.mxu0 %v1083
      %v2621 = vpop.f32.mrf.mxu0
      %v2622 = vadd.f32 %v2237, %v2621
      %v2623 = vpop.f32.mrf.mxu0
      %2624 = vmatprep.mubr.f32.mxu0 %v1100
      %2625 = vmatmul.mubr.f32.gmra.mxu0 %v1099
      %v2626 = vpop.f32.mrf.mxu0
      %v2627 = vadd.f32 %v2242, %v2626
      %v2628 = vpop.f32.mrf.mxu0
      %2629 = vmatprep.mubr.f32.mxu0 %v1116
      %2630 = vmatmul.mubr.f32.gmra.mxu0 %v1115
      %v2631 = vpop.f32.mrf.mxu0
      %v2632 = vadd.f32 %v2247, %v2631
      %v2633 = vpop.f32.mrf.mxu0
      %2634 = vmatprep.mubr.f32.mxu0 %v1132
      %2635 = vmatmul.mubr.f32.gmra.mxu0 %v1131
      %v2636 = vpop.f32.mrf.mxu0
      %v2637 = vadd.f32 %v2252, %v2636
      %v2638 = vpop.f32.mrf.mxu0
      %2639 = vmatprep.mubr.f32.mxu0 %v1148
      %2640 = vmatmul.mubr.f32.gmra.mxu0 %v1147
      %v2641 = vpop.f32.mrf.mxu0
      %v2642 = vadd.f32 %v2257, %v2641
      %v2643 = vpop.f32.mrf.mxu0
      %2644 = vmatprep.mubr.f32.mxu0 %v1164
      %2645 = vmatmul.mubr.f32.gmra.mxu0 %v1163
      %v2646 = vpop.f32.mrf.mxu0
      %v2647 = vadd.f32 %v2262, %v2646
      %v2648 = vpop.f32.mrf.mxu0
      %2649 = vmatprep.mubr.f32.mxu0 %v1180
      %2650 = vmatmul.mubr.f32.gmra.mxu0 %v1179
      %v2651 = vpop.f32.mrf.mxu0
      %v2652 = vadd.f32 %v2267, %v2651
      %v2653 = vpop.f32.mrf.mxu0
      %2654 = vmatprep.mubr.f32.mxu0 %v1196
      %2655 = vmatmul.mubr.f32.gmra.mxu0 %v1195
      %v2656 = vpop.f32.mrf.mxu0
      %v2657 = vadd.f32 %v2272, %v2656
      %v2658 = vpop.f32.mrf.mxu0
      %2659 = vmatprep.mubr.f32.mxu0 %v1212
      %2660 = vmatmul.mubr.f32.gmra.mxu0 %v1211
      %v2661 = vpop.f32.mrf.mxu0
      %v2662 = vadd.f32 %v2277, %v2661
      %v2663 = vpop.f32.mrf.mxu0
      %2664 = vmatprep.mubr.f32.mxu0 %v1228
      %2665 = vmatmul.mubr.f32.gmra.mxu0 %v1227
      %v2666 = vpop.f32.mrf.mxu0
      %v2667 = vadd.f32 %v2282, %v2666
      %v2668 = vpop.f32.mrf.mxu0
      %2669 = vmatprep.mubr.f32.mxu0 %v1244
      %2670 = vmatmul.mubr.f32.gmra.mxu0 %v1243
      %v2671 = vpop.f32.mrf.mxu0
      %v2672 = vadd.f32 %v2287, %v2671
      %v2673 = vpop.f32.mrf.mxu0
      %2674 = vmatprep.mubr.f32.mxu0 %v1260
      %2675 = vmatmul.mubr.f32.gmra.mxu0 %v1259
      %v2676 = vpop.f32.mrf.mxu0
      %v2677 = vadd.f32 %v2292, %v2676
      %v2678 = vpop.f32.mrf.mxu0
      %2679 = vmatprep.mubr.f32.mxu0 %v1276
      %2680 = vmatmul.mubr.f32.gmra.mxu0 %v1275
      %v2681 = vpop.f32.mrf.mxu0
      %v2682 = vadd.f32 %v2297, %v2681
      %v2683 = vpop.f32.mrf.mxu0
      %2684 = vmatprep.mubr.f32.mxu0 %v1292
      %2685 = vmatmul.mubr.f32.gmra.mxu0 %v1291
      %v2686 = vpop.f32.mrf.mxu0
      %v2687 = vadd.f32 %v2302, %v2686
      %v2688 = vpop.f32.mrf.mxu0
      %2689 = vmatprep.mubr.f32.mxu0 %v1308
      %2690 = vmatmul.mubr.f32.gmra.mxu0 %v1307
      %v2691 = vpop.f32.mrf.mxu0
      %v2692 = vadd.f32 %v2307, %v2691
      %v2693 = vpop.f32.mrf.mxu0
      %2694 = vmatprep.mubr.f32.mxu0 %v1324
      %2695 = vmatmul.mubr.f32.gmra.mxu0 %v1323
      %v2696 = vpop.f32.mrf.mxu0
      %v2697 = vadd.f32 %v2312, %v2696
      %v2698 = vpop.f32.mrf.mxu0
      %2699 = vmatprep.mubr.f32.mxu0 %v1340
      %2700 = vmatmul.mubr.f32.gmra.mxu0 %v1339
      %v2701 = vpop.f32.mrf.mxu0
      %v2702 = vadd.f32 %v2317, %v2701
      %v2703 = vpop.f32.mrf.mxu0
      %2704 = vmatprep.mubr.f32.mxu0 %v1356
      %2705 = vmatmul.mubr.f32.gmra.mxu0 %v1355
      %v2706 = vpop.f32.mrf.mxu0
      %v2707 = vadd.f32 %v2322, %v2706
      %v2708 = vpop.f32.mrf.mxu0
      %2709 = vmatprep.mubr.f32.mxu0 %v1372
      %2710 = vmatmul.mubr.f32.gmra.mxu0 %v1371
      %v2711 = vpop.f32.mrf.mxu0
      %v2712 = vadd.f32 %v2327, %v2711
      %v2713 = vpop.f32.mrf.mxu0
      %2714 = vmatprep.mubr.f32.mxu0 %v1388
      %2715 = vmatmul.mubr.f32.gmra.mxu0 %v1387
      %v2716 = vpop.f32.mrf.mxu0
      %v2717 = vadd.f32 %v2332, %v2716
      %v2718 = vpop.f32.mrf.mxu0
      %2719 = vmatprep.mubr.f32.mxu0 %v1404
      %2720 = vmatmul.mubr.f32.gmra.mxu0 %v1403
      %v2721 = vpop.f32.mrf.mxu0
      %v2722 = vadd.f32 %v2337, %v2721
      %v2723 = vpop.f32.mrf.mxu0
      %2724 = vmatprep.mubr.f32.mxu0 %v1420
      %2725 = vmatmul.mubr.f32.gmra.mxu0 %v1419
      %v2726 = vpop.f32.mrf.mxu0
      %v2727 = vadd.f32 %v2342, %v2726
      %v2728 = vpop.f32.mrf.mxu0
      %2729 = vmatprep.mubr.f32.mxu0 %v1436
      %2730 = vmatmul.mubr.f32.gmra.mxu0 %v1435
      %v2731 = vpop.f32.mrf.mxu0
      %v2732 = vadd.f32 %v2347, %v2731
      %v2733 = vpop.f32.mrf.mxu0
      %2734 = vmatprep.mubr.f32.mxu0 %v1452
      %2735 = vmatmul.mubr.f32.gmra.mxu0 %v1451
      %v2736 = vpop.f32.mrf.mxu0
      %v2737 = vadd.f32 %v2352, %v2736
      %v2738 = vpop.f32.mrf.mxu0
      %2739 = vmatprep.mubr.f32.mxu0 %v1468
      %2740 = vmatmul.mubr.f32.gmra.mxu0 %v1467
      %v2741 = vpop.f32.mrf.mxu0
      %v2742 = vadd.f32 %v2357, %v2741
      %v2743 = vpop.f32.mrf.mxu0
      %2744 = vmatprep.mubr.f32.mxu0 %v1484
      %2745 = vmatmul.mubr.f32.gmra.mxu0 %v1483
      %v2746 = vpop.f32.mrf.mxu0
      %v2747 = vadd.f32 %v2362, %v2746
      %v2748 = vpop.f32.mrf.mxu0
      %2749 = vmatprep.mubr.f32.mxu0 %v1500
      %2750 = vmatmul.mubr.f32.gmra.mxu0 %v1499
      %v2751 = vpop.f32.mrf.mxu0
      %v2752 = vadd.f32 %v2367, %v2751
      %v2753 = vpop.f32.mrf.mxu0
      %2754 = vmatprep.mubr.f32.mxu0 %v1516
      %2755 = vmatmul.mubr.f32.gmra.mxu0 %v1515
      %v2756 = vpop.f32.mrf.mxu0
      %v2757 = vadd.f32 %v2372, %v2756
      %v2758 = vpop.f32.mrf.mxu0
      %2759 = vmatprep.mubr.f32.mxu0 %v1532
      %2760 = vmatmul.mubr.f32.gmra.mxu0 %v1531
      %v2761 = vpop.f32.mrf.mxu0
      %v2762 = vadd.f32 %v2377, %v2761
      %v2763 = vpop.f32.mrf.mxu0
      %2764 = vmatprep.mubr.f32.mxu0 %v1548
      %2765 = vmatmul.mubr.f32.gmra.mxu0 %v1547
      %v2766 = vpop.f32.mrf.mxu0
      %v2767 = vadd.f32 %v2382, %v2766
      %v2768 = vpop.f32.mrf.mxu0
      %2769 = vmatprep.mubr.f32.mxu0 %v1564
      %2770 = vmatmul.mubr.f32.gmra.mxu0 %v1563
      %v2771 = vpop.f32.mrf.mxu0
      %v2772 = vadd.f32 %v2387, %v2771
      %v2773 = vpop.f32.mrf.mxu0
      %2774 = vmatprep.mubr.f32.mxu0 %v1580
      %2775 = vmatmul.mubr.f32.gmra.mxu0 %v1579
      %v2776 = vpop.f32.mrf.mxu0
      %v2777 = vadd.f32 %v2392, %v2776
      %v2778 = vpop.f32.mrf.mxu0
      %2779 = vmatprep.mubr.f32.mxu0 %v1596
      %2780 = vmatmul.mubr.f32.gmra.mxu0 %v1595
      %v2781 = vpop.f32.mrf.mxu0
      %v2782 = vadd.f32 %v2397, %v2781
      %v2783 = vpop.f32.mrf.mxu0
      %2784 = vmatprep.mubr.f32.mxu0 %v1612
      %2785 = vmatmul.mubr.f32.gmra.mxu0 %v1611
      %v2786 = vpop.f32.mrf.mxu0
      %v2787 = vadd.f32 %v2402, %v2786
      %v2788 = vpop.f32.mrf.mxu0
      %2789 = vmatprep.mubr.f32.mxu0 %v1628
      %2790 = vmatmul.mubr.f32.gmra.mxu0 %v1627
      %v2791 = vpop.f32.mrf.mxu0
      %v2792 = vadd.f32 %v2407, %v2791
      %v2793 = vpop.f32.mrf.mxu0
      %2794 = vdwg.mxu0
      %2795 = vmatprep.subr.mxu0 0.0
      %2796 = vmatpush1.msra.mxu0 %v439
      %2797 = vmatprep.subr.mxu0 0.0
      %2798 = vmatpush1.msra.mxu0 %v438
      %2799 = vmatprep.subr.mxu0 0.0
      %2800 = vmatpush1.msra.mxu0 %v437
      %2801 = vmatprep.subr.mxu0 0.0
      %2802 = vmatpush1.msra.mxu0 %v436
      %2803 = vmatprep.subr.mxu0 0.0
      %2804 = vmatpush1.msra.mxu0 %v435
      %2805 = vmatprep.subr.mxu0 0.0
      %2806 = vmatpush1.msra.mxu0 %v434
      %2807 = vmatprep.subr.mxu0 0.0
      %2808 = vmatpush1.msra.mxu0 %v433
      %2809 = vmatprep.subr.mxu0 0.0
      %2810 = vmatpush1.msra.mxu0 %v432
      %2811 = vmatprep.subr.mxu0 0.0
      %2812 = vmatpush1.msra.mxu0 %v431
      %2813 = vmatprep.subr.mxu0 0.0
      %2814 = vmatpush1.msra.mxu0 %v430
      %2815 = vmatprep.subr.mxu0 0.0
      %2816 = vmatpush1.msra.mxu0 %v429
      %2817 = vmatprep.subr.mxu0 0.0
      %2818 = vmatpush1.msra.mxu0 %v428
      %2819 = vmatprep.subr.mxu0 0.0
      %2820 = vmatpush1.msra.mxu0 %v427
      %2821 = vmatprep.subr.mxu0 0.0
      %2822 = vmatpush1.msra.mxu0 %v426
      %2823 = vmatprep.subr.mxu0 0.0
      %2824 = vmatpush1.msra.mxu0 %v425
      %2825 = vmatprep.subr.mxu0 0.0
      %2826 = vmatpush1.msra.mxu0 %v424
      %2827 = vmatprep.subr.mxu0 0.0
      %2828 = vmatpush2.msra.mxu0 %v455
      %2829 = vmatprep.subr.mxu0 0.0
      %2830 = vmatpush2.msra.mxu0 %v454
      %2831 = vmatprep.subr.mxu0 0.0
      %2832 = vmatpush2.msra.mxu0 %v453
      %2833 = vmatprep.subr.mxu0 0.0
      %2834 = vmatpush2.msra.mxu0 %v452
      %2835 = vmatprep.subr.mxu0 0.0
      %2836 = vmatpush2.msra.mxu0 %v451
      %2837 = vmatprep.subr.mxu0 0.0
      %2838 = vmatpush2.msra.mxu0 %v450
      %2839 = vmatprep.subr.mxu0 0.0
      %2840 = vmatpush2.msra.mxu0 %v449
      %2841 = vmatprep.subr.mxu0 0.0
      %2842 = vmatpush2.msra.mxu0 %v448
      %2843 = vmatprep.subr.mxu0 0.0
      %2844 = vmatpush2.msra.mxu0 %v447
      %2845 = vmatprep.subr.mxu0 0.0
      %2846 = vmatpush2.msra.mxu0 %v446
      %2847 = vmatprep.subr.mxu0 0.0
      %2848 = vmatpush2.msra.mxu0 %v445
      %2849 = vmatprep.subr.mxu0 0.0
      %2850 = vmatpush2.msra.mxu0 %v444
      %2851 = vmatprep.subr.mxu0 0.0
      %2852 = vmatpush2.msra.mxu0 %v443
      %2853 = vmatprep.subr.mxu0 0.0
      %2854 = vmatpush2.msra.mxu0 %v442
      %2855 = vmatprep.subr.mxu0 0.0
      %2856 = vmatpush2.msra.mxu0 %v441
      %2857 = vmatprep.subr.mxu0 0.0
      %2858 = vmatpush2.msra.mxu0 %v440
      %2859 = vmatprep.mubr.f32.mxu0 %v622
      %2860 = vmatmul.mubr.f32.gmra.mxu0 %v621
      %v2861 = vpop.f32.mrf.mxu0
      %v2862 = vadd.f32 %v2477, %v2861
      %v2863 = vpop.f32.mrf.mxu0
      %2864 = vmatprep.mubr.f32.mxu0 %v638
      %2865 = vmatmul.mubr.f32.gmra.mxu0 %v637
      %v2866 = vpop.f32.mrf.mxu0
      %v2867 = vadd.f32 %v2482, %v2866
      %v2868 = vpop.f32.mrf.mxu0
      %2869 = vmatprep.mubr.f32.mxu0 %v654
      %2870 = vmatmul.mubr.f32.gmra.mxu0 %v653
      %v2871 = vpop.f32.mrf.mxu0
      %v2872 = vadd.f32 %v2487, %v2871
      %v2873 = vpop.f32.mrf.mxu0
      %2874 = vmatprep.mubr.f32.mxu0 %v670
      %2875 = vmatmul.mubr.f32.gmra.mxu0 %v669
      %v2876 = vpop.f32.mrf.mxu0
      %v2877 = vadd.f32 %v2492, %v2876
      %v2878 = vpop.f32.mrf.mxu0
      %2879 = vmatprep.mubr.f32.mxu0 %v686
      %2880 = vmatmul.mubr.f32.gmra.mxu0 %v685
      %v2881 = vpop.f32.mrf.mxu0
      %v2882 = vadd.f32 %v2497, %v2881
      %v2883 = vpop.f32.mrf.mxu0
      %2884 = vmatprep.mubr.f32.mxu0 %v702
      %2885 = vmatmul.mubr.f32.gmra.mxu0 %v701
      %v2886 = vpop.f32.mrf.mxu0
      %v2887 = vadd.f32 %v2502, %v2886
      %v2888 = vpop.f32.mrf.mxu0
      %2889 = vmatprep.mubr.f32.mxu0 %v718
      %2890 = vmatmul.mubr.f32.gmra.mxu0 %v717
      %v2891 = vpop.f32.mrf.mxu0
      %v2892 = vadd.f32 %v2507, %v2891
      %v2893 = vpop.f32.mrf.mxu0
      %2894 = vmatprep.mubr.f32.mxu0 %v734
      %2895 = vmatmul.mubr.f32.gmra.mxu0 %v733
      %v2896 = vpop.f32.mrf.mxu0
      %v2897 = vadd.f32 %v2512, %v2896
      %v2898 = vpop.f32.mrf.mxu0
      %2899 = vmatprep.mubr.f32.mxu0 %v750
      %2900 = vmatmul.mubr.f32.gmra.mxu0 %v749
      %v2901 = vpop.f32.mrf.mxu0
      %v2902 = vadd.f32 %v2517, %v2901
      %v2903 = vpop.f32.mrf.mxu0
      %2904 = vmatprep.mubr.f32.mxu0 %v766
      %2905 = vmatmul.mubr.f32.gmra.mxu0 %v765
      %v2906 = vpop.f32.mrf.mxu0
      %v2907 = vadd.f32 %v2522, %v2906
      %v2908 = vpop.f32.mrf.mxu0
      %2909 = vmatprep.mubr.f32.mxu0 %v782
      %2910 = vmatmul.mubr.f32.gmra.mxu0 %v781
      %v2911 = vpop.f32.mrf.mxu0
      %v2912 = vadd.f32 %v2527, %v2911
      %v2913 = vpop.f32.mrf.mxu0
      %2914 = vmatprep.mubr.f32.mxu0 %v798
      %2915 = vmatmul.mubr.f32.gmra.mxu0 %v797
      %v2916 = vpop.f32.mrf.mxu0
      %v2917 = vadd.f32 %v2532, %v2916
      %v2918 = vpop.f32.mrf.mxu0
      %2919 = vmatprep.mubr.f32.mxu0 %v814
      %2920 = vmatmul.mubr.f32.gmra.mxu0 %v813
      %v2921 = vpop.f32.mrf.mxu0
      %v2922 = vadd.f32 %v2537, %v2921
      %v2923 = vpop.f32.mrf.mxu0
      %2924 = vmatprep.mubr.f32.mxu0 %v830
      %2925 = vmatmul.mubr.f32.gmra.mxu0 %v829
      %v2926 = vpop.f32.mrf.mxu0
      %v2927 = vadd.f32 %v2542, %v2926
      %v2928 = vpop.f32.mrf.mxu0
      %2929 = vmatprep.mubr.f32.mxu0 %v846
      %2930 = vmatmul.mubr.f32.gmra.mxu0 %v845
      %v2931 = vpop.f32.mrf.mxu0
      %v2932 = vadd.f32 %v2547, %v2931
      %v2933 = vpop.f32.mrf.mxu0
      %2934 = vmatprep.mubr.f32.mxu0 %v862
      %2935 = vmatmul.mubr.f32.gmra.mxu0 %v861
      %v2936 = vpop.f32.mrf.mxu0
      %v2937 = vadd.f32 %v2552, %v2936
      %v2938 = vpop.f32.mrf.mxu0
      %2939 = vmatprep.mubr.f32.mxu0 %v878
      %2940 = vmatmul.mubr.f32.gmra.mxu0 %v877
      %v2941 = vpop.f32.mrf.mxu0
      %v2942 = vadd.f32 %v2557, %v2941
      %v2943 = vpop.f32.mrf.mxu0
      %2944 = vmatprep.mubr.f32.mxu0 %v894
      %2945 = vmatmul.mubr.f32.gmra.mxu0 %v893
      %v2946 = vpop.f32.mrf.mxu0
      %v2947 = vadd.f32 %v2562, %v2946
      %v2948 = vpop.f32.mrf.mxu0
      %2949 = vmatprep.mubr.f32.mxu0 %v910
      %2950 = vmatmul.mubr.f32.gmra.mxu0 %v909
      %v2951 = vpop.f32.mrf.mxu0
      %v2952 = vadd.f32 %v2567, %v2951
      %v2953 = vpop.f32.mrf.mxu0
      %2954 = vmatprep.mubr.f32.mxu0 %v926
      %2955 = vmatmul.mubr.f32.gmra.mxu0 %v925
      %v2956 = vpop.f32.mrf.mxu0
      %v2957 = vadd.f32 %v2572, %v2956
      %v2958 = vpop.f32.mrf.mxu0
      %2959 = vmatprep.mubr.f32.mxu0 %v942
      %2960 = vmatmul.mubr.f32.gmra.mxu0 %v941
      %v2961 = vpop.f32.mrf.mxu0
      %v2962 = vadd.f32 %v2577, %v2961
      %v2963 = vpop.f32.mrf.mxu0
      %2964 = vmatprep.mubr.f32.mxu0 %v958
      %2965 = vmatmul.mubr.f32.gmra.mxu0 %v957
      %v2966 = vpop.f32.mrf.mxu0
      %v2967 = vadd.f32 %v2582, %v2966
      %v2968 = vpop.f32.mrf.mxu0
      %2969 = vmatprep.mubr.f32.mxu0 %v974
      %2970 = vmatmul.mubr.f32.gmra.mxu0 %v973
      %v2971 = vpop.f32.mrf.mxu0
      %v2972 = vadd.f32 %v2587, %v2971
      %v2973 = vpop.f32.mrf.mxu0
      %2974 = vmatprep.mubr.f32.mxu0 %v990
      %2975 = vmatmul.mubr.f32.gmra.mxu0 %v989
      %v2976 = vpop.f32.mrf.mxu0
      %v2977 = vadd.f32 %v2592, %v2976
      %v2978 = vpop.f32.mrf.mxu0
      %2979 = vmatprep.mubr.f32.mxu0 %v1006
      %2980 = vmatmul.mubr.f32.gmra.mxu0 %v1005
      %v2981 = vpop.f32.mrf.mxu0
      %v2982 = vadd.f32 %v2597, %v2981
      %v2983 = vpop.f32.mrf.mxu0
      %2984 = vmatprep.mubr.f32.mxu0 %v1022
      %2985 = vmatmul.mubr.f32.gmra.mxu0 %v1021
      %v2986 = vpop.f32.mrf.mxu0
      %v2987 = vadd.f32 %v2602, %v2986
      %v2988 = vpop.f32.mrf.mxu0
      %2989 = vmatprep.mubr.f32.mxu0 %v1038
      %2990 = vmatmul.mubr.f32.gmra.mxu0 %v1037
      %v2991 = vpop.f32.mrf.mxu0
      %v2992 = vadd.f32 %v2607, %v2991
      %v2993 = vpop.f32.mrf.mxu0
      %2994 = vmatprep.mubr.f32.mxu0 %v1054
      %2995 = vmatmul.mubr.f32.gmra.mxu0 %v1053
      %v2996 = vpop.f32.mrf.mxu0
      %v2997 = vadd.f32 %v2612, %v2996
      %v2998 = vpop.f32.mrf.mxu0
      %2999 = vmatprep.mubr.f32.mxu0 %v1070
      %3000 = vmatmul.mubr.f32.gmra.mxu0 %v1069
      %v3001 = vpop.f32.mrf.mxu0
      %v3002 = vadd.f32 %v2617, %v3001
      %v3003 = vpop.f32.mrf.mxu0
      %3004 = vmatprep.mubr.f32.mxu0 %v1086
      %3005 = vmatmul.mubr.f32.gmra.mxu0 %v1085
      %v3006 = vpop.f32.mrf.mxu0
      %v3007 = vadd.f32 %v2622, %v3006
      %v3008 = vpop.f32.mrf.mxu0
      %3009 = vmatprep.mubr.f32.mxu0 %v1102
      %3010 = vmatmul.mubr.f32.gmra.mxu0 %v1101
      %v3011 = vpop.f32.mrf.mxu0
      %v3012 = vadd.f32 %v2627, %v3011
      %v3013 = vpop.f32.mrf.mxu0
      %3014 = vmatprep.mubr.f32.mxu0 %v1118
      %3015 = vmatmul.mubr.f32.gmra.mxu0 %v1117
      %v3016 = vpop.f32.mrf.mxu0
      %v3017 = vadd.f32 %v2632, %v3016
      %v3018 = vpop.f32.mrf.mxu0
      %3019 = vmatprep.mubr.f32.mxu0 %v1134
      %3020 = vmatmul.mubr.f32.gmra.mxu0 %v1133
      %v3021 = vpop.f32.mrf.mxu0
      %v3022 = vadd.f32 %v2637, %v3021
      %v3023 = vpop.f32.mrf.mxu0
      %3024 = vmatprep.mubr.f32.mxu0 %v1150
      %3025 = vmatmul.mubr.f32.gmra.mxu0 %v1149
      %v3026 = vpop.f32.mrf.mxu0
      %v3027 = vadd.f32 %v2642, %v3026
      %v3028 = vpop.f32.mrf.mxu0
      %3029 = vmatprep.mubr.f32.mxu0 %v1166
      %3030 = vmatmul.mubr.f32.gmra.mxu0 %v1165
      %v3031 = vpop.f32.mrf.mxu0
      %v3032 = vadd.f32 %v2647, %v3031
      %v3033 = vpop.f32.mrf.mxu0
      %3034 = vmatprep.mubr.f32.mxu0 %v1182
      %3035 = vmatmul.mubr.f32.gmra.mxu0 %v1181
      %v3036 = vpop.f32.mrf.mxu0
      %v3037 = vadd.f32 %v2652, %v3036
      %v3038 = vpop.f32.mrf.mxu0
      %3039 = vmatprep.mubr.f32.mxu0 %v1198
      %3040 = vmatmul.mubr.f32.gmra.mxu0 %v1197
      %v3041 = vpop.f32.mrf.mxu0
      %v3042 = vadd.f32 %v2657, %v3041
      %v3043 = vpop.f32.mrf.mxu0
      %3044 = vmatprep.mubr.f32.mxu0 %v1214
      %3045 = vmatmul.mubr.f32.gmra.mxu0 %v1213
      %v3046 = vpop.f32.mrf.mxu0
      %v3047 = vadd.f32 %v2662, %v3046
      %v3048 = vpop.f32.mrf.mxu0
      %3049 = vmatprep.mubr.f32.mxu0 %v1230
      %3050 = vmatmul.mubr.f32.gmra.mxu0 %v1229
      %v3051 = vpop.f32.mrf.mxu0
      %v3052 = vadd.f32 %v2667, %v3051
      %v3053 = vpop.f32.mrf.mxu0
      %3054 = vmatprep.mubr.f32.mxu0 %v1246
      %3055 = vmatmul.mubr.f32.gmra.mxu0 %v1245
      %v3056 = vpop.f32.mrf.mxu0
      %v3057 = vadd.f32 %v2672, %v3056
      %v3058 = vpop.f32.mrf.mxu0
      %3059 = vmatprep.mubr.f32.mxu0 %v1262
      %3060 = vmatmul.mubr.f32.gmra.mxu0 %v1261
      %v3061 = vpop.f32.mrf.mxu0
      %v3062 = vadd.f32 %v2677, %v3061
      %v3063 = vpop.f32.mrf.mxu0
      %3064 = vmatprep.mubr.f32.mxu0 %v1278
      %3065 = vmatmul.mubr.f32.gmra.mxu0 %v1277
      %v3066 = vpop.f32.mrf.mxu0
      %v3067 = vadd.f32 %v2682, %v3066
      %v3068 = vpop.f32.mrf.mxu0
      %3069 = vmatprep.mubr.f32.mxu0 %v1294
      %3070 = vmatmul.mubr.f32.gmra.mxu0 %v1293
      %v3071 = vpop.f32.mrf.mxu0
      %v3072 = vadd.f32 %v2687, %v3071
      %v3073 = vpop.f32.mrf.mxu0
      %3074 = vmatprep.mubr.f32.mxu0 %v1310
      %3075 = vmatmul.mubr.f32.gmra.mxu0 %v1309
      %v3076 = vpop.f32.mrf.mxu0
      %v3077 = vadd.f32 %v2692, %v3076
      %v3078 = vpop.f32.mrf.mxu0
      %3079 = vmatprep.mubr.f32.mxu0 %v1326
      %3080 = vmatmul.mubr.f32.gmra.mxu0 %v1325
      %v3081 = vpop.f32.mrf.mxu0
      %v3082 = vadd.f32 %v2697, %v3081
      %v3083 = vpop.f32.mrf.mxu0
      %3084 = vmatprep.mubr.f32.mxu0 %v1342
      %3085 = vmatmul.mubr.f32.gmra.mxu0 %v1341
      %v3086 = vpop.f32.mrf.mxu0
      %v3087 = vadd.f32 %v2702, %v3086
      %v3088 = vpop.f32.mrf.mxu0
      %3089 = vmatprep.mubr.f32.mxu0 %v1358
      %3090 = vmatmul.mubr.f32.gmra.mxu0 %v1357
      %v3091 = vpop.f32.mrf.mxu0
      %v3092 = vadd.f32 %v2707, %v3091
      %v3093 = vpop.f32.mrf.mxu0
      %3094 = vmatprep.mubr.f32.mxu0 %v1374
      %3095 = vmatmul.mubr.f32.gmra.mxu0 %v1373
      %v3096 = vpop.f32.mrf.mxu0
      %v3097 = vadd.f32 %v2712, %v3096
      %v3098 = vpop.f32.mrf.mxu0
      %3099 = vmatprep.mubr.f32.mxu0 %v1390
      %3100 = vmatmul.mubr.f32.gmra.mxu0 %v1389
      %v3101 = vpop.f32.mrf.mxu0
      %v3102 = vadd.f32 %v2717, %v3101
      %v3103 = vpop.f32.mrf.mxu0
      %3104 = vmatprep.mubr.f32.mxu0 %v1406
      %3105 = vmatmul.mubr.f32.gmra.mxu0 %v1405
      %v3106 = vpop.f32.mrf.mxu0
      %v3107 = vadd.f32 %v2722, %v3106
      %v3108 = vpop.f32.mrf.mxu0
      %3109 = vmatprep.mubr.f32.mxu0 %v1422
      %3110 = vmatmul.mubr.f32.gmra.mxu0 %v1421
      %v3111 = vpop.f32.mrf.mxu0
      %v3112 = vadd.f32 %v2727, %v3111
      %v3113 = vpop.f32.mrf.mxu0
      %3114 = vmatprep.mubr.f32.mxu0 %v1438
      %3115 = vmatmul.mubr.f32.gmra.mxu0 %v1437
      %v3116 = vpop.f32.mrf.mxu0
      %v3117 = vadd.f32 %v2732, %v3116
      %v3118 = vpop.f32.mrf.mxu0
      %3119 = vmatprep.mubr.f32.mxu0 %v1454
      %3120 = vmatmul.mubr.f32.gmra.mxu0 %v1453
      %v3121 = vpop.f32.mrf.mxu0
      %v3122 = vadd.f32 %v2737, %v3121
      %v3123 = vpop.f32.mrf.mxu0
      %3124 = vmatprep.mubr.f32.mxu0 %v1470
      %3125 = vmatmul.mubr.f32.gmra.mxu0 %v1469
      %v3126 = vpop.f32.mrf.mxu0
      %v3127 = vadd.f32 %v2742, %v3126
      %v3128 = vpop.f32.mrf.mxu0
      %3129 = vmatprep.mubr.f32.mxu0 %v1486
      %3130 = vmatmul.mubr.f32.gmra.mxu0 %v1485
      %v3131 = vpop.f32.mrf.mxu0
      %v3132 = vadd.f32 %v2747, %v3131
      %v3133 = vpop.f32.mrf.mxu0
      %3134 = vmatprep.mubr.f32.mxu0 %v1502
      %3135 = vmatmul.mubr.f32.gmra.mxu0 %v1501
      %v3136 = vpop.f32.mrf.mxu0
      %v3137 = vadd.f32 %v2752, %v3136
      %v3138 = vpop.f32.mrf.mxu0
      %3139 = vmatprep.mubr.f32.mxu0 %v1518
      %3140 = vmatmul.mubr.f32.gmra.mxu0 %v1517
      %v3141 = vpop.f32.mrf.mxu0
      %v3142 = vadd.f32 %v2757, %v3141
      %v3143 = vpop.f32.mrf.mxu0
      %3144 = vmatprep.mubr.f32.mxu0 %v1534
      %3145 = vmatmul.mubr.f32.gmra.mxu0 %v1533
      %v3146 = vpop.f32.mrf.mxu0
      %v3147 = vadd.f32 %v2762, %v3146
      %v3148 = vpop.f32.mrf.mxu0
      %3149 = vmatprep.mubr.f32.mxu0 %v1550
      %3150 = vmatmul.mubr.f32.gmra.mxu0 %v1549
      %v3151 = vpop.f32.mrf.mxu0
      %v3152 = vadd.f32 %v2767, %v3151
      %v3153 = vpop.f32.mrf.mxu0
      %3154 = vmatprep.mubr.f32.mxu0 %v1566
      %3155 = vmatmul.mubr.f32.gmra.mxu0 %v1565
      %v3156 = vpop.f32.mrf.mxu0
      %v3157 = vadd.f32 %v2772, %v3156
      %v3158 = vpop.f32.mrf.mxu0
      %3159 = vmatprep.mubr.f32.mxu0 %v1582
      %3160 = vmatmul.mubr.f32.gmra.mxu0 %v1581
      %v3161 = vpop.f32.mrf.mxu0
      %v3162 = vadd.f32 %v2777, %v3161
      %v3163 = vpop.f32.mrf.mxu0
      %3164 = vmatprep.mubr.f32.mxu0 %v1598
      %3165 = vmatmul.mubr.f32.gmra.mxu0 %v1597
      %v3166 = vpop.f32.mrf.mxu0
      %v3167 = vadd.f32 %v2782, %v3166
      %v3168 = vpop.f32.mrf.mxu0
      %3169 = vmatprep.mubr.f32.mxu0 %v1614
      %3170 = vmatmul.mubr.f32.gmra.mxu0 %v1613
      %v3171 = vpop.f32.mrf.mxu0
      %v3172 = vadd.f32 %v2787, %v3171
      %v3173 = vpop.f32.mrf.mxu0
      %3174 = vmatprep.mubr.f32.mxu0 %v1630
      %3175 = vmatmul.mubr.f32.gmra.mxu0 %v1629
      %v3176 = vpop.f32.mrf.mxu0
      %v3177 = vadd.f32 %v2792, %v3176
      %v3178 = vpop.f32.mrf.mxu0
      %3179 = vdwg.mxu0
      %3180 = vmatprep.subr.mxu0 0.0
      %3181 = vmatpush1.msra.mxu0 %v471
      %3182 = vmatprep.subr.mxu0 0.0
      %3183 = vmatpush1.msra.mxu0 %v470
      %3184 = vmatprep.subr.mxu0 0.0
      %3185 = vmatpush1.msra.mxu0 %v469
      %3186 = vmatprep.subr.mxu0 0.0
      %3187 = vmatpush1.msra.mxu0 %v468
      %3188 = vmatprep.subr.mxu0 0.0
      %3189 = vmatpush1.msra.mxu0 %v467
      %3190 = vmatprep.subr.mxu0 0.0
      %3191 = vmatpush1.msra.mxu0 %v466
      %3192 = vmatprep.subr.mxu0 0.0
      %3193 = vmatpush1.msra.mxu0 %v465
      %3194 = vmatprep.subr.mxu0 0.0
      %3195 = vmatpush1.msra.mxu0 %v464
      %3196 = vmatprep.subr.mxu0 0.0
      %3197 = vmatpush1.msra.mxu0 %v463
      %3198 = vmatprep.subr.mxu0 0.0
      %3199 = vmatpush1.msra.mxu0 %v462
      %3200 = vmatprep.subr.mxu0 0.0
      %3201 = vmatpush1.msra.mxu0 %v461
      %3202 = vmatprep.subr.mxu0 0.0
      %3203 = vmatpush1.msra.mxu0 %v460
      %3204 = vmatprep.subr.mxu0 0.0
      %3205 = vmatpush1.msra.mxu0 %v459
      %3206 = vmatprep.subr.mxu0 0.0
      %3207 = vmatpush1.msra.mxu0 %v458
      %3208 = vmatprep.subr.mxu0 0.0
      %3209 = vmatpush1.msra.mxu0 %v457
      %3210 = vmatprep.subr.mxu0 0.0
      %3211 = vmatpush1.msra.mxu0 %v456
      %3212 = vmatprep.subr.mxu0 0.0
      %3213 = vmatpush2.msra.mxu0 %v487
      %3214 = vmatprep.subr.mxu0 0.0
      %3215 = vmatpush2.msra.mxu0 %v486
      %3216 = vmatprep.subr.mxu0 0.0
      %3217 = vmatpush2.msra.mxu0 %v485
      %3218 = vmatprep.subr.mxu0 0.0
      %3219 = vmatpush2.msra.mxu0 %v484
      %3220 = vmatprep.subr.mxu0 0.0
      %3221 = vmatpush2.msra.mxu0 %v483
      %3222 = vmatprep.subr.mxu0 0.0
      %3223 = vmatpush2.msra.mxu0 %v482
      %3224 = vmatprep.subr.mxu0 0.0
      %3225 = vmatpush2.msra.mxu0 %v481
      %3226 = vmatprep.subr.mxu0 0.0
      %3227 = vmatpush2.msra.mxu0 %v480
      %3228 = vmatprep.subr.mxu0 0.0
      %3229 = vmatpush2.msra.mxu0 %v479
      %3230 = vmatprep.subr.mxu0 0.0
      %3231 = vmatpush2.msra.mxu0 %v478
      %3232 = vmatprep.subr.mxu0 0.0
      %3233 = vmatpush2.msra.mxu0 %v477
      %3234 = vmatprep.subr.mxu0 0.0
      %3235 = vmatpush2.msra.mxu0 %v476
      %3236 = vmatprep.subr.mxu0 0.0
      %3237 = vmatpush2.msra.mxu0 %v475
      %3238 = vmatprep.subr.mxu0 0.0
      %3239 = vmatpush2.msra.mxu0 %v474
      %3240 = vmatprep.subr.mxu0 0.0
      %3241 = vmatpush2.msra.mxu0 %v473
      %3242 = vmatprep.subr.mxu0 0.0
      %3243 = vmatpush2.msra.mxu0 %v472
      %3244 = vmatprep.mubr.f32.mxu0 %v624
      %3245 = vmatmul.mubr.f32.gmra.mxu0 %v623
      %v3246 = vpop.f32.mrf.mxu0
      %v3247 = vadd.f32 %v2862, %v3246
      %v3248 = vpop.f32.mrf.mxu0
      %3249 = vmatprep.mubr.f32.mxu0 %v640
      %3250 = vmatmul.mubr.f32.gmra.mxu0 %v639
      %v3251 = vpop.f32.mrf.mxu0
      %v3252 = vadd.f32 %v2867, %v3251
      %v3253 = vpop.f32.mrf.mxu0
      %3254 = vmatprep.mubr.f32.mxu0 %v656
      %3255 = vmatmul.mubr.f32.gmra.mxu0 %v655
      %v3256 = vpop.f32.mrf.mxu0
      %v3257 = vadd.f32 %v2872, %v3256
      %v3258 = vpop.f32.mrf.mxu0
      %3259 = vmatprep.mubr.f32.mxu0 %v672
      %3260 = vmatmul.mubr.f32.gmra.mxu0 %v671
      %v3261 = vpop.f32.mrf.mxu0
      %v3262 = vadd.f32 %v2877, %v3261
      %v3263 = vpop.f32.mrf.mxu0
      %3264 = vmatprep.mubr.f32.mxu0 %v688
      %3265 = vmatmul.mubr.f32.gmra.mxu0 %v687
      %v3266 = vpop.f32.mrf.mxu0
      %v3267 = vadd.f32 %v2882, %v3266
      %v3268 = vpop.f32.mrf.mxu0
      %3269 = vmatprep.mubr.f32.mxu0 %v704
      %3270 = vmatmul.mubr.f32.gmra.mxu0 %v703
      %v3271 = vpop.f32.mrf.mxu0
      %v3272 = vadd.f32 %v2887, %v3271
      %v3273 = vpop.f32.mrf.mxu0
      %3274 = vmatprep.mubr.f32.mxu0 %v720
      %3275 = vmatmul.mubr.f32.gmra.mxu0 %v719
      %v3276 = vpop.f32.mrf.mxu0
      %v3277 = vadd.f32 %v2892, %v3276
      %v3278 = vpop.f32.mrf.mxu0
      %3279 = vmatprep.mubr.f32.mxu0 %v736
      %3280 = vmatmul.mubr.f32.gmra.mxu0 %v735
      %v3281 = vpop.f32.mrf.mxu0
      %v3282 = vadd.f32 %v2897, %v3281
      %v3283 = vpop.f32.mrf.mxu0
      %3284 = vmatprep.mubr.f32.mxu0 %v752
      %3285 = vmatmul.mubr.f32.gmra.mxu0 %v751
      %v3286 = vpop.f32.mrf.mxu0
      %v3287 = vadd.f32 %v2902, %v3286
      %v3288 = vpop.f32.mrf.mxu0
      %3289 = vmatprep.mubr.f32.mxu0 %v768
      %3290 = vmatmul.mubr.f32.gmra.mxu0 %v767
      %v3291 = vpop.f32.mrf.mxu0
      %v3292 = vadd.f32 %v2907, %v3291
      %v3293 = vpop.f32.mrf.mxu0
      %3294 = vmatprep.mubr.f32.mxu0 %v784
      %3295 = vmatmul.mubr.f32.gmra.mxu0 %v783
      %v3296 = vpop.f32.mrf.mxu0
      %v3297 = vadd.f32 %v2912, %v3296
      %v3298 = vpop.f32.mrf.mxu0
      %3299 = vmatprep.mubr.f32.mxu0 %v800
      %3300 = vmatmul.mubr.f32.gmra.mxu0 %v799
      %v3301 = vpop.f32.mrf.mxu0
      %v3302 = vadd.f32 %v2917, %v3301
      %v3303 = vpop.f32.mrf.mxu0
      %3304 = vmatprep.mubr.f32.mxu0 %v816
      %3305 = vmatmul.mubr.f32.gmra.mxu0 %v815
      %v3306 = vpop.f32.mrf.mxu0
      %v3307 = vadd.f32 %v2922, %v3306
      %v3308 = vpop.f32.mrf.mxu0
      %3309 = vmatprep.mubr.f32.mxu0 %v832
      %3310 = vmatmul.mubr.f32.gmra.mxu0 %v831
      %v3311 = vpop.f32.mrf.mxu0
      %v3312 = vadd.f32 %v2927, %v3311
      %v3313 = vpop.f32.mrf.mxu0
      %3314 = vmatprep.mubr.f32.mxu0 %v848
      %3315 = vmatmul.mubr.f32.gmra.mxu0 %v847
      %v3316 = vpop.f32.mrf.mxu0
      %v3317 = vadd.f32 %v2932, %v3316
      %v3318 = vpop.f32.mrf.mxu0
      %3319 = vmatprep.mubr.f32.mxu0 %v864
      %3320 = vmatmul.mubr.f32.gmra.mxu0 %v863
      %v3321 = vpop.f32.mrf.mxu0
      %v3322 = vadd.f32 %v2937, %v3321
      %v3323 = vpop.f32.mrf.mxu0
      %3324 = vmatprep.mubr.f32.mxu0 %v880
      %3325 = vmatmul.mubr.f32.gmra.mxu0 %v879
      %v3326 = vpop.f32.mrf.mxu0
      %v3327 = vadd.f32 %v2942, %v3326
      %v3328 = vpop.f32.mrf.mxu0
      %3329 = vmatprep.mubr.f32.mxu0 %v896
      %3330 = vmatmul.mubr.f32.gmra.mxu0 %v895
      %v3331 = vpop.f32.mrf.mxu0
      %v3332 = vadd.f32 %v2947, %v3331
      %v3333 = vpop.f32.mrf.mxu0
      %3334 = vmatprep.mubr.f32.mxu0 %v912
      %3335 = vmatmul.mubr.f32.gmra.mxu0 %v911
      %v3336 = vpop.f32.mrf.mxu0
      %v3337 = vadd.f32 %v2952, %v3336
      %v3338 = vpop.f32.mrf.mxu0
      %3339 = vmatprep.mubr.f32.mxu0 %v928
      %3340 = vmatmul.mubr.f32.gmra.mxu0 %v927
      %v3341 = vpop.f32.mrf.mxu0
      %v3342 = vadd.f32 %v2957, %v3341
      %v3343 = vpop.f32.mrf.mxu0
      %3344 = vmatprep.mubr.f32.mxu0 %v944
      %3345 = vmatmul.mubr.f32.gmra.mxu0 %v943
      %v3346 = vpop.f32.mrf.mxu0
      %v3347 = vadd.f32 %v2962, %v3346
      %v3348 = vpop.f32.mrf.mxu0
      %3349 = vmatprep.mubr.f32.mxu0 %v960
      %3350 = vmatmul.mubr.f32.gmra.mxu0 %v959
      %v3351 = vpop.f32.mrf.mxu0
      %v3352 = vadd.f32 %v2967, %v3351
      %v3353 = vpop.f32.mrf.mxu0
      %3354 = vmatprep.mubr.f32.mxu0 %v976
      %3355 = vmatmul.mubr.f32.gmra.mxu0 %v975
      %v3356 = vpop.f32.mrf.mxu0
      %v3357 = vadd.f32 %v2972, %v3356
      %v3358 = vpop.f32.mrf.mxu0
      %3359 = vmatprep.mubr.f32.mxu0 %v992
      %3360 = vmatmul.mubr.f32.gmra.mxu0 %v991
      %v3361 = vpop.f32.mrf.mxu0
      %v3362 = vadd.f32 %v2977, %v3361
      %v3363 = vpop.f32.mrf.mxu0
      %3364 = vmatprep.mubr.f32.mxu0 %v1008
      %3365 = vmatmul.mubr.f32.gmra.mxu0 %v1007
      %v3366 = vpop.f32.mrf.mxu0
      %v3367 = vadd.f32 %v2982, %v3366
      %v3368 = vpop.f32.mrf.mxu0
      %3369 = vmatprep.mubr.f32.mxu0 %v1024
      %3370 = vmatmul.mubr.f32.gmra.mxu0 %v1023
      %v3371 = vpop.f32.mrf.mxu0
      %v3372 = vadd.f32 %v2987, %v3371
      %v3373 = vpop.f32.mrf.mxu0
      %3374 = vmatprep.mubr.f32.mxu0 %v1040
      %3375 = vmatmul.mubr.f32.gmra.mxu0 %v1039
      %v3376 = vpop.f32.mrf.mxu0
      %v3377 = vadd.f32 %v2992, %v3376
      %v3378 = vpop.f32.mrf.mxu0
      %3379 = vmatprep.mubr.f32.mxu0 %v1056
      %3380 = vmatmul.mubr.f32.gmra.mxu0 %v1055
      %v3381 = vpop.f32.mrf.mxu0
      %v3382 = vadd.f32 %v2997, %v3381
      %v3383 = vpop.f32.mrf.mxu0
      %3384 = vmatprep.mubr.f32.mxu0 %v1072
      %3385 = vmatmul.mubr.f32.gmra.mxu0 %v1071
      %v3386 = vpop.f32.mrf.mxu0
      %v3387 = vadd.f32 %v3002, %v3386
      %v3388 = vpop.f32.mrf.mxu0
      %3389 = vmatprep.mubr.f32.mxu0 %v1088
      %3390 = vmatmul.mubr.f32.gmra.mxu0 %v1087
      %v3391 = vpop.f32.mrf.mxu0
      %v3392 = vadd.f32 %v3007, %v3391
      %v3393 = vpop.f32.mrf.mxu0
      %3394 = vmatprep.mubr.f32.mxu0 %v1104
      %3395 = vmatmul.mubr.f32.gmra.mxu0 %v1103
      %v3396 = vpop.f32.mrf.mxu0
      %v3397 = vadd.f32 %v3012, %v3396
      %v3398 = vpop.f32.mrf.mxu0
      %3399 = vmatprep.mubr.f32.mxu0 %v1120
      %3400 = vmatmul.mubr.f32.gmra.mxu0 %v1119
      %v3401 = vpop.f32.mrf.mxu0
      %v3402 = vadd.f32 %v3017, %v3401
      %v3403 = vpop.f32.mrf.mxu0
      %3404 = vmatprep.mubr.f32.mxu0 %v1136
      %3405 = vmatmul.mubr.f32.gmra.mxu0 %v1135
      %v3406 = vpop.f32.mrf.mxu0
      %v3407 = vadd.f32 %v3022, %v3406
      %v3408 = vpop.f32.mrf.mxu0
      %3409 = vmatprep.mubr.f32.mxu0 %v1152
      %3410 = vmatmul.mubr.f32.gmra.mxu0 %v1151
      %v3411 = vpop.f32.mrf.mxu0
      %v3412 = vadd.f32 %v3027, %v3411
      %v3413 = vpop.f32.mrf.mxu0
      %3414 = vmatprep.mubr.f32.mxu0 %v1168
      %3415 = vmatmul.mubr.f32.gmra.mxu0 %v1167
      %v3416 = vpop.f32.mrf.mxu0
      %v3417 = vadd.f32 %v3032, %v3416
      %v3418 = vpop.f32.mrf.mxu0
      %3419 = vmatprep.mubr.f32.mxu0 %v1184
      %3420 = vmatmul.mubr.f32.gmra.mxu0 %v1183
      %v3421 = vpop.f32.mrf.mxu0
      %v3422 = vadd.f32 %v3037, %v3421
      %v3423 = vpop.f32.mrf.mxu0
      %3424 = vmatprep.mubr.f32.mxu0 %v1200
      %3425 = vmatmul.mubr.f32.gmra.mxu0 %v1199
      %v3426 = vpop.f32.mrf.mxu0
      %v3427 = vadd.f32 %v3042, %v3426
      %v3428 = vpop.f32.mrf.mxu0
      %3429 = vmatprep.mubr.f32.mxu0 %v1216
      %3430 = vmatmul.mubr.f32.gmra.mxu0 %v1215
      %v3431 = vpop.f32.mrf.mxu0
      %v3432 = vadd.f32 %v3047, %v3431
      %v3433 = vpop.f32.mrf.mxu0
      %3434 = vmatprep.mubr.f32.mxu0 %v1232
      %3435 = vmatmul.mubr.f32.gmra.mxu0 %v1231
      %v3436 = vpop.f32.mrf.mxu0
      %v3437 = vadd.f32 %v3052, %v3436
      %v3438 = vpop.f32.mrf.mxu0
      %3439 = vmatprep.mubr.f32.mxu0 %v1248
      %3440 = vmatmul.mubr.f32.gmra.mxu0 %v1247
      %v3441 = vpop.f32.mrf.mxu0
      %v3442 = vadd.f32 %v3057, %v3441
      %v3443 = vpop.f32.mrf.mxu0
      %3444 = vmatprep.mubr.f32.mxu0 %v1264
      %3445 = vmatmul.mubr.f32.gmra.mxu0 %v1263
      %v3446 = vpop.f32.mrf.mxu0
      %v3447 = vadd.f32 %v3062, %v3446
      %v3448 = vpop.f32.mrf.mxu0
      %3449 = vmatprep.mubr.f32.mxu0 %v1280
      %3450 = vmatmul.mubr.f32.gmra.mxu0 %v1279
      %v3451 = vpop.f32.mrf.mxu0
      %v3452 = vadd.f32 %v3067, %v3451
      %v3453 = vpop.f32.mrf.mxu0
      %3454 = vmatprep.mubr.f32.mxu0 %v1296
      %3455 = vmatmul.mubr.f32.gmra.mxu0 %v1295
      %v3456 = vpop.f32.mrf.mxu0
      %v3457 = vadd.f32 %v3072, %v3456
      %v3458 = vpop.f32.mrf.mxu0
      %3459 = vmatprep.mubr.f32.mxu0 %v1312
      %3460 = vmatmul.mubr.f32.gmra.mxu0 %v1311
      %v3461 = vpop.f32.mrf.mxu0
      %v3462 = vadd.f32 %v3077, %v3461
      %v3463 = vpop.f32.mrf.mxu0
      %3464 = vmatprep.mubr.f32.mxu0 %v1328
      %3465 = vmatmul.mubr.f32.gmra.mxu0 %v1327
      %v3466 = vpop.f32.mrf.mxu0
      %v3467 = vadd.f32 %v3082, %v3466
      %v3468 = vpop.f32.mrf.mxu0
      %3469 = vmatprep.mubr.f32.mxu0 %v1344
      %3470 = vmatmul.mubr.f32.gmra.mxu0 %v1343
      %v3471 = vpop.f32.mrf.mxu0
      %v3472 = vadd.f32 %v3087, %v3471
      %v3473 = vpop.f32.mrf.mxu0
      %3474 = vmatprep.mubr.f32.mxu0 %v1360
      %3475 = vmatmul.mubr.f32.gmra.mxu0 %v1359
      %v3476 = vpop.f32.mrf.mxu0
      %v3477 = vadd.f32 %v3092, %v3476
      %v3478 = vpop.f32.mrf.mxu0
      %3479 = vmatprep.mubr.f32.mxu0 %v1376
      %3480 = vmatmul.mubr.f32.gmra.mxu0 %v1375
      %v3481 = vpop.f32.mrf.mxu0
      %v3482 = vadd.f32 %v3097, %v3481
      %v3483 = vpop.f32.mrf.mxu0
      %3484 = vmatprep.mubr.f32.mxu0 %v1392
      %3485 = vmatmul.mubr.f32.gmra.mxu0 %v1391
      %v3486 = vpop.f32.mrf.mxu0
      %v3487 = vadd.f32 %v3102, %v3486
      %v3488 = vpop.f32.mrf.mxu0
      %3489 = vmatprep.mubr.f32.mxu0 %v1408
      %3490 = vmatmul.mubr.f32.gmra.mxu0 %v1407
      %v3491 = vpop.f32.mrf.mxu0
      %v3492 = vadd.f32 %v3107, %v3491
      %v3493 = vpop.f32.mrf.mxu0
      %3494 = vmatprep.mubr.f32.mxu0 %v1424
      %3495 = vmatmul.mubr.f32.gmra.mxu0 %v1423
      %v3496 = vpop.f32.mrf.mxu0
      %v3497 = vadd.f32 %v3112, %v3496
      %v3498 = vpop.f32.mrf.mxu0
      %3499 = vmatprep.mubr.f32.mxu0 %v1440
      %3500 = vmatmul.mubr.f32.gmra.mxu0 %v1439
      %v3501 = vpop.f32.mrf.mxu0
      %v3502 = vadd.f32 %v3117, %v3501
      %v3503 = vpop.f32.mrf.mxu0
      %3504 = vmatprep.mubr.f32.mxu0 %v1456
      %3505 = vmatmul.mubr.f32.gmra.mxu0 %v1455
      %v3506 = vpop.f32.mrf.mxu0
      %v3507 = vadd.f32 %v3122, %v3506
      %v3508 = vpop.f32.mrf.mxu0
      %3509 = vmatprep.mubr.f32.mxu0 %v1472
      %3510 = vmatmul.mubr.f32.gmra.mxu0 %v1471
      %v3511 = vpop.f32.mrf.mxu0
      %v3512 = vadd.f32 %v3127, %v3511
      %v3513 = vpop.f32.mrf.mxu0
      %3514 = vmatprep.mubr.f32.mxu0 %v1488
      %3515 = vmatmul.mubr.f32.gmra.mxu0 %v1487
      %v3516 = vpop.f32.mrf.mxu0
      %v3517 = vadd.f32 %v3132, %v3516
      %v3518 = vpop.f32.mrf.mxu0
      %3519 = vmatprep.mubr.f32.mxu0 %v1504
      %3520 = vmatmul.mubr.f32.gmra.mxu0 %v1503
      %v3521 = vpop.f32.mrf.mxu0
      %v3522 = vadd.f32 %v3137, %v3521
      %v3523 = vpop.f32.mrf.mxu0
      %3524 = vmatprep.mubr.f32.mxu0 %v1520
      %3525 = vmatmul.mubr.f32.gmra.mxu0 %v1519
      %v3526 = vpop.f32.mrf.mxu0
      %v3527 = vadd.f32 %v3142, %v3526
      %v3528 = vpop.f32.mrf.mxu0
      %3529 = vmatprep.mubr.f32.mxu0 %v1536
      %3530 = vmatmul.mubr.f32.gmra.mxu0 %v1535
      %v3531 = vpop.f32.mrf.mxu0
      %v3532 = vadd.f32 %v3147, %v3531
      %v3533 = vpop.f32.mrf.mxu0
      %3534 = vmatprep.mubr.f32.mxu0 %v1552
      %3535 = vmatmul.mubr.f32.gmra.mxu0 %v1551
      %v3536 = vpop.f32.mrf.mxu0
      %v3537 = vadd.f32 %v3152, %v3536
      %v3538 = vpop.f32.mrf.mxu0
      %3539 = vmatprep.mubr.f32.mxu0 %v1568
      %3540 = vmatmul.mubr.f32.gmra.mxu0 %v1567
      %v3541 = vpop.f32.mrf.mxu0
      %v3542 = vadd.f32 %v3157, %v3541
      %v3543 = vpop.f32.mrf.mxu0
      %3544 = vmatprep.mubr.f32.mxu0 %v1584
      %3545 = vmatmul.mubr.f32.gmra.mxu0 %v1583
      %v3546 = vpop.f32.mrf.mxu0
      %v3547 = vadd.f32 %v3162, %v3546
      %v3548 = vpop.f32.mrf.mxu0
      %3549 = vmatprep.mubr.f32.mxu0 %v1600
      %3550 = vmatmul.mubr.f32.gmra.mxu0 %v1599
      %v3551 = vpop.f32.mrf.mxu0
      %v3552 = vadd.f32 %v3167, %v3551
      %v3553 = vpop.f32.mrf.mxu0
      %3554 = vmatprep.mubr.f32.mxu0 %v1616
      %3555 = vmatmul.mubr.f32.gmra.mxu0 %v1615
      %v3556 = vpop.f32.mrf.mxu0
      %v3557 = vadd.f32 %v3172, %v3556
      %v3558 = vpop.f32.mrf.mxu0
      %3559 = vmatprep.mubr.f32.mxu0 %v1632
      %3560 = vmatmul.mubr.f32.gmra.mxu0 %v1631
      %v3561 = vpop.f32.mrf.mxu0
      %v3562 = vadd.f32 %v3177, %v3561
      %v3563 = vpop.f32.mrf.mxu0
      %3564 = vdwg.mxu0
      %3565 = vmatprep.subr.mxu0 0.0
      %3566 = vmatpush1.msra.mxu0 %v503
      %3567 = vmatprep.subr.mxu0 0.0
      %3568 = vmatpush1.msra.mxu0 %v502
      %3569 = vmatprep.subr.mxu0 0.0
      %3570 = vmatpush1.msra.mxu0 %v501
      %3571 = vmatprep.subr.mxu0 0.0
      %3572 = vmatpush1.msra.mxu0 %v500
      %3573 = vmatprep.subr.mxu0 0.0
      %3574 = vmatpush1.msra.mxu0 %v499
      %3575 = vmatprep.subr.mxu0 0.0
      %3576 = vmatpush1.msra.mxu0 %v498
      %3577 = vmatprep.subr.mxu0 0.0
      %3578 = vmatpush1.msra.mxu0 %v497
      %3579 = vmatprep.subr.mxu0 0.0
      %3580 = vmatpush1.msra.mxu0 %v496
      %3581 = vmatprep.subr.mxu0 0.0
      %3582 = vmatpush1.msra.mxu0 %v495
      %3583 = vmatprep.subr.mxu0 0.0
      %3584 = vmatpush1.msra.mxu0 %v494
      %3585 = vmatprep.subr.mxu0 0.0
      %3586 = vmatpush1.msra.mxu0 %v493
      %3587 = vmatprep.subr.mxu0 0.0
      %3588 = vmatpush1.msra.mxu0 %v492
      %3589 = vmatprep.subr.mxu0 0.0
      %3590 = vmatpush1.msra.mxu0 %v491
      %3591 = vmatprep.subr.mxu0 0.0
      %3592 = vmatpush1.msra.mxu0 %v490
      %3593 = vmatprep.subr.mxu0 0.0
      %3594 = vmatpush1.msra.mxu0 %v489
      %3595 = vmatprep.subr.mxu0 0.0
      %3596 = vmatpush1.msra.mxu0 %v488
      %3597 = vmatprep.subr.mxu0 0.0
      %3598 = vmatpush2.msra.mxu0 %v519
      %3599 = vmatprep.subr.mxu0 0.0
      %3600 = vmatpush2.msra.mxu0 %v518
      %3601 = vmatprep.subr.mxu0 0.0
      %3602 = vmatpush2.msra.mxu0 %v517
      %3603 = vmatprep.subr.mxu0 0.0
      %3604 = vmatpush2.msra.mxu0 %v516
      %3605 = vmatprep.subr.mxu0 0.0
      %3606 = vmatpush2.msra.mxu0 %v515
      %3607 = vmatprep.subr.mxu0 0.0
      %3608 = vmatpush2.msra.mxu0 %v514
      %3609 = vmatprep.subr.mxu0 0.0
      %3610 = vmatpush2.msra.mxu0 %v513
      %3611 = vmatprep.subr.mxu0 0.0
      %3612 = vmatpush2.msra.mxu0 %v512
      %3613 = vmatprep.subr.mxu0 0.0
      %3614 = vmatpush2.msra.mxu0 %v511
      %3615 = vmatprep.subr.mxu0 0.0
      %3616 = vmatpush2.msra.mxu0 %v510
      %3617 = vmatprep.subr.mxu0 0.0
      %3618 = vmatpush2.msra.mxu0 %v509
      %3619 = vmatprep.subr.mxu0 0.0
      %3620 = vmatpush2.msra.mxu0 %v508
      %3621 = vmatprep.subr.mxu0 0.0
      %3622 = vmatpush2.msra.mxu0 %v507
      %3623 = vmatprep.subr.mxu0 0.0
      %3624 = vmatpush2.msra.mxu0 %v506
      %3625 = vmatprep.subr.mxu0 0.0
      %3626 = vmatpush2.msra.mxu0 %v505
      %3627 = vmatprep.subr.mxu0 0.0
      %3628 = vmatpush2.msra.mxu0 %v504
      %3629 = vmatprep.mubr.f32.mxu0 %v626
      %3630 = vmatmul.mubr.f32.gmra.mxu0 %v625
      %v3631 = vpop.f32.mrf.mxu0
      %v3632 = vadd.f32 %v3247, %v3631
      %v3633 = vpop.f32.mrf.mxu0
      %3634 = vmatprep.mubr.f32.mxu0 %v642
      %3635 = vmatmul.mubr.f32.gmra.mxu0 %v641
      %v3636 = vpop.f32.mrf.mxu0
      %v3637 = vadd.f32 %v3252, %v3636
      %v3638 = vpop.f32.mrf.mxu0
      %3639 = vmatprep.mubr.f32.mxu0 %v658
      %3640 = vmatmul.mubr.f32.gmra.mxu0 %v657
      %v3641 = vpop.f32.mrf.mxu0
      %v3642 = vadd.f32 %v3257, %v3641
      %v3643 = vpop.f32.mrf.mxu0
      %3644 = vmatprep.mubr.f32.mxu0 %v674
      %3645 = vmatmul.mubr.f32.gmra.mxu0 %v673
      %v3646 = vpop.f32.mrf.mxu0
      %v3647 = vadd.f32 %v3262, %v3646
      %v3648 = vpop.f32.mrf.mxu0
      %3649 = vmatprep.mubr.f32.mxu0 %v690
      %3650 = vmatmul.mubr.f32.gmra.mxu0 %v689
      %v3651 = vpop.f32.mrf.mxu0
      %v3652 = vadd.f32 %v3267, %v3651
      %v3653 = vpop.f32.mrf.mxu0
      %3654 = vmatprep.mubr.f32.mxu0 %v706
      %3655 = vmatmul.mubr.f32.gmra.mxu0 %v705
      %v3656 = vpop.f32.mrf.mxu0
      %v3657 = vadd.f32 %v3272, %v3656
      %v3658 = vpop.f32.mrf.mxu0
      %3659 = vmatprep.mubr.f32.mxu0 %v722
      %3660 = vmatmul.mubr.f32.gmra.mxu0 %v721
      %v3661 = vpop.f32.mrf.mxu0
      %v3662 = vadd.f32 %v3277, %v3661
      %v3663 = vpop.f32.mrf.mxu0
      %3664 = vmatprep.mubr.f32.mxu0 %v738
      %3665 = vmatmul.mubr.f32.gmra.mxu0 %v737
      %v3666 = vpop.f32.mrf.mxu0
      %v3667 = vadd.f32 %v3282, %v3666
      %v3668 = vpop.f32.mrf.mxu0
      %3669 = vmatprep.mubr.f32.mxu0 %v754
      %3670 = vmatmul.mubr.f32.gmra.mxu0 %v753
      %v3671 = vpop.f32.mrf.mxu0
      %v3672 = vadd.f32 %v3287, %v3671
      %v3673 = vpop.f32.mrf.mxu0
      %3674 = vmatprep.mubr.f32.mxu0 %v770
      %3675 = vmatmul.mubr.f32.gmra.mxu0 %v769
      %v3676 = vpop.f32.mrf.mxu0
      %v3677 = vadd.f32 %v3292, %v3676
      %v3678 = vpop.f32.mrf.mxu0
      %3679 = vmatprep.mubr.f32.mxu0 %v786
      %3680 = vmatmul.mubr.f32.gmra.mxu0 %v785
      %v3681 = vpop.f32.mrf.mxu0
      %v3682 = vadd.f32 %v3297, %v3681
      %v3683 = vpop.f32.mrf.mxu0
      %3684 = vmatprep.mubr.f32.mxu0 %v802
      %3685 = vmatmul.mubr.f32.gmra.mxu0 %v801
      %v3686 = vpop.f32.mrf.mxu0
      %v3687 = vadd.f32 %v3302, %v3686
      %v3688 = vpop.f32.mrf.mxu0
      %3689 = vmatprep.mubr.f32.mxu0 %v818
      %3690 = vmatmul.mubr.f32.gmra.mxu0 %v817
      %v3691 = vpop.f32.mrf.mxu0
      %v3692 = vadd.f32 %v3307, %v3691
      %v3693 = vpop.f32.mrf.mxu0
      %3694 = vmatprep.mubr.f32.mxu0 %v834
      %3695 = vmatmul.mubr.f32.gmra.mxu0 %v833
      %v3696 = vpop.f32.mrf.mxu0
      %v3697 = vadd.f32 %v3312, %v3696
      %v3698 = vpop.f32.mrf.mxu0
      %3699 = vmatprep.mubr.f32.mxu0 %v850
      %3700 = vmatmul.mubr.f32.gmra.mxu0 %v849
      %v3701 = vpop.f32.mrf.mxu0
      %v3702 = vadd.f32 %v3317, %v3701
      %v3703 = vpop.f32.mrf.mxu0
      %3704 = vmatprep.mubr.f32.mxu0 %v866
      %3705 = vmatmul.mubr.f32.gmra.mxu0 %v865
      %v3706 = vpop.f32.mrf.mxu0
      %v3707 = vadd.f32 %v3322, %v3706
      %v3708 = vpop.f32.mrf.mxu0
      %3709 = vmatprep.mubr.f32.mxu0 %v882
      %3710 = vmatmul.mubr.f32.gmra.mxu0 %v881
      %v3711 = vpop.f32.mrf.mxu0
      %v3712 = vadd.f32 %v3327, %v3711
      %v3713 = vpop.f32.mrf.mxu0
      %3714 = vmatprep.mubr.f32.mxu0 %v898
      %3715 = vmatmul.mubr.f32.gmra.mxu0 %v897
      %v3716 = vpop.f32.mrf.mxu0
      %v3717 = vadd.f32 %v3332, %v3716
      %v3718 = vpop.f32.mrf.mxu0
      %3719 = vmatprep.mubr.f32.mxu0 %v914
      %3720 = vmatmul.mubr.f32.gmra.mxu0 %v913
      %v3721 = vpop.f32.mrf.mxu0
      %v3722 = vadd.f32 %v3337, %v3721
      %v3723 = vpop.f32.mrf.mxu0
      %3724 = vmatprep.mubr.f32.mxu0 %v930
      %3725 = vmatmul.mubr.f32.gmra.mxu0 %v929
      %v3726 = vpop.f32.mrf.mxu0
      %v3727 = vadd.f32 %v3342, %v3726
      %v3728 = vpop.f32.mrf.mxu0
      %3729 = vmatprep.mubr.f32.mxu0 %v946
      %3730 = vmatmul.mubr.f32.gmra.mxu0 %v945
      %v3731 = vpop.f32.mrf.mxu0
      %v3732 = vadd.f32 %v3347, %v3731
      %v3733 = vpop.f32.mrf.mxu0
      %3734 = vmatprep.mubr.f32.mxu0 %v962
      %3735 = vmatmul.mubr.f32.gmra.mxu0 %v961
      %v3736 = vpop.f32.mrf.mxu0
      %v3737 = vadd.f32 %v3352, %v3736
      %v3738 = vpop.f32.mrf.mxu0
      %3739 = vmatprep.mubr.f32.mxu0 %v978
      %3740 = vmatmul.mubr.f32.gmra.mxu0 %v977
      %v3741 = vpop.f32.mrf.mxu0
      %v3742 = vadd.f32 %v3357, %v3741
      %v3743 = vpop.f32.mrf.mxu0
      %3744 = vmatprep.mubr.f32.mxu0 %v994
      %3745 = vmatmul.mubr.f32.gmra.mxu0 %v993
      %v3746 = vpop.f32.mrf.mxu0
      %v3747 = vadd.f32 %v3362, %v3746
      %v3748 = vpop.f32.mrf.mxu0
      %3749 = vmatprep.mubr.f32.mxu0 %v1010
      %3750 = vmatmul.mubr.f32.gmra.mxu0 %v1009
      %v3751 = vpop.f32.mrf.mxu0
      %v3752 = vadd.f32 %v3367, %v3751
      %v3753 = vpop.f32.mrf.mxu0
      %3754 = vmatprep.mubr.f32.mxu0 %v1026
      %3755 = vmatmul.mubr.f32.gmra.mxu0 %v1025
      %v3756 = vpop.f32.mrf.mxu0
      %v3757 = vadd.f32 %v3372, %v3756
      %v3758 = vpop.f32.mrf.mxu0
      %3759 = vmatprep.mubr.f32.mxu0 %v1042
      %3760 = vmatmul.mubr.f32.gmra.mxu0 %v1041
      %v3761 = vpop.f32.mrf.mxu0
      %v3762 = vadd.f32 %v3377, %v3761
      %v3763 = vpop.f32.mrf.mxu0
      %3764 = vmatprep.mubr.f32.mxu0 %v1058
      %3765 = vmatmul.mubr.f32.gmra.mxu0 %v1057
      %v3766 = vpop.f32.mrf.mxu0
      %v3767 = vadd.f32 %v3382, %v3766
      %v3768 = vpop.f32.mrf.mxu0
      %3769 = vmatprep.mubr.f32.mxu0 %v1074
      %3770 = vmatmul.mubr.f32.gmra.mxu0 %v1073
      %v3771 = vpop.f32.mrf.mxu0
      %v3772 = vadd.f32 %v3387, %v3771
      %v3773 = vpop.f32.mrf.mxu0
      %3774 = vmatprep.mubr.f32.mxu0 %v1090
      %3775 = vmatmul.mubr.f32.gmra.mxu0 %v1089
      %v3776 = vpop.f32.mrf.mxu0
      %v3777 = vadd.f32 %v3392, %v3776
      %v3778 = vpop.f32.mrf.mxu0
      %3779 = vmatprep.mubr.f32.mxu0 %v1106
      %3780 = vmatmul.mubr.f32.gmra.mxu0 %v1105
      %v3781 = vpop.f32.mrf.mxu0
      %v3782 = vadd.f32 %v3397, %v3781
      %v3783 = vpop.f32.mrf.mxu0
      %3784 = vmatprep.mubr.f32.mxu0 %v1122
      %3785 = vmatmul.mubr.f32.gmra.mxu0 %v1121
      %v3786 = vpop.f32.mrf.mxu0
      %v3787 = vadd.f32 %v3402, %v3786
      %v3788 = vpop.f32.mrf.mxu0
      %3789 = vmatprep.mubr.f32.mxu0 %v1138
      %3790 = vmatmul.mubr.f32.gmra.mxu0 %v1137
      %v3791 = vpop.f32.mrf.mxu0
      %v3792 = vadd.f32 %v3407, %v3791
      %v3793 = vpop.f32.mrf.mxu0
      %3794 = vmatprep.mubr.f32.mxu0 %v1154
      %3795 = vmatmul.mubr.f32.gmra.mxu0 %v1153
      %v3796 = vpop.f32.mrf.mxu0
      %v3797 = vadd.f32 %v3412, %v3796
      %v3798 = vpop.f32.mrf.mxu0
      %3799 = vmatprep.mubr.f32.mxu0 %v1170
      %3800 = vmatmul.mubr.f32.gmra.mxu0 %v1169
      %v3801 = vpop.f32.mrf.mxu0
      %v3802 = vadd.f32 %v3417, %v3801
      %v3803 = vpop.f32.mrf.mxu0
      %3804 = vmatprep.mubr.f32.mxu0 %v1186
      %3805 = vmatmul.mubr.f32.gmra.mxu0 %v1185
      %v3806 = vpop.f32.mrf.mxu0
      %v3807 = vadd.f32 %v3422, %v3806
      %v3808 = vpop.f32.mrf.mxu0
      %3809 = vmatprep.mubr.f32.mxu0 %v1202
      %3810 = vmatmul.mubr.f32.gmra.mxu0 %v1201
      %v3811 = vpop.f32.mrf.mxu0
      %v3812 = vadd.f32 %v3427, %v3811
      %v3813 = vpop.f32.mrf.mxu0
      %3814 = vmatprep.mubr.f32.mxu0 %v1218
      %3815 = vmatmul.mubr.f32.gmra.mxu0 %v1217
      %v3816 = vpop.f32.mrf.mxu0
      %v3817 = vadd.f32 %v3432, %v3816
      %v3818 = vpop.f32.mrf.mxu0
      %3819 = vmatprep.mubr.f32.mxu0 %v1234
      %3820 = vmatmul.mubr.f32.gmra.mxu0 %v1233
      %v3821 = vpop.f32.mrf.mxu0
      %v3822 = vadd.f32 %v3437, %v3821
      %v3823 = vpop.f32.mrf.mxu0
      %3824 = vmatprep.mubr.f32.mxu0 %v1250
      %3825 = vmatmul.mubr.f32.gmra.mxu0 %v1249
      %v3826 = vpop.f32.mrf.mxu0
      %v3827 = vadd.f32 %v3442, %v3826
      %v3828 = vpop.f32.mrf.mxu0
      %3829 = vmatprep.mubr.f32.mxu0 %v1266
      %3830 = vmatmul.mubr.f32.gmra.mxu0 %v1265
      %v3831 = vpop.f32.mrf.mxu0
      %v3832 = vadd.f32 %v3447, %v3831
      %v3833 = vpop.f32.mrf.mxu0
      %3834 = vmatprep.mubr.f32.mxu0 %v1282
      %3835 = vmatmul.mubr.f32.gmra.mxu0 %v1281
      %v3836 = vpop.f32.mrf.mxu0
      %v3837 = vadd.f32 %v3452, %v3836
      %v3838 = vpop.f32.mrf.mxu0
      %3839 = vmatprep.mubr.f32.mxu0 %v1298
      %3840 = vmatmul.mubr.f32.gmra.mxu0 %v1297
      %v3841 = vpop.f32.mrf.mxu0
      %v3842 = vadd.f32 %v3457, %v3841
      %v3843 = vpop.f32.mrf.mxu0
      %3844 = vmatprep.mubr.f32.mxu0 %v1314
      %3845 = vmatmul.mubr.f32.gmra.mxu0 %v1313
      %v3846 = vpop.f32.mrf.mxu0
      %v3847 = vadd.f32 %v3462, %v3846
      %v3848 = vpop.f32.mrf.mxu0
      %3849 = vmatprep.mubr.f32.mxu0 %v1330
      %3850 = vmatmul.mubr.f32.gmra.mxu0 %v1329
      %v3851 = vpop.f32.mrf.mxu0
      %v3852 = vadd.f32 %v3467, %v3851
      %v3853 = vpop.f32.mrf.mxu0
      %3854 = vmatprep.mubr.f32.mxu0 %v1346
      %3855 = vmatmul.mubr.f32.gmra.mxu0 %v1345
      %v3856 = vpop.f32.mrf.mxu0
      %v3857 = vadd.f32 %v3472, %v3856
      %v3858 = vpop.f32.mrf.mxu0
      %3859 = vmatprep.mubr.f32.mxu0 %v1362
      %3860 = vmatmul.mubr.f32.gmra.mxu0 %v1361
      %v3861 = vpop.f32.mrf.mxu0
      %v3862 = vadd.f32 %v3477, %v3861
      %v3863 = vpop.f32.mrf.mxu0
      %3864 = vmatprep.mubr.f32.mxu0 %v1378
      %3865 = vmatmul.mubr.f32.gmra.mxu0 %v1377
      %v3866 = vpop.f32.mrf.mxu0
      %v3867 = vadd.f32 %v3482, %v3866
      %v3868 = vpop.f32.mrf.mxu0
      %3869 = vmatprep.mubr.f32.mxu0 %v1394
      %3870 = vmatmul.mubr.f32.gmra.mxu0 %v1393
      %v3871 = vpop.f32.mrf.mxu0
      %v3872 = vadd.f32 %v3487, %v3871
      %v3873 = vpop.f32.mrf.mxu0
      %3874 = vmatprep.mubr.f32.mxu0 %v1410
      %3875 = vmatmul.mubr.f32.gmra.mxu0 %v1409
      %v3876 = vpop.f32.mrf.mxu0
      %v3877 = vadd.f32 %v3492, %v3876
      %v3878 = vpop.f32.mrf.mxu0
      %3879 = vmatprep.mubr.f32.mxu0 %v1426
      %3880 = vmatmul.mubr.f32.gmra.mxu0 %v1425
      %v3881 = vpop.f32.mrf.mxu0
      %v3882 = vadd.f32 %v3497, %v3881
      %v3883 = vpop.f32.mrf.mxu0
      %3884 = vmatprep.mubr.f32.mxu0 %v1442
      %3885 = vmatmul.mubr.f32.gmra.mxu0 %v1441
      %v3886 = vpop.f32.mrf.mxu0
      %v3887 = vadd.f32 %v3502, %v3886
      %v3888 = vpop.f32.mrf.mxu0
      %3889 = vmatprep.mubr.f32.mxu0 %v1458
      %3890 = vmatmul.mubr.f32.gmra.mxu0 %v1457
      %v3891 = vpop.f32.mrf.mxu0
      %v3892 = vadd.f32 %v3507, %v3891
      %v3893 = vpop.f32.mrf.mxu0
      %3894 = vmatprep.mubr.f32.mxu0 %v1474
      %3895 = vmatmul.mubr.f32.gmra.mxu0 %v1473
      %v3896 = vpop.f32.mrf.mxu0
      %v3897 = vadd.f32 %v3512, %v3896
      %v3898 = vpop.f32.mrf.mxu0
      %3899 = vmatprep.mubr.f32.mxu0 %v1490
      %3900 = vmatmul.mubr.f32.gmra.mxu0 %v1489
      %v3901 = vpop.f32.mrf.mxu0
      %v3902 = vadd.f32 %v3517, %v3901
      %v3903 = vpop.f32.mrf.mxu0
      %3904 = vmatprep.mubr.f32.mxu0 %v1506
      %3905 = vmatmul.mubr.f32.gmra.mxu0 %v1505
      %v3906 = vpop.f32.mrf.mxu0
      %v3907 = vadd.f32 %v3522, %v3906
      %v3908 = vpop.f32.mrf.mxu0
      %3909 = vmatprep.mubr.f32.mxu0 %v1522
      %3910 = vmatmul.mubr.f32.gmra.mxu0 %v1521
      %v3911 = vpop.f32.mrf.mxu0
      %v3912 = vadd.f32 %v3527, %v3911
      %v3913 = vpop.f32.mrf.mxu0
      %3914 = vmatprep.mubr.f32.mxu0 %v1538
      %3915 = vmatmul.mubr.f32.gmra.mxu0 %v1537
      %v3916 = vpop.f32.mrf.mxu0
      %v3917 = vadd.f32 %v3532, %v3916
      %v3918 = vpop.f32.mrf.mxu0
      %3919 = vmatprep.mubr.f32.mxu0 %v1554
      %3920 = vmatmul.mubr.f32.gmra.mxu0 %v1553
      %v3921 = vpop.f32.mrf.mxu0
      %v3922 = vadd.f32 %v3537, %v3921
      %v3923 = vpop.f32.mrf.mxu0
      %3924 = vmatprep.mubr.f32.mxu0 %v1570
      %3925 = vmatmul.mubr.f32.gmra.mxu0 %v1569
      %v3926 = vpop.f32.mrf.mxu0
      %v3927 = vadd.f32 %v3542, %v3926
      %v3928 = vpop.f32.mrf.mxu0
      %3929 = vmatprep.mubr.f32.mxu0 %v1586
      %3930 = vmatmul.mubr.f32.gmra.mxu0 %v1585
      %v3931 = vpop.f32.mrf.mxu0
      %v3932 = vadd.f32 %v3547, %v3931
      %v3933 = vpop.f32.mrf.mxu0
      %3934 = vmatprep.mubr.f32.mxu0 %v1602
      %3935 = vmatmul.mubr.f32.gmra.mxu0 %v1601
      %v3936 = vpop.f32.mrf.mxu0
      %v3937 = vadd.f32 %v3552, %v3936
      %v3938 = vpop.f32.mrf.mxu0
      %3939 = vmatprep.mubr.f32.mxu0 %v1618
      %3940 = vmatmul.mubr.f32.gmra.mxu0 %v1617
      %v3941 = vpop.f32.mrf.mxu0
      %v3942 = vadd.f32 %v3557, %v3941
      %v3943 = vpop.f32.mrf.mxu0
      %3944 = vmatprep.mubr.f32.mxu0 %v1634
      %3945 = vmatmul.mubr.f32.gmra.mxu0 %v1633
      %v3946 = vpop.f32.mrf.mxu0
      %v3947 = vadd.f32 %v3562, %v3946
      %v3948 = vpop.f32.mrf.mxu0
      %3949 = vdwg.mxu0
      %3950 = vmatprep.subr.mxu0 0.0
      %3951 = vmatpush1.msra.mxu0 %v535
      %3952 = vmatprep.subr.mxu0 0.0
      %3953 = vmatpush1.msra.mxu0 %v534
      %3954 = vmatprep.subr.mxu0 0.0
      %3955 = vmatpush1.msra.mxu0 %v533
      %3956 = vmatprep.subr.mxu0 0.0
      %3957 = vmatpush1.msra.mxu0 %v532
      %3958 = vmatprep.subr.mxu0 0.0
      %3959 = vmatpush1.msra.mxu0 %v531
      %3960 = vmatprep.subr.mxu0 0.0
      %3961 = vmatpush1.msra.mxu0 %v530
      %3962 = vmatprep.subr.mxu0 0.0
      %3963 = vmatpush1.msra.mxu0 %v529
      %3964 = vmatprep.subr.mxu0 0.0
      %3965 = vmatpush1.msra.mxu0 %v528
      %3966 = vmatprep.subr.mxu0 0.0
      %3967 = vmatpush1.msra.mxu0 %v527
      %3968 = vmatprep.subr.mxu0 0.0
      %3969 = vmatpush1.msra.mxu0 %v526
      %3970 = vmatprep.subr.mxu0 0.0
      %3971 = vmatpush1.msra.mxu0 %v525
      %3972 = vmatprep.subr.mxu0 0.0
      %3973 = vmatpush1.msra.mxu0 %v524
      %3974 = vmatprep.subr.mxu0 0.0
      %3975 = vmatpush1.msra.mxu0 %v523
      %3976 = vmatprep.subr.mxu0 0.0
      %3977 = vmatpush1.msra.mxu0 %v522
      %3978 = vmatprep.subr.mxu0 0.0
      %3979 = vmatpush1.msra.mxu0 %v521
      %3980 = vmatprep.subr.mxu0 0.0
      %3981 = vmatpush1.msra.mxu0 %v520
      %3982 = vmatprep.subr.mxu0 0.0
      %3983 = vmatpush2.msra.mxu0 %v551
      %3984 = vmatprep.subr.mxu0 0.0
      %3985 = vmatpush2.msra.mxu0 %v550
      %3986 = vmatprep.subr.mxu0 0.0
      %3987 = vmatpush2.msra.mxu0 %v549
      %3988 = vmatprep.subr.mxu0 0.0
      %3989 = vmatpush2.msra.mxu0 %v548
      %3990 = vmatprep.subr.mxu0 0.0
      %3991 = vmatpush2.msra.mxu0 %v547
      %3992 = vmatprep.subr.mxu0 0.0
      %3993 = vmatpush2.msra.mxu0 %v546
      %3994 = vmatprep.subr.mxu0 0.0
      %3995 = vmatpush2.msra.mxu0 %v545
      %3996 = vmatprep.subr.mxu0 0.0
      %3997 = vmatpush2.msra.mxu0 %v544
      %3998 = vmatprep.subr.mxu0 0.0
      %3999 = vmatpush2.msra.mxu0 %v543
      %4000 = vmatprep.subr.mxu0 0.0
      %4001 = vmatpush2.msra.mxu0 %v542
      %4002 = vmatprep.subr.mxu0 0.0
      %4003 = vmatpush2.msra.mxu0 %v541
      %4004 = vmatprep.subr.mxu0 0.0
      %4005 = vmatpush2.msra.mxu0 %v540
      %4006 = vmatprep.subr.mxu0 0.0
      %4007 = vmatpush2.msra.mxu0 %v539
      %4008 = vmatprep.subr.mxu0 0.0
      %4009 = vmatpush2.msra.mxu0 %v538
      %4010 = vmatprep.subr.mxu0 0.0
      %4011 = vmatpush2.msra.mxu0 %v537
      %4012 = vmatprep.subr.mxu0 0.0
      %4013 = vmatpush2.msra.mxu0 %v536
      %4014 = vmatprep.mubr.f32.mxu0 %v628
      %4015 = vmatmul.mubr.f32.gmra.mxu0 %v627
      %v4016 = vpop.f32.mrf.mxu0
      %v4017 = vadd.f32 %v3632, %v4016
      %v4018 = vpop.f32.mrf.mxu0
      %4019 = vmatprep.mubr.f32.mxu0 %v644
      %4020 = vmatmul.mubr.f32.gmra.mxu0 %v643
      %v4021 = vpop.f32.mrf.mxu0
      %v4022 = vadd.f32 %v3637, %v4021
      %v4023 = vpop.f32.mrf.mxu0
      %4024 = vmatprep.mubr.f32.mxu0 %v660
      %4025 = vmatmul.mubr.f32.gmra.mxu0 %v659
      %v4026 = vpop.f32.mrf.mxu0
      %v4027 = vadd.f32 %v3642, %v4026
      %v4028 = vpop.f32.mrf.mxu0
      %4029 = vmatprep.mubr.f32.mxu0 %v676
      %4030 = vmatmul.mubr.f32.gmra.mxu0 %v675
      %v4031 = vpop.f32.mrf.mxu0
      %v4032 = vadd.f32 %v3647, %v4031
      %v4033 = vpop.f32.mrf.mxu0
      %4034 = vmatprep.mubr.f32.mxu0 %v692
      %4035 = vmatmul.mubr.f32.gmra.mxu0 %v691
      %v4036 = vpop.f32.mrf.mxu0
      %v4037 = vadd.f32 %v3652, %v4036
      %v4038 = vpop.f32.mrf.mxu0
      %4039 = vmatprep.mubr.f32.mxu0 %v708
      %4040 = vmatmul.mubr.f32.gmra.mxu0 %v707
      %v4041 = vpop.f32.mrf.mxu0
      %v4042 = vadd.f32 %v3657, %v4041
      %v4043 = vpop.f32.mrf.mxu0
      %4044 = vmatprep.mubr.f32.mxu0 %v724
      %4045 = vmatmul.mubr.f32.gmra.mxu0 %v723
      %v4046 = vpop.f32.mrf.mxu0
      %v4047 = vadd.f32 %v3662, %v4046
      %v4048 = vpop.f32.mrf.mxu0
      %4049 = vmatprep.mubr.f32.mxu0 %v740
      %4050 = vmatmul.mubr.f32.gmra.mxu0 %v739
      %v4051 = vpop.f32.mrf.mxu0
      %v4052 = vadd.f32 %v3667, %v4051
      %v4053 = vpop.f32.mrf.mxu0
      %4054 = vmatprep.mubr.f32.mxu0 %v756
      %4055 = vmatmul.mubr.f32.gmra.mxu0 %v755
      %v4056 = vpop.f32.mrf.mxu0
      %v4057 = vadd.f32 %v3672, %v4056
      %v4058 = vpop.f32.mrf.mxu0
      %4059 = vmatprep.mubr.f32.mxu0 %v772
      %4060 = vmatmul.mubr.f32.gmra.mxu0 %v771
      %v4061 = vpop.f32.mrf.mxu0
      %v4062 = vadd.f32 %v3677, %v4061
      %v4063 = vpop.f32.mrf.mxu0
      %4064 = vmatprep.mubr.f32.mxu0 %v788
      %4065 = vmatmul.mubr.f32.gmra.mxu0 %v787
      %v4066 = vpop.f32.mrf.mxu0
      %v4067 = vadd.f32 %v3682, %v4066
      %v4068 = vpop.f32.mrf.mxu0
      %4069 = vmatprep.mubr.f32.mxu0 %v804
      %4070 = vmatmul.mubr.f32.gmra.mxu0 %v803
      %v4071 = vpop.f32.mrf.mxu0
      %v4072 = vadd.f32 %v3687, %v4071
      %v4073 = vpop.f32.mrf.mxu0
      %4074 = vmatprep.mubr.f32.mxu0 %v820
      %4075 = vmatmul.mubr.f32.gmra.mxu0 %v819
      %v4076 = vpop.f32.mrf.mxu0
      %v4077 = vadd.f32 %v3692, %v4076
      %v4078 = vpop.f32.mrf.mxu0
      %4079 = vmatprep.mubr.f32.mxu0 %v836
      %4080 = vmatmul.mubr.f32.gmra.mxu0 %v835
      %v4081 = vpop.f32.mrf.mxu0
      %v4082 = vadd.f32 %v3697, %v4081
      %v4083 = vpop.f32.mrf.mxu0
      %4084 = vmatprep.mubr.f32.mxu0 %v852
      %4085 = vmatmul.mubr.f32.gmra.mxu0 %v851
      %v4086 = vpop.f32.mrf.mxu0
      %v4087 = vadd.f32 %v3702, %v4086
      %v4088 = vpop.f32.mrf.mxu0
      %4089 = vmatprep.mubr.f32.mxu0 %v868
      %4090 = vmatmul.mubr.f32.gmra.mxu0 %v867
      %v4091 = vpop.f32.mrf.mxu0
      %v4092 = vadd.f32 %v3707, %v4091
      %v4093 = vpop.f32.mrf.mxu0
      %4094 = vmatprep.mubr.f32.mxu0 %v884
      %4095 = vmatmul.mubr.f32.gmra.mxu0 %v883
      %v4096 = vpop.f32.mrf.mxu0
      %v4097 = vadd.f32 %v3712, %v4096
      %v4098 = vpop.f32.mrf.mxu0
      %4099 = vmatprep.mubr.f32.mxu0 %v900
      %4100 = vmatmul.mubr.f32.gmra.mxu0 %v899
      %v4101 = vpop.f32.mrf.mxu0
      %v4102 = vadd.f32 %v3717, %v4101
      %v4103 = vpop.f32.mrf.mxu0
      %4104 = vmatprep.mubr.f32.mxu0 %v916
      %4105 = vmatmul.mubr.f32.gmra.mxu0 %v915
      %v4106 = vpop.f32.mrf.mxu0
      %v4107 = vadd.f32 %v3722, %v4106
      %v4108 = vpop.f32.mrf.mxu0
      %4109 = vmatprep.mubr.f32.mxu0 %v932
      %4110 = vmatmul.mubr.f32.gmra.mxu0 %v931
      %v4111 = vpop.f32.mrf.mxu0
      %v4112 = vadd.f32 %v3727, %v4111
      %v4113 = vpop.f32.mrf.mxu0
      %4114 = vmatprep.mubr.f32.mxu0 %v948
      %4115 = vmatmul.mubr.f32.gmra.mxu0 %v947
      %v4116 = vpop.f32.mrf.mxu0
      %v4117 = vadd.f32 %v3732, %v4116
      %v4118 = vpop.f32.mrf.mxu0
      %4119 = vmatprep.mubr.f32.mxu0 %v964
      %4120 = vmatmul.mubr.f32.gmra.mxu0 %v963
      %v4121 = vpop.f32.mrf.mxu0
      %v4122 = vadd.f32 %v3737, %v4121
      %v4123 = vpop.f32.mrf.mxu0
      %4124 = vmatprep.mubr.f32.mxu0 %v980
      %4125 = vmatmul.mubr.f32.gmra.mxu0 %v979
      %v4126 = vpop.f32.mrf.mxu0
      %v4127 = vadd.f32 %v3742, %v4126
      %v4128 = vpop.f32.mrf.mxu0
      %4129 = vmatprep.mubr.f32.mxu0 %v996
      %4130 = vmatmul.mubr.f32.gmra.mxu0 %v995
      %v4131 = vpop.f32.mrf.mxu0
      %v4132 = vadd.f32 %v3747, %v4131
      %v4133 = vpop.f32.mrf.mxu0
      %4134 = vmatprep.mubr.f32.mxu0 %v1012
      %4135 = vmatmul.mubr.f32.gmra.mxu0 %v1011
      %v4136 = vpop.f32.mrf.mxu0
      %v4137 = vadd.f32 %v3752, %v4136
      %v4138 = vpop.f32.mrf.mxu0
      %4139 = vmatprep.mubr.f32.mxu0 %v1028
      %4140 = vmatmul.mubr.f32.gmra.mxu0 %v1027
      %v4141 = vpop.f32.mrf.mxu0
      %v4142 = vadd.f32 %v3757, %v4141
      %v4143 = vpop.f32.mrf.mxu0
      %4144 = vmatprep.mubr.f32.mxu0 %v1044
      %4145 = vmatmul.mubr.f32.gmra.mxu0 %v1043
      %v4146 = vpop.f32.mrf.mxu0
      %v4147 = vadd.f32 %v3762, %v4146
      %v4148 = vpop.f32.mrf.mxu0
      %4149 = vmatprep.mubr.f32.mxu0 %v1060
      %4150 = vmatmul.mubr.f32.gmra.mxu0 %v1059
      %v4151 = vpop.f32.mrf.mxu0
      %v4152 = vadd.f32 %v3767, %v4151
      %v4153 = vpop.f32.mrf.mxu0
      %4154 = vmatprep.mubr.f32.mxu0 %v1076
      %4155 = vmatmul.mubr.f32.gmra.mxu0 %v1075
      %v4156 = vpop.f32.mrf.mxu0
      %v4157 = vadd.f32 %v3772, %v4156
      %v4158 = vpop.f32.mrf.mxu0
      %4159 = vmatprep.mubr.f32.mxu0 %v1092
      %4160 = vmatmul.mubr.f32.gmra.mxu0 %v1091
      %v4161 = vpop.f32.mrf.mxu0
      %v4162 = vadd.f32 %v3777, %v4161
      %v4163 = vpop.f32.mrf.mxu0
      %4164 = vmatprep.mubr.f32.mxu0 %v1108
      %4165 = vmatmul.mubr.f32.gmra.mxu0 %v1107
      %v4166 = vpop.f32.mrf.mxu0
      %v4167 = vadd.f32 %v3782, %v4166
      %v4168 = vpop.f32.mrf.mxu0
      %4169 = vmatprep.mubr.f32.mxu0 %v1124
      %4170 = vmatmul.mubr.f32.gmra.mxu0 %v1123
      %v4171 = vpop.f32.mrf.mxu0
      %v4172 = vadd.f32 %v3787, %v4171
      %v4173 = vpop.f32.mrf.mxu0
      %4174 = vmatprep.mubr.f32.mxu0 %v1140
      %4175 = vmatmul.mubr.f32.gmra.mxu0 %v1139
      %v4176 = vpop.f32.mrf.mxu0
      %v4177 = vadd.f32 %v3792, %v4176
      %v4178 = vpop.f32.mrf.mxu0
      %4179 = vmatprep.mubr.f32.mxu0 %v1156
      %4180 = vmatmul.mubr.f32.gmra.mxu0 %v1155
      %v4181 = vpop.f32.mrf.mxu0
      %v4182 = vadd.f32 %v3797, %v4181
      %v4183 = vpop.f32.mrf.mxu0
      %4184 = vmatprep.mubr.f32.mxu0 %v1172
      %4185 = vmatmul.mubr.f32.gmra.mxu0 %v1171
      %v4186 = vpop.f32.mrf.mxu0
      %v4187 = vadd.f32 %v3802, %v4186
      %v4188 = vpop.f32.mrf.mxu0
      %4189 = vmatprep.mubr.f32.mxu0 %v1188
      %4190 = vmatmul.mubr.f32.gmra.mxu0 %v1187
      %v4191 = vpop.f32.mrf.mxu0
      %v4192 = vadd.f32 %v3807, %v4191
      %v4193 = vpop.f32.mrf.mxu0
      %4194 = vmatprep.mubr.f32.mxu0 %v1204
      %4195 = vmatmul.mubr.f32.gmra.mxu0 %v1203
      %v4196 = vpop.f32.mrf.mxu0
      %v4197 = vadd.f32 %v3812, %v4196
      %v4198 = vpop.f32.mrf.mxu0
      %4199 = vmatprep.mubr.f32.mxu0 %v1220
      %4200 = vmatmul.mubr.f32.gmra.mxu0 %v1219
      %v4201 = vpop.f32.mrf.mxu0
      %v4202 = vadd.f32 %v3817, %v4201
      %v4203 = vpop.f32.mrf.mxu0
      %4204 = vmatprep.mubr.f32.mxu0 %v1236
      %4205 = vmatmul.mubr.f32.gmra.mxu0 %v1235
      %v4206 = vpop.f32.mrf.mxu0
      %v4207 = vadd.f32 %v3822, %v4206
      %v4208 = vpop.f32.mrf.mxu0
      %4209 = vmatprep.mubr.f32.mxu0 %v1252
      %4210 = vmatmul.mubr.f32.gmra.mxu0 %v1251
      %v4211 = vpop.f32.mrf.mxu0
      %v4212 = vadd.f32 %v3827, %v4211
      %v4213 = vpop.f32.mrf.mxu0
      %4214 = vmatprep.mubr.f32.mxu0 %v1268
      %4215 = vmatmul.mubr.f32.gmra.mxu0 %v1267
      %v4216 = vpop.f32.mrf.mxu0
      %v4217 = vadd.f32 %v3832, %v4216
      %v4218 = vpop.f32.mrf.mxu0
      %4219 = vmatprep.mubr.f32.mxu0 %v1284
      %4220 = vmatmul.mubr.f32.gmra.mxu0 %v1283
      %v4221 = vpop.f32.mrf.mxu0
      %v4222 = vadd.f32 %v3837, %v4221
      %v4223 = vpop.f32.mrf.mxu0
      %4224 = vmatprep.mubr.f32.mxu0 %v1300
      %4225 = vmatmul.mubr.f32.gmra.mxu0 %v1299
      %v4226 = vpop.f32.mrf.mxu0
      %v4227 = vadd.f32 %v3842, %v4226
      %v4228 = vpop.f32.mrf.mxu0
      %4229 = vmatprep.mubr.f32.mxu0 %v1316
      %4230 = vmatmul.mubr.f32.gmra.mxu0 %v1315
      %v4231 = vpop.f32.mrf.mxu0
      %v4232 = vadd.f32 %v3847, %v4231
      %v4233 = vpop.f32.mrf.mxu0
      %4234 = vmatprep.mubr.f32.mxu0 %v1332
      %4235 = vmatmul.mubr.f32.gmra.mxu0 %v1331
      %v4236 = vpop.f32.mrf.mxu0
      %v4237 = vadd.f32 %v3852, %v4236
      %v4238 = vpop.f32.mrf.mxu0
      %4239 = vmatprep.mubr.f32.mxu0 %v1348
      %4240 = vmatmul.mubr.f32.gmra.mxu0 %v1347
      %v4241 = vpop.f32.mrf.mxu0
      %v4242 = vadd.f32 %v3857, %v4241
      %v4243 = vpop.f32.mrf.mxu0
      %4244 = vmatprep.mubr.f32.mxu0 %v1364
      %4245 = vmatmul.mubr.f32.gmra.mxu0 %v1363
      %v4246 = vpop.f32.mrf.mxu0
      %v4247 = vadd.f32 %v3862, %v4246
      %v4248 = vpop.f32.mrf.mxu0
      %4249 = vmatprep.mubr.f32.mxu0 %v1380
      %4250 = vmatmul.mubr.f32.gmra.mxu0 %v1379
      %v4251 = vpop.f32.mrf.mxu0
      %v4252 = vadd.f32 %v3867, %v4251
      %v4253 = vpop.f32.mrf.mxu0
      %4254 = vmatprep.mubr.f32.mxu0 %v1396
      %4255 = vmatmul.mubr.f32.gmra.mxu0 %v1395
      %v4256 = vpop.f32.mrf.mxu0
      %v4257 = vadd.f32 %v3872, %v4256
      %v4258 = vpop.f32.mrf.mxu0
      %4259 = vmatprep.mubr.f32.mxu0 %v1412
      %4260 = vmatmul.mubr.f32.gmra.mxu0 %v1411
      %v4261 = vpop.f32.mrf.mxu0
      %v4262 = vadd.f32 %v3877, %v4261
      %v4263 = vpop.f32.mrf.mxu0
      %4264 = vmatprep.mubr.f32.mxu0 %v1428
      %4265 = vmatmul.mubr.f32.gmra.mxu0 %v1427
      %v4266 = vpop.f32.mrf.mxu0
      %v4267 = vadd.f32 %v3882, %v4266
      %v4268 = vpop.f32.mrf.mxu0
      %4269 = vmatprep.mubr.f32.mxu0 %v1444
      %4270 = vmatmul.mubr.f32.gmra.mxu0 %v1443
      %v4271 = vpop.f32.mrf.mxu0
      %v4272 = vadd.f32 %v3887, %v4271
      %v4273 = vpop.f32.mrf.mxu0
      %4274 = vmatprep.mubr.f32.mxu0 %v1460
      %4275 = vmatmul.mubr.f32.gmra.mxu0 %v1459
      %v4276 = vpop.f32.mrf.mxu0
      %v4277 = vadd.f32 %v3892, %v4276
      %v4278 = vpop.f32.mrf.mxu0
      %4279 = vmatprep.mubr.f32.mxu0 %v1476
      %4280 = vmatmul.mubr.f32.gmra.mxu0 %v1475
      %v4281 = vpop.f32.mrf.mxu0
      %v4282 = vadd.f32 %v3897, %v4281
      %v4283 = vpop.f32.mrf.mxu0
      %4284 = vmatprep.mubr.f32.mxu0 %v1492
      %4285 = vmatmul.mubr.f32.gmra.mxu0 %v1491
      %v4286 = vpop.f32.mrf.mxu0
      %v4287 = vadd.f32 %v3902, %v4286
      %v4288 = vpop.f32.mrf.mxu0
      %4289 = vmatprep.mubr.f32.mxu0 %v1508
      %4290 = vmatmul.mubr.f32.gmra.mxu0 %v1507
      %v4291 = vpop.f32.mrf.mxu0
      %v4292 = vadd.f32 %v3907, %v4291
      %v4293 = vpop.f32.mrf.mxu0
      %4294 = vmatprep.mubr.f32.mxu0 %v1524
      %4295 = vmatmul.mubr.f32.gmra.mxu0 %v1523
      %v4296 = vpop.f32.mrf.mxu0
      %v4297 = vadd.f32 %v3912, %v4296
      %v4298 = vpop.f32.mrf.mxu0
      %4299 = vmatprep.mubr.f32.mxu0 %v1540
      %4300 = vmatmul.mubr.f32.gmra.mxu0 %v1539
      %v4301 = vpop.f32.mrf.mxu0
      %v4302 = vadd.f32 %v3917, %v4301
      %v4303 = vpop.f32.mrf.mxu0
      %4304 = vmatprep.mubr.f32.mxu0 %v1556
      %4305 = vmatmul.mubr.f32.gmra.mxu0 %v1555
      %v4306 = vpop.f32.mrf.mxu0
      %v4307 = vadd.f32 %v3922, %v4306
      %v4308 = vpop.f32.mrf.mxu0
      %4309 = vmatprep.mubr.f32.mxu0 %v1572
      %4310 = vmatmul.mubr.f32.gmra.mxu0 %v1571
      %v4311 = vpop.f32.mrf.mxu0
      %v4312 = vadd.f32 %v3927, %v4311
      %v4313 = vpop.f32.mrf.mxu0
      %4314 = vmatprep.mubr.f32.mxu0 %v1588
      %4315 = vmatmul.mubr.f32.gmra.mxu0 %v1587
      %v4316 = vpop.f32.mrf.mxu0
      %v4317 = vadd.f32 %v3932, %v4316
      %v4318 = vpop.f32.mrf.mxu0
      %4319 = vmatprep.mubr.f32.mxu0 %v1604
      %4320 = vmatmul.mubr.f32.gmra.mxu0 %v1603
      %v4321 = vpop.f32.mrf.mxu0
      %v4322 = vadd.f32 %v3937, %v4321
      %v4323 = vpop.f32.mrf.mxu0
      %4324 = vmatprep.mubr.f32.mxu0 %v1620
      %4325 = vmatmul.mubr.f32.gmra.mxu0 %v1619
      %v4326 = vpop.f32.mrf.mxu0
      %v4327 = vadd.f32 %v3942, %v4326
      %v4328 = vpop.f32.mrf.mxu0
      %4329 = vmatprep.mubr.f32.mxu0 %v1636
      %4330 = vmatmul.mubr.f32.gmra.mxu0 %v1635
      %v4331 = vpop.f32.mrf.mxu0
      %v4332 = vadd.f32 %v3947, %v4331
      %v4333 = vpop.f32.mrf.mxu0
      %4334 = vdwg.mxu0
      %4335 = vmatprep.subr.mxu0 0.0
      %4336 = vmatpush1.msra.mxu0 %v567
      %4337 = vmatprep.subr.mxu0 0.0
      %4338 = vmatpush1.msra.mxu0 %v566
      %4339 = vmatprep.subr.mxu0 0.0
      %4340 = vmatpush1.msra.mxu0 %v565
      %4341 = vmatprep.subr.mxu0 0.0
      %4342 = vmatpush1.msra.mxu0 %v564
      %4343 = vmatprep.subr.mxu0 0.0
      %4344 = vmatpush1.msra.mxu0 %v563
      %4345 = vmatprep.subr.mxu0 0.0
      %4346 = vmatpush1.msra.mxu0 %v562
      %4347 = vmatprep.subr.mxu0 0.0
      %4348 = vmatpush1.msra.mxu0 %v561
      %4349 = vmatprep.subr.mxu0 0.0
      %4350 = vmatpush1.msra.mxu0 %v560
      %4351 = vmatprep.subr.mxu0 0.0
      %4352 = vmatpush1.msra.mxu0 %v559
      %4353 = vmatprep.subr.mxu0 0.0
      %4354 = vmatpush1.msra.mxu0 %v558
      %4355 = vmatprep.subr.mxu0 0.0
      %4356 = vmatpush1.msra.mxu0 %v557
      %4357 = vmatprep.subr.mxu0 0.0
      %4358 = vmatpush1.msra.mxu0 %v556
      %4359 = vmatprep.subr.mxu0 0.0
      %4360 = vmatpush1.msra.mxu0 %v555
      %4361 = vmatprep.subr.mxu0 0.0
      %4362 = vmatpush1.msra.mxu0 %v554
      %4363 = vmatprep.subr.mxu0 0.0
      %4364 = vmatpush1.msra.mxu0 %v553
      %4365 = vmatprep.subr.mxu0 0.0
      %4366 = vmatpush1.msra.mxu0 %v552
      %4367 = vmatprep.subr.mxu0 0.0
      %4368 = vmatpush2.msra.mxu0 %v583
      %4369 = vmatprep.subr.mxu0 0.0
      %4370 = vmatpush2.msra.mxu0 %v582
      %4371 = vmatprep.subr.mxu0 0.0
      %4372 = vmatpush2.msra.mxu0 %v581
      %4373 = vmatprep.subr.mxu0 0.0
      %4374 = vmatpush2.msra.mxu0 %v580
      %4375 = vmatprep.subr.mxu0 0.0
      %4376 = vmatpush2.msra.mxu0 %v579
      %4377 = vmatprep.subr.mxu0 0.0
      %4378 = vmatpush2.msra.mxu0 %v578
      %4379 = vmatprep.subr.mxu0 0.0
      %4380 = vmatpush2.msra.mxu0 %v577
      %4381 = vmatprep.subr.mxu0 0.0
      %4382 = vmatpush2.msra.mxu0 %v576
      %4383 = vmatprep.subr.mxu0 0.0
      %4384 = vmatpush2.msra.mxu0 %v575
      %4385 = vmatprep.subr.mxu0 0.0
      %4386 = vmatpush2.msra.mxu0 %v574
      %4387 = vmatprep.subr.mxu0 0.0
      %4388 = vmatpush2.msra.mxu0 %v573
      %4389 = vmatprep.subr.mxu0 0.0
      %4390 = vmatpush2.msra.mxu0 %v572
      %4391 = vmatprep.subr.mxu0 0.0
      %4392 = vmatpush2.msra.mxu0 %v571
      %4393 = vmatprep.subr.mxu0 0.0
      %4394 = vmatpush2.msra.mxu0 %v570
      %4395 = vmatprep.subr.mxu0 0.0
      %4396 = vmatpush2.msra.mxu0 %v569
      %4397 = vmatprep.subr.mxu0 0.0
      %4398 = vmatpush2.msra.mxu0 %v568
      %4399 = vmatprep.mubr.f32.mxu0 %v630
      %4400 = vmatmul.mubr.f32.gmra.mxu0 %v629
      %v4401 = vpop.f32.mrf.mxu0
      %v4402 = vadd.f32 %v4017, %v4401
      %v4403 = vpop.f32.mrf.mxu0
      %4404 = vmatprep.mubr.f32.mxu0 %v646
      %4405 = vmatmul.mubr.f32.gmra.mxu0 %v645
      %v4406 = vpop.f32.mrf.mxu0
      %v4407 = vadd.f32 %v4022, %v4406
      %v4408 = vpop.f32.mrf.mxu0
      %4409 = vmatprep.mubr.f32.mxu0 %v662
      %4410 = vmatmul.mubr.f32.gmra.mxu0 %v661
      %v4411 = vpop.f32.mrf.mxu0
      %v4412 = vadd.f32 %v4027, %v4411
      %v4413 = vpop.f32.mrf.mxu0
      %4414 = vmatprep.mubr.f32.mxu0 %v678
      %4415 = vmatmul.mubr.f32.gmra.mxu0 %v677
      %v4416 = vpop.f32.mrf.mxu0
      %v4417 = vadd.f32 %v4032, %v4416
      %v4418 = vpop.f32.mrf.mxu0
      %4419 = vmatprep.mubr.f32.mxu0 %v694
      %4420 = vmatmul.mubr.f32.gmra.mxu0 %v693
      %v4421 = vpop.f32.mrf.mxu0
      %v4422 = vadd.f32 %v4037, %v4421
      %v4423 = vpop.f32.mrf.mxu0
      %4424 = vmatprep.mubr.f32.mxu0 %v710
      %4425 = vmatmul.mubr.f32.gmra.mxu0 %v709
      %v4426 = vpop.f32.mrf.mxu0
      %v4427 = vadd.f32 %v4042, %v4426
      %v4428 = vpop.f32.mrf.mxu0
      %4429 = vmatprep.mubr.f32.mxu0 %v726
      %4430 = vmatmul.mubr.f32.gmra.mxu0 %v725
      %v4431 = vpop.f32.mrf.mxu0
      %v4432 = vadd.f32 %v4047, %v4431
      %v4433 = vpop.f32.mrf.mxu0
      %4434 = vmatprep.mubr.f32.mxu0 %v742
      %4435 = vmatmul.mubr.f32.gmra.mxu0 %v741
      %v4436 = vpop.f32.mrf.mxu0
      %v4437 = vadd.f32 %v4052, %v4436
      %v4438 = vpop.f32.mrf.mxu0
      %4439 = vmatprep.mubr.f32.mxu0 %v758
      %4440 = vmatmul.mubr.f32.gmra.mxu0 %v757
      %v4441 = vpop.f32.mrf.mxu0
      %v4442 = vadd.f32 %v4057, %v4441
      %v4443 = vpop.f32.mrf.mxu0
      %4444 = vmatprep.mubr.f32.mxu0 %v774
      %4445 = vmatmul.mubr.f32.gmra.mxu0 %v773
      %v4446 = vpop.f32.mrf.mxu0
      %v4447 = vadd.f32 %v4062, %v4446
      %v4448 = vpop.f32.mrf.mxu0
      %4449 = vmatprep.mubr.f32.mxu0 %v790
      %4450 = vmatmul.mubr.f32.gmra.mxu0 %v789
      %v4451 = vpop.f32.mrf.mxu0
      %v4452 = vadd.f32 %v4067, %v4451
      %v4453 = vpop.f32.mrf.mxu0
      %4454 = vmatprep.mubr.f32.mxu0 %v806
      %4455 = vmatmul.mubr.f32.gmra.mxu0 %v805
      %v4456 = vpop.f32.mrf.mxu0
      %v4457 = vadd.f32 %v4072, %v4456
      %v4458 = vpop.f32.mrf.mxu0
      %4459 = vmatprep.mubr.f32.mxu0 %v822
      %4460 = vmatmul.mubr.f32.gmra.mxu0 %v821
      %v4461 = vpop.f32.mrf.mxu0
      %v4462 = vadd.f32 %v4077, %v4461
      %v4463 = vpop.f32.mrf.mxu0
      %4464 = vmatprep.mubr.f32.mxu0 %v838
      %4465 = vmatmul.mubr.f32.gmra.mxu0 %v837
      %v4466 = vpop.f32.mrf.mxu0
      %v4467 = vadd.f32 %v4082, %v4466
      %v4468 = vpop.f32.mrf.mxu0
      %4469 = vmatprep.mubr.f32.mxu0 %v854
      %4470 = vmatmul.mubr.f32.gmra.mxu0 %v853
      %v4471 = vpop.f32.mrf.mxu0
      %v4472 = vadd.f32 %v4087, %v4471
      %v4473 = vpop.f32.mrf.mxu0
      %4474 = vmatprep.mubr.f32.mxu0 %v870
      %4475 = vmatmul.mubr.f32.gmra.mxu0 %v869
      %v4476 = vpop.f32.mrf.mxu0
      %v4477 = vadd.f32 %v4092, %v4476
      %v4478 = vpop.f32.mrf.mxu0
      %4479 = vmatprep.mubr.f32.mxu0 %v886
      %4480 = vmatmul.mubr.f32.gmra.mxu0 %v885
      %v4481 = vpop.f32.mrf.mxu0
      %v4482 = vadd.f32 %v4097, %v4481
      %v4483 = vpop.f32.mrf.mxu0
      %4484 = vmatprep.mubr.f32.mxu0 %v902
      %4485 = vmatmul.mubr.f32.gmra.mxu0 %v901
      %v4486 = vpop.f32.mrf.mxu0
      %v4487 = vadd.f32 %v4102, %v4486
      %v4488 = vpop.f32.mrf.mxu0
      %4489 = vmatprep.mubr.f32.mxu0 %v918
      %4490 = vmatmul.mubr.f32.gmra.mxu0 %v917
      %v4491 = vpop.f32.mrf.mxu0
      %v4492 = vadd.f32 %v4107, %v4491
      %v4493 = vpop.f32.mrf.mxu0
      %4494 = vmatprep.mubr.f32.mxu0 %v934
      %4495 = vmatmul.mubr.f32.gmra.mxu0 %v933
      %v4496 = vpop.f32.mrf.mxu0
      %v4497 = vadd.f32 %v4112, %v4496
      %v4498 = vpop.f32.mrf.mxu0
      %4499 = vmatprep.mubr.f32.mxu0 %v950
      %4500 = vmatmul.mubr.f32.gmra.mxu0 %v949
      %v4501 = vpop.f32.mrf.mxu0
      %v4502 = vadd.f32 %v4117, %v4501
      %v4503 = vpop.f32.mrf.mxu0
      %4504 = vmatprep.mubr.f32.mxu0 %v966
      %4505 = vmatmul.mubr.f32.gmra.mxu0 %v965
      %v4506 = vpop.f32.mrf.mxu0
      %v4507 = vadd.f32 %v4122, %v4506
      %v4508 = vpop.f32.mrf.mxu0
      %4509 = vmatprep.mubr.f32.mxu0 %v982
      %4510 = vmatmul.mubr.f32.gmra.mxu0 %v981
      %v4511 = vpop.f32.mrf.mxu0
      %v4512 = vadd.f32 %v4127, %v4511
      %v4513 = vpop.f32.mrf.mxu0
      %4514 = vmatprep.mubr.f32.mxu0 %v998
      %4515 = vmatmul.mubr.f32.gmra.mxu0 %v997
      %v4516 = vpop.f32.mrf.mxu0
      %v4517 = vadd.f32 %v4132, %v4516
      %v4518 = vpop.f32.mrf.mxu0
      %4519 = vmatprep.mubr.f32.mxu0 %v1014
      %4520 = vmatmul.mubr.f32.gmra.mxu0 %v1013
      %v4521 = vpop.f32.mrf.mxu0
      %v4522 = vadd.f32 %v4137, %v4521
      %v4523 = vpop.f32.mrf.mxu0
      %4524 = vmatprep.mubr.f32.mxu0 %v1030
      %4525 = vmatmul.mubr.f32.gmra.mxu0 %v1029
      %v4526 = vpop.f32.mrf.mxu0
      %v4527 = vadd.f32 %v4142, %v4526
      %v4528 = vpop.f32.mrf.mxu0
      %4529 = vmatprep.mubr.f32.mxu0 %v1046
      %4530 = vmatmul.mubr.f32.gmra.mxu0 %v1045
      %v4531 = vpop.f32.mrf.mxu0
      %v4532 = vadd.f32 %v4147, %v4531
      %v4533 = vpop.f32.mrf.mxu0
      %4534 = vmatprep.mubr.f32.mxu0 %v1062
      %4535 = vmatmul.mubr.f32.gmra.mxu0 %v1061
      %v4536 = vpop.f32.mrf.mxu0
      %v4537 = vadd.f32 %v4152, %v4536
      %v4538 = vpop.f32.mrf.mxu0
      %4539 = vmatprep.mubr.f32.mxu0 %v1078
      %4540 = vmatmul.mubr.f32.gmra.mxu0 %v1077
      %v4541 = vpop.f32.mrf.mxu0
      %v4542 = vadd.f32 %v4157, %v4541
      %v4543 = vpop.f32.mrf.mxu0
      %4544 = vmatprep.mubr.f32.mxu0 %v1094
      %4545 = vmatmul.mubr.f32.gmra.mxu0 %v1093
      %v4546 = vpop.f32.mrf.mxu0
      %v4547 = vadd.f32 %v4162, %v4546
      %v4548 = vpop.f32.mrf.mxu0
      %4549 = vmatprep.mubr.f32.mxu0 %v1110
      %4550 = vmatmul.mubr.f32.gmra.mxu0 %v1109
      %v4551 = vpop.f32.mrf.mxu0
      %v4552 = vadd.f32 %v4167, %v4551
      %v4553 = vpop.f32.mrf.mxu0
      %4554 = vmatprep.mubr.f32.mxu0 %v1126
      %4555 = vmatmul.mubr.f32.gmra.mxu0 %v1125
      %v4556 = vpop.f32.mrf.mxu0
      %v4557 = vadd.f32 %v4172, %v4556
      %v4558 = vpop.f32.mrf.mxu0
      %4559 = vmatprep.mubr.f32.mxu0 %v1142
      %4560 = vmatmul.mubr.f32.gmra.mxu0 %v1141
      %v4561 = vpop.f32.mrf.mxu0
      %v4562 = vadd.f32 %v4177, %v4561
      %v4563 = vpop.f32.mrf.mxu0
      %4564 = vmatprep.mubr.f32.mxu0 %v1158
      %4565 = vmatmul.mubr.f32.gmra.mxu0 %v1157
      %v4566 = vpop.f32.mrf.mxu0
      %v4567 = vadd.f32 %v4182, %v4566
      %v4568 = vpop.f32.mrf.mxu0
      %4569 = vmatprep.mubr.f32.mxu0 %v1174
      %4570 = vmatmul.mubr.f32.gmra.mxu0 %v1173
      %v4571 = vpop.f32.mrf.mxu0
      %v4572 = vadd.f32 %v4187, %v4571
      %v4573 = vpop.f32.mrf.mxu0
      %4574 = vmatprep.mubr.f32.mxu0 %v1190
      %4575 = vmatmul.mubr.f32.gmra.mxu0 %v1189
      %v4576 = vpop.f32.mrf.mxu0
      %v4577 = vadd.f32 %v4192, %v4576
      %v4578 = vpop.f32.mrf.mxu0
      %4579 = vmatprep.mubr.f32.mxu0 %v1206
      %4580 = vmatmul.mubr.f32.gmra.mxu0 %v1205
      %v4581 = vpop.f32.mrf.mxu0
      %v4582 = vadd.f32 %v4197, %v4581
      %v4583 = vpop.f32.mrf.mxu0
      %4584 = vmatprep.mubr.f32.mxu0 %v1222
      %4585 = vmatmul.mubr.f32.gmra.mxu0 %v1221
      %v4586 = vpop.f32.mrf.mxu0
      %v4587 = vadd.f32 %v4202, %v4586
      %v4588 = vpop.f32.mrf.mxu0
      %4589 = vmatprep.mubr.f32.mxu0 %v1238
      %4590 = vmatmul.mubr.f32.gmra.mxu0 %v1237
      %v4591 = vpop.f32.mrf.mxu0
      %v4592 = vadd.f32 %v4207, %v4591
      %v4593 = vpop.f32.mrf.mxu0
      %4594 = vmatprep.mubr.f32.mxu0 %v1254
      %4595 = vmatmul.mubr.f32.gmra.mxu0 %v1253
      %v4596 = vpop.f32.mrf.mxu0
      %v4597 = vadd.f32 %v4212, %v4596
      %v4598 = vpop.f32.mrf.mxu0
      %4599 = vmatprep.mubr.f32.mxu0 %v1270
      %4600 = vmatmul.mubr.f32.gmra.mxu0 %v1269
      %v4601 = vpop.f32.mrf.mxu0
      %v4602 = vadd.f32 %v4217, %v4601
      %v4603 = vpop.f32.mrf.mxu0
      %4604 = vmatprep.mubr.f32.mxu0 %v1286
      %4605 = vmatmul.mubr.f32.gmra.mxu0 %v1285
      %v4606 = vpop.f32.mrf.mxu0
      %v4607 = vadd.f32 %v4222, %v4606
      %v4608 = vpop.f32.mrf.mxu0
      %4609 = vmatprep.mubr.f32.mxu0 %v1302
      %4610 = vmatmul.mubr.f32.gmra.mxu0 %v1301
      %v4611 = vpop.f32.mrf.mxu0
      %v4612 = vadd.f32 %v4227, %v4611
      %v4613 = vpop.f32.mrf.mxu0
      %4614 = vmatprep.mubr.f32.mxu0 %v1318
      %4615 = vmatmul.mubr.f32.gmra.mxu0 %v1317
      %v4616 = vpop.f32.mrf.mxu0
      %v4617 = vadd.f32 %v4232, %v4616
      %v4618 = vpop.f32.mrf.mxu0
      %4619 = vmatprep.mubr.f32.mxu0 %v1334
      %4620 = vmatmul.mubr.f32.gmra.mxu0 %v1333
      %v4621 = vpop.f32.mrf.mxu0
      %v4622 = vadd.f32 %v4237, %v4621
      %v4623 = vpop.f32.mrf.mxu0
      %4624 = vmatprep.mubr.f32.mxu0 %v1350
      %4625 = vmatmul.mubr.f32.gmra.mxu0 %v1349
      %v4626 = vpop.f32.mrf.mxu0
      %v4627 = vadd.f32 %v4242, %v4626
      %v4628 = vpop.f32.mrf.mxu0
      %4629 = vmatprep.mubr.f32.mxu0 %v1366
      %4630 = vmatmul.mubr.f32.gmra.mxu0 %v1365
      %v4631 = vpop.f32.mrf.mxu0
      %v4632 = vadd.f32 %v4247, %v4631
      %v4633 = vpop.f32.mrf.mxu0
      %4634 = vmatprep.mubr.f32.mxu0 %v1382
      %4635 = vmatmul.mubr.f32.gmra.mxu0 %v1381
      %v4636 = vpop.f32.mrf.mxu0
      %v4637 = vadd.f32 %v4252, %v4636
      %v4638 = vpop.f32.mrf.mxu0
      %4639 = vmatprep.mubr.f32.mxu0 %v1398
      %4640 = vmatmul.mubr.f32.gmra.mxu0 %v1397
      %v4641 = vpop.f32.mrf.mxu0
      %v4642 = vadd.f32 %v4257, %v4641
      %v4643 = vpop.f32.mrf.mxu0
      %4644 = vmatprep.mubr.f32.mxu0 %v1414
      %4645 = vmatmul.mubr.f32.gmra.mxu0 %v1413
      %v4646 = vpop.f32.mrf.mxu0
      %v4647 = vadd.f32 %v4262, %v4646
      %v4648 = vpop.f32.mrf.mxu0
      %4649 = vmatprep.mubr.f32.mxu0 %v1430
      %4650 = vmatmul.mubr.f32.gmra.mxu0 %v1429
      %v4651 = vpop.f32.mrf.mxu0
      %v4652 = vadd.f32 %v4267, %v4651
      %v4653 = vpop.f32.mrf.mxu0
      %4654 = vmatprep.mubr.f32.mxu0 %v1446
      %4655 = vmatmul.mubr.f32.gmra.mxu0 %v1445
      %v4656 = vpop.f32.mrf.mxu0
      %v4657 = vadd.f32 %v4272, %v4656
      %v4658 = vpop.f32.mrf.mxu0
      %4659 = vmatprep.mubr.f32.mxu0 %v1462
      %4660 = vmatmul.mubr.f32.gmra.mxu0 %v1461
      %v4661 = vpop.f32.mrf.mxu0
      %v4662 = vadd.f32 %v4277, %v4661
      %v4663 = vpop.f32.mrf.mxu0
      %4664 = vmatprep.mubr.f32.mxu0 %v1478
      %4665 = vmatmul.mubr.f32.gmra.mxu0 %v1477
      %v4666 = vpop.f32.mrf.mxu0
      %v4667 = vadd.f32 %v4282, %v4666
      %v4668 = vpop.f32.mrf.mxu0
      %4669 = vmatprep.mubr.f32.mxu0 %v1494
      %4670 = vmatmul.mubr.f32.gmra.mxu0 %v1493
      %v4671 = vpop.f32.mrf.mxu0
      %v4672 = vadd.f32 %v4287, %v4671
      %v4673 = vpop.f32.mrf.mxu0
      %4674 = vmatprep.mubr.f32.mxu0 %v1510
      %4675 = vmatmul.mubr.f32.gmra.mxu0 %v1509
      %v4676 = vpop.f32.mrf.mxu0
      %v4677 = vadd.f32 %v4292, %v4676
      %v4678 = vpop.f32.mrf.mxu0
      %4679 = vmatprep.mubr.f32.mxu0 %v1526
      %4680 = vmatmul.mubr.f32.gmra.mxu0 %v1525
      %v4681 = vpop.f32.mrf.mxu0
      %v4682 = vadd.f32 %v4297, %v4681
      %v4683 = vpop.f32.mrf.mxu0
      %4684 = vmatprep.mubr.f32.mxu0 %v1542
      %4685 = vmatmul.mubr.f32.gmra.mxu0 %v1541
      %v4686 = vpop.f32.mrf.mxu0
      %v4687 = vadd.f32 %v4302, %v4686
      %v4688 = vpop.f32.mrf.mxu0
      %4689 = vmatprep.mubr.f32.mxu0 %v1558
      %4690 = vmatmul.mubr.f32.gmra.mxu0 %v1557
      %v4691 = vpop.f32.mrf.mxu0
      %v4692 = vadd.f32 %v4307, %v4691
      %v4693 = vpop.f32.mrf.mxu0
      %4694 = vmatprep.mubr.f32.mxu0 %v1574
      %4695 = vmatmul.mubr.f32.gmra.mxu0 %v1573
      %v4696 = vpop.f32.mrf.mxu0
      %v4697 = vadd.f32 %v4312, %v4696
      %v4698 = vpop.f32.mrf.mxu0
      %4699 = vmatprep.mubr.f32.mxu0 %v1590
      %4700 = vmatmul.mubr.f32.gmra.mxu0 %v1589
      %v4701 = vpop.f32.mrf.mxu0
      %v4702 = vadd.f32 %v4317, %v4701
      %v4703 = vpop.f32.mrf.mxu0
      %4704 = vmatprep.mubr.f32.mxu0 %v1606
      %4705 = vmatmul.mubr.f32.gmra.mxu0 %v1605
      %v4706 = vpop.f32.mrf.mxu0
      %v4707 = vadd.f32 %v4322, %v4706
      %v4708 = vpop.f32.mrf.mxu0
      %4709 = vmatprep.mubr.f32.mxu0 %v1622
      %4710 = vmatmul.mubr.f32.gmra.mxu0 %v1621
      %v4711 = vpop.f32.mrf.mxu0
      %v4712 = vadd.f32 %v4327, %v4711
      %v4713 = vpop.f32.mrf.mxu0
      %4714 = vmatprep.mubr.f32.mxu0 %v1638
      %4715 = vmatmul.mubr.f32.gmra.mxu0 %v1637
      %v4716 = vpop.f32.mrf.mxu0
      %v4717 = vadd.f32 %v4332, %v4716
      %v4718 = vpop.f32.mrf.mxu0
      %4719 = vdwg.mxu0
      %4720 = vmatprep.subr.mxu0 0.0
      %4721 = vmatpush1.msra.mxu0 %v599
      %4722 = vmatprep.subr.mxu0 0.0
      %4723 = vmatpush1.msra.mxu0 %v598
      %4724 = vmatprep.subr.mxu0 0.0
      %4725 = vmatpush1.msra.mxu0 %v597
      %4726 = vmatprep.subr.mxu0 0.0
      %4727 = vmatpush1.msra.mxu0 %v596
      %4728 = vmatprep.subr.mxu0 0.0
      %4729 = vmatpush1.msra.mxu0 %v595
      %4730 = vmatprep.subr.mxu0 0.0
      %4731 = vmatpush1.msra.mxu0 %v594
      %4732 = vmatprep.subr.mxu0 0.0
      %4733 = vmatpush1.msra.mxu0 %v593
      %4734 = vmatprep.subr.mxu0 0.0
      %4735 = vmatpush1.msra.mxu0 %v592
      %4736 = vmatprep.subr.mxu0 0.0
      %4737 = vmatpush1.msra.mxu0 %v591
      %4738 = vmatprep.subr.mxu0 0.0
      %4739 = vmatpush1.msra.mxu0 %v590
      %4740 = vmatprep.subr.mxu0 0.0
      %4741 = vmatpush1.msra.mxu0 %v589
      %4742 = vmatprep.subr.mxu0 0.0
      %4743 = vmatpush1.msra.mxu0 %v588
      %4744 = vmatprep.subr.mxu0 0.0
      %4745 = vmatpush1.msra.mxu0 %v587
      %4746 = vmatprep.subr.mxu0 0.0
      %4747 = vmatpush1.msra.mxu0 %v586
      %4748 = vmatprep.subr.mxu0 0.0
      %4749 = vmatpush1.msra.mxu0 %v585
      %4750 = vmatprep.subr.mxu0 0.0
      %4751 = vmatpush1.msra.mxu0 %v584
      %4752 = vmatprep.subr.mxu0 0.0
      %4753 = vmatpush2.msra.mxu0 %v615
      %4754 = vmatprep.subr.mxu0 0.0
      %4755 = vmatpush2.msra.mxu0 %v614
      %4756 = vmatprep.subr.mxu0 0.0
      %4757 = vmatpush2.msra.mxu0 %v613
      %4758 = vmatprep.subr.mxu0 0.0
      %4759 = vmatpush2.msra.mxu0 %v612
      %4760 = vmatprep.subr.mxu0 0.0
      %4761 = vmatpush2.msra.mxu0 %v611
      %4762 = vmatprep.subr.mxu0 0.0
      %4763 = vmatpush2.msra.mxu0 %v610
      %4764 = vmatprep.subr.mxu0 0.0
      %4765 = vmatpush2.msra.mxu0 %v609
      %4766 = vmatprep.subr.mxu0 0.0
      %4767 = vmatpush2.msra.mxu0 %v608
      %4768 = vmatprep.subr.mxu0 0.0
      %4769 = vmatpush2.msra.mxu0 %v607
      %4770 = vmatprep.subr.mxu0 0.0
      %4771 = vmatpush2.msra.mxu0 %v606
      %4772 = vmatprep.subr.mxu0 0.0
      %4773 = vmatpush2.msra.mxu0 %v605
      %4774 = vmatprep.subr.mxu0 0.0
      %4775 = vmatpush2.msra.mxu0 %v604
      %4776 = vmatprep.subr.mxu0 0.0
      %4777 = vmatpush2.msra.mxu0 %v603
      %4778 = vmatprep.subr.mxu0 0.0
      %4779 = vmatpush2.msra.mxu0 %v602
      %4780 = vmatprep.subr.mxu0 0.0
      %4781 = vmatpush2.msra.mxu0 %v601
      %4782 = vmatprep.subr.mxu0 0.0
      %4783 = vmatpush2.msra.mxu0 %v600
      %4784 = vmatprep.mubr.f32.mxu0 %v632
      %4785 = vmatmul.mubr.f32.gmra.mxu0 %v631
      %v4786 = vpop.f32.mrf.mxu0
      %v4787 = vadd.f32 %v4402, %v4786
      %v4788 = vpop.f32.mrf.mxu0
      %4789 = vmatprep.mubr.f32.mxu0 %v648
      %4790 = vmatmul.mubr.f32.gmra.mxu0 %v647
      %v4791 = vpop.f32.mrf.mxu0
      %v4792 = vadd.f32 %v4407, %v4791
      %v4793 = vpop.f32.mrf.mxu0
      %4794 = vmatprep.mubr.f32.mxu0 %v664
      %4795 = vmatmul.mubr.f32.gmra.mxu0 %v663
      %v4796 = vpop.f32.mrf.mxu0
      %v4797 = vadd.f32 %v4412, %v4796
      %v4798 = vpop.f32.mrf.mxu0
      %4799 = vmatprep.mubr.f32.mxu0 %v680
      %4800 = vmatmul.mubr.f32.gmra.mxu0 %v679
      %v4801 = vpop.f32.mrf.mxu0
      %v4802 = vadd.f32 %v4417, %v4801
      %v4803 = vpop.f32.mrf.mxu0
      %4804 = vmatprep.mubr.f32.mxu0 %v696
      %4805 = vmatmul.mubr.f32.gmra.mxu0 %v695
      %v4806 = vpop.f32.mrf.mxu0
      %v4807 = vadd.f32 %v4422, %v4806
      %v4808 = vpop.f32.mrf.mxu0
      %4809 = vmatprep.mubr.f32.mxu0 %v712
      %4810 = vmatmul.mubr.f32.gmra.mxu0 %v711
      %v4811 = vpop.f32.mrf.mxu0
      %v4812 = vadd.f32 %v4427, %v4811
      %v4813 = vpop.f32.mrf.mxu0
      %4814 = vmatprep.mubr.f32.mxu0 %v728
      %4815 = vmatmul.mubr.f32.gmra.mxu0 %v727
      %v4816 = vpop.f32.mrf.mxu0
      %v4817 = vadd.f32 %v4432, %v4816
      %v4818 = vpop.f32.mrf.mxu0
      %4819 = vmatprep.mubr.f32.mxu0 %v744
      %4820 = vmatmul.mubr.f32.gmra.mxu0 %v743
      %v4821 = vpop.f32.mrf.mxu0
      %v4822 = vadd.f32 %v4437, %v4821
      %v4823 = vpop.f32.mrf.mxu0
      %4824 = vmatprep.mubr.f32.mxu0 %v760
      %4825 = vmatmul.mubr.f32.gmra.mxu0 %v759
      %v4826 = vpop.f32.mrf.mxu0
      %v4827 = vadd.f32 %v4442, %v4826
      %v4828 = vpop.f32.mrf.mxu0
      %4829 = vmatprep.mubr.f32.mxu0 %v776
      %4830 = vmatmul.mubr.f32.gmra.mxu0 %v775
      %v4831 = vpop.f32.mrf.mxu0
      %v4832 = vadd.f32 %v4447, %v4831
      %v4833 = vpop.f32.mrf.mxu0
      %4834 = vmatprep.mubr.f32.mxu0 %v792
      %4835 = vmatmul.mubr.f32.gmra.mxu0 %v791
      %v4836 = vpop.f32.mrf.mxu0
      %v4837 = vadd.f32 %v4452, %v4836
      %v4838 = vpop.f32.mrf.mxu0
      %4839 = vmatprep.mubr.f32.mxu0 %v808
      %4840 = vmatmul.mubr.f32.gmra.mxu0 %v807
      %v4841 = vpop.f32.mrf.mxu0
      %v4842 = vadd.f32 %v4457, %v4841
      %v4843 = vpop.f32.mrf.mxu0
      %4844 = vmatprep.mubr.f32.mxu0 %v824
      %4845 = vmatmul.mubr.f32.gmra.mxu0 %v823
      %v4846 = vpop.f32.mrf.mxu0
      %v4847 = vadd.f32 %v4462, %v4846
      %v4848 = vpop.f32.mrf.mxu0
      %4849 = vmatprep.mubr.f32.mxu0 %v840
      %4850 = vmatmul.mubr.f32.gmra.mxu0 %v839
      %v4851 = vpop.f32.mrf.mxu0
      %v4852 = vadd.f32 %v4467, %v4851
      %v4853 = vpop.f32.mrf.mxu0
      %4854 = vmatprep.mubr.f32.mxu0 %v856
      %4855 = vmatmul.mubr.f32.gmra.mxu0 %v855
      %v4856 = vpop.f32.mrf.mxu0
      %v4857 = vadd.f32 %v4472, %v4856
      %v4858 = vpop.f32.mrf.mxu0
      %4859 = vmatprep.mubr.f32.mxu0 %v872
      %4860 = vmatmul.mubr.f32.gmra.mxu0 %v871
      %v4861 = vpop.f32.mrf.mxu0
      %v4862 = vadd.f32 %v4477, %v4861
      %v4863 = vpop.f32.mrf.mxu0
      %4864 = vmatprep.mubr.f32.mxu0 %v888
      %4865 = vmatmul.mubr.f32.gmra.mxu0 %v887
      %v4866 = vpop.f32.mrf.mxu0
      %v4867 = vadd.f32 %v4482, %v4866
      %v4868 = vpop.f32.mrf.mxu0
      %4869 = vmatprep.mubr.f32.mxu0 %v904
      %4870 = vmatmul.mubr.f32.gmra.mxu0 %v903
      %v4871 = vpop.f32.mrf.mxu0
      %v4872 = vadd.f32 %v4487, %v4871
      %v4873 = vpop.f32.mrf.mxu0
      %4874 = vmatprep.mubr.f32.mxu0 %v920
      %4875 = vmatmul.mubr.f32.gmra.mxu0 %v919
      %v4876 = vpop.f32.mrf.mxu0
      %v4877 = vadd.f32 %v4492, %v4876
      %v4878 = vpop.f32.mrf.mxu0
      %4879 = vmatprep.mubr.f32.mxu0 %v936
      %4880 = vmatmul.mubr.f32.gmra.mxu0 %v935
      %v4881 = vpop.f32.mrf.mxu0
      %v4882 = vadd.f32 %v4497, %v4881
      %v4883 = vpop.f32.mrf.mxu0
      %4884 = vmatprep.mubr.f32.mxu0 %v952
      %4885 = vmatmul.mubr.f32.gmra.mxu0 %v951
      %v4886 = vpop.f32.mrf.mxu0
      %v4887 = vadd.f32 %v4502, %v4886
      %v4888 = vpop.f32.mrf.mxu0
      %4889 = vmatprep.mubr.f32.mxu0 %v968
      %4890 = vmatmul.mubr.f32.gmra.mxu0 %v967
      %v4891 = vpop.f32.mrf.mxu0
      %v4892 = vadd.f32 %v4507, %v4891
      %v4893 = vpop.f32.mrf.mxu0
      %4894 = vmatprep.mubr.f32.mxu0 %v984
      %4895 = vmatmul.mubr.f32.gmra.mxu0 %v983
      %v4896 = vpop.f32.mrf.mxu0
      %v4897 = vadd.f32 %v4512, %v4896
      %v4898 = vpop.f32.mrf.mxu0
      %4899 = vmatprep.mubr.f32.mxu0 %v1000
      %4900 = vmatmul.mubr.f32.gmra.mxu0 %v999
      %v4901 = vpop.f32.mrf.mxu0
      %v4902 = vadd.f32 %v4517, %v4901
      %v4903 = vpop.f32.mrf.mxu0
      %4904 = vmatprep.mubr.f32.mxu0 %v1016
      %4905 = vmatmul.mubr.f32.gmra.mxu0 %v1015
      %v4906 = vpop.f32.mrf.mxu0
      %v4907 = vadd.f32 %v4522, %v4906
      %v4908 = vpop.f32.mrf.mxu0
      %4909 = vmatprep.mubr.f32.mxu0 %v1032
      %4910 = vmatmul.mubr.f32.gmra.mxu0 %v1031
      %v4911 = vpop.f32.mrf.mxu0
      %v4912 = vadd.f32 %v4527, %v4911
      %v4913 = vpop.f32.mrf.mxu0
      %4914 = vmatprep.mubr.f32.mxu0 %v1048
      %4915 = vmatmul.mubr.f32.gmra.mxu0 %v1047
      %v4916 = vpop.f32.mrf.mxu0
      %v4917 = vadd.f32 %v4532, %v4916
      %v4918 = vpop.f32.mrf.mxu0
      %4919 = vmatprep.mubr.f32.mxu0 %v1064
      %4920 = vmatmul.mubr.f32.gmra.mxu0 %v1063
      %v4921 = vpop.f32.mrf.mxu0
      %v4922 = vadd.f32 %v4537, %v4921
      %v4923 = vpop.f32.mrf.mxu0
      %4924 = vmatprep.mubr.f32.mxu0 %v1080
      %4925 = vmatmul.mubr.f32.gmra.mxu0 %v1079
      %v4926 = vpop.f32.mrf.mxu0
      %v4927 = vadd.f32 %v4542, %v4926
      %v4928 = vpop.f32.mrf.mxu0
      %4929 = vmatprep.mubr.f32.mxu0 %v1096
      %4930 = vmatmul.mubr.f32.gmra.mxu0 %v1095
      %v4931 = vpop.f32.mrf.mxu0
      %v4932 = vadd.f32 %v4547, %v4931
      %v4933 = vpop.f32.mrf.mxu0
      %4934 = vmatprep.mubr.f32.mxu0 %v1112
      %4935 = vmatmul.mubr.f32.gmra.mxu0 %v1111
      %v4936 = vpop.f32.mrf.mxu0
      %v4937 = vadd.f32 %v4552, %v4936
      %v4938 = vpop.f32.mrf.mxu0
      %4939 = vmatprep.mubr.f32.mxu0 %v1128
      %4940 = vmatmul.mubr.f32.gmra.mxu0 %v1127
      %v4941 = vpop.f32.mrf.mxu0
      %v4942 = vadd.f32 %v4557, %v4941
      %v4943 = vpop.f32.mrf.mxu0
      %4944 = vmatprep.mubr.f32.mxu0 %v1144
      %4945 = vmatmul.mubr.f32.gmra.mxu0 %v1143
      %v4946 = vpop.f32.mrf.mxu0
      %v4947 = vadd.f32 %v4562, %v4946
      %v4948 = vpop.f32.mrf.mxu0
      %4949 = vmatprep.mubr.f32.mxu0 %v1160
      %4950 = vmatmul.mubr.f32.gmra.mxu0 %v1159
      %v4951 = vpop.f32.mrf.mxu0
      %v4952 = vadd.f32 %v4567, %v4951
      %v4953 = vpop.f32.mrf.mxu0
      %4954 = vmatprep.mubr.f32.mxu0 %v1176
      %4955 = vmatmul.mubr.f32.gmra.mxu0 %v1175
      %v4956 = vpop.f32.mrf.mxu0
      %v4957 = vadd.f32 %v4572, %v4956
      %v4958 = vpop.f32.mrf.mxu0
      %4959 = vmatprep.mubr.f32.mxu0 %v1192
      %4960 = vmatmul.mubr.f32.gmra.mxu0 %v1191
      %v4961 = vpop.f32.mrf.mxu0
      %v4962 = vadd.f32 %v4577, %v4961
      %v4963 = vpop.f32.mrf.mxu0
      %4964 = vmatprep.mubr.f32.mxu0 %v1208
      %4965 = vmatmul.mubr.f32.gmra.mxu0 %v1207
      %v4966 = vpop.f32.mrf.mxu0
      %v4967 = vadd.f32 %v4582, %v4966
      %v4968 = vpop.f32.mrf.mxu0
      %4969 = vmatprep.mubr.f32.mxu0 %v1224
      %4970 = vmatmul.mubr.f32.gmra.mxu0 %v1223
      %v4971 = vpop.f32.mrf.mxu0
      %v4972 = vadd.f32 %v4587, %v4971
      %v4973 = vpop.f32.mrf.mxu0
      %4974 = vmatprep.mubr.f32.mxu0 %v1240
      %4975 = vmatmul.mubr.f32.gmra.mxu0 %v1239
      %v4976 = vpop.f32.mrf.mxu0
      %v4977 = vadd.f32 %v4592, %v4976
      %v4978 = vpop.f32.mrf.mxu0
      %4979 = vmatprep.mubr.f32.mxu0 %v1256
      %4980 = vmatmul.mubr.f32.gmra.mxu0 %v1255
      %v4981 = vpop.f32.mrf.mxu0
      %v4982 = vadd.f32 %v4597, %v4981
      %v4983 = vpop.f32.mrf.mxu0
      %4984 = vmatprep.mubr.f32.mxu0 %v1272
      %4985 = vmatmul.mubr.f32.gmra.mxu0 %v1271
      %v4986 = vpop.f32.mrf.mxu0
      %v4987 = vadd.f32 %v4602, %v4986
      %v4988 = vpop.f32.mrf.mxu0
      %4989 = vmatprep.mubr.f32.mxu0 %v1288
      %4990 = vmatmul.mubr.f32.gmra.mxu0 %v1287
      %v4991 = vpop.f32.mrf.mxu0
      %v4992 = vadd.f32 %v4607, %v4991
      %v4993 = vpop.f32.mrf.mxu0
      %4994 = vmatprep.mubr.f32.mxu0 %v1304
      %4995 = vmatmul.mubr.f32.gmra.mxu0 %v1303
      %v4996 = vpop.f32.mrf.mxu0
      %v4997 = vadd.f32 %v4612, %v4996
      %v4998 = vpop.f32.mrf.mxu0
      %4999 = vmatprep.mubr.f32.mxu0 %v1320
      %5000 = vmatmul.mubr.f32.gmra.mxu0 %v1319
      %v5001 = vpop.f32.mrf.mxu0
      %v5002 = vadd.f32 %v4617, %v5001
      %v5003 = vpop.f32.mrf.mxu0
      %5004 = vmatprep.mubr.f32.mxu0 %v1336
      %5005 = vmatmul.mubr.f32.gmra.mxu0 %v1335
      %v5006 = vpop.f32.mrf.mxu0
      %v5007 = vadd.f32 %v4622, %v5006
      %v5008 = vpop.f32.mrf.mxu0
      %5009 = vmatprep.mubr.f32.mxu0 %v1352
      %5010 = vmatmul.mubr.f32.gmra.mxu0 %v1351
      %v5011 = vpop.f32.mrf.mxu0
      %v5012 = vadd.f32 %v4627, %v5011
      %v5013 = vpop.f32.mrf.mxu0
      %5014 = vmatprep.mubr.f32.mxu0 %v1368
      %5015 = vmatmul.mubr.f32.gmra.mxu0 %v1367
      %v5016 = vpop.f32.mrf.mxu0
      %v5017 = vadd.f32 %v4632, %v5016
      %v5018 = vpop.f32.mrf.mxu0
      %5019 = vmatprep.mubr.f32.mxu0 %v1384
      %5020 = vmatmul.mubr.f32.gmra.mxu0 %v1383
      %v5021 = vpop.f32.mrf.mxu0
      %v5022 = vadd.f32 %v4637, %v5021
      %v5023 = vpop.f32.mrf.mxu0
      %5024 = vmatprep.mubr.f32.mxu0 %v1400
      %5025 = vmatmul.mubr.f32.gmra.mxu0 %v1399
      %v5026 = vpop.f32.mrf.mxu0
      %v5027 = vadd.f32 %v4642, %v5026
      %v5028 = vpop.f32.mrf.mxu0
      %5029 = vmatprep.mubr.f32.mxu0 %v1416
      %5030 = vmatmul.mubr.f32.gmra.mxu0 %v1415
      %v5031 = vpop.f32.mrf.mxu0
      %v5032 = vadd.f32 %v4647, %v5031
      %v5033 = vpop.f32.mrf.mxu0
      %5034 = vmatprep.mubr.f32.mxu0 %v1432
      %5035 = vmatmul.mubr.f32.gmra.mxu0 %v1431
      %v5036 = vpop.f32.mrf.mxu0
      %v5037 = vadd.f32 %v4652, %v5036
      %v5038 = vpop.f32.mrf.mxu0
      %5039 = vmatprep.mubr.f32.mxu0 %v1448
      %5040 = vmatmul.mubr.f32.gmra.mxu0 %v1447
      %v5041 = vpop.f32.mrf.mxu0
      %v5042 = vadd.f32 %v4657, %v5041
      %v5043 = vpop.f32.mrf.mxu0
      %5044 = vmatprep.mubr.f32.mxu0 %v1464
      %5045 = vmatmul.mubr.f32.gmra.mxu0 %v1463
      %v5046 = vpop.f32.mrf.mxu0
      %v5047 = vadd.f32 %v4662, %v5046
      %v5048 = vpop.f32.mrf.mxu0
      %5049 = vmatprep.mubr.f32.mxu0 %v1480
      %5050 = vmatmul.mubr.f32.gmra.mxu0 %v1479
      %v5051 = vpop.f32.mrf.mxu0
      %v5052 = vadd.f32 %v4667, %v5051
      %v5053 = vpop.f32.mrf.mxu0
      %5054 = vmatprep.mubr.f32.mxu0 %v1496
      %5055 = vmatmul.mubr.f32.gmra.mxu0 %v1495
      %v5056 = vpop.f32.mrf.mxu0
      %v5057 = vadd.f32 %v4672, %v5056
      %v5058 = vpop.f32.mrf.mxu0
      %5059 = vmatprep.mubr.f32.mxu0 %v1512
      %5060 = vmatmul.mubr.f32.gmra.mxu0 %v1511
      %v5061 = vpop.f32.mrf.mxu0
      %v5062 = vadd.f32 %v4677, %v5061
      %v5063 = vpop.f32.mrf.mxu0
      %5064 = vmatprep.mubr.f32.mxu0 %v1528
      %5065 = vmatmul.mubr.f32.gmra.mxu0 %v1527
      %v5066 = vpop.f32.mrf.mxu0
      %v5067 = vadd.f32 %v4682, %v5066
      %v5068 = vpop.f32.mrf.mxu0
      %5069 = vmatprep.mubr.f32.mxu0 %v1544
      %5070 = vmatmul.mubr.f32.gmra.mxu0 %v1543
      %v5071 = vpop.f32.mrf.mxu0
      %v5072 = vadd.f32 %v4687, %v5071
      %v5073 = vpop.f32.mrf.mxu0
      %5074 = vmatprep.mubr.f32.mxu0 %v1560
      %5075 = vmatmul.mubr.f32.gmra.mxu0 %v1559
      %v5076 = vpop.f32.mrf.mxu0
      %v5077 = vadd.f32 %v4692, %v5076
      %v5078 = vpop.f32.mrf.mxu0
      %5079 = vmatprep.mubr.f32.mxu0 %v1576
      %5080 = vmatmul.mubr.f32.gmra.mxu0 %v1575
      %v5081 = vpop.f32.mrf.mxu0
      %v5082 = vadd.f32 %v4697, %v5081
      %v5083 = vpop.f32.mrf.mxu0
      %5084 = vmatprep.mubr.f32.mxu0 %v1592
      %5085 = vmatmul.mubr.f32.gmra.mxu0 %v1591
      %v5086 = vpop.f32.mrf.mxu0
      %v5087 = vadd.f32 %v4702, %v5086
      %v5088 = vpop.f32.mrf.mxu0
      %5089 = vmatprep.mubr.f32.mxu0 %v1608
      %5090 = vmatmul.mubr.f32.gmra.mxu0 %v1607
      %v5091 = vpop.f32.mrf.mxu0
      %v5092 = vadd.f32 %v4707, %v5091
      %v5093 = vpop.f32.mrf.mxu0
      %5094 = vmatprep.mubr.f32.mxu0 %v1624
      %5095 = vmatmul.mubr.f32.gmra.mxu0 %v1623
      %v5096 = vpop.f32.mrf.mxu0
      %v5097 = vadd.f32 %v4712, %v5096
      %v5098 = vpop.f32.mrf.mxu0
      %5099 = vmatprep.mubr.f32.mxu0 %v1640
      %5100 = vmatmul.mubr.f32.gmra.mxu0 %v1639
      %v5101 = vpop.f32.mrf.mxu0
      %v5102 = vadd.f32 %v4717, %v5101
      %v5103 = vpop.f32.mrf.mxu0
      %5104 = vdwg.mxu0
      %v5106 = vlaneseq
      %v5107 = vshrl.u32 %v5106, 7
      %v5108 = vsub.s32 0, %v5107
      %v5109 = vrot.slane %v616, %v5108
      %v5111 = vmul.f32 %v4787, %v5109
      %v5112 = vmul.f32 %v4792, %v5109
      %v5113 = vmul.f32 %v4797, %v5109
      %v5114 = vmul.f32 %v4802, %v5109
      %v5115 = vmul.f32 %v4807, %v5109
      %v5116 = vmul.f32 %v4812, %v5109
      %v5117 = vmul.f32 %v4817, %v5109
      %v5118 = vmul.f32 %v4822, %v5109
      %v5119 = vmul.f32 %v4827, %v5109
      %v5120 = vmul.f32 %v4832, %v5109
      %v5121 = vmul.f32 %v4837, %v5109
      %v5122 = vmul.f32 %v4842, %v5109
      %v5123 = vmul.f32 %v4847, %v5109
      %v5124 = vmul.f32 %v4852, %v5109
      %v5125 = vmul.f32 %v4857, %v5109
      %v5126 = vmul.f32 %v4862, %v5109
      %v5127 = vmul.f32 %v4867, %v5109
      %v5128 = vmul.f32 %v4872, %v5109
      %v5129 = vmul.f32 %v4877, %v5109
      %v5130 = vmul.f32 %v4882, %v5109
      %v5131 = vmul.f32 %v4887, %v5109
      %v5132 = vmul.f32 %v4892, %v5109
      %v5133 = vmul.f32 %v4897, %v5109
      %v5134 = vmul.f32 %v4902, %v5109
      %v5135 = vmul.f32 %v4907, %v5109
      %v5136 = vmul.f32 %v4912, %v5109
      %v5137 = vmul.f32 %v4917, %v5109
      %v5138 = vmul.f32 %v4922, %v5109
      %v5139 = vmul.f32 %v4927, %v5109
      %v5140 = vmul.f32 %v4932, %v5109
      %v5141 = vmul.f32 %v4937, %v5109
      %v5142 = vmul.f32 %v4942, %v5109
      %v5143 = vmul.f32 %v4947, %v5109
      %v5144 = vmul.f32 %v4952, %v5109
      %v5145 = vmul.f32 %v4957, %v5109
      %v5146 = vmul.f32 %v4962, %v5109
      %v5147 = vmul.f32 %v4967, %v5109
      %v5148 = vmul.f32 %v4972, %v5109
      %v5149 = vmul.f32 %v4977, %v5109
      %v5150 = vmul.f32 %v4982, %v5109
      %v5151 = vmul.f32 %v4987, %v5109
      %v5152 = vmul.f32 %v4992, %v5109
      %v5153 = vmul.f32 %v4997, %v5109
      %v5154 = vmul.f32 %v5002, %v5109
      %v5155 = vmul.f32 %v5007, %v5109
      %v5156 = vmul.f32 %v5012, %v5109
      %v5157 = vmul.f32 %v5017, %v5109
      %v5158 = vmul.f32 %v5022, %v5109
      %v5159 = vmul.f32 %v5027, %v5109
      %v5160 = vmul.f32 %v5032, %v5109
      %v5161 = vmul.f32 %v5037, %v5109
      %v5162 = vmul.f32 %v5042, %v5109
      %v5163 = vmul.f32 %v5047, %v5109
      %v5164 = vmul.f32 %v5052, %v5109
      %v5165 = vmul.f32 %v5057, %v5109
      %v5166 = vmul.f32 %v5062, %v5109
      %v5167 = vmul.f32 %v5067, %v5109
      %v5168 = vmul.f32 %v5072, %v5109
      %v5169 = vmul.f32 %v5077, %v5109
      %v5170 = vmul.f32 %v5082, %v5109
      %v5171 = vmul.f32 %v5087, %v5109
      %v5172 = vmul.f32 %v5092, %v5109
      %v5173 = vmul.f32 %v5097, %v5109
      %v5174 = vmul.f32 %v5102, %v5109
      %v5175 = vmax.f32 %v5111, 0.0
      %v5176 = vmax.f32 %v5112, 0.0
      %v5177 = vmax.f32 %v5113, 0.0
      %v5178 = vmax.f32 %v5114, 0.0
      %v5179 = vmax.f32 %v5115, 0.0
      %v5180 = vmax.f32 %v5116, 0.0
      %v5181 = vmax.f32 %v5117, 0.0
      %v5182 = vmax.f32 %v5118, 0.0
      %v5183 = vmax.f32 %v5119, 0.0
      %v5184 = vmax.f32 %v5120, 0.0
      %v5185 = vmax.f32 %v5121, 0.0
      %v5186 = vmax.f32 %v5122, 0.0
      %v5187 = vmax.f32 %v5123, 0.0
      %v5188 = vmax.f32 %v5124, 0.0
      %v5189 = vmax.f32 %v5125, 0.0
      %v5190 = vmax.f32 %v5126, 0.0
      %v5191 = vmax.f32 %v5127, 0.0
      %v5192 = vmax.f32 %v5128, 0.0
      %v5193 = vmax.f32 %v5129, 0.0
      %v5194 = vmax.f32 %v5130, 0.0
      %v5195 = vmax.f32 %v5131, 0.0
      %v5196 = vmax.f32 %v5132, 0.0
      %v5197 = vmax.f32 %v5133, 0.0
      %v5198 = vmax.f32 %v5134, 0.0
      %v5199 = vmax.f32 %v5135, 0.0
      %v5200 = vmax.f32 %v5136, 0.0
      %v5201 = vmax.f32 %v5137, 0.0
      %v5202 = vmax.f32 %v5138, 0.0
      %v5203 = vmax.f32 %v5139, 0.0
      %v5204 = vmax.f32 %v5140, 0.0
      %v5205 = vmax.f32 %v5141, 0.0
      %v5206 = vmax.f32 %v5142, 0.0
      %v5207 = vmax.f32 %v5143, 0.0
      %v5208 = vmax.f32 %v5144, 0.0
      %v5209 = vmax.f32 %v5145, 0.0
      %v5210 = vmax.f32 %v5146, 0.0
      %v5211 = vmax.f32 %v5147, 0.0
      %v5212 = vmax.f32 %v5148, 0.0
      %v5213 = vmax.f32 %v5149, 0.0
      %v5214 = vmax.f32 %v5150, 0.0
      %v5215 = vmax.f32 %v5151, 0.0
      %v5216 = vmax.f32 %v5152, 0.0
      %v5217 = vmax.f32 %v5153, 0.0
      %v5218 = vmax.f32 %v5154, 0.0
      %v5219 = vmax.f32 %v5155, 0.0
      %v5220 = vmax.f32 %v5156, 0.0
      %v5221 = vmax.f32 %v5157, 0.0
      %v5222 = vmax.f32 %v5158, 0.0
      %v5223 = vmax.f32 %v5159, 0.0
      %v5224 = vmax.f32 %v5160, 0.0
      %v5225 = vmax.f32 %v5161, 0.0
      %v5226 = vmax.f32 %v5162, 0.0
      %v5227 = vmax.f32 %v5163, 0.0
      %v5228 = vmax.f32 %v5164, 0.0
      %v5229 = vmax.f32 %v5165, 0.0
      %v5230 = vmax.f32 %v5166, 0.0
      %v5231 = vmax.f32 %v5167, 0.0
      %v5232 = vmax.f32 %v5168, 0.0
      %v5233 = vmax.f32 %v5169, 0.0
      %v5234 = vmax.f32 %v5170, 0.0
      %v5235 = vmax.f32 %v5171, 0.0
      %v5236 = vmax.f32 %v5172, 0.0
      %v5237 = vmax.f32 %v5173, 0.0
      %v5238 = vmax.f32 %v5174, 0.0
      %v5239 = vld [vmem:[%s6] sm:$0xff]
      %v5240 = vld [vmem:[%s6 + $0x8] sm:$0xff]
      %v5241 = vld [vmem:[%s6 + $0x10] sm:$0xff]
      %v5242 = vld [vmem:[%s6 + $0x18] sm:$0xff]
      %v5243 = vld [vmem:[%s6 + $0x20] sm:$0xff]
      %v5244 = vld [vmem:[%s6 + $0x28] sm:$0xff]
      %v5245 = vld [vmem:[%s6 + $0x30] sm:$0xff]
      %v5246 = vld [vmem:[%s6 + $0x38] sm:$0xff]
      %v5247 = vld [vmem:[%s6 + $0x40] sm:$0xff]
      %v5248 = vld [vmem:[%s6 + $0x48] sm:$0xff]
      %v5249 = vld [vmem:[%s6 + $0x50] sm:$0xff]
      %v5250 = vld [vmem:[%s6 + $0x58] sm:$0xff]
      %v5251 = vld [vmem:[%s6 + $0x60] sm:$0xff]
      %v5252 = vld [vmem:[%s6 + $0x68] sm:$0xff]
      %v5253 = vld [vmem:[%s6 + $0x70] sm:$0xff]
      %v5254 = vld [vmem:[%s6 + $0x78] sm:$0xff]
      %v5255 = vld [vmem:[%s6 + $0x80] sm:$0xff]
      %v5256 = vld [vmem:[%s6 + $0x88] sm:$0xff]
      %v5257 = vld [vmem:[%s6 + $0x90] sm:$0xff]
      %v5258 = vld [vmem:[%s6 + $0x98] sm:$0xff]
      %v5259 = vld [vmem:[%s6 + $0xa0] sm:$0xff]
      %v5260 = vld [vmem:[%s6 + $0xa8] sm:$0xff]
      %v5261 = vld [vmem:[%s6 + $0xb0] sm:$0xff]
      %v5262 = vld [vmem:[%s6 + $0xb8] sm:$0xff]
      %v5263 = vld [vmem:[%s6 + $0xc0] sm:$0xff]
      %v5264 = vld [vmem:[%s6 + $0xc8] sm:$0xff]
      %v5265 = vld [vmem:[%s6 + $0xd0] sm:$0xff]
      %v5266 = vld [vmem:[%s6 + $0xd8] sm:$0xff]
      %v5267 = vld [vmem:[%s6 + $0xe0] sm:$0xff]
      %v5268 = vld [vmem:[%s6 + $0xe8] sm:$0xff]
      %v5269 = vld [vmem:[%s6 + $0xf0] sm:$0xff]
      %v5270 = vld [vmem:[%s6 + $0xf8] sm:$0xff]
      %v5271 = vld [vmem:[%s6 + $0x100] sm:$0xff]
      %v5272 = vld [vmem:[%s6 + $0x108] sm:$0xff]
      %v5273 = vld [vmem:[%s6 + $0x110] sm:$0xff]
      %v5274 = vld [vmem:[%s6 + $0x118] sm:$0xff]
      %v5275 = vld [vmem:[%s6 + $0x120] sm:$0xff]
      %v5276 = vld [vmem:[%s6 + $0x128] sm:$0xff]
      %v5277 = vld [vmem:[%s6 + $0x130] sm:$0xff]
      %v5278 = vld [vmem:[%s6 + $0x138] sm:$0xff]
      %v5279 = vld [vmem:[%s6 + $0x140] sm:$0xff]
      %v5280 = vld [vmem:[%s6 + $0x148] sm:$0xff]
      %v5281 = vld [vmem:[%s6 + $0x150] sm:$0xff]
      %v5282 = vld [vmem:[%s6 + $0x158] sm:$0xff]
      %v5283 = vld [vmem:[%s6 + $0x160] sm:$0xff]
      %v5284 = vld [vmem:[%s6 + $0x168] sm:$0xff]
      %v5285 = vld [vmem:[%s6 + $0x170] sm:$0xff]
      %v5286 = vld [vmem:[%s6 + $0x178] sm:$0xff]
      %v5287 = vld [vmem:[%s6 + $0x180] sm:$0xff]
      %v5288 = vld [vmem:[%s6 + $0x188] sm:$0xff]
      %v5289 = vld [vmem:[%s6 + $0x190] sm:$0xff]
      %v5290 = vld [vmem:[%s6 + $0x198] sm:$0xff]
      %v5291 = vld [vmem:[%s6 + $0x1a0] sm:$0xff]
      %v5292 = vld [vmem:[%s6 + $0x1a8] sm:$0xff]
      %v5293 = vld [vmem:[%s6 + $0x1b0] sm:$0xff]
      %v5294 = vld [vmem:[%s6 + $0x1b8] sm:$0xff]
      %v5295 = vld [vmem:[%s6 + $0x1c0] sm:$0xff]
      %v5296 = vld [vmem:[%s6 + $0x1c8] sm:$0xff]
      %v5297 = vld [vmem:[%s6 + $0x1d0] sm:$0xff]
      %v5298 = vld [vmem:[%s6 + $0x1d8] sm:$0xff]
      %v5299 = vld [vmem:[%s6 + $0x1e0] sm:$0xff]
      %v5300 = vld [vmem:[%s6 + $0x1e8] sm:$0xff]
      %v5301 = vld [vmem:[%s6 + $0x1f0] sm:$0xff]
      %v5302 = vld [vmem:[%s6 + $0x1f8] sm:$0xff]
      %v5303 = vld [vmem:[%s6 + $0x200] sm:$0xff]
      %v5304 = vld [vmem:[%s6 + $0x208] sm:$0xff]
      %v5305 = vld [vmem:[%s6 + $0x210] sm:$0xff]
      %v5306 = vld [vmem:[%s6 + $0x218] sm:$0xff]
      %v5307 = vld [vmem:[%s6 + $0x220] sm:$0xff]
      %v5308 = vld [vmem:[%s6 + $0x228] sm:$0xff]
      %v5309 = vld [vmem:[%s6 + $0x230] sm:$0xff]
      %v5310 = vld [vmem:[%s6 + $0x238] sm:$0xff]
      %v5311 = vld [vmem:[%s6 + $0x240] sm:$0xff]
      %v5312 = vld [vmem:[%s6 + $0x248] sm:$0xff]
      %v5313 = vld [vmem:[%s6 + $0x250] sm:$0xff]
      %v5314 = vld [vmem:[%s6 + $0x258] sm:$0xff]
      %v5315 = vld [vmem:[%s6 + $0x260] sm:$0xff]
      %v5316 = vld [vmem:[%s6 + $0x268] sm:$0xff]
      %v5317 = vld [vmem:[%s6 + $0x270] sm:$0xff]
      %v5318 = vld [vmem:[%s6 + $0x278] sm:$0xff]
      %v5319 = vld [vmem:[%s6 + $0x280] sm:$0xff]
      %v5320 = vld [vmem:[%s6 + $0x288] sm:$0xff]
      %v5321 = vld [vmem:[%s6 + $0x290] sm:$0xff]
      %v5322 = vld [vmem:[%s6 + $0x298] sm:$0xff]
      %v5323 = vld [vmem:[%s6 + $0x2a0] sm:$0xff]
      %v5324 = vld [vmem:[%s6 + $0x2a8] sm:$0xff]
      %v5325 = vld [vmem:[%s6 + $0x2b0] sm:$0xff]
      %v5326 = vld [vmem:[%s6 + $0x2b8] sm:$0xff]
      %v5327 = vld [vmem:[%s6 + $0x2c0] sm:$0xff]
      %v5328 = vld [vmem:[%s6 + $0x2c8] sm:$0xff]
      %v5329 = vld [vmem:[%s6 + $0x2d0] sm:$0xff]
      %v5330 = vld [vmem:[%s6 + $0x2d8] sm:$0xff]
      %v5331 = vld [vmem:[%s6 + $0x2e0] sm:$0xff]
      %v5332 = vld [vmem:[%s6 + $0x2e8] sm:$0xff]
      %v5333 = vld [vmem:[%s6 + $0x2f0] sm:$0xff]
      %v5334 = vld [vmem:[%s6 + $0x2f8] sm:$0xff]
      %v5335 = vld [vmem:[%s6 + $0x300] sm:$0xff]
      %v5336 = vld [vmem:[%s6 + $0x308] sm:$0xff]
      %v5337 = vld [vmem:[%s6 + $0x310] sm:$0xff]
      %v5338 = vld [vmem:[%s6 + $0x318] sm:$0xff]
      %v5339 = vld [vmem:[%s6 + $0x320] sm:$0xff]
      %v5340 = vld [vmem:[%s6 + $0x328] sm:$0xff]
      %v5341 = vld [vmem:[%s6 + $0x330] sm:$0xff]
      %v5342 = vld [vmem:[%s6 + $0x338] sm:$0xff]
      %v5343 = vld [vmem:[%s6 + $0x340] sm:$0xff]
      %v5344 = vld [vmem:[%s6 + $0x348] sm:$0xff]
      %v5345 = vld [vmem:[%s6 + $0x350] sm:$0xff]
      %v5346 = vld [vmem:[%s6 + $0x358] sm:$0xff]
      %v5347 = vld [vmem:[%s6 + $0x360] sm:$0xff]
      %v5348 = vld [vmem:[%s6 + $0x368] sm:$0xff]
      %v5349 = vld [vmem:[%s6 + $0x370] sm:$0xff]
      %v5350 = vld [vmem:[%s6 + $0x378] sm:$0xff]
      %v5351 = vld [vmem:[%s6 + $0x380] sm:$0xff]
      %v5352 = vld [vmem:[%s6 + $0x388] sm:$0xff]
      %v5353 = vld [vmem:[%s6 + $0x390] sm:$0xff]
      %v5354 = vld [vmem:[%s6 + $0x398] sm:$0xff]
      %v5355 = vld [vmem:[%s6 + $0x3a0] sm:$0xff]
      %v5356 = vld [vmem:[%s6 + $0x3a8] sm:$0xff]
      %v5357 = vld [vmem:[%s6 + $0x3b0] sm:$0xff]
      %v5358 = vld [vmem:[%s6 + $0x3b8] sm:$0xff]
      %v5359 = vld [vmem:[%s6 + $0x3c0] sm:$0xff]
      %v5360 = vld [vmem:[%s6 + $0x3c8] sm:$0xff]
      %v5361 = vld [vmem:[%s6 + $0x3d0] sm:$0xff]
      %v5362 = vld [vmem:[%s6 + $0x3d8] sm:$0xff]
      %v5363 = vld [vmem:[%s6 + $0x3e0] sm:$0xff]
      %v5364 = vld [vmem:[%s6 + $0x3e8] sm:$0xff]
      %v5365 = vld [vmem:[%s6 + $0x3f0] sm:$0xff]
      %v5366 = vld [vmem:[%s6 + $0x3f8] sm:$0xff]
      %v5367 = vld [vmem:[%s6 + $0x400] sm:$0xff]
      %v5368 = vld [vmem:[%s6 + $0x408] sm:$0xff]
      %v5369 = vld [vmem:[%s6 + $0x410] sm:$0xff]
      %v5370 = vld [vmem:[%s6 + $0x418] sm:$0xff]
      %v5371 = vld [vmem:[%s6 + $0x420] sm:$0xff]
      %v5372 = vld [vmem:[%s6 + $0x428] sm:$0xff]
      %v5373 = vld [vmem:[%s6 + $0x430] sm:$0xff]
      %v5374 = vld [vmem:[%s6 + $0x438] sm:$0xff]
      %v5375 = vld [vmem:[%s6 + $0x440] sm:$0xff]
      %v5376 = vld [vmem:[%s6 + $0x448] sm:$0xff]
      %v5377 = vld [vmem:[%s6 + $0x450] sm:$0xff]
      %v5378 = vld [vmem:[%s6 + $0x458] sm:$0xff]
      %v5379 = vld [vmem:[%s6 + $0x460] sm:$0xff]
      %v5380 = vld [vmem:[%s6 + $0x468] sm:$0xff]
      %v5381 = vld [vmem:[%s6 + $0x470] sm:$0xff]
      %v5382 = vld [vmem:[%s6 + $0x478] sm:$0xff]
      %v5383 = vld [vmem:[%s6 + $0x480] sm:$0xff]
      %v5384 = vld [vmem:[%s6 + $0x488] sm:$0xff]
      %v5385 = vld [vmem:[%s6 + $0x490] sm:$0xff]
      %v5386 = vld [vmem:[%s6 + $0x498] sm:$0xff]
      %v5387 = vld [vmem:[%s6 + $0x4a0] sm:$0xff]
      %v5388 = vld [vmem:[%s6 + $0x4a8] sm:$0xff]
      %v5389 = vld [vmem:[%s6 + $0x4b0] sm:$0xff]
      %v5390 = vld [vmem:[%s6 + $0x4b8] sm:$0xff]
      %v5391 = vld [vmem:[%s6 + $0x4c0] sm:$0xff]
      %v5392 = vld [vmem:[%s6 + $0x4c8] sm:$0xff]
      %v5393 = vld [vmem:[%s6 + $0x4d0] sm:$0xff]
      %v5394 = vld [vmem:[%s6 + $0x4d8] sm:$0xff]
      %v5395 = vld [vmem:[%s6 + $0x4e0] sm:$0xff]
      %v5396 = vld [vmem:[%s6 + $0x4e8] sm:$0xff]
      %v5397 = vld [vmem:[%s6 + $0x4f0] sm:$0xff]
      %v5398 = vld [vmem:[%s6 + $0x4f8] sm:$0xff]
      %v5399 = vld [vmem:[%s6 + $0x500] sm:$0xff]
      %v5400 = vld [vmem:[%s6 + $0x508] sm:$0xff]
      %v5401 = vld [vmem:[%s6 + $0x510] sm:$0xff]
      %v5402 = vld [vmem:[%s6 + $0x518] sm:$0xff]
      %v5403 = vld [vmem:[%s6 + $0x520] sm:$0xff]
      %v5404 = vld [vmem:[%s6 + $0x528] sm:$0xff]
      %v5405 = vld [vmem:[%s6 + $0x530] sm:$0xff]
      %v5406 = vld [vmem:[%s6 + $0x538] sm:$0xff]
      %v5407 = vld [vmem:[%s6 + $0x540] sm:$0xff]
      %v5408 = vld [vmem:[%s6 + $0x548] sm:$0xff]
      %v5409 = vld [vmem:[%s6 + $0x550] sm:$0xff]
      %v5410 = vld [vmem:[%s6 + $0x558] sm:$0xff]
      %v5411 = vld [vmem:[%s6 + $0x560] sm:$0xff]
      %v5412 = vld [vmem:[%s6 + $0x568] sm:$0xff]
      %v5413 = vld [vmem:[%s6 + $0x570] sm:$0xff]
      %v5414 = vld [vmem:[%s6 + $0x578] sm:$0xff]
      %v5415 = vld [vmem:[%s6 + $0x580] sm:$0xff]
      %v5416 = vld [vmem:[%s6 + $0x588] sm:$0xff]
      %v5417 = vld [vmem:[%s6 + $0x590] sm:$0xff]
      %v5418 = vld [vmem:[%s6 + $0x598] sm:$0xff]
      %v5419 = vld [vmem:[%s6 + $0x5a0] sm:$0xff]
      %v5420 = vld [vmem:[%s6 + $0x5a8] sm:$0xff]
      %v5421 = vld [vmem:[%s6 + $0x5b0] sm:$0xff]
      %v5422 = vld [vmem:[%s6 + $0x5b8] sm:$0xff]
      %v5423 = vld [vmem:[%s6 + $0x5c0] sm:$0xff]
      %v5424 = vld [vmem:[%s6 + $0x5c8] sm:$0xff]
      %v5425 = vld [vmem:[%s6 + $0x5d0] sm:$0xff]
      %v5426 = vld [vmem:[%s6 + $0x5d8] sm:$0xff]
      %v5427 = vld [vmem:[%s6 + $0x5e0] sm:$0xff]
      %v5428 = vld [vmem:[%s6 + $0x5e8] sm:$0xff]
      %v5429 = vld [vmem:[%s6 + $0x5f0] sm:$0xff]
      %v5430 = vld [vmem:[%s6 + $0x5f8] sm:$0xff]
      %v5431 = vld [vmem:[%s6 + $0x600] sm:$0xff]
      %v5432 = vld [vmem:[%s6 + $0x608] sm:$0xff]
      %v5433 = vld [vmem:[%s6 + $0x610] sm:$0xff]
      %v5434 = vld [vmem:[%s6 + $0x618] sm:$0xff]
      %v5435 = vld [vmem:[%s6 + $0x620] sm:$0xff]
      %v5436 = vld [vmem:[%s6 + $0x628] sm:$0xff]
      %v5437 = vld [vmem:[%s6 + $0x630] sm:$0xff]
      %v5438 = vld [vmem:[%s6 + $0x638] sm:$0xff]
      %v5439 = vld [vmem:[%s6 + $0x640] sm:$0xff]
      %v5440 = vld [vmem:[%s6 + $0x648] sm:$0xff]
      %v5441 = vld [vmem:[%s6 + $0x650] sm:$0xff]
      %v5442 = vld [vmem:[%s6 + $0x658] sm:$0xff]
      %v5443 = vld [vmem:[%s6 + $0x660] sm:$0xff]
      %v5444 = vld [vmem:[%s6 + $0x668] sm:$0xff]
      %v5445 = vld [vmem:[%s6 + $0x670] sm:$0xff]
      %v5446 = vld [vmem:[%s6 + $0x678] sm:$0xff]
      %v5447 = vld [vmem:[%s6 + $0x680] sm:$0xff]
      %v5448 = vld [vmem:[%s6 + $0x688] sm:$0xff]
      %v5449 = vld [vmem:[%s6 + $0x690] sm:$0xff]
      %v5450 = vld [vmem:[%s6 + $0x698] sm:$0xff]
      %v5451 = vld [vmem:[%s6 + $0x6a0] sm:$0xff]
      %v5452 = vld [vmem:[%s6 + $0x6a8] sm:$0xff]
      %v5453 = vld [vmem:[%s6 + $0x6b0] sm:$0xff]
      %v5454 = vld [vmem:[%s6 + $0x6b8] sm:$0xff]
      %v5455 = vld [vmem:[%s6 + $0x6c0] sm:$0xff]
      %v5456 = vld [vmem:[%s6 + $0x6c8] sm:$0xff]
      %v5457 = vld [vmem:[%s6 + $0x6d0] sm:$0xff]
      %v5458 = vld [vmem:[%s6 + $0x6d8] sm:$0xff]
      %v5459 = vld [vmem:[%s6 + $0x6e0] sm:$0xff]
      %v5460 = vld [vmem:[%s6 + $0x6e8] sm:$0xff]
      %v5461 = vld [vmem:[%s6 + $0x6f0] sm:$0xff]
      %v5462 = vld [vmem:[%s6 + $0x6f8] sm:$0xff]
      %v5463 = vld [vmem:[%s6 + $0x700] sm:$0xff]
      %v5464 = vld [vmem:[%s6 + $0x708] sm:$0xff]
      %v5465 = vld [vmem:[%s6 + $0x710] sm:$0xff]
      %v5466 = vld [vmem:[%s6 + $0x718] sm:$0xff]
      %v5467 = vld [vmem:[%s6 + $0x720] sm:$0xff]
      %v5468 = vld [vmem:[%s6 + $0x728] sm:$0xff]
      %v5469 = vld [vmem:[%s6 + $0x730] sm:$0xff]
      %v5470 = vld [vmem:[%s6 + $0x738] sm:$0xff]
      %v5471 = vld [vmem:[%s6 + $0x740] sm:$0xff]
      %v5472 = vld [vmem:[%s6 + $0x748] sm:$0xff]
      %v5473 = vld [vmem:[%s6 + $0x750] sm:$0xff]
      %v5474 = vld [vmem:[%s6 + $0x758] sm:$0xff]
      %v5475 = vld [vmem:[%s6 + $0x760] sm:$0xff]
      %v5476 = vld [vmem:[%s6 + $0x768] sm:$0xff]
      %v5477 = vld [vmem:[%s6 + $0x770] sm:$0xff]
      %v5478 = vld [vmem:[%s6 + $0x778] sm:$0xff]
      %v5479 = vld [vmem:[%s6 + $0x780] sm:$0xff]
      %v5480 = vld [vmem:[%s6 + $0x788] sm:$0xff]
      %v5481 = vld [vmem:[%s6 + $0x790] sm:$0xff]
      %v5482 = vld [vmem:[%s6 + $0x798] sm:$0xff]
      %v5483 = vld [vmem:[%s6 + $0x7a0] sm:$0xff]
      %v5484 = vld [vmem:[%s6 + $0x7a8] sm:$0xff]
      %v5485 = vld [vmem:[%s6 + $0x7b0] sm:$0xff]
      %v5486 = vld [vmem:[%s6 + $0x7b8] sm:$0xff]
      %v5487 = vld [vmem:[%s6 + $0x7c0] sm:$0xff]
      %v5488 = vld [vmem:[%s6 + $0x7c8] sm:$0xff]
      %v5489 = vld [vmem:[%s6 + $0x7d0] sm:$0xff]
      %v5490 = vld [vmem:[%s6 + $0x7d8] sm:$0xff]
      %v5491 = vld [vmem:[%s6 + $0x7e0] sm:$0xff]
      %v5492 = vld [vmem:[%s6 + $0x7e8] sm:$0xff]
      %v5493 = vld [vmem:[%s6 + $0x7f0] sm:$0xff]
      %v5494 = vld [vmem:[%s6 + $0x7f8] sm:$0xff]
      %5495 = vmatprep.subr.mxu0 0.0
      %5496 = vmatpush1.msra.mxu0 %v5190
      %5497 = vmatprep.subr.mxu0 0.0
      %5498 = vmatpush1.msra.mxu0 %v5189
      %5499 = vmatprep.subr.mxu0 0.0
      %5500 = vmatpush1.msra.mxu0 %v5188
      %5501 = vmatprep.subr.mxu0 0.0
      %5502 = vmatpush1.msra.mxu0 %v5187
      %5503 = vmatprep.subr.mxu0 0.0
      %5504 = vmatpush1.msra.mxu0 %v5186
      %5505 = vmatprep.subr.mxu0 0.0
      %5506 = vmatpush1.msra.mxu0 %v5185
      %5507 = vmatprep.subr.mxu0 0.0
      %5508 = vmatpush1.msra.mxu0 %v5184
      %5509 = vmatprep.subr.mxu0 0.0
      %5510 = vmatpush1.msra.mxu0 %v5183
      %5511 = vmatprep.subr.mxu0 0.0
      %5512 = vmatpush1.msra.mxu0 %v5182
      %5513 = vmatprep.subr.mxu0 0.0
      %5514 = vmatpush1.msra.mxu0 %v5181
      %5515 = vmatprep.subr.mxu0 0.0
      %5516 = vmatpush1.msra.mxu0 %v5180
      %5517 = vmatprep.subr.mxu0 0.0
      %5518 = vmatpush1.msra.mxu0 %v5179
      %5519 = vmatprep.subr.mxu0 0.0
      %5520 = vmatpush1.msra.mxu0 %v5178
      %5521 = vmatprep.subr.mxu0 0.0
      %5522 = vmatpush1.msra.mxu0 %v5177
      %5523 = vmatprep.subr.mxu0 0.0
      %5524 = vmatpush1.msra.mxu0 %v5176
      %5525 = vmatprep.subr.mxu0 0.0
      %5526 = vmatpush1.msra.mxu0 %v5175
      %5527 = vmatprep.subr.mxu0 0.0
      %5528 = vmatpush2.msra.mxu0 %v5206
      %5529 = vmatprep.subr.mxu0 0.0
      %5530 = vmatpush2.msra.mxu0 %v5205
      %5531 = vmatprep.subr.mxu0 0.0
      %5532 = vmatpush2.msra.mxu0 %v5204
      %5533 = vmatprep.subr.mxu0 0.0
      %5534 = vmatpush2.msra.mxu0 %v5203
      %5535 = vmatprep.subr.mxu0 0.0
      %5536 = vmatpush2.msra.mxu0 %v5202
      %5537 = vmatprep.subr.mxu0 0.0
      %5538 = vmatpush2.msra.mxu0 %v5201
      %5539 = vmatprep.subr.mxu0 0.0
      %5540 = vmatpush2.msra.mxu0 %v5200
      %5541 = vmatprep.subr.mxu0 0.0
      %5542 = vmatpush2.msra.mxu0 %v5199
      %5543 = vmatprep.subr.mxu0 0.0
      %5544 = vmatpush2.msra.mxu0 %v5198
      %5545 = vmatprep.subr.mxu0 0.0
      %5546 = vmatpush2.msra.mxu0 %v5197
      %5547 = vmatprep.subr.mxu0 0.0
      %5548 = vmatpush2.msra.mxu0 %v5196
      %5549 = vmatprep.subr.mxu0 0.0
      %5550 = vmatpush2.msra.mxu0 %v5195
      %5551 = vmatprep.subr.mxu0 0.0
      %5552 = vmatpush2.msra.mxu0 %v5194
      %5553 = vmatprep.subr.mxu0 0.0
      %5554 = vmatpush2.msra.mxu0 %v5193
      %5555 = vmatprep.subr.mxu0 0.0
      %5556 = vmatpush2.msra.mxu0 %v5192
      %5557 = vmatprep.subr.mxu0 0.0
      %5558 = vmatpush2.msra.mxu0 %v5191
      %5559 = vmatprep.mubr.f32.mxu0 %v5240
      %5560 = vmatmul.mubr.f32.gmra.mxu0 %v5239
      %v5561 = vpop.f32.mrf.mxu0
      %v5562 = vadd.f32 0.0, %v5561
      %v5563 = vpop.f32.mrf.mxu0
      %5564 = vmatprep.mubr.f32.mxu0 %v5244
      %5565 = vmatmul.mubr.f32.gmra.mxu0 %v5243
      %v5566 = vpop.f32.mrf.mxu0
      %v5567 = vadd.f32 0.0, %v5566
      %v5568 = vpop.f32.mrf.mxu0
      %5569 = vmatprep.mubr.f32.mxu0 %v5248
      %5570 = vmatmul.mubr.f32.gmra.mxu0 %v5247
      %v5571 = vpop.f32.mrf.mxu0
      %v5572 = vadd.f32 0.0, %v5571
      %v5573 = vpop.f32.mrf.mxu0
      %5574 = vmatprep.mubr.f32.mxu0 %v5252
      %5575 = vmatmul.mubr.f32.gmra.mxu0 %v5251
      %v5576 = vpop.f32.mrf.mxu0
      %v5577 = vadd.f32 0.0, %v5576
      %v5578 = vpop.f32.mrf.mxu0
      %5579 = vmatprep.mubr.f32.mxu0 %v5256
      %5580 = vmatmul.mubr.f32.gmra.mxu0 %v5255
      %v5581 = vpop.f32.mrf.mxu0
      %v5582 = vadd.f32 0.0, %v5581
      %v5583 = vpop.f32.mrf.mxu0
      %5584 = vmatprep.mubr.f32.mxu0 %v5260
      %5585 = vmatmul.mubr.f32.gmra.mxu0 %v5259
      %v5586 = vpop.f32.mrf.mxu0
      %v5587 = vadd.f32 0.0, %v5586
      %v5588 = vpop.f32.mrf.mxu0
      %5589 = vmatprep.mubr.f32.mxu0 %v5264
      %5590 = vmatmul.mubr.f32.gmra.mxu0 %v5263
      %v5591 = vpop.f32.mrf.mxu0
      %v5592 = vadd.f32 0.0, %v5591
      %v5593 = vpop.f32.mrf.mxu0
      %5594 = vmatprep.mubr.f32.mxu0 %v5268
      %5595 = vmatmul.mubr.f32.gmra.mxu0 %v5267
      %v5596 = vpop.f32.mrf.mxu0
      %v5597 = vadd.f32 0.0, %v5596
      %v5598 = vpop.f32.mrf.mxu0
      %5599 = vmatprep.mubr.f32.mxu0 %v5272
      %5600 = vmatmul.mubr.f32.gmra.mxu0 %v5271
      %v5601 = vpop.f32.mrf.mxu0
      %v5602 = vadd.f32 0.0, %v5601
      %v5603 = vpop.f32.mrf.mxu0
      %5604 = vmatprep.mubr.f32.mxu0 %v5276
      %5605 = vmatmul.mubr.f32.gmra.mxu0 %v5275
      %v5606 = vpop.f32.mrf.mxu0
      %v5607 = vadd.f32 0.0, %v5606
      %v5608 = vpop.f32.mrf.mxu0
      %5609 = vmatprep.mubr.f32.mxu0 %v5280
      %5610 = vmatmul.mubr.f32.gmra.mxu0 %v5279
      %v5611 = vpop.f32.mrf.mxu0
      %v5612 = vadd.f32 0.0, %v5611
      %v5613 = vpop.f32.mrf.mxu0
      %5614 = vmatprep.mubr.f32.mxu0 %v5284
      %5615 = vmatmul.mubr.f32.gmra.mxu0 %v5283
      %v5616 = vpop.f32.mrf.mxu0
      %v5617 = vadd.f32 0.0, %v5616
      %v5618 = vpop.f32.mrf.mxu0
      %5619 = vmatprep.mubr.f32.mxu0 %v5288
      %5620 = vmatmul.mubr.f32.gmra.mxu0 %v5287
      %v5621 = vpop.f32.mrf.mxu0
      %v5622 = vadd.f32 0.0, %v5621
      %v5623 = vpop.f32.mrf.mxu0
      %5624 = vmatprep.mubr.f32.mxu0 %v5292
      %5625 = vmatmul.mubr.f32.gmra.mxu0 %v5291
      %v5626 = vpop.f32.mrf.mxu0
      %v5627 = vadd.f32 0.0, %v5626
      %v5628 = vpop.f32.mrf.mxu0
      %5629 = vmatprep.mubr.f32.mxu0 %v5296
      %5630 = vmatmul.mubr.f32.gmra.mxu0 %v5295
      %v5631 = vpop.f32.mrf.mxu0
      %v5632 = vadd.f32 0.0, %v5631
      %v5633 = vpop.f32.mrf.mxu0
      %5634 = vmatprep.mubr.f32.mxu0 %v5300
      %5635 = vmatmul.mubr.f32.gmra.mxu0 %v5299
      %v5636 = vpop.f32.mrf.mxu0
      %v5637 = vadd.f32 0.0, %v5636
      %v5638 = vpop.f32.mrf.mxu0
      %5639 = vmatprep.mubr.f32.mxu0 %v5304
      %5640 = vmatmul.mubr.f32.gmra.mxu0 %v5303
      %v5641 = vpop.f32.mrf.mxu0
      %v5642 = vadd.f32 0.0, %v5641
      %v5643 = vpop.f32.mrf.mxu0
      %5644 = vmatprep.mubr.f32.mxu0 %v5308
      %5645 = vmatmul.mubr.f32.gmra.mxu0 %v5307
      %v5646 = vpop.f32.mrf.mxu0
      %v5647 = vadd.f32 0.0, %v5646
      %v5648 = vpop.f32.mrf.mxu0
      %5649 = vmatprep.mubr.f32.mxu0 %v5312
      %5650 = vmatmul.mubr.f32.gmra.mxu0 %v5311
      %v5651 = vpop.f32.mrf.mxu0
      %v5652 = vadd.f32 0.0, %v5651
      %v5653 = vpop.f32.mrf.mxu0
      %5654 = vmatprep.mubr.f32.mxu0 %v5316
      %5655 = vmatmul.mubr.f32.gmra.mxu0 %v5315
      %v5656 = vpop.f32.mrf.mxu0
      %v5657 = vadd.f32 0.0, %v5656
      %v5658 = vpop.f32.mrf.mxu0
      %5659 = vmatprep.mubr.f32.mxu0 %v5320
      %5660 = vmatmul.mubr.f32.gmra.mxu0 %v5319
      %v5661 = vpop.f32.mrf.mxu0
      %v5662 = vadd.f32 0.0, %v5661
      %v5663 = vpop.f32.mrf.mxu0
      %5664 = vmatprep.mubr.f32.mxu0 %v5324
      %5665 = vmatmul.mubr.f32.gmra.mxu0 %v5323
      %v5666 = vpop.f32.mrf.mxu0
      %v5667 = vadd.f32 0.0, %v5666
      %v5668 = vpop.f32.mrf.mxu0
      %5669 = vmatprep.mubr.f32.mxu0 %v5328
      %5670 = vmatmul.mubr.f32.gmra.mxu0 %v5327
      %v5671 = vpop.f32.mrf.mxu0
      %v5672 = vadd.f32 0.0, %v5671
      %v5673 = vpop.f32.mrf.mxu0
      %5674 = vmatprep.mubr.f32.mxu0 %v5332
      %5675 = vmatmul.mubr.f32.gmra.mxu0 %v5331
      %v5676 = vpop.f32.mrf.mxu0
      %v5677 = vadd.f32 0.0, %v5676
      %v5678 = vpop.f32.mrf.mxu0
      %5679 = vmatprep.mubr.f32.mxu0 %v5336
      %5680 = vmatmul.mubr.f32.gmra.mxu0 %v5335
      %v5681 = vpop.f32.mrf.mxu0
      %v5682 = vadd.f32 0.0, %v5681
      %v5683 = vpop.f32.mrf.mxu0
      %5684 = vmatprep.mubr.f32.mxu0 %v5340
      %5685 = vmatmul.mubr.f32.gmra.mxu0 %v5339
      %v5686 = vpop.f32.mrf.mxu0
      %v5687 = vadd.f32 0.0, %v5686
      %v5688 = vpop.f32.mrf.mxu0
      %5689 = vmatprep.mubr.f32.mxu0 %v5344
      %5690 = vmatmul.mubr.f32.gmra.mxu0 %v5343
      %v5691 = vpop.f32.mrf.mxu0
      %v5692 = vadd.f32 0.0, %v5691
      %v5693 = vpop.f32.mrf.mxu0
      %5694 = vmatprep.mubr.f32.mxu0 %v5348
      %5695 = vmatmul.mubr.f32.gmra.mxu0 %v5347
      %v5696 = vpop.f32.mrf.mxu0
      %v5697 = vadd.f32 0.0, %v5696
      %v5698 = vpop.f32.mrf.mxu0
      %5699 = vmatprep.mubr.f32.mxu0 %v5352
      %5700 = vmatmul.mubr.f32.gmra.mxu0 %v5351
      %v5701 = vpop.f32.mrf.mxu0
      %v5702 = vadd.f32 0.0, %v5701
      %v5703 = vpop.f32.mrf.mxu0
      %5704 = vmatprep.mubr.f32.mxu0 %v5356
      %5705 = vmatmul.mubr.f32.gmra.mxu0 %v5355
      %v5706 = vpop.f32.mrf.mxu0
      %v5707 = vadd.f32 0.0, %v5706
      %v5708 = vpop.f32.mrf.mxu0
      %5709 = vmatprep.mubr.f32.mxu0 %v5360
      %5710 = vmatmul.mubr.f32.gmra.mxu0 %v5359
      %v5711 = vpop.f32.mrf.mxu0
      %v5712 = vadd.f32 0.0, %v5711
      %v5713 = vpop.f32.mrf.mxu0
      %5714 = vmatprep.mubr.f32.mxu0 %v5364
      %5715 = vmatmul.mubr.f32.gmra.mxu0 %v5363
      %v5716 = vpop.f32.mrf.mxu0
      %v5717 = vadd.f32 0.0, %v5716
      %v5718 = vpop.f32.mrf.mxu0
      %5719 = vmatprep.mubr.f32.mxu0 %v5368
      %5720 = vmatmul.mubr.f32.gmra.mxu0 %v5367
      %v5721 = vpop.f32.mrf.mxu0
      %v5722 = vadd.f32 0.0, %v5721
      %v5723 = vpop.f32.mrf.mxu0
      %5724 = vmatprep.mubr.f32.mxu0 %v5372
      %5725 = vmatmul.mubr.f32.gmra.mxu0 %v5371
      %v5726 = vpop.f32.mrf.mxu0
      %v5727 = vadd.f32 0.0, %v5726
      %v5728 = vpop.f32.mrf.mxu0
      %5729 = vmatprep.mubr.f32.mxu0 %v5376
      %5730 = vmatmul.mubr.f32.gmra.mxu0 %v5375
      %v5731 = vpop.f32.mrf.mxu0
      %v5732 = vadd.f32 0.0, %v5731
      %v5733 = vpop.f32.mrf.mxu0
      %5734 = vmatprep.mubr.f32.mxu0 %v5380
      %5735 = vmatmul.mubr.f32.gmra.mxu0 %v5379
      %v5736 = vpop.f32.mrf.mxu0
      %v5737 = vadd.f32 0.0, %v5736
      %v5738 = vpop.f32.mrf.mxu0
      %5739 = vmatprep.mubr.f32.mxu0 %v5384
      %5740 = vmatmul.mubr.f32.gmra.mxu0 %v5383
      %v5741 = vpop.f32.mrf.mxu0
      %v5742 = vadd.f32 0.0, %v5741
      %v5743 = vpop.f32.mrf.mxu0
      %5744 = vmatprep.mubr.f32.mxu0 %v5388
      %5745 = vmatmul.mubr.f32.gmra.mxu0 %v5387
      %v5746 = vpop.f32.mrf.mxu0
      %v5747 = vadd.f32 0.0, %v5746
      %v5748 = vpop.f32.mrf.mxu0
      %5749 = vmatprep.mubr.f32.mxu0 %v5392
      %5750 = vmatmul.mubr.f32.gmra.mxu0 %v5391
      %v5751 = vpop.f32.mrf.mxu0
      %v5752 = vadd.f32 0.0, %v5751
      %v5753 = vpop.f32.mrf.mxu0
      %5754 = vmatprep.mubr.f32.mxu0 %v5396
      %5755 = vmatmul.mubr.f32.gmra.mxu0 %v5395
      %v5756 = vpop.f32.mrf.mxu0
      %v5757 = vadd.f32 0.0, %v5756
      %v5758 = vpop.f32.mrf.mxu0
      %5759 = vmatprep.mubr.f32.mxu0 %v5400
      %5760 = vmatmul.mubr.f32.gmra.mxu0 %v5399
      %v5761 = vpop.f32.mrf.mxu0
      %v5762 = vadd.f32 0.0, %v5761
      %v5763 = vpop.f32.mrf.mxu0
      %5764 = vmatprep.mubr.f32.mxu0 %v5404
      %5765 = vmatmul.mubr.f32.gmra.mxu0 %v5403
      %v5766 = vpop.f32.mrf.mxu0
      %v5767 = vadd.f32 0.0, %v5766
      %v5768 = vpop.f32.mrf.mxu0
      %5769 = vmatprep.mubr.f32.mxu0 %v5408
      %5770 = vmatmul.mubr.f32.gmra.mxu0 %v5407
      %v5771 = vpop.f32.mrf.mxu0
      %v5772 = vadd.f32 0.0, %v5771
      %v5773 = vpop.f32.mrf.mxu0
      %5774 = vmatprep.mubr.f32.mxu0 %v5412
      %5775 = vmatmul.mubr.f32.gmra.mxu0 %v5411
      %v5776 = vpop.f32.mrf.mxu0
      %v5777 = vadd.f32 0.0, %v5776
      %v5778 = vpop.f32.mrf.mxu0
      %5779 = vmatprep.mubr.f32.mxu0 %v5416
      %5780 = vmatmul.mubr.f32.gmra.mxu0 %v5415
      %v5781 = vpop.f32.mrf.mxu0
      %v5782 = vadd.f32 0.0, %v5781
      %v5783 = vpop.f32.mrf.mxu0
      %5784 = vmatprep.mubr.f32.mxu0 %v5420
      %5785 = vmatmul.mubr.f32.gmra.mxu0 %v5419
      %v5786 = vpop.f32.mrf.mxu0
      %v5787 = vadd.f32 0.0, %v5786
      %v5788 = vpop.f32.mrf.mxu0
      %5789 = vmatprep.mubr.f32.mxu0 %v5424
      %5790 = vmatmul.mubr.f32.gmra.mxu0 %v5423
      %v5791 = vpop.f32.mrf.mxu0
      %v5792 = vadd.f32 0.0, %v5791
      %v5793 = vpop.f32.mrf.mxu0
      %5794 = vmatprep.mubr.f32.mxu0 %v5428
      %5795 = vmatmul.mubr.f32.gmra.mxu0 %v5427
      %v5796 = vpop.f32.mrf.mxu0
      %v5797 = vadd.f32 0.0, %v5796
      %v5798 = vpop.f32.mrf.mxu0
      %5799 = vmatprep.mubr.f32.mxu0 %v5432
      %5800 = vmatmul.mubr.f32.gmra.mxu0 %v5431
      %v5801 = vpop.f32.mrf.mxu0
      %v5802 = vadd.f32 0.0, %v5801
      %v5803 = vpop.f32.mrf.mxu0
      %5804 = vmatprep.mubr.f32.mxu0 %v5436
      %5805 = vmatmul.mubr.f32.gmra.mxu0 %v5435
      %v5806 = vpop.f32.mrf.mxu0
      %v5807 = vadd.f32 0.0, %v5806
      %v5808 = vpop.f32.mrf.mxu0
      %5809 = vmatprep.mubr.f32.mxu0 %v5440
      %5810 = vmatmul.mubr.f32.gmra.mxu0 %v5439
      %v5811 = vpop.f32.mrf.mxu0
      %v5812 = vadd.f32 0.0, %v5811
      %v5813 = vpop.f32.mrf.mxu0
      %5814 = vmatprep.mubr.f32.mxu0 %v5444
      %5815 = vmatmul.mubr.f32.gmra.mxu0 %v5443
      %v5816 = vpop.f32.mrf.mxu0
      %v5817 = vadd.f32 0.0, %v5816
      %v5818 = vpop.f32.mrf.mxu0
      %5819 = vmatprep.mubr.f32.mxu0 %v5448
      %5820 = vmatmul.mubr.f32.gmra.mxu0 %v5447
      %v5821 = vpop.f32.mrf.mxu0
      %v5822 = vadd.f32 0.0, %v5821
      %v5823 = vpop.f32.mrf.mxu0
      %5824 = vmatprep.mubr.f32.mxu0 %v5452
      %5825 = vmatmul.mubr.f32.gmra.mxu0 %v5451
      %v5826 = vpop.f32.mrf.mxu0
      %v5827 = vadd.f32 0.0, %v5826
      %v5828 = vpop.f32.mrf.mxu0
      %5829 = vmatprep.mubr.f32.mxu0 %v5456
      %5830 = vmatmul.mubr.f32.gmra.mxu0 %v5455
      %v5831 = vpop.f32.mrf.mxu0
      %v5832 = vadd.f32 0.0, %v5831
      %v5833 = vpop.f32.mrf.mxu0
      %5834 = vmatprep.mubr.f32.mxu0 %v5460
      %5835 = vmatmul.mubr.f32.gmra.mxu0 %v5459
      %v5836 = vpop.f32.mrf.mxu0
      %v5837 = vadd.f32 0.0, %v5836
      %v5838 = vpop.f32.mrf.mxu0
      %5839 = vmatprep.mubr.f32.mxu0 %v5464
      %5840 = vmatmul.mubr.f32.gmra.mxu0 %v5463
      %v5841 = vpop.f32.mrf.mxu0
      %v5842 = vadd.f32 0.0, %v5841
      %v5843 = vpop.f32.mrf.mxu0
      %5844 = vmatprep.mubr.f32.mxu0 %v5468
      %5845 = vmatmul.mubr.f32.gmra.mxu0 %v5467
      %v5846 = vpop.f32.mrf.mxu0
      %v5847 = vadd.f32 0.0, %v5846
      %v5848 = vpop.f32.mrf.mxu0
      %5849 = vmatprep.mubr.f32.mxu0 %v5472
      %5850 = vmatmul.mubr.f32.gmra.mxu0 %v5471
      %v5851 = vpop.f32.mrf.mxu0
      %v5852 = vadd.f32 0.0, %v5851
      %v5853 = vpop.f32.mrf.mxu0
      %5854 = vmatprep.mubr.f32.mxu0 %v5476
      %5855 = vmatmul.mubr.f32.gmra.mxu0 %v5475
      %v5856 = vpop.f32.mrf.mxu0
      %v5857 = vadd.f32 0.0, %v5856
      %v5858 = vpop.f32.mrf.mxu0
      %5859 = vmatprep.mubr.f32.mxu0 %v5480
      %5860 = vmatmul.mubr.f32.gmra.mxu0 %v5479
      %v5861 = vpop.f32.mrf.mxu0
      %v5862 = vadd.f32 0.0, %v5861
      %v5863 = vpop.f32.mrf.mxu0
      %5864 = vmatprep.mubr.f32.mxu0 %v5484
      %5865 = vmatmul.mubr.f32.gmra.mxu0 %v5483
      %v5866 = vpop.f32.mrf.mxu0
      %v5867 = vadd.f32 0.0, %v5866
      %v5868 = vpop.f32.mrf.mxu0
      %5869 = vmatprep.mubr.f32.mxu0 %v5488
      %5870 = vmatmul.mubr.f32.gmra.mxu0 %v5487
      %v5871 = vpop.f32.mrf.mxu0
      %v5872 = vadd.f32 0.0, %v5871
      %v5873 = vpop.f32.mrf.mxu0
      %5874 = vmatprep.mubr.f32.mxu0 %v5492
      %5875 = vmatmul.mubr.f32.gmra.mxu0 %v5491
      %v5876 = vpop.f32.mrf.mxu0
      %v5877 = vadd.f32 0.0, %v5876
      %v5878 = vpop.f32.mrf.mxu0
      %5879 = vdwg.mxu0
      %5880 = vmatprep.subr.mxu0 0.0
      %5881 = vmatpush1.msra.mxu0 %v5222
      %5882 = vmatprep.subr.mxu0 0.0
      %5883 = vmatpush1.msra.mxu0 %v5221
      %5884 = vmatprep.subr.mxu0 0.0
      %5885 = vmatpush1.msra.mxu0 %v5220
      %5886 = vmatprep.subr.mxu0 0.0
      %5887 = vmatpush1.msra.mxu0 %v5219
      %5888 = vmatprep.subr.mxu0 0.0
      %5889 = vmatpush1.msra.mxu0 %v5218
      %5890 = vmatprep.subr.mxu0 0.0
      %5891 = vmatpush1.msra.mxu0 %v5217
      %5892 = vmatprep.subr.mxu0 0.0
      %5893 = vmatpush1.msra.mxu0 %v5216
      %5894 = vmatprep.subr.mxu0 0.0
      %5895 = vmatpush1.msra.mxu0 %v5215
      %5896 = vmatprep.subr.mxu0 0.0
      %5897 = vmatpush1.msra.mxu0 %v5214
      %5898 = vmatprep.subr.mxu0 0.0
      %5899 = vmatpush1.msra.mxu0 %v5213
      %5900 = vmatprep.subr.mxu0 0.0
      %5901 = vmatpush1.msra.mxu0 %v5212
      %5902 = vmatprep.subr.mxu0 0.0
      %5903 = vmatpush1.msra.mxu0 %v5211
      %5904 = vmatprep.subr.mxu0 0.0
      %5905 = vmatpush1.msra.mxu0 %v5210
      %5906 = vmatprep.subr.mxu0 0.0
      %5907 = vmatpush1.msra.mxu0 %v5209
      %5908 = vmatprep.subr.mxu0 0.0
      %5909 = vmatpush1.msra.mxu0 %v5208
      %5910 = vmatprep.subr.mxu0 0.0
      %5911 = vmatpush1.msra.mxu0 %v5207
      %5912 = vmatprep.subr.mxu0 0.0
      %5913 = vmatpush2.msra.mxu0 %v5238
      %5914 = vmatprep.subr.mxu0 0.0
      %5915 = vmatpush2.msra.mxu0 %v5237
      %5916 = vmatprep.subr.mxu0 0.0
      %5917 = vmatpush2.msra.mxu0 %v5236
      %5918 = vmatprep.subr.mxu0 0.0
      %5919 = vmatpush2.msra.mxu0 %v5235
      %5920 = vmatprep.subr.mxu0 0.0
      %5921 = vmatpush2.msra.mxu0 %v5234
      %5922 = vmatprep.subr.mxu0 0.0
      %5923 = vmatpush2.msra.mxu0 %v5233
      %5924 = vmatprep.subr.mxu0 0.0
      %5925 = vmatpush2.msra.mxu0 %v5232
      %5926 = vmatprep.subr.mxu0 0.0
      %5927 = vmatpush2.msra.mxu0 %v5231
      %5928 = vmatprep.subr.mxu0 0.0
      %5929 = vmatpush2.msra.mxu0 %v5230
      %5930 = vmatprep.subr.mxu0 0.0
      %5931 = vmatpush2.msra.mxu0 %v5229
      %5932 = vmatprep.subr.mxu0 0.0
      %5933 = vmatpush2.msra.mxu0 %v5228
      %5934 = vmatprep.subr.mxu0 0.0
      %5935 = vmatpush2.msra.mxu0 %v5227
      %5936 = vmatprep.subr.mxu0 0.0
      %5937 = vmatpush2.msra.mxu0 %v5226
      %5938 = vmatprep.subr.mxu0 0.0
      %5939 = vmatpush2.msra.mxu0 %v5225
      %5940 = vmatprep.subr.mxu0 0.0
      %5941 = vmatpush2.msra.mxu0 %v5224
      %5942 = vmatprep.subr.mxu0 0.0
      %5943 = vmatpush2.msra.mxu0 %v5223
      %5944 = vmatprep.mubr.f32.mxu0 %v5242
      %5945 = vmatmul.mubr.f32.gmra.mxu0 %v5241
      %v5946 = vpop.f32.mrf.mxu0
      %v5947 = vadd.f32 %v5562, %v5946
      %v5948 = vpop.f32.mrf.mxu0
      %5949 = vmatprep.mubr.f32.mxu0 %v5246
      %5950 = vmatmul.mubr.f32.gmra.mxu0 %v5245
      %v5951 = vpop.f32.mrf.mxu0
      %v5952 = vadd.f32 %v5567, %v5951
      %v5953 = vpop.f32.mrf.mxu0
      %5954 = vmatprep.mubr.f32.mxu0 %v5250
      %5955 = vmatmul.mubr.f32.gmra.mxu0 %v5249
      %v5956 = vpop.f32.mrf.mxu0
      %v5957 = vadd.f32 %v5572, %v5956
      %v5958 = vpop.f32.mrf.mxu0
      %5959 = vmatprep.mubr.f32.mxu0 %v5254
      %5960 = vmatmul.mubr.f32.gmra.mxu0 %v5253
      %v5961 = vpop.f32.mrf.mxu0
      %v5962 = vadd.f32 %v5577, %v5961
      %v5963 = vpop.f32.mrf.mxu0
      %5964 = vmatprep.mubr.f32.mxu0 %v5258
      %5965 = vmatmul.mubr.f32.gmra.mxu0 %v5257
      %v5966 = vpop.f32.mrf.mxu0
      %v5967 = vadd.f32 %v5582, %v5966
      %v5968 = vpop.f32.mrf.mxu0
      %5969 = vmatprep.mubr.f32.mxu0 %v5262
      %5970 = vmatmul.mubr.f32.gmra.mxu0 %v5261
      %v5971 = vpop.f32.mrf.mxu0
      %v5972 = vadd.f32 %v5587, %v5971
      %v5973 = vpop.f32.mrf.mxu0
      %5974 = vmatprep.mubr.f32.mxu0 %v5266
      %5975 = vmatmul.mubr.f32.gmra.mxu0 %v5265
      %v5976 = vpop.f32.mrf.mxu0
      %v5977 = vadd.f32 %v5592, %v5976
      %v5978 = vpop.f32.mrf.mxu0
      %5979 = vmatprep.mubr.f32.mxu0 %v5270
      %5980 = vmatmul.mubr.f32.gmra.mxu0 %v5269
      %v5981 = vpop.f32.mrf.mxu0
      %v5982 = vadd.f32 %v5597, %v5981
      %v5983 = vpop.f32.mrf.mxu0
      %5984 = vmatprep.mubr.f32.mxu0 %v5274
      %5985 = vmatmul.mubr.f32.gmra.mxu0 %v5273
      %v5986 = vpop.f32.mrf.mxu0
      %v5987 = vadd.f32 %v5602, %v5986
      %v5988 = vpop.f32.mrf.mxu0
      %5989 = vmatprep.mubr.f32.mxu0 %v5278
      %5990 = vmatmul.mubr.f32.gmra.mxu0 %v5277
      %v5991 = vpop.f32.mrf.mxu0
      %v5992 = vadd.f32 %v5607, %v5991
      %v5993 = vpop.f32.mrf.mxu0
      %5994 = vmatprep.mubr.f32.mxu0 %v5282
      %5995 = vmatmul.mubr.f32.gmra.mxu0 %v5281
      %v5996 = vpop.f32.mrf.mxu0
      %v5997 = vadd.f32 %v5612, %v5996
      %v5998 = vpop.f32.mrf.mxu0
      %5999 = vmatprep.mubr.f32.mxu0 %v5286
      %6000 = vmatmul.mubr.f32.gmra.mxu0 %v5285
      %v6001 = vpop.f32.mrf.mxu0
      %v6002 = vadd.f32 %v5617, %v6001
      %v6003 = vpop.f32.mrf.mxu0
      %6004 = vmatprep.mubr.f32.mxu0 %v5290
      %6005 = vmatmul.mubr.f32.gmra.mxu0 %v5289
      %v6006 = vpop.f32.mrf.mxu0
      %v6007 = vadd.f32 %v5622, %v6006
      %v6008 = vpop.f32.mrf.mxu0
      %6009 = vmatprep.mubr.f32.mxu0 %v5294
      %6010 = vmatmul.mubr.f32.gmra.mxu0 %v5293
      %v6011 = vpop.f32.mrf.mxu0
      %v6012 = vadd.f32 %v5627, %v6011
      %v6013 = vpop.f32.mrf.mxu0
      %6014 = vmatprep.mubr.f32.mxu0 %v5298
      %6015 = vmatmul.mubr.f32.gmra.mxu0 %v5297
      %v6016 = vpop.f32.mrf.mxu0
      %v6017 = vadd.f32 %v5632, %v6016
      %v6018 = vpop.f32.mrf.mxu0
      %6019 = vmatprep.mubr.f32.mxu0 %v5302
      %6020 = vmatmul.mubr.f32.gmra.mxu0 %v5301
      %v6021 = vpop.f32.mrf.mxu0
      %v6022 = vadd.f32 %v5637, %v6021
      %v6023 = vpop.f32.mrf.mxu0
      %6024 = vmatprep.mubr.f32.mxu0 %v5306
      %6025 = vmatmul.mubr.f32.gmra.mxu0 %v5305
      %v6026 = vpop.f32.mrf.mxu0
      %v6027 = vadd.f32 %v5642, %v6026
      %v6028 = vpop.f32.mrf.mxu0
      %6029 = vmatprep.mubr.f32.mxu0 %v5310
      %6030 = vmatmul.mubr.f32.gmra.mxu0 %v5309
      %v6031 = vpop.f32.mrf.mxu0
      %v6032 = vadd.f32 %v5647, %v6031
      %v6033 = vpop.f32.mrf.mxu0
      %6034 = vmatprep.mubr.f32.mxu0 %v5314
      %6035 = vmatmul.mubr.f32.gmra.mxu0 %v5313
      %v6036 = vpop.f32.mrf.mxu0
      %v6037 = vadd.f32 %v5652, %v6036
      %v6038 = vpop.f32.mrf.mxu0
      %6039 = vmatprep.mubr.f32.mxu0 %v5318
      %6040 = vmatmul.mubr.f32.gmra.mxu0 %v5317
      %v6041 = vpop.f32.mrf.mxu0
      %v6042 = vadd.f32 %v5657, %v6041
      %v6043 = vpop.f32.mrf.mxu0
      %6044 = vmatprep.mubr.f32.mxu0 %v5322
      %6045 = vmatmul.mubr.f32.gmra.mxu0 %v5321
      %v6046 = vpop.f32.mrf.mxu0
      %v6047 = vadd.f32 %v5662, %v6046
      %v6048 = vpop.f32.mrf.mxu0
      %6049 = vmatprep.mubr.f32.mxu0 %v5326
      %6050 = vmatmul.mubr.f32.gmra.mxu0 %v5325
      %v6051 = vpop.f32.mrf.mxu0
      %v6052 = vadd.f32 %v5667, %v6051
      %v6053 = vpop.f32.mrf.mxu0
      %6054 = vmatprep.mubr.f32.mxu0 %v5330
      %6055 = vmatmul.mubr.f32.gmra.mxu0 %v5329
      %v6056 = vpop.f32.mrf.mxu0
      %v6057 = vadd.f32 %v5672, %v6056
      %v6058 = vpop.f32.mrf.mxu0
      %6059 = vmatprep.mubr.f32.mxu0 %v5334
      %6060 = vmatmul.mubr.f32.gmra.mxu0 %v5333
      %v6061 = vpop.f32.mrf.mxu0
      %v6062 = vadd.f32 %v5677, %v6061
      %v6063 = vpop.f32.mrf.mxu0
      %6064 = vmatprep.mubr.f32.mxu0 %v5338
      %6065 = vmatmul.mubr.f32.gmra.mxu0 %v5337
      %v6066 = vpop.f32.mrf.mxu0
      %v6067 = vadd.f32 %v5682, %v6066
      %v6068 = vpop.f32.mrf.mxu0
      %6069 = vmatprep.mubr.f32.mxu0 %v5342
      %6070 = vmatmul.mubr.f32.gmra.mxu0 %v5341
      %v6071 = vpop.f32.mrf.mxu0
      %v6072 = vadd.f32 %v5687, %v6071
      %v6073 = vpop.f32.mrf.mxu0
      %6074 = vmatprep.mubr.f32.mxu0 %v5346
      %6075 = vmatmul.mubr.f32.gmra.mxu0 %v5345
      %v6076 = vpop.f32.mrf.mxu0
      %v6077 = vadd.f32 %v5692, %v6076
      %v6078 = vpop.f32.mrf.mxu0
      %6079 = vmatprep.mubr.f32.mxu0 %v5350
      %6080 = vmatmul.mubr.f32.gmra.mxu0 %v5349
      %v6081 = vpop.f32.mrf.mxu0
      %v6082 = vadd.f32 %v5697, %v6081
      %v6083 = vpop.f32.mrf.mxu0
      %6084 = vmatprep.mubr.f32.mxu0 %v5354
      %6085 = vmatmul.mubr.f32.gmra.mxu0 %v5353
      %v6086 = vpop.f32.mrf.mxu0
      %v6087 = vadd.f32 %v5702, %v6086
      %v6088 = vpop.f32.mrf.mxu0
      %6089 = vmatprep.mubr.f32.mxu0 %v5358
      %6090 = vmatmul.mubr.f32.gmra.mxu0 %v5357
      %v6091 = vpop.f32.mrf.mxu0
      %v6092 = vadd.f32 %v5707, %v6091
      %v6093 = vpop.f32.mrf.mxu0
      %6094 = vmatprep.mubr.f32.mxu0 %v5362
      %6095 = vmatmul.mubr.f32.gmra.mxu0 %v5361
      %v6096 = vpop.f32.mrf.mxu0
      %v6097 = vadd.f32 %v5712, %v6096
      %v6098 = vpop.f32.mrf.mxu0
      %6099 = vmatprep.mubr.f32.mxu0 %v5366
      %6100 = vmatmul.mubr.f32.gmra.mxu0 %v5365
      %v6101 = vpop.f32.mrf.mxu0
      %v6102 = vadd.f32 %v5717, %v6101
      %v6103 = vpop.f32.mrf.mxu0
      %6104 = vmatprep.mubr.f32.mxu0 %v5370
      %6105 = vmatmul.mubr.f32.gmra.mxu0 %v5369
      %v6106 = vpop.f32.mrf.mxu0
      %v6107 = vadd.f32 %v5722, %v6106
      %v6108 = vpop.f32.mrf.mxu0
      %6109 = vmatprep.mubr.f32.mxu0 %v5374
      %6110 = vmatmul.mubr.f32.gmra.mxu0 %v5373
      %v6111 = vpop.f32.mrf.mxu0
      %v6112 = vadd.f32 %v5727, %v6111
      %v6113 = vpop.f32.mrf.mxu0
      %6114 = vmatprep.mubr.f32.mxu0 %v5378
      %6115 = vmatmul.mubr.f32.gmra.mxu0 %v5377
      %v6116 = vpop.f32.mrf.mxu0
      %v6117 = vadd.f32 %v5732, %v6116
      %v6118 = vpop.f32.mrf.mxu0
      %6119 = vmatprep.mubr.f32.mxu0 %v5382
      %6120 = vmatmul.mubr.f32.gmra.mxu0 %v5381
      %v6121 = vpop.f32.mrf.mxu0
      %v6122 = vadd.f32 %v5737, %v6121
      %v6123 = vpop.f32.mrf.mxu0
      %6124 = vmatprep.mubr.f32.mxu0 %v5386
      %6125 = vmatmul.mubr.f32.gmra.mxu0 %v5385
      %v6126 = vpop.f32.mrf.mxu0
      %v6127 = vadd.f32 %v5742, %v6126
      %v6128 = vpop.f32.mrf.mxu0
      %6129 = vmatprep.mubr.f32.mxu0 %v5390
      %6130 = vmatmul.mubr.f32.gmra.mxu0 %v5389
      %v6131 = vpop.f32.mrf.mxu0
      %v6132 = vadd.f32 %v5747, %v6131
      %v6133 = vpop.f32.mrf.mxu0
      %6134 = vmatprep.mubr.f32.mxu0 %v5394
      %6135 = vmatmul.mubr.f32.gmra.mxu0 %v5393
      %v6136 = vpop.f32.mrf.mxu0
      %v6137 = vadd.f32 %v5752, %v6136
      %v6138 = vpop.f32.mrf.mxu0
      %6139 = vmatprep.mubr.f32.mxu0 %v5398
      %6140 = vmatmul.mubr.f32.gmra.mxu0 %v5397
      %v6141 = vpop.f32.mrf.mxu0
      %v6142 = vadd.f32 %v5757, %v6141
      %v6143 = vpop.f32.mrf.mxu0
      %6144 = vmatprep.mubr.f32.mxu0 %v5402
      %6145 = vmatmul.mubr.f32.gmra.mxu0 %v5401
      %v6146 = vpop.f32.mrf.mxu0
      %v6147 = vadd.f32 %v5762, %v6146
      %v6148 = vpop.f32.mrf.mxu0
      %6149 = vmatprep.mubr.f32.mxu0 %v5406
      %6150 = vmatmul.mubr.f32.gmra.mxu0 %v5405
      %v6151 = vpop.f32.mrf.mxu0
      %v6152 = vadd.f32 %v5767, %v6151
      %v6153 = vpop.f32.mrf.mxu0
      %6154 = vmatprep.mubr.f32.mxu0 %v5410
      %6155 = vmatmul.mubr.f32.gmra.mxu0 %v5409
      %v6156 = vpop.f32.mrf.mxu0
      %v6157 = vadd.f32 %v5772, %v6156
      %v6158 = vpop.f32.mrf.mxu0
      %6159 = vmatprep.mubr.f32.mxu0 %v5414
      %6160 = vmatmul.mubr.f32.gmra.mxu0 %v5413
      %v6161 = vpop.f32.mrf.mxu0
      %v6162 = vadd.f32 %v5777, %v6161
      %v6163 = vpop.f32.mrf.mxu0
      %6164 = vmatprep.mubr.f32.mxu0 %v5418
      %6165 = vmatmul.mubr.f32.gmra.mxu0 %v5417
      %v6166 = vpop.f32.mrf.mxu0
      %v6167 = vadd.f32 %v5782, %v6166
      %v6168 = vpop.f32.mrf.mxu0
      %6169 = vmatprep.mubr.f32.mxu0 %v5422
      %6170 = vmatmul.mubr.f32.gmra.mxu0 %v5421
      %v6171 = vpop.f32.mrf.mxu0
      %v6172 = vadd.f32 %v5787, %v6171
      %v6173 = vpop.f32.mrf.mxu0
      %6174 = vmatprep.mubr.f32.mxu0 %v5426
      %6175 = vmatmul.mubr.f32.gmra.mxu0 %v5425
      %v6176 = vpop.f32.mrf.mxu0
      %v6177 = vadd.f32 %v5792, %v6176
      %v6178 = vpop.f32.mrf.mxu0
      %6179 = vmatprep.mubr.f32.mxu0 %v5430
      %6180 = vmatmul.mubr.f32.gmra.mxu0 %v5429
      %v6181 = vpop.f32.mrf.mxu0
      %v6182 = vadd.f32 %v5797, %v6181
      %v6183 = vpop.f32.mrf.mxu0
      %6184 = vmatprep.mubr.f32.mxu0 %v5434
      %6185 = vmatmul.mubr.f32.gmra.mxu0 %v5433
      %v6186 = vpop.f32.mrf.mxu0
      %v6187 = vadd.f32 %v5802, %v6186
      %v6188 = vpop.f32.mrf.mxu0
      %6189 = vmatprep.mubr.f32.mxu0 %v5438
      %6190 = vmatmul.mubr.f32.gmra.mxu0 %v5437
      %v6191 = vpop.f32.mrf.mxu0
      %v6192 = vadd.f32 %v5807, %v6191
      %v6193 = vpop.f32.mrf.mxu0
      %6194 = vmatprep.mubr.f32.mxu0 %v5442
      %6195 = vmatmul.mubr.f32.gmra.mxu0 %v5441
      %v6196 = vpop.f32.mrf.mxu0
      %v6197 = vadd.f32 %v5812, %v6196
      %v6198 = vpop.f32.mrf.mxu0
      %6199 = vmatprep.mubr.f32.mxu0 %v5446
      %6200 = vmatmul.mubr.f32.gmra.mxu0 %v5445
      %v6201 = vpop.f32.mrf.mxu0
      %v6202 = vadd.f32 %v5817, %v6201
      %v6203 = vpop.f32.mrf.mxu0
      %6204 = vmatprep.mubr.f32.mxu0 %v5450
      %6205 = vmatmul.mubr.f32.gmra.mxu0 %v5449
      %v6206 = vpop.f32.mrf.mxu0
      %v6207 = vadd.f32 %v5822, %v6206
      %v6208 = vpop.f32.mrf.mxu0
      %6209 = vmatprep.mubr.f32.mxu0 %v5454
      %6210 = vmatmul.mubr.f32.gmra.mxu0 %v5453
      %v6211 = vpop.f32.mrf.mxu0
      %v6212 = vadd.f32 %v5827, %v6211
      %v6213 = vpop.f32.mrf.mxu0
      %6214 = vmatprep.mubr.f32.mxu0 %v5458
      %6215 = vmatmul.mubr.f32.gmra.mxu0 %v5457
      %v6216 = vpop.f32.mrf.mxu0
      %v6217 = vadd.f32 %v5832, %v6216
      %v6218 = vpop.f32.mrf.mxu0
      %6219 = vmatprep.mubr.f32.mxu0 %v5462
      %6220 = vmatmul.mubr.f32.gmra.mxu0 %v5461
      %v6221 = vpop.f32.mrf.mxu0
      %v6222 = vadd.f32 %v5837, %v6221
      %v6223 = vpop.f32.mrf.mxu0
      %6224 = vmatprep.mubr.f32.mxu0 %v5466
      %6225 = vmatmul.mubr.f32.gmra.mxu0 %v5465
      %v6226 = vpop.f32.mrf.mxu0
      %v6227 = vadd.f32 %v5842, %v6226
      %v6228 = vpop.f32.mrf.mxu0
      %6229 = vmatprep.mubr.f32.mxu0 %v5470
      %6230 = vmatmul.mubr.f32.gmra.mxu0 %v5469
      %v6231 = vpop.f32.mrf.mxu0
      %v6232 = vadd.f32 %v5847, %v6231
      %v6233 = vpop.f32.mrf.mxu0
      %6234 = vmatprep.mubr.f32.mxu0 %v5474
      %6235 = vmatmul.mubr.f32.gmra.mxu0 %v5473
      %v6236 = vpop.f32.mrf.mxu0
      %v6237 = vadd.f32 %v5852, %v6236
      %v6238 = vpop.f32.mrf.mxu0
      %6239 = vmatprep.mubr.f32.mxu0 %v5478
      %6240 = vmatmul.mubr.f32.gmra.mxu0 %v5477
      %v6241 = vpop.f32.mrf.mxu0
      %v6242 = vadd.f32 %v5857, %v6241
      %v6243 = vpop.f32.mrf.mxu0
      %6244 = vmatprep.mubr.f32.mxu0 %v5482
      %6245 = vmatmul.mubr.f32.gmra.mxu0 %v5481
      %v6246 = vpop.f32.mrf.mxu0
      %v6247 = vadd.f32 %v5862, %v6246
      %v6248 = vpop.f32.mrf.mxu0
      %6249 = vmatprep.mubr.f32.mxu0 %v5486
      %6250 = vmatmul.mubr.f32.gmra.mxu0 %v5485
      %v6251 = vpop.f32.mrf.mxu0
      %v6252 = vadd.f32 %v5867, %v6251
      %v6253 = vpop.f32.mrf.mxu0
      %6254 = vmatprep.mubr.f32.mxu0 %v5490
      %6255 = vmatmul.mubr.f32.gmra.mxu0 %v5489
      %v6256 = vpop.f32.mrf.mxu0
      %v6257 = vadd.f32 %v5872, %v6256
      %v6258 = vpop.f32.mrf.mxu0
      %6259 = vmatprep.mubr.f32.mxu0 %v5494
      %6260 = vmatmul.mubr.f32.gmra.mxu0 %v5493
      %v6261 = vpop.f32.mrf.mxu0
      %v6262 = vadd.f32 %v5877, %v6261
      %v6263 = vpop.f32.mrf.mxu0
      %6264 = vdwg.mxu0
      %v6265 = vld [vmem:[%s7] sm:$0xff]
      %v6266 = vld [vmem:[%s7 + $0x8] sm:$0xff]
      %v6267 = vld [vmem:[%s7 + $0x10] sm:$0xff]
      %v6268 = vld [vmem:[%s7 + $0x18] sm:$0xff]
      %v6269 = vld [vmem:[%s7 + $0x20] sm:$0xff]
      %v6270 = vld [vmem:[%s7 + $0x28] sm:$0xff]
      %v6271 = vld [vmem:[%s7 + $0x30] sm:$0xff]
      %v6272 = vld [vmem:[%s7 + $0x38] sm:$0xff]
      %v6273 = vld [vmem:[%s7 + $0x40] sm:$0xff]
      %v6274 = vld [vmem:[%s7 + $0x48] sm:$0xff]
      %v6275 = vld [vmem:[%s7 + $0x50] sm:$0xff]
      %v6276 = vld [vmem:[%s7 + $0x58] sm:$0xff]
      %v6277 = vld [vmem:[%s7 + $0x60] sm:$0xff]
      %v6278 = vld [vmem:[%s7 + $0x68] sm:$0xff]
      %v6279 = vld [vmem:[%s7 + $0x70] sm:$0xff]
      %v6280 = vld [vmem:[%s7 + $0x78] sm:$0xff]
      %v6281 = vld [vmem:[%s7 + $0x80] sm:$0xff]
      %v6282 = vld [vmem:[%s7 + $0x88] sm:$0xff]
      %v6283 = vld [vmem:[%s7 + $0x90] sm:$0xff]
      %v6284 = vld [vmem:[%s7 + $0x98] sm:$0xff]
      %v6285 = vld [vmem:[%s7 + $0xa0] sm:$0xff]
      %v6286 = vld [vmem:[%s7 + $0xa8] sm:$0xff]
      %v6287 = vld [vmem:[%s7 + $0xb0] sm:$0xff]
      %v6288 = vld [vmem:[%s7 + $0xb8] sm:$0xff]
      %v6289 = vld [vmem:[%s7 + $0xc0] sm:$0xff]
      %v6290 = vld [vmem:[%s7 + $0xc8] sm:$0xff]
      %v6291 = vld [vmem:[%s7 + $0xd0] sm:$0xff]
      %v6292 = vld [vmem:[%s7 + $0xd8] sm:$0xff]
      %v6293 = vld [vmem:[%s7 + $0xe0] sm:$0xff]
      %v6294 = vld [vmem:[%s7 + $0xe8] sm:$0xff]
      %v6295 = vld [vmem:[%s7 + $0xf0] sm:$0xff]
      %v6296 = vld [vmem:[%s7 + $0xf8] sm:$0xff]
      %v6297 = vld [vmem:[%s7 + $0x100] sm:$0xff]
      %v6298 = vld [vmem:[%s7 + $0x108] sm:$0xff]
      %v6299 = vld [vmem:[%s7 + $0x110] sm:$0xff]
      %v6300 = vld [vmem:[%s7 + $0x118] sm:$0xff]
      %v6301 = vld [vmem:[%s7 + $0x120] sm:$0xff]
      %v6302 = vld [vmem:[%s7 + $0x128] sm:$0xff]
      %v6303 = vld [vmem:[%s7 + $0x130] sm:$0xff]
      %v6304 = vld [vmem:[%s7 + $0x138] sm:$0xff]
      %v6305 = vld [vmem:[%s7 + $0x140] sm:$0xff]
      %v6306 = vld [vmem:[%s7 + $0x148] sm:$0xff]
      %v6307 = vld [vmem:[%s7 + $0x150] sm:$0xff]
      %v6308 = vld [vmem:[%s7 + $0x158] sm:$0xff]
      %v6309 = vld [vmem:[%s7 + $0x160] sm:$0xff]
      %v6310 = vld [vmem:[%s7 + $0x168] sm:$0xff]
      %v6311 = vld [vmem:[%s7 + $0x170] sm:$0xff]
      %v6312 = vld [vmem:[%s7 + $0x178] sm:$0xff]
      %v6313 = vld [vmem:[%s7 + $0x180] sm:$0xff]
      %v6314 = vld [vmem:[%s7 + $0x188] sm:$0xff]
      %v6315 = vld [vmem:[%s7 + $0x190] sm:$0xff]
      %v6316 = vld [vmem:[%s7 + $0x198] sm:$0xff]
      %v6317 = vld [vmem:[%s7 + $0x1a0] sm:$0xff]
      %v6318 = vld [vmem:[%s7 + $0x1a8] sm:$0xff]
      %v6319 = vld [vmem:[%s7 + $0x1b0] sm:$0xff]
      %v6320 = vld [vmem:[%s7 + $0x1b8] sm:$0xff]
      %v6321 = vld [vmem:[%s7 + $0x1c0] sm:$0xff]
      %v6322 = vld [vmem:[%s7 + $0x1c8] sm:$0xff]
      %v6323 = vld [vmem:[%s7 + $0x1d0] sm:$0xff]
      %v6324 = vld [vmem:[%s7 + $0x1d8] sm:$0xff]
      %v6325 = vld [vmem:[%s7 + $0x1e0] sm:$0xff]
      %v6326 = vld [vmem:[%s7 + $0x1e8] sm:$0xff]
      %v6327 = vld [vmem:[%s7 + $0x1f0] sm:$0xff]
      %v6328 = vld [vmem:[%s7 + $0x1f8] sm:$0xff]
      %v6329 = vld [vmem:[%s7 + $0x200] sm:$0xff]
      %v6330 = vld [vmem:[%s7 + $0x208] sm:$0xff]
      %v6331 = vld [vmem:[%s7 + $0x210] sm:$0xff]
      %v6332 = vld [vmem:[%s7 + $0x218] sm:$0xff]
      %v6333 = vld [vmem:[%s7 + $0x220] sm:$0xff]
      %v6334 = vld [vmem:[%s7 + $0x228] sm:$0xff]
      %v6335 = vld [vmem:[%s7 + $0x230] sm:$0xff]
      %v6336 = vld [vmem:[%s7 + $0x238] sm:$0xff]
      %v6337 = vld [vmem:[%s7 + $0x240] sm:$0xff]
      %v6338 = vld [vmem:[%s7 + $0x248] sm:$0xff]
      %v6339 = vld [vmem:[%s7 + $0x250] sm:$0xff]
      %v6340 = vld [vmem:[%s7 + $0x258] sm:$0xff]
      %v6341 = vld [vmem:[%s7 + $0x260] sm:$0xff]
      %v6342 = vld [vmem:[%s7 + $0x268] sm:$0xff]
      %v6343 = vld [vmem:[%s7 + $0x270] sm:$0xff]
      %v6344 = vld [vmem:[%s7 + $0x278] sm:$0xff]
      %v6345 = vld [vmem:[%s7 + $0x280] sm:$0xff]
      %v6346 = vld [vmem:[%s7 + $0x288] sm:$0xff]
      %v6347 = vld [vmem:[%s7 + $0x290] sm:$0xff]
      %v6348 = vld [vmem:[%s7 + $0x298] sm:$0xff]
      %v6349 = vld [vmem:[%s7 + $0x2a0] sm:$0xff]
      %v6350 = vld [vmem:[%s7 + $0x2a8] sm:$0xff]
      %v6351 = vld [vmem:[%s7 + $0x2b0] sm:$0xff]
      %v6352 = vld [vmem:[%s7 + $0x2b8] sm:$0xff]
      %v6353 = vld [vmem:[%s7 + $0x2c0] sm:$0xff]
      %v6354 = vld [vmem:[%s7 + $0x2c8] sm:$0xff]
      %v6355 = vld [vmem:[%s7 + $0x2d0] sm:$0xff]
      %v6356 = vld [vmem:[%s7 + $0x2d8] sm:$0xff]
      %v6357 = vld [vmem:[%s7 + $0x2e0] sm:$0xff]
      %v6358 = vld [vmem:[%s7 + $0x2e8] sm:$0xff]
      %v6359 = vld [vmem:[%s7 + $0x2f0] sm:$0xff]
      %v6360 = vld [vmem:[%s7 + $0x2f8] sm:$0xff]
      %v6361 = vld [vmem:[%s7 + $0x300] sm:$0xff]
      %v6362 = vld [vmem:[%s7 + $0x308] sm:$0xff]
      %v6363 = vld [vmem:[%s7 + $0x310] sm:$0xff]
      %v6364 = vld [vmem:[%s7 + $0x318] sm:$0xff]
      %v6365 = vld [vmem:[%s7 + $0x320] sm:$0xff]
      %v6366 = vld [vmem:[%s7 + $0x328] sm:$0xff]
      %v6367 = vld [vmem:[%s7 + $0x330] sm:$0xff]
      %v6368 = vld [vmem:[%s7 + $0x338] sm:$0xff]
      %v6369 = vld [vmem:[%s7 + $0x340] sm:$0xff]
      %v6370 = vld [vmem:[%s7 + $0x348] sm:$0xff]
      %v6371 = vld [vmem:[%s7 + $0x350] sm:$0xff]
      %v6372 = vld [vmem:[%s7 + $0x358] sm:$0xff]
      %v6373 = vld [vmem:[%s7 + $0x360] sm:$0xff]
      %v6374 = vld [vmem:[%s7 + $0x368] sm:$0xff]
      %v6375 = vld [vmem:[%s7 + $0x370] sm:$0xff]
      %v6376 = vld [vmem:[%s7 + $0x378] sm:$0xff]
      %v6377 = vld [vmem:[%s7 + $0x380] sm:$0xff]
      %v6378 = vld [vmem:[%s7 + $0x388] sm:$0xff]
      %v6379 = vld [vmem:[%s7 + $0x390] sm:$0xff]
      %v6380 = vld [vmem:[%s7 + $0x398] sm:$0xff]
      %v6381 = vld [vmem:[%s7 + $0x3a0] sm:$0xff]
      %v6382 = vld [vmem:[%s7 + $0x3a8] sm:$0xff]
      %v6383 = vld [vmem:[%s7 + $0x3b0] sm:$0xff]
      %v6384 = vld [vmem:[%s7 + $0x3b8] sm:$0xff]
      %v6385 = vld [vmem:[%s7 + $0x3c0] sm:$0xff]
      %v6386 = vld [vmem:[%s7 + $0x3c8] sm:$0xff]
      %v6387 = vld [vmem:[%s7 + $0x3d0] sm:$0xff]
      %v6388 = vld [vmem:[%s7 + $0x3d8] sm:$0xff]
      %v6389 = vld [vmem:[%s7 + $0x3e0] sm:$0xff]
      %v6390 = vld [vmem:[%s7 + $0x3e8] sm:$0xff]
      %v6391 = vld [vmem:[%s7 + $0x3f0] sm:$0xff]
      %v6392 = vld [vmem:[%s7 + $0x3f8] sm:$0xff]
      %v6393 = vld [vmem:[%s7 + $0x400] sm:$0xff]
      %v6394 = vld [vmem:[%s7 + $0x408] sm:$0xff]
      %v6395 = vld [vmem:[%s7 + $0x410] sm:$0xff]
      %v6396 = vld [vmem:[%s7 + $0x418] sm:$0xff]
      %v6397 = vld [vmem:[%s7 + $0x420] sm:$0xff]
      %v6398 = vld [vmem:[%s7 + $0x428] sm:$0xff]
      %v6399 = vld [vmem:[%s7 + $0x430] sm:$0xff]
      %v6400 = vld [vmem:[%s7 + $0x438] sm:$0xff]
      %v6401 = vld [vmem:[%s7 + $0x440] sm:$0xff]
      %v6402 = vld [vmem:[%s7 + $0x448] sm:$0xff]
      %v6403 = vld [vmem:[%s7 + $0x450] sm:$0xff]
      %v6404 = vld [vmem:[%s7 + $0x458] sm:$0xff]
      %v6405 = vld [vmem:[%s7 + $0x460] sm:$0xff]
      %v6406 = vld [vmem:[%s7 + $0x468] sm:$0xff]
      %v6407 = vld [vmem:[%s7 + $0x470] sm:$0xff]
      %v6408 = vld [vmem:[%s7 + $0x478] sm:$0xff]
      %v6409 = vld [vmem:[%s7 + $0x480] sm:$0xff]
      %v6410 = vld [vmem:[%s7 + $0x488] sm:$0xff]
      %v6411 = vld [vmem:[%s7 + $0x490] sm:$0xff]
      %v6412 = vld [vmem:[%s7 + $0x498] sm:$0xff]
      %v6413 = vld [vmem:[%s7 + $0x4a0] sm:$0xff]
      %v6414 = vld [vmem:[%s7 + $0x4a8] sm:$0xff]
      %v6415 = vld [vmem:[%s7 + $0x4b0] sm:$0xff]
      %v6416 = vld [vmem:[%s7 + $0x4b8] sm:$0xff]
      %v6417 = vld [vmem:[%s7 + $0x4c0] sm:$0xff]
      %v6418 = vld [vmem:[%s7 + $0x4c8] sm:$0xff]
      %v6419 = vld [vmem:[%s7 + $0x4d0] sm:$0xff]
      %v6420 = vld [vmem:[%s7 + $0x4d8] sm:$0xff]
      %v6421 = vld [vmem:[%s7 + $0x4e0] sm:$0xff]
      %v6422 = vld [vmem:[%s7 + $0x4e8] sm:$0xff]
      %v6423 = vld [vmem:[%s7 + $0x4f0] sm:$0xff]
      %v6424 = vld [vmem:[%s7 + $0x4f8] sm:$0xff]
      %v6425 = vld [vmem:[%s7 + $0x500] sm:$0xff]
      %v6426 = vld [vmem:[%s7 + $0x508] sm:$0xff]
      %v6427 = vld [vmem:[%s7 + $0x510] sm:$0xff]
      %v6428 = vld [vmem:[%s7 + $0x518] sm:$0xff]
      %v6429 = vld [vmem:[%s7 + $0x520] sm:$0xff]
      %v6430 = vld [vmem:[%s7 + $0x528] sm:$0xff]
      %v6431 = vld [vmem:[%s7 + $0x530] sm:$0xff]
      %v6432 = vld [vmem:[%s7 + $0x538] sm:$0xff]
      %v6433 = vld [vmem:[%s7 + $0x540] sm:$0xff]
      %v6434 = vld [vmem:[%s7 + $0x548] sm:$0xff]
      %v6435 = vld [vmem:[%s7 + $0x550] sm:$0xff]
      %v6436 = vld [vmem:[%s7 + $0x558] sm:$0xff]
      %v6437 = vld [vmem:[%s7 + $0x560] sm:$0xff]
      %v6438 = vld [vmem:[%s7 + $0x568] sm:$0xff]
      %v6439 = vld [vmem:[%s7 + $0x570] sm:$0xff]
      %v6440 = vld [vmem:[%s7 + $0x578] sm:$0xff]
      %v6441 = vld [vmem:[%s7 + $0x580] sm:$0xff]
      %v6442 = vld [vmem:[%s7 + $0x588] sm:$0xff]
      %v6443 = vld [vmem:[%s7 + $0x590] sm:$0xff]
      %v6444 = vld [vmem:[%s7 + $0x598] sm:$0xff]
      %v6445 = vld [vmem:[%s7 + $0x5a0] sm:$0xff]
      %v6446 = vld [vmem:[%s7 + $0x5a8] sm:$0xff]
      %v6447 = vld [vmem:[%s7 + $0x5b0] sm:$0xff]
      %v6448 = vld [vmem:[%s7 + $0x5b8] sm:$0xff]
      %v6449 = vld [vmem:[%s7 + $0x5c0] sm:$0xff]
      %v6450 = vld [vmem:[%s7 + $0x5c8] sm:$0xff]
      %v6451 = vld [vmem:[%s7 + $0x5d0] sm:$0xff]
      %v6452 = vld [vmem:[%s7 + $0x5d8] sm:$0xff]
      %v6453 = vld [vmem:[%s7 + $0x5e0] sm:$0xff]
      %v6454 = vld [vmem:[%s7 + $0x5e8] sm:$0xff]
      %v6455 = vld [vmem:[%s7 + $0x5f0] sm:$0xff]
      %v6456 = vld [vmem:[%s7 + $0x5f8] sm:$0xff]
      %v6457 = vld [vmem:[%s7 + $0x600] sm:$0xff]
      %v6458 = vld [vmem:[%s7 + $0x608] sm:$0xff]
      %v6459 = vld [vmem:[%s7 + $0x610] sm:$0xff]
      %v6460 = vld [vmem:[%s7 + $0x618] sm:$0xff]
      %v6461 = vld [vmem:[%s7 + $0x620] sm:$0xff]
      %v6462 = vld [vmem:[%s7 + $0x628] sm:$0xff]
      %v6463 = vld [vmem:[%s7 + $0x630] sm:$0xff]
      %v6464 = vld [vmem:[%s7 + $0x638] sm:$0xff]
      %v6465 = vld [vmem:[%s7 + $0x640] sm:$0xff]
      %v6466 = vld [vmem:[%s7 + $0x648] sm:$0xff]
      %v6467 = vld [vmem:[%s7 + $0x650] sm:$0xff]
      %v6468 = vld [vmem:[%s7 + $0x658] sm:$0xff]
      %v6469 = vld [vmem:[%s7 + $0x660] sm:$0xff]
      %v6470 = vld [vmem:[%s7 + $0x668] sm:$0xff]
      %v6471 = vld [vmem:[%s7 + $0x670] sm:$0xff]
      %v6472 = vld [vmem:[%s7 + $0x678] sm:$0xff]
      %v6473 = vld [vmem:[%s7 + $0x680] sm:$0xff]
      %v6474 = vld [vmem:[%s7 + $0x688] sm:$0xff]
      %v6475 = vld [vmem:[%s7 + $0x690] sm:$0xff]
      %v6476 = vld [vmem:[%s7 + $0x698] sm:$0xff]
      %v6477 = vld [vmem:[%s7 + $0x6a0] sm:$0xff]
      %v6478 = vld [vmem:[%s7 + $0x6a8] sm:$0xff]
      %v6479 = vld [vmem:[%s7 + $0x6b0] sm:$0xff]
      %v6480 = vld [vmem:[%s7 + $0x6b8] sm:$0xff]
      %v6481 = vld [vmem:[%s7 + $0x6c0] sm:$0xff]
      %v6482 = vld [vmem:[%s7 + $0x6c8] sm:$0xff]
      %v6483 = vld [vmem:[%s7 + $0x6d0] sm:$0xff]
      %v6484 = vld [vmem:[%s7 + $0x6d8] sm:$0xff]
      %v6485 = vld [vmem:[%s7 + $0x6e0] sm:$0xff]
      %v6486 = vld [vmem:[%s7 + $0x6e8] sm:$0xff]
      %v6487 = vld [vmem:[%s7 + $0x6f0] sm:$0xff]
      %v6488 = vld [vmem:[%s7 + $0x6f8] sm:$0xff]
      %v6489 = vld [vmem:[%s7 + $0x700] sm:$0xff]
      %v6490 = vld [vmem:[%s7 + $0x708] sm:$0xff]
      %v6491 = vld [vmem:[%s7 + $0x710] sm:$0xff]
      %v6492 = vld [vmem:[%s7 + $0x718] sm:$0xff]
      %v6493 = vld [vmem:[%s7 + $0x720] sm:$0xff]
      %v6494 = vld [vmem:[%s7 + $0x728] sm:$0xff]
      %v6495 = vld [vmem:[%s7 + $0x730] sm:$0xff]
      %v6496 = vld [vmem:[%s7 + $0x738] sm:$0xff]
      %v6497 = vld [vmem:[%s7 + $0x740] sm:$0xff]
      %v6498 = vld [vmem:[%s7 + $0x748] sm:$0xff]
      %v6499 = vld [vmem:[%s7 + $0x750] sm:$0xff]
      %v6500 = vld [vmem:[%s7 + $0x758] sm:$0xff]
      %v6501 = vld [vmem:[%s7 + $0x760] sm:$0xff]
      %v6502 = vld [vmem:[%s7 + $0x768] sm:$0xff]
      %v6503 = vld [vmem:[%s7 + $0x770] sm:$0xff]
      %v6504 = vld [vmem:[%s7 + $0x778] sm:$0xff]
      %v6505 = vld [vmem:[%s7 + $0x780] sm:$0xff]
      %v6506 = vld [vmem:[%s7 + $0x788] sm:$0xff]
      %v6507 = vld [vmem:[%s7 + $0x790] sm:$0xff]
      %v6508 = vld [vmem:[%s7 + $0x798] sm:$0xff]
      %v6509 = vld [vmem:[%s7 + $0x7a0] sm:$0xff]
      %v6510 = vld [vmem:[%s7 + $0x7a8] sm:$0xff]
      %v6511 = vld [vmem:[%s7 + $0x7b0] sm:$0xff]
      %v6512 = vld [vmem:[%s7 + $0x7b8] sm:$0xff]
      %v6513 = vld [vmem:[%s7 + $0x7c0] sm:$0xff]
      %v6514 = vld [vmem:[%s7 + $0x7c8] sm:$0xff]
      %v6515 = vld [vmem:[%s7 + $0x7d0] sm:$0xff]
      %v6516 = vld [vmem:[%s7 + $0x7d8] sm:$0xff]
      %v6517 = vld [vmem:[%s7 + $0x7e0] sm:$0xff]
      %v6518 = vld [vmem:[%s7 + $0x7e8] sm:$0xff]
      %v6519 = vld [vmem:[%s7 + $0x7f0] sm:$0xff]
      %v6520 = vld [vmem:[%s7 + $0x7f8] sm:$0xff]
      %6521 = vmatprep.subr.mxu0 0.0
      %6522 = vmatpush1.msra.mxu0 %v5190
      %6523 = vmatprep.subr.mxu0 0.0
      %6524 = vmatpush1.msra.mxu0 %v5189
      %6525 = vmatprep.subr.mxu0 0.0
      %6526 = vmatpush1.msra.mxu0 %v5188
      %6527 = vmatprep.subr.mxu0 0.0
      %6528 = vmatpush1.msra.mxu0 %v5187
      %6529 = vmatprep.subr.mxu0 0.0
      %6530 = vmatpush1.msra.mxu0 %v5186
      %6531 = vmatprep.subr.mxu0 0.0
      %6532 = vmatpush1.msra.mxu0 %v5185
      %6533 = vmatprep.subr.mxu0 0.0
      %6534 = vmatpush1.msra.mxu0 %v5184
      %6535 = vmatprep.subr.mxu0 0.0
      %6536 = vmatpush1.msra.mxu0 %v5183
      %6537 = vmatprep.subr.mxu0 0.0
      %6538 = vmatpush1.msra.mxu0 %v5182
      %6539 = vmatprep.subr.mxu0 0.0
      %6540 = vmatpush1.msra.mxu0 %v5181
      %6541 = vmatprep.subr.mxu0 0.0
      %6542 = vmatpush1.msra.mxu0 %v5180
      %6543 = vmatprep.subr.mxu0 0.0
      %6544 = vmatpush1.msra.mxu0 %v5179
      %6545 = vmatprep.subr.mxu0 0.0
      %6546 = vmatpush1.msra.mxu0 %v5178
      %6547 = vmatprep.subr.mxu0 0.0
      %6548 = vmatpush1.msra.mxu0 %v5177
      %6549 = vmatprep.subr.mxu0 0.0
      %6550 = vmatpush1.msra.mxu0 %v5176
      %6551 = vmatprep.subr.mxu0 0.0
      %6552 = vmatpush1.msra.mxu0 %v5175
      %6553 = vmatprep.subr.mxu0 0.0
      %6554 = vmatpush2.msra.mxu0 %v5206
      %6555 = vmatprep.subr.mxu0 0.0
      %6556 = vmatpush2.msra.mxu0 %v5205
      %6557 = vmatprep.subr.mxu0 0.0
      %6558 = vmatpush2.msra.mxu0 %v5204
      %6559 = vmatprep.subr.mxu0 0.0
      %6560 = vmatpush2.msra.mxu0 %v5203
      %6561 = vmatprep.subr.mxu0 0.0
      %6562 = vmatpush2.msra.mxu0 %v5202
      %6563 = vmatprep.subr.mxu0 0.0
      %6564 = vmatpush2.msra.mxu0 %v5201
      %6565 = vmatprep.subr.mxu0 0.0
      %6566 = vmatpush2.msra.mxu0 %v5200
      %6567 = vmatprep.subr.mxu0 0.0
      %6568 = vmatpush2.msra.mxu0 %v5199
      %6569 = vmatprep.subr.mxu0 0.0
      %6570 = vmatpush2.msra.mxu0 %v5198
      %6571 = vmatprep.subr.mxu0 0.0
      %6572 = vmatpush2.msra.mxu0 %v5197
      %6573 = vmatprep.subr.mxu0 0.0
      %6574 = vmatpush2.msra.mxu0 %v5196
      %6575 = vmatprep.subr.mxu0 0.0
      %6576 = vmatpush2.msra.mxu0 %v5195
      %6577 = vmatprep.subr.mxu0 0.0
      %6578 = vmatpush2.msra.mxu0 %v5194
      %6579 = vmatprep.subr.mxu0 0.0
      %6580 = vmatpush2.msra.mxu0 %v5193
      %6581 = vmatprep.subr.mxu0 0.0
      %6582 = vmatpush2.msra.mxu0 %v5192
      %6583 = vmatprep.subr.mxu0 0.0
      %6584 = vmatpush2.msra.mxu0 %v5191
      %6585 = vmatprep.mubr.f32.mxu0 %v6266
      %6586 = vmatmul.mubr.f32.gmra.mxu0 %v6265
      %v6587 = vpop.f32.mrf.mxu0
      %v6588 = vadd.f32 0.0, %v6587
      %v6589 = vpop.f32.mrf.mxu0
      %6590 = vmatprep.mubr.f32.mxu0 %v6270
      %6591 = vmatmul.mubr.f32.gmra.mxu0 %v6269
      %v6592 = vpop.f32.mrf.mxu0
      %v6593 = vadd.f32 0.0, %v6592
      %v6594 = vpop.f32.mrf.mxu0
      %6595 = vmatprep.mubr.f32.mxu0 %v6274
      %6596 = vmatmul.mubr.f32.gmra.mxu0 %v6273
      %v6597 = vpop.f32.mrf.mxu0
      %v6598 = vadd.f32 0.0, %v6597
      %v6599 = vpop.f32.mrf.mxu0
      %6600 = vmatprep.mubr.f32.mxu0 %v6278
      %6601 = vmatmul.mubr.f32.gmra.mxu0 %v6277
      %v6602 = vpop.f32.mrf.mxu0
      %v6603 = vadd.f32 0.0, %v6602
      %v6604 = vpop.f32.mrf.mxu0
      %6605 = vmatprep.mubr.f32.mxu0 %v6282
      %6606 = vmatmul.mubr.f32.gmra.mxu0 %v6281
      %v6607 = vpop.f32.mrf.mxu0
      %v6608 = vadd.f32 0.0, %v6607
      %v6609 = vpop.f32.mrf.mxu0
      %6610 = vmatprep.mubr.f32.mxu0 %v6286
      %6611 = vmatmul.mubr.f32.gmra.mxu0 %v6285
      %v6612 = vpop.f32.mrf.mxu0
      %v6613 = vadd.f32 0.0, %v6612
      %v6614 = vpop.f32.mrf.mxu0
      %6615 = vmatprep.mubr.f32.mxu0 %v6290
      %6616 = vmatmul.mubr.f32.gmra.mxu0 %v6289
      %v6617 = vpop.f32.mrf.mxu0
      %v6618 = vadd.f32 0.0, %v6617
      %v6619 = vpop.f32.mrf.mxu0
      %6620 = vmatprep.mubr.f32.mxu0 %v6294
      %6621 = vmatmul.mubr.f32.gmra.mxu0 %v6293
      %v6622 = vpop.f32.mrf.mxu0
      %v6623 = vadd.f32 0.0, %v6622
      %v6624 = vpop.f32.mrf.mxu0
      %6625 = vmatprep.mubr.f32.mxu0 %v6298
      %6626 = vmatmul.mubr.f32.gmra.mxu0 %v6297
      %v6627 = vpop.f32.mrf.mxu0
      %v6628 = vadd.f32 0.0, %v6627
      %v6629 = vpop.f32.mrf.mxu0
      %6630 = vmatprep.mubr.f32.mxu0 %v6302
      %6631 = vmatmul.mubr.f32.gmra.mxu0 %v6301
      %v6632 = vpop.f32.mrf.mxu0
      %v6633 = vadd.f32 0.0, %v6632
      %v6634 = vpop.f32.mrf.mxu0
      %6635 = vmatprep.mubr.f32.mxu0 %v6306
      %6636 = vmatmul.mubr.f32.gmra.mxu0 %v6305
      %v6637 = vpop.f32.mrf.mxu0
      %v6638 = vadd.f32 0.0, %v6637
      %v6639 = vpop.f32.mrf.mxu0
      %6640 = vmatprep.mubr.f32.mxu0 %v6310
      %6641 = vmatmul.mubr.f32.gmra.mxu0 %v6309
      %v6642 = vpop.f32.mrf.mxu0
      %v6643 = vadd.f32 0.0, %v6642
      %v6644 = vpop.f32.mrf.mxu0
      %6645 = vmatprep.mubr.f32.mxu0 %v6314
      %6646 = vmatmul.mubr.f32.gmra.mxu0 %v6313
      %v6647 = vpop.f32.mrf.mxu0
      %v6648 = vadd.f32 0.0, %v6647
      %v6649 = vpop.f32.mrf.mxu0
      %6650 = vmatprep.mubr.f32.mxu0 %v6318
      %6651 = vmatmul.mubr.f32.gmra.mxu0 %v6317
      %v6652 = vpop.f32.mrf.mxu0
      %v6653 = vadd.f32 0.0, %v6652
      %v6654 = vpop.f32.mrf.mxu0
      %6655 = vmatprep.mubr.f32.mxu0 %v6322
      %6656 = vmatmul.mubr.f32.gmra.mxu0 %v6321
      %v6657 = vpop.f32.mrf.mxu0
      %v6658 = vadd.f32 0.0, %v6657
      %v6659 = vpop.f32.mrf.mxu0
      %6660 = vmatprep.mubr.f32.mxu0 %v6326
      %6661 = vmatmul.mubr.f32.gmra.mxu0 %v6325
      %v6662 = vpop.f32.mrf.mxu0
      %v6663 = vadd.f32 0.0, %v6662
      %v6664 = vpop.f32.mrf.mxu0
      %6665 = vmatprep.mubr.f32.mxu0 %v6330
      %6666 = vmatmul.mubr.f32.gmra.mxu0 %v6329
      %v6667 = vpop.f32.mrf.mxu0
      %v6668 = vadd.f32 0.0, %v6667
      %v6669 = vpop.f32.mrf.mxu0
      %6670 = vmatprep.mubr.f32.mxu0 %v6334
      %6671 = vmatmul.mubr.f32.gmra.mxu0 %v6333
      %v6672 = vpop.f32.mrf.mxu0
      %v6673 = vadd.f32 0.0, %v6672
      %v6674 = vpop.f32.mrf.mxu0
      %6675 = vmatprep.mubr.f32.mxu0 %v6338
      %6676 = vmatmul.mubr.f32.gmra.mxu0 %v6337
      %v6677 = vpop.f32.mrf.mxu0
      %v6678 = vadd.f32 0.0, %v6677
      %v6679 = vpop.f32.mrf.mxu0
      %6680 = vmatprep.mubr.f32.mxu0 %v6342
      %6681 = vmatmul.mubr.f32.gmra.mxu0 %v6341
      %v6682 = vpop.f32.mrf.mxu0
      %v6683 = vadd.f32 0.0, %v6682
      %v6684 = vpop.f32.mrf.mxu0
      %6685 = vmatprep.mubr.f32.mxu0 %v6346
      %6686 = vmatmul.mubr.f32.gmra.mxu0 %v6345
      %v6687 = vpop.f32.mrf.mxu0
      %v6688 = vadd.f32 0.0, %v6687
      %v6689 = vpop.f32.mrf.mxu0
      %6690 = vmatprep.mubr.f32.mxu0 %v6350
      %6691 = vmatmul.mubr.f32.gmra.mxu0 %v6349
      %v6692 = vpop.f32.mrf.mxu0
      %v6693 = vadd.f32 0.0, %v6692
      %v6694 = vpop.f32.mrf.mxu0
      %6695 = vmatprep.mubr.f32.mxu0 %v6354
      %6696 = vmatmul.mubr.f32.gmra.mxu0 %v6353
      %v6697 = vpop.f32.mrf.mxu0
      %v6698 = vadd.f32 0.0, %v6697
      %v6699 = vpop.f32.mrf.mxu0
      %6700 = vmatprep.mubr.f32.mxu0 %v6358
      %6701 = vmatmul.mubr.f32.gmra.mxu0 %v6357
      %v6702 = vpop.f32.mrf.mxu0
      %v6703 = vadd.f32 0.0, %v6702
      %v6704 = vpop.f32.mrf.mxu0
      %6705 = vmatprep.mubr.f32.mxu0 %v6362
      %6706 = vmatmul.mubr.f32.gmra.mxu0 %v6361
      %v6707 = vpop.f32.mrf.mxu0
      %v6708 = vadd.f32 0.0, %v6707
      %v6709 = vpop.f32.mrf.mxu0
      %6710 = vmatprep.mubr.f32.mxu0 %v6366
      %6711 = vmatmul.mubr.f32.gmra.mxu0 %v6365
      %v6712 = vpop.f32.mrf.mxu0
      %v6713 = vadd.f32 0.0, %v6712
      %v6714 = vpop.f32.mrf.mxu0
      %6715 = vmatprep.mubr.f32.mxu0 %v6370
      %6716 = vmatmul.mubr.f32.gmra.mxu0 %v6369
      %v6717 = vpop.f32.mrf.mxu0
      %v6718 = vadd.f32 0.0, %v6717
      %v6719 = vpop.f32.mrf.mxu0
      %6720 = vmatprep.mubr.f32.mxu0 %v6374
      %6721 = vmatmul.mubr.f32.gmra.mxu0 %v6373
      %v6722 = vpop.f32.mrf.mxu0
      %v6723 = vadd.f32 0.0, %v6722
      %v6724 = vpop.f32.mrf.mxu0
      %6725 = vmatprep.mubr.f32.mxu0 %v6378
      %6726 = vmatmul.mubr.f32.gmra.mxu0 %v6377
      %v6727 = vpop.f32.mrf.mxu0
      %v6728 = vadd.f32 0.0, %v6727
      %v6729 = vpop.f32.mrf.mxu0
      %6730 = vmatprep.mubr.f32.mxu0 %v6382
      %6731 = vmatmul.mubr.f32.gmra.mxu0 %v6381
      %v6732 = vpop.f32.mrf.mxu0
      %v6733 = vadd.f32 0.0, %v6732
      %v6734 = vpop.f32.mrf.mxu0
      %6735 = vmatprep.mubr.f32.mxu0 %v6386
      %6736 = vmatmul.mubr.f32.gmra.mxu0 %v6385
      %v6737 = vpop.f32.mrf.mxu0
      %v6738 = vadd.f32 0.0, %v6737
      %v6739 = vpop.f32.mrf.mxu0
      %6740 = vmatprep.mubr.f32.mxu0 %v6390
      %6741 = vmatmul.mubr.f32.gmra.mxu0 %v6389
      %v6742 = vpop.f32.mrf.mxu0
      %v6743 = vadd.f32 0.0, %v6742
      %v6744 = vpop.f32.mrf.mxu0
      %6745 = vmatprep.mubr.f32.mxu0 %v6394
      %6746 = vmatmul.mubr.f32.gmra.mxu0 %v6393
      %v6747 = vpop.f32.mrf.mxu0
      %v6748 = vadd.f32 0.0, %v6747
      %v6749 = vpop.f32.mrf.mxu0
      %6750 = vmatprep.mubr.f32.mxu0 %v6398
      %6751 = vmatmul.mubr.f32.gmra.mxu0 %v6397
      %v6752 = vpop.f32.mrf.mxu0
      %v6753 = vadd.f32 0.0, %v6752
      %v6754 = vpop.f32.mrf.mxu0
      %6755 = vmatprep.mubr.f32.mxu0 %v6402
      %6756 = vmatmul.mubr.f32.gmra.mxu0 %v6401
      %v6757 = vpop.f32.mrf.mxu0
      %v6758 = vadd.f32 0.0, %v6757
      %v6759 = vpop.f32.mrf.mxu0
      %6760 = vmatprep.mubr.f32.mxu0 %v6406
      %6761 = vmatmul.mubr.f32.gmra.mxu0 %v6405
      %v6762 = vpop.f32.mrf.mxu0
      %v6763 = vadd.f32 0.0, %v6762
      %v6764 = vpop.f32.mrf.mxu0
      %6765 = vmatprep.mubr.f32.mxu0 %v6410
      %6766 = vmatmul.mubr.f32.gmra.mxu0 %v6409
      %v6767 = vpop.f32.mrf.mxu0
      %v6768 = vadd.f32 0.0, %v6767
      %v6769 = vpop.f32.mrf.mxu0
      %6770 = vmatprep.mubr.f32.mxu0 %v6414
      %6771 = vmatmul.mubr.f32.gmra.mxu0 %v6413
      %v6772 = vpop.f32.mrf.mxu0
      %v6773 = vadd.f32 0.0, %v6772
      %v6774 = vpop.f32.mrf.mxu0
      %6775 = vmatprep.mubr.f32.mxu0 %v6418
      %6776 = vmatmul.mubr.f32.gmra.mxu0 %v6417
      %v6777 = vpop.f32.mrf.mxu0
      %v6778 = vadd.f32 0.0, %v6777
      %v6779 = vpop.f32.mrf.mxu0
      %6780 = vmatprep.mubr.f32.mxu0 %v6422
      %6781 = vmatmul.mubr.f32.gmra.mxu0 %v6421
      %v6782 = vpop.f32.mrf.mxu0
      %v6783 = vadd.f32 0.0, %v6782
      %v6784 = vpop.f32.mrf.mxu0
      %6785 = vmatprep.mubr.f32.mxu0 %v6426
      %6786 = vmatmul.mubr.f32.gmra.mxu0 %v6425
      %v6787 = vpop.f32.mrf.mxu0
      %v6788 = vadd.f32 0.0, %v6787
      %v6789 = vpop.f32.mrf.mxu0
      %6790 = vmatprep.mubr.f32.mxu0 %v6430
      %6791 = vmatmul.mubr.f32.gmra.mxu0 %v6429
      %v6792 = vpop.f32.mrf.mxu0
      %v6793 = vadd.f32 0.0, %v6792
      %v6794 = vpop.f32.mrf.mxu0
      %6795 = vmatprep.mubr.f32.mxu0 %v6434
      %6796 = vmatmul.mubr.f32.gmra.mxu0 %v6433
      %v6797 = vpop.f32.mrf.mxu0
      %v6798 = vadd.f32 0.0, %v6797
      %v6799 = vpop.f32.mrf.mxu0
      %6800 = vmatprep.mubr.f32.mxu0 %v6438
      %6801 = vmatmul.mubr.f32.gmra.mxu0 %v6437
      %v6802 = vpop.f32.mrf.mxu0
      %v6803 = vadd.f32 0.0, %v6802
      %v6804 = vpop.f32.mrf.mxu0
      %6805 = vmatprep.mubr.f32.mxu0 %v6442
      %6806 = vmatmul.mubr.f32.gmra.mxu0 %v6441
      %v6807 = vpop.f32.mrf.mxu0
      %v6808 = vadd.f32 0.0, %v6807
      %v6809 = vpop.f32.mrf.mxu0
      %6810 = vmatprep.mubr.f32.mxu0 %v6446
      %6811 = vmatmul.mubr.f32.gmra.mxu0 %v6445
      %v6812 = vpop.f32.mrf.mxu0
      %v6813 = vadd.f32 0.0, %v6812
      %v6814 = vpop.f32.mrf.mxu0
      %6815 = vmatprep.mubr.f32.mxu0 %v6450
      %6816 = vmatmul.mubr.f32.gmra.mxu0 %v6449
      %v6817 = vpop.f32.mrf.mxu0
      %v6818 = vadd.f32 0.0, %v6817
      %v6819 = vpop.f32.mrf.mxu0
      %6820 = vmatprep.mubr.f32.mxu0 %v6454
      %6821 = vmatmul.mubr.f32.gmra.mxu0 %v6453
      %v6822 = vpop.f32.mrf.mxu0
      %v6823 = vadd.f32 0.0, %v6822
      %v6824 = vpop.f32.mrf.mxu0
      %6825 = vmatprep.mubr.f32.mxu0 %v6458
      %6826 = vmatmul.mubr.f32.gmra.mxu0 %v6457
      %v6827 = vpop.f32.mrf.mxu0
      %v6828 = vadd.f32 0.0, %v6827
      %v6829 = vpop.f32.mrf.mxu0
      %6830 = vmatprep.mubr.f32.mxu0 %v6462
      %6831 = vmatmul.mubr.f32.gmra.mxu0 %v6461
      %v6832 = vpop.f32.mrf.mxu0
      %v6833 = vadd.f32 0.0, %v6832
      %v6834 = vpop.f32.mrf.mxu0
      %6835 = vmatprep.mubr.f32.mxu0 %v6466
      %6836 = vmatmul.mubr.f32.gmra.mxu0 %v6465
      %v6837 = vpop.f32.mrf.mxu0
      %v6838 = vadd.f32 0.0, %v6837
      %v6839 = vpop.f32.mrf.mxu0
      %6840 = vmatprep.mubr.f32.mxu0 %v6470
      %6841 = vmatmul.mubr.f32.gmra.mxu0 %v6469
      %v6842 = vpop.f32.mrf.mxu0
      %v6843 = vadd.f32 0.0, %v6842
      %v6844 = vpop.f32.mrf.mxu0
      %6845 = vmatprep.mubr.f32.mxu0 %v6474
      %6846 = vmatmul.mubr.f32.gmra.mxu0 %v6473
      %v6847 = vpop.f32.mrf.mxu0
      %v6848 = vadd.f32 0.0, %v6847
      %v6849 = vpop.f32.mrf.mxu0
      %6850 = vmatprep.mubr.f32.mxu0 %v6478
      %6851 = vmatmul.mubr.f32.gmra.mxu0 %v6477
      %v6852 = vpop.f32.mrf.mxu0
      %v6853 = vadd.f32 0.0, %v6852
      %v6854 = vpop.f32.mrf.mxu0
      %6855 = vmatprep.mubr.f32.mxu0 %v6482
      %6856 = vmatmul.mubr.f32.gmra.mxu0 %v6481
      %v6857 = vpop.f32.mrf.mxu0
      %v6858 = vadd.f32 0.0, %v6857
      %v6859 = vpop.f32.mrf.mxu0
      %6860 = vmatprep.mubr.f32.mxu0 %v6486
      %6861 = vmatmul.mubr.f32.gmra.mxu0 %v6485
      %v6862 = vpop.f32.mrf.mxu0
      %v6863 = vadd.f32 0.0, %v6862
      %v6864 = vpop.f32.mrf.mxu0
      %6865 = vmatprep.mubr.f32.mxu0 %v6490
      %6866 = vmatmul.mubr.f32.gmra.mxu0 %v6489
      %v6867 = vpop.f32.mrf.mxu0
      %v6868 = vadd.f32 0.0, %v6867
      %v6869 = vpop.f32.mrf.mxu0
      %6870 = vmatprep.mubr.f32.mxu0 %v6494
      %6871 = vmatmul.mubr.f32.gmra.mxu0 %v6493
      %v6872 = vpop.f32.mrf.mxu0
      %v6873 = vadd.f32 0.0, %v6872
      %v6874 = vpop.f32.mrf.mxu0
      %6875 = vmatprep.mubr.f32.mxu0 %v6498
      %6876 = vmatmul.mubr.f32.gmra.mxu0 %v6497
      %v6877 = vpop.f32.mrf.mxu0
      %v6878 = vadd.f32 0.0, %v6877
      %v6879 = vpop.f32.mrf.mxu0
      %6880 = vmatprep.mubr.f32.mxu0 %v6502
      %6881 = vmatmul.mubr.f32.gmra.mxu0 %v6501
      %v6882 = vpop.f32.mrf.mxu0
      %v6883 = vadd.f32 0.0, %v6882
      %v6884 = vpop.f32.mrf.mxu0
      %6885 = vmatprep.mubr.f32.mxu0 %v6506
      %6886 = vmatmul.mubr.f32.gmra.mxu0 %v6505
      %v6887 = vpop.f32.mrf.mxu0
      %v6888 = vadd.f32 0.0, %v6887
      %v6889 = vpop.f32.mrf.mxu0
      %6890 = vmatprep.mubr.f32.mxu0 %v6510
      %6891 = vmatmul.mubr.f32.gmra.mxu0 %v6509
      %v6892 = vpop.f32.mrf.mxu0
      %v6893 = vadd.f32 0.0, %v6892
      %v6894 = vpop.f32.mrf.mxu0
      %6895 = vmatprep.mubr.f32.mxu0 %v6514
      %6896 = vmatmul.mubr.f32.gmra.mxu0 %v6513
      %v6897 = vpop.f32.mrf.mxu0
      %v6898 = vadd.f32 0.0, %v6897
      %v6899 = vpop.f32.mrf.mxu0
      %6900 = vmatprep.mubr.f32.mxu0 %v6518
      %6901 = vmatmul.mubr.f32.gmra.mxu0 %v6517
      %v6902 = vpop.f32.mrf.mxu0
      %v6903 = vadd.f32 0.0, %v6902
      %v6904 = vpop.f32.mrf.mxu0
      %6905 = vdwg.mxu0
      %6906 = vmatprep.subr.mxu0 0.0
      %6907 = vmatpush1.msra.mxu0 %v5222
      %6908 = vmatprep.subr.mxu0 0.0
      %6909 = vmatpush1.msra.mxu0 %v5221
      %6910 = vmatprep.subr.mxu0 0.0
      %6911 = vmatpush1.msra.mxu0 %v5220
      %6912 = vmatprep.subr.mxu0 0.0
      %6913 = vmatpush1.msra.mxu0 %v5219
      %6914 = vmatprep.subr.mxu0 0.0
      %6915 = vmatpush1.msra.mxu0 %v5218
      %6916 = vmatprep.subr.mxu0 0.0
      %6917 = vmatpush1.msra.mxu0 %v5217
      %6918 = vmatprep.subr.mxu0 0.0
      %6919 = vmatpush1.msra.mxu0 %v5216
      %6920 = vmatprep.subr.mxu0 0.0
      %6921 = vmatpush1.msra.mxu0 %v5215
      %6922 = vmatprep.subr.mxu0 0.0
      %6923 = vmatpush1.msra.mxu0 %v5214
      %6924 = vmatprep.subr.mxu0 0.0
      %6925 = vmatpush1.msra.mxu0 %v5213
      %6926 = vmatprep.subr.mxu0 0.0
      %6927 = vmatpush1.msra.mxu0 %v5212
      %6928 = vmatprep.subr.mxu0 0.0
      %6929 = vmatpush1.msra.mxu0 %v5211
      %6930 = vmatprep.subr.mxu0 0.0
      %6931 = vmatpush1.msra.mxu0 %v5210
      %6932 = vmatprep.subr.mxu0 0.0
      %6933 = vmatpush1.msra.mxu0 %v5209
      %6934 = vmatprep.subr.mxu0 0.0
      %6935 = vmatpush1.msra.mxu0 %v5208
      %6936 = vmatprep.subr.mxu0 0.0
      %6937 = vmatpush1.msra.mxu0 %v5207
      %6938 = vmatprep.subr.mxu0 0.0
      %6939 = vmatpush2.msra.mxu0 %v5238
      %6940 = vmatprep.subr.mxu0 0.0
      %6941 = vmatpush2.msra.mxu0 %v5237
      %6942 = vmatprep.subr.mxu0 0.0
      %6943 = vmatpush2.msra.mxu0 %v5236
      %6944 = vmatprep.subr.mxu0 0.0
      %6945 = vmatpush2.msra.mxu0 %v5235
      %6946 = vmatprep.subr.mxu0 0.0
      %6947 = vmatpush2.msra.mxu0 %v5234
      %6948 = vmatprep.subr.mxu0 0.0
      %6949 = vmatpush2.msra.mxu0 %v5233
      %6950 = vmatprep.subr.mxu0 0.0
      %6951 = vmatpush2.msra.mxu0 %v5232
      %6952 = vmatprep.subr.mxu0 0.0
      %6953 = vmatpush2.msra.mxu0 %v5231
      %6954 = vmatprep.subr.mxu0 0.0
      %6955 = vmatpush2.msra.mxu0 %v5230
      %6956 = vmatprep.subr.mxu0 0.0
      %6957 = vmatpush2.msra.mxu0 %v5229
      %6958 = vmatprep.subr.mxu0 0.0
      %6959 = vmatpush2.msra.mxu0 %v5228
      %6960 = vmatprep.subr.mxu0 0.0
      %6961 = vmatpush2.msra.mxu0 %v5227
      %6962 = vmatprep.subr.mxu0 0.0
      %6963 = vmatpush2.msra.mxu0 %v5226
      %6964 = vmatprep.subr.mxu0 0.0
      %6965 = vmatpush2.msra.mxu0 %v5225
      %6966 = vmatprep.subr.mxu0 0.0
      %6967 = vmatpush2.msra.mxu0 %v5224
      %6968 = vmatprep.subr.mxu0 0.0
      %6969 = vmatpush2.msra.mxu0 %v5223
      %6970 = vmatprep.mubr.f32.mxu0 %v6268
      %6971 = vmatmul.mubr.f32.gmra.mxu0 %v6267
      %v6972 = vpop.f32.mrf.mxu0
      %v6973 = vadd.f32 %v6588, %v6972
      %v6974 = vpop.f32.mrf.mxu0
      %6975 = vmatprep.mubr.f32.mxu0 %v6272
      %6976 = vmatmul.mubr.f32.gmra.mxu0 %v6271
      %v6977 = vpop.f32.mrf.mxu0
      %v6978 = vadd.f32 %v6593, %v6977
      %v6979 = vpop.f32.mrf.mxu0
      %6980 = vmatprep.mubr.f32.mxu0 %v6276
      %6981 = vmatmul.mubr.f32.gmra.mxu0 %v6275
      %v6982 = vpop.f32.mrf.mxu0
      %v6983 = vadd.f32 %v6598, %v6982
      %v6984 = vpop.f32.mrf.mxu0
      %6985 = vmatprep.mubr.f32.mxu0 %v6280
      %6986 = vmatmul.mubr.f32.gmra.mxu0 %v6279
      %v6987 = vpop.f32.mrf.mxu0
      %v6988 = vadd.f32 %v6603, %v6987
      %v6989 = vpop.f32.mrf.mxu0
      %6990 = vmatprep.mubr.f32.mxu0 %v6284
      %6991 = vmatmul.mubr.f32.gmra.mxu0 %v6283
      %v6992 = vpop.f32.mrf.mxu0
      %v6993 = vadd.f32 %v6608, %v6992
      %v6994 = vpop.f32.mrf.mxu0
      %6995 = vmatprep.mubr.f32.mxu0 %v6288
      %6996 = vmatmul.mubr.f32.gmra.mxu0 %v6287
      %v6997 = vpop.f32.mrf.mxu0
      %v6998 = vadd.f32 %v6613, %v6997
      %v6999 = vpop.f32.mrf.mxu0
      %7000 = vmatprep.mubr.f32.mxu0 %v6292
      %7001 = vmatmul.mubr.f32.gmra.mxu0 %v6291
      %v7002 = vpop.f32.mrf.mxu0
      %v7003 = vadd.f32 %v6618, %v7002
      %v7004 = vpop.f32.mrf.mxu0
      %7005 = vmatprep.mubr.f32.mxu0 %v6296
      %7006 = vmatmul.mubr.f32.gmra.mxu0 %v6295
      %v7007 = vpop.f32.mrf.mxu0
      %v7008 = vadd.f32 %v6623, %v7007
      %v7009 = vpop.f32.mrf.mxu0
      %7010 = vmatprep.mubr.f32.mxu0 %v6300
      %7011 = vmatmul.mubr.f32.gmra.mxu0 %v6299
      %v7012 = vpop.f32.mrf.mxu0
      %v7013 = vadd.f32 %v6628, %v7012
      %v7014 = vpop.f32.mrf.mxu0
      %7015 = vmatprep.mubr.f32.mxu0 %v6304
      %7016 = vmatmul.mubr.f32.gmra.mxu0 %v6303
      %v7017 = vpop.f32.mrf.mxu0
      %v7018 = vadd.f32 %v6633, %v7017
      %v7019 = vpop.f32.mrf.mxu0
      %7020 = vmatprep.mubr.f32.mxu0 %v6308
      %7021 = vmatmul.mubr.f32.gmra.mxu0 %v6307
      %v7022 = vpop.f32.mrf.mxu0
      %v7023 = vadd.f32 %v6638, %v7022
      %v7024 = vpop.f32.mrf.mxu0
      %7025 = vmatprep.mubr.f32.mxu0 %v6312
      %7026 = vmatmul.mubr.f32.gmra.mxu0 %v6311
      %v7027 = vpop.f32.mrf.mxu0
      %v7028 = vadd.f32 %v6643, %v7027
      %v7029 = vpop.f32.mrf.mxu0
      %7030 = vmatprep.mubr.f32.mxu0 %v6316
      %7031 = vmatmul.mubr.f32.gmra.mxu0 %v6315
      %v7032 = vpop.f32.mrf.mxu0
      %v7033 = vadd.f32 %v6648, %v7032
      %v7034 = vpop.f32.mrf.mxu0
      %7035 = vmatprep.mubr.f32.mxu0 %v6320
      %7036 = vmatmul.mubr.f32.gmra.mxu0 %v6319
      %v7037 = vpop.f32.mrf.mxu0
      %v7038 = vadd.f32 %v6653, %v7037
      %v7039 = vpop.f32.mrf.mxu0
      %7040 = vmatprep.mubr.f32.mxu0 %v6324
      %7041 = vmatmul.mubr.f32.gmra.mxu0 %v6323
      %v7042 = vpop.f32.mrf.mxu0
      %v7043 = vadd.f32 %v6658, %v7042
      %v7044 = vpop.f32.mrf.mxu0
      %7045 = vmatprep.mubr.f32.mxu0 %v6328
      %7046 = vmatmul.mubr.f32.gmra.mxu0 %v6327
      %v7047 = vpop.f32.mrf.mxu0
      %v7048 = vadd.f32 %v6663, %v7047
      %v7049 = vpop.f32.mrf.mxu0
      %7050 = vmatprep.mubr.f32.mxu0 %v6332
      %7051 = vmatmul.mubr.f32.gmra.mxu0 %v6331
      %v7052 = vpop.f32.mrf.mxu0
      %v7053 = vadd.f32 %v6668, %v7052
      %v7054 = vpop.f32.mrf.mxu0
      %7055 = vmatprep.mubr.f32.mxu0 %v6336
      %7056 = vmatmul.mubr.f32.gmra.mxu0 %v6335
      %v7057 = vpop.f32.mrf.mxu0
      %v7058 = vadd.f32 %v6673, %v7057
      %v7059 = vpop.f32.mrf.mxu0
      %7060 = vmatprep.mubr.f32.mxu0 %v6340
      %7061 = vmatmul.mubr.f32.gmra.mxu0 %v6339
      %v7062 = vpop.f32.mrf.mxu0
      %v7063 = vadd.f32 %v6678, %v7062
      %v7064 = vpop.f32.mrf.mxu0
      %7065 = vmatprep.mubr.f32.mxu0 %v6344
      %7066 = vmatmul.mubr.f32.gmra.mxu0 %v6343
      %v7067 = vpop.f32.mrf.mxu0
      %v7068 = vadd.f32 %v6683, %v7067
      %v7069 = vpop.f32.mrf.mxu0
      %7070 = vmatprep.mubr.f32.mxu0 %v6348
      %7071 = vmatmul.mubr.f32.gmra.mxu0 %v6347
      %v7072 = vpop.f32.mrf.mxu0
      %v7073 = vadd.f32 %v6688, %v7072
      %v7074 = vpop.f32.mrf.mxu0
      %7075 = vmatprep.mubr.f32.mxu0 %v6352
      %7076 = vmatmul.mubr.f32.gmra.mxu0 %v6351
      %v7077 = vpop.f32.mrf.mxu0
      %v7078 = vadd.f32 %v6693, %v7077
      %v7079 = vpop.f32.mrf.mxu0
      %7080 = vmatprep.mubr.f32.mxu0 %v6356
      %7081 = vmatmul.mubr.f32.gmra.mxu0 %v6355
      %v7082 = vpop.f32.mrf.mxu0
      %v7083 = vadd.f32 %v6698, %v7082
      %v7084 = vpop.f32.mrf.mxu0
      %7085 = vmatprep.mubr.f32.mxu0 %v6360
      %7086 = vmatmul.mubr.f32.gmra.mxu0 %v6359
      %v7087 = vpop.f32.mrf.mxu0
      %v7088 = vadd.f32 %v6703, %v7087
      %v7089 = vpop.f32.mrf.mxu0
      %7090 = vmatprep.mubr.f32.mxu0 %v6364
      %7091 = vmatmul.mubr.f32.gmra.mxu0 %v6363
      %v7092 = vpop.f32.mrf.mxu0
      %v7093 = vadd.f32 %v6708, %v7092
      %v7094 = vpop.f32.mrf.mxu0
      %7095 = vmatprep.mubr.f32.mxu0 %v6368
      %7096 = vmatmul.mubr.f32.gmra.mxu0 %v6367
      %v7097 = vpop.f32.mrf.mxu0
      %v7098 = vadd.f32 %v6713, %v7097
      %v7099 = vpop.f32.mrf.mxu0
      %7100 = vmatprep.mubr.f32.mxu0 %v6372
      %7101 = vmatmul.mubr.f32.gmra.mxu0 %v6371
      %v7102 = vpop.f32.mrf.mxu0
      %v7103 = vadd.f32 %v6718, %v7102
      %v7104 = vpop.f32.mrf.mxu0
      %7105 = vmatprep.mubr.f32.mxu0 %v6376
      %7106 = vmatmul.mubr.f32.gmra.mxu0 %v6375
      %v7107 = vpop.f32.mrf.mxu0
      %v7108 = vadd.f32 %v6723, %v7107
      %v7109 = vpop.f32.mrf.mxu0
      %7110 = vmatprep.mubr.f32.mxu0 %v6380
      %7111 = vmatmul.mubr.f32.gmra.mxu0 %v6379
      %v7112 = vpop.f32.mrf.mxu0
      %v7113 = vadd.f32 %v6728, %v7112
      %v7114 = vpop.f32.mrf.mxu0
      %7115 = vmatprep.mubr.f32.mxu0 %v6384
      %7116 = vmatmul.mubr.f32.gmra.mxu0 %v6383
      %v7117 = vpop.f32.mrf.mxu0
      %v7118 = vadd.f32 %v6733, %v7117
      %v7119 = vpop.f32.mrf.mxu0
      %7120 = vmatprep.mubr.f32.mxu0 %v6388
      %7121 = vmatmul.mubr.f32.gmra.mxu0 %v6387
      %v7122 = vpop.f32.mrf.mxu0
      %v7123 = vadd.f32 %v6738, %v7122
      %v7124 = vpop.f32.mrf.mxu0
      %7125 = vmatprep.mubr.f32.mxu0 %v6392
      %7126 = vmatmul.mubr.f32.gmra.mxu0 %v6391
      %v7127 = vpop.f32.mrf.mxu0
      %v7128 = vadd.f32 %v6743, %v7127
      %v7129 = vpop.f32.mrf.mxu0
      %7130 = vmatprep.mubr.f32.mxu0 %v6396
      %7131 = vmatmul.mubr.f32.gmra.mxu0 %v6395
      %v7132 = vpop.f32.mrf.mxu0
      %v7133 = vadd.f32 %v6748, %v7132
      %v7134 = vpop.f32.mrf.mxu0
      %7135 = vmatprep.mubr.f32.mxu0 %v6400
      %7136 = vmatmul.mubr.f32.gmra.mxu0 %v6399
      %v7137 = vpop.f32.mrf.mxu0
      %v7138 = vadd.f32 %v6753, %v7137
      %v7139 = vpop.f32.mrf.mxu0
      %7140 = vmatprep.mubr.f32.mxu0 %v6404
      %7141 = vmatmul.mubr.f32.gmra.mxu0 %v6403
      %v7142 = vpop.f32.mrf.mxu0
      %v7143 = vadd.f32 %v6758, %v7142
      %v7144 = vpop.f32.mrf.mxu0
      %7145 = vmatprep.mubr.f32.mxu0 %v6408
      %7146 = vmatmul.mubr.f32.gmra.mxu0 %v6407
      %v7147 = vpop.f32.mrf.mxu0
      %v7148 = vadd.f32 %v6763, %v7147
      %v7149 = vpop.f32.mrf.mxu0
      %7150 = vmatprep.mubr.f32.mxu0 %v6412
      %7151 = vmatmul.mubr.f32.gmra.mxu0 %v6411
      %v7152 = vpop.f32.mrf.mxu0
      %v7153 = vadd.f32 %v6768, %v7152
      %v7154 = vpop.f32.mrf.mxu0
      %7155 = vmatprep.mubr.f32.mxu0 %v6416
      %7156 = vmatmul.mubr.f32.gmra.mxu0 %v6415
      %v7157 = vpop.f32.mrf.mxu0
      %v7158 = vadd.f32 %v6773, %v7157
      %v7159 = vpop.f32.mrf.mxu0
      %7160 = vmatprep.mubr.f32.mxu0 %v6420
      %7161 = vmatmul.mubr.f32.gmra.mxu0 %v6419
      %v7162 = vpop.f32.mrf.mxu0
      %v7163 = vadd.f32 %v6778, %v7162
      %v7164 = vpop.f32.mrf.mxu0
      %7165 = vmatprep.mubr.f32.mxu0 %v6424
      %7166 = vmatmul.mubr.f32.gmra.mxu0 %v6423
      %v7167 = vpop.f32.mrf.mxu0
      %v7168 = vadd.f32 %v6783, %v7167
      %v7169 = vpop.f32.mrf.mxu0
      %7170 = vmatprep.mubr.f32.mxu0 %v6428
      %7171 = vmatmul.mubr.f32.gmra.mxu0 %v6427
      %v7172 = vpop.f32.mrf.mxu0
      %v7173 = vadd.f32 %v6788, %v7172
      %v7174 = vpop.f32.mrf.mxu0
      %7175 = vmatprep.mubr.f32.mxu0 %v6432
      %7176 = vmatmul.mubr.f32.gmra.mxu0 %v6431
      %v7177 = vpop.f32.mrf.mxu0
      %v7178 = vadd.f32 %v6793, %v7177
      %v7179 = vpop.f32.mrf.mxu0
      %7180 = vmatprep.mubr.f32.mxu0 %v6436
      %7181 = vmatmul.mubr.f32.gmra.mxu0 %v6435
      %v7182 = vpop.f32.mrf.mxu0
      %v7183 = vadd.f32 %v6798, %v7182
      %v7184 = vpop.f32.mrf.mxu0
      %7185 = vmatprep.mubr.f32.mxu0 %v6440
      %7186 = vmatmul.mubr.f32.gmra.mxu0 %v6439
      %v7187 = vpop.f32.mrf.mxu0
      %v7188 = vadd.f32 %v6803, %v7187
      %v7189 = vpop.f32.mrf.mxu0
      %7190 = vmatprep.mubr.f32.mxu0 %v6444
      %7191 = vmatmul.mubr.f32.gmra.mxu0 %v6443
      %v7192 = vpop.f32.mrf.mxu0
      %v7193 = vadd.f32 %v6808, %v7192
      %v7194 = vpop.f32.mrf.mxu0
      %7195 = vmatprep.mubr.f32.mxu0 %v6448
      %7196 = vmatmul.mubr.f32.gmra.mxu0 %v6447
      %v7197 = vpop.f32.mrf.mxu0
      %v7198 = vadd.f32 %v6813, %v7197
      %v7199 = vpop.f32.mrf.mxu0
      %7200 = vmatprep.mubr.f32.mxu0 %v6452
      %7201 = vmatmul.mubr.f32.gmra.mxu0 %v6451
      %v7202 = vpop.f32.mrf.mxu0
      %v7203 = vadd.f32 %v6818, %v7202
      %v7204 = vpop.f32.mrf.mxu0
      %7205 = vmatprep.mubr.f32.mxu0 %v6456
      %7206 = vmatmul.mubr.f32.gmra.mxu0 %v6455
      %v7207 = vpop.f32.mrf.mxu0
      %v7208 = vadd.f32 %v6823, %v7207
      %v7209 = vpop.f32.mrf.mxu0
      %7210 = vmatprep.mubr.f32.mxu0 %v6460
      %7211 = vmatmul.mubr.f32.gmra.mxu0 %v6459
      %v7212 = vpop.f32.mrf.mxu0
      %v7213 = vadd.f32 %v6828, %v7212
      %v7214 = vpop.f32.mrf.mxu0
      %7215 = vmatprep.mubr.f32.mxu0 %v6464
      %7216 = vmatmul.mubr.f32.gmra.mxu0 %v6463
      %v7217 = vpop.f32.mrf.mxu0
      %v7218 = vadd.f32 %v6833, %v7217
      %v7219 = vpop.f32.mrf.mxu0
      %7220 = vmatprep.mubr.f32.mxu0 %v6468
      %7221 = vmatmul.mubr.f32.gmra.mxu0 %v6467
      %v7222 = vpop.f32.mrf.mxu0
      %v7223 = vadd.f32 %v6838, %v7222
      %v7224 = vpop.f32.mrf.mxu0
      %7225 = vmatprep.mubr.f32.mxu0 %v6472
      %7226 = vmatmul.mubr.f32.gmra.mxu0 %v6471
      %v7227 = vpop.f32.mrf.mxu0
      %v7228 = vadd.f32 %v6843, %v7227
      %v7229 = vpop.f32.mrf.mxu0
      %7230 = vmatprep.mubr.f32.mxu0 %v6476
      %7231 = vmatmul.mubr.f32.gmra.mxu0 %v6475
      %v7232 = vpop.f32.mrf.mxu0
      %v7233 = vadd.f32 %v6848, %v7232
      %v7234 = vpop.f32.mrf.mxu0
      %7235 = vmatprep.mubr.f32.mxu0 %v6480
      %7236 = vmatmul.mubr.f32.gmra.mxu0 %v6479
      %v7237 = vpop.f32.mrf.mxu0
      %v7238 = vadd.f32 %v6853, %v7237
      %v7239 = vpop.f32.mrf.mxu0
      %7240 = vmatprep.mubr.f32.mxu0 %v6484
      %7241 = vmatmul.mubr.f32.gmra.mxu0 %v6483
      %v7242 = vpop.f32.mrf.mxu0
      %v7243 = vadd.f32 %v6858, %v7242
      %v7244 = vpop.f32.mrf.mxu0
      %7245 = vmatprep.mubr.f32.mxu0 %v6488
      %7246 = vmatmul.mubr.f32.gmra.mxu0 %v6487
      %v7247 = vpop.f32.mrf.mxu0
      %v7248 = vadd.f32 %v6863, %v7247
      %v7249 = vpop.f32.mrf.mxu0
      %7250 = vmatprep.mubr.f32.mxu0 %v6492
      %7251 = vmatmul.mubr.f32.gmra.mxu0 %v6491
      %v7252 = vpop.f32.mrf.mxu0
      %v7253 = vadd.f32 %v6868, %v7252
      %v7254 = vpop.f32.mrf.mxu0
      %7255 = vmatprep.mubr.f32.mxu0 %v6496
      %7256 = vmatmul.mubr.f32.gmra.mxu0 %v6495
      %v7257 = vpop.f32.mrf.mxu0
      %v7258 = vadd.f32 %v6873, %v7257
      %v7259 = vpop.f32.mrf.mxu0
      %7260 = vmatprep.mubr.f32.mxu0 %v6500
      %7261 = vmatmul.mubr.f32.gmra.mxu0 %v6499
      %v7262 = vpop.f32.mrf.mxu0
      %v7263 = vadd.f32 %v6878, %v7262
      %v7264 = vpop.f32.mrf.mxu0
      %7265 = vmatprep.mubr.f32.mxu0 %v6504
      %7266 = vmatmul.mubr.f32.gmra.mxu0 %v6503
      %v7267 = vpop.f32.mrf.mxu0
      %v7268 = vadd.f32 %v6883, %v7267
      %v7269 = vpop.f32.mrf.mxu0
      %7270 = vmatprep.mubr.f32.mxu0 %v6508
      %7271 = vmatmul.mubr.f32.gmra.mxu0 %v6507
      %v7272 = vpop.f32.mrf.mxu0
      %v7273 = vadd.f32 %v6888, %v7272
      %v7274 = vpop.f32.mrf.mxu0
      %7275 = vmatprep.mubr.f32.mxu0 %v6512
      %7276 = vmatmul.mubr.f32.gmra.mxu0 %v6511
      %v7277 = vpop.f32.mrf.mxu0
      %v7278 = vadd.f32 %v6893, %v7277
      %v7279 = vpop.f32.mrf.mxu0
      %7280 = vmatprep.mubr.f32.mxu0 %v6516
      %7281 = vmatmul.mubr.f32.gmra.mxu0 %v6515
      %v7282 = vpop.f32.mrf.mxu0
      %v7283 = vadd.f32 %v6898, %v7282
      %v7284 = vpop.f32.mrf.mxu0
      %7285 = vmatprep.mubr.f32.mxu0 %v6520
      %7286 = vmatmul.mubr.f32.gmra.mxu0 %v6519
      %v7287 = vpop.f32.mrf.mxu0
      %v7288 = vadd.f32 %v6903, %v7287
      %v7289 = vpop.f32.mrf.mxu0
      %7290 = vdwg.mxu0
      %v7291 = vld [vmem:[%s4] sm:$0xff]
      %v7292 = vld [vmem:[%s4 + $0x8] sm:$0xff]
      %v7293 = vld [vmem:[%s4 + $0x10] sm:$0xff]
      %v7294 = vld [vmem:[%s4 + $0x18] sm:$0xff]
      %v7295 = vld [vmem:[%s4 + $0x20] sm:$0xff]
      %v7296 = vld [vmem:[%s4 + $0x28] sm:$0xff]
      %v7297 = vld [vmem:[%s4 + $0x30] sm:$0xff]
      %v7298 = vld [vmem:[%s4 + $0x38] sm:$0xff]
      %v7299 = vld [vmem:[%s5] sm:$0xff]
      %v7300 = vld [vmem:[%s5 + $0x8] sm:$0xff]
      %v7301 = vld [vmem:[%s5 + $0x10] sm:$0xff]
      %v7302 = vld [vmem:[%s5 + $0x18] sm:$0xff]
      %v7303 = vld [vmem:[%s5 + $0x20] sm:$0xff]
      %v7304 = vld [vmem:[%s5 + $0x28] sm:$0xff]
      %v7305 = vld [vmem:[%s5 + $0x30] sm:$0xff]
      %v7306 = vld [vmem:[%s5 + $0x38] sm:$0xff]
      %v7307 = vld [vmem:[%s5 + $0x40] sm:$0xff]
      %v7308 = vld [vmem:[%s5 + $0x48] sm:$0xff]
      %v7309 = vld [vmem:[%s5 + $0x50] sm:$0xff]
      %v7310 = vld [vmem:[%s5 + $0x58] sm:$0xff]
      %v7311 = vld [vmem:[%s5 + $0x60] sm:$0xff]
      %v7312 = vld [vmem:[%s5 + $0x68] sm:$0xff]
      %v7313 = vld [vmem:[%s5 + $0x70] sm:$0xff]
      %v7314 = vld [vmem:[%s5 + $0x78] sm:$0xff]
      %v7315 = vld [vmem:[%s5 + $0x80] sm:$0xff]
      %v7316 = vld [vmem:[%s5 + $0x88] sm:$0xff]
      %v7317 = vld [vmem:[%s5 + $0x90] sm:$0xff]
      %v7318 = vld [vmem:[%s5 + $0x98] sm:$0xff]
      %v7319 = vld [vmem:[%s5 + $0xa0] sm:$0xff]
      %v7320 = vld [vmem:[%s5 + $0xa8] sm:$0xff]
      %v7321 = vld [vmem:[%s5 + $0xb0] sm:$0xff]
      %v7322 = vld [vmem:[%s5 + $0xb8] sm:$0xff]
      %v7323 = vld [vmem:[%s5 + $0xc0] sm:$0xff]
      %v7324 = vld [vmem:[%s5 + $0xc8] sm:$0xff]
      %v7325 = vld [vmem:[%s5 + $0xd0] sm:$0xff]
      %v7326 = vld [vmem:[%s5 + $0xd8] sm:$0xff]
      %v7327 = vld [vmem:[%s5 + $0xe0] sm:$0xff]
      %v7328 = vld [vmem:[%s5 + $0xe8] sm:$0xff]
      %v7329 = vld [vmem:[%s5 + $0xf0] sm:$0xff]
      %v7330 = vld [vmem:[%s5 + $0xf8] sm:$0xff]
      %v7331 = vld [vmem:[%s5 + $0x100] sm:$0xff]
      %v7332 = vld [vmem:[%s5 + $0x108] sm:$0xff]
      %v7333 = vld [vmem:[%s5 + $0x110] sm:$0xff]
      %v7334 = vld [vmem:[%s5 + $0x118] sm:$0xff]
      %v7335 = vld [vmem:[%s5 + $0x120] sm:$0xff]
      %v7336 = vld [vmem:[%s5 + $0x128] sm:$0xff]
      %v7337 = vld [vmem:[%s5 + $0x130] sm:$0xff]
      %v7338 = vld [vmem:[%s5 + $0x138] sm:$0xff]
      %v7339 = vld [vmem:[%s5 + $0x140] sm:$0xff]
      %v7340 = vld [vmem:[%s5 + $0x148] sm:$0xff]
      %v7341 = vld [vmem:[%s5 + $0x150] sm:$0xff]
      %v7342 = vld [vmem:[%s5 + $0x158] sm:$0xff]
      %v7343 = vld [vmem:[%s5 + $0x160] sm:$0xff]
      %v7344 = vld [vmem:[%s5 + $0x168] sm:$0xff]
      %v7345 = vld [vmem:[%s5 + $0x170] sm:$0xff]
      %v7346 = vld [vmem:[%s5 + $0x178] sm:$0xff]
      %v7347 = vld [vmem:[%s5 + $0x180] sm:$0xff]
      %v7348 = vld [vmem:[%s5 + $0x188] sm:$0xff]
      %v7349 = vld [vmem:[%s5 + $0x190] sm:$0xff]
      %v7350 = vld [vmem:[%s5 + $0x198] sm:$0xff]
      %v7351 = vld [vmem:[%s5 + $0x1a0] sm:$0xff]
      %v7352 = vld [vmem:[%s5 + $0x1a8] sm:$0xff]
      %v7353 = vld [vmem:[%s5 + $0x1b0] sm:$0xff]
      %v7354 = vld [vmem:[%s5 + $0x1b8] sm:$0xff]
      %v7355 = vld [vmem:[%s5 + $0x1c0] sm:$0xff]
      %v7356 = vld [vmem:[%s5 + $0x1c8] sm:$0xff]
      %v7357 = vld [vmem:[%s5 + $0x1d0] sm:$0xff]
      %v7358 = vld [vmem:[%s5 + $0x1d8] sm:$0xff]
      %v7359 = vld [vmem:[%s5 + $0x1e0] sm:$0xff]
      %v7360 = vld [vmem:[%s5 + $0x1e8] sm:$0xff]
      %v7361 = vld [vmem:[%s5 + $0x1f0] sm:$0xff]
      %v7362 = vld [vmem:[%s5 + $0x1f8] sm:$0xff]
      %v7363 = vld [vmem:[%s5 + $0x200] sm:$0xff]
      %v7364 = vld [vmem:[%s5 + $0x208] sm:$0xff]
      %v7365 = vld [vmem:[%s5 + $0x210] sm:$0xff]
      %v7366 = vld [vmem:[%s5 + $0x218] sm:$0xff]
      %v7367 = vld [vmem:[%s5 + $0x220] sm:$0xff]
      %v7368 = vld [vmem:[%s5 + $0x228] sm:$0xff]
      %v7369 = vld [vmem:[%s5 + $0x230] sm:$0xff]
      %v7370 = vld [vmem:[%s5 + $0x238] sm:$0xff]
      %v7371 = vld [vmem:[%s5 + $0x240] sm:$0xff]
      %v7372 = vld [vmem:[%s5 + $0x248] sm:$0xff]
      %v7373 = vld [vmem:[%s5 + $0x250] sm:$0xff]
      %v7374 = vld [vmem:[%s5 + $0x258] sm:$0xff]
      %v7375 = vld [vmem:[%s5 + $0x260] sm:$0xff]
      %v7376 = vld [vmem:[%s5 + $0x268] sm:$0xff]
      %v7377 = vld [vmem:[%s5 + $0x270] sm:$0xff]
      %v7378 = vld [vmem:[%s5 + $0x278] sm:$0xff]
      %v7379 = vld [vmem:[%s5 + $0x280] sm:$0xff]
      %v7380 = vld [vmem:[%s5 + $0x288] sm:$0xff]
      %v7381 = vld [vmem:[%s5 + $0x290] sm:$0xff]
      %v7382 = vld [vmem:[%s5 + $0x298] sm:$0xff]
      %v7383 = vld [vmem:[%s5 + $0x2a0] sm:$0xff]
      %v7384 = vld [vmem:[%s5 + $0x2a8] sm:$0xff]
      %v7385 = vld [vmem:[%s5 + $0x2b0] sm:$0xff]
      %v7386 = vld [vmem:[%s5 + $0x2b8] sm:$0xff]
      %v7387 = vld [vmem:[%s5 + $0x2c0] sm:$0xff]
      %v7388 = vld [vmem:[%s5 + $0x2c8] sm:$0xff]
      %v7389 = vld [vmem:[%s5 + $0x2d0] sm:$0xff]
      %v7390 = vld [vmem:[%s5 + $0x2d8] sm:$0xff]
      %v7391 = vld [vmem:[%s5 + $0x2e0] sm:$0xff]
      %v7392 = vld [vmem:[%s5 + $0x2e8] sm:$0xff]
      %v7393 = vld [vmem:[%s5 + $0x2f0] sm:$0xff]
      %v7394 = vld [vmem:[%s5 + $0x2f8] sm:$0xff]
      %v7395 = vld [vmem:[%s5 + $0x300] sm:$0xff]
      %v7396 = vld [vmem:[%s5 + $0x308] sm:$0xff]
      %v7397 = vld [vmem:[%s5 + $0x310] sm:$0xff]
      %v7398 = vld [vmem:[%s5 + $0x318] sm:$0xff]
      %v7399 = vld [vmem:[%s5 + $0x320] sm:$0xff]
      %v7400 = vld [vmem:[%s5 + $0x328] sm:$0xff]
      %v7401 = vld [vmem:[%s5 + $0x330] sm:$0xff]
      %v7402 = vld [vmem:[%s5 + $0x338] sm:$0xff]
      %v7403 = vld [vmem:[%s5 + $0x340] sm:$0xff]
      %v7404 = vld [vmem:[%s5 + $0x348] sm:$0xff]
      %v7405 = vld [vmem:[%s5 + $0x350] sm:$0xff]
      %v7406 = vld [vmem:[%s5 + $0x358] sm:$0xff]
      %v7407 = vld [vmem:[%s5 + $0x360] sm:$0xff]
      %v7408 = vld [vmem:[%s5 + $0x368] sm:$0xff]
      %v7409 = vld [vmem:[%s5 + $0x370] sm:$0xff]
      %v7410 = vld [vmem:[%s5 + $0x378] sm:$0xff]
      %v7411 = vld [vmem:[%s5 + $0x380] sm:$0xff]
      %v7412 = vld [vmem:[%s5 + $0x388] sm:$0xff]
      %v7413 = vld [vmem:[%s5 + $0x390] sm:$0xff]
      %v7414 = vld [vmem:[%s5 + $0x398] sm:$0xff]
      %v7415 = vld [vmem:[%s5 + $0x3a0] sm:$0xff]
      %v7416 = vld [vmem:[%s5 + $0x3a8] sm:$0xff]
      %v7417 = vld [vmem:[%s5 + $0x3b0] sm:$0xff]
      %v7418 = vld [vmem:[%s5 + $0x3b8] sm:$0xff]
      %v7419 = vld [vmem:[%s5 + $0x3c0] sm:$0xff]
      %v7420 = vld [vmem:[%s5 + $0x3c8] sm:$0xff]
      %v7421 = vld [vmem:[%s5 + $0x3d0] sm:$0xff]
      %v7422 = vld [vmem:[%s5 + $0x3d8] sm:$0xff]
      %v7423 = vld [vmem:[%s5 + $0x3e0] sm:$0xff]
      %v7424 = vld [vmem:[%s5 + $0x3e8] sm:$0xff]
      %v7425 = vld [vmem:[%s5 + $0x3f0] sm:$0xff]
      %v7426 = vld [vmem:[%s5 + $0x3f8] sm:$0xff]
      %v7427 = vld [vmem:[%s5 + $0x400] sm:$0xff]
      %v7428 = vld [vmem:[%s5 + $0x408] sm:$0xff]
      %v7429 = vld [vmem:[%s5 + $0x410] sm:$0xff]
      %v7430 = vld [vmem:[%s5 + $0x418] sm:$0xff]
      %v7431 = vld [vmem:[%s5 + $0x420] sm:$0xff]
      %v7432 = vld [vmem:[%s5 + $0x428] sm:$0xff]
      %v7433 = vld [vmem:[%s5 + $0x430] sm:$0xff]
      %v7434 = vld [vmem:[%s5 + $0x438] sm:$0xff]
      %v7435 = vld [vmem:[%s5 + $0x440] sm:$0xff]
      %v7436 = vld [vmem:[%s5 + $0x448] sm:$0xff]
      %v7437 = vld [vmem:[%s5 + $0x450] sm:$0xff]
      %v7438 = vld [vmem:[%s5 + $0x458] sm:$0xff]
      %v7439 = vld [vmem:[%s5 + $0x460] sm:$0xff]
      %v7440 = vld [vmem:[%s5 + $0x468] sm:$0xff]
      %v7441 = vld [vmem:[%s5 + $0x470] sm:$0xff]
      %v7442 = vld [vmem:[%s5 + $0x478] sm:$0xff]
      %v7443 = vld [vmem:[%s5 + $0x480] sm:$0xff]
      %v7444 = vld [vmem:[%s5 + $0x488] sm:$0xff]
      %v7445 = vld [vmem:[%s5 + $0x490] sm:$0xff]
      %v7446 = vld [vmem:[%s5 + $0x498] sm:$0xff]
      %v7447 = vld [vmem:[%s5 + $0x4a0] sm:$0xff]
      %v7448 = vld [vmem:[%s5 + $0x4a8] sm:$0xff]
      %v7449 = vld [vmem:[%s5 + $0x4b0] sm:$0xff]
      %v7450 = vld [vmem:[%s5 + $0x4b8] sm:$0xff]
      %v7451 = vld [vmem:[%s5 + $0x4c0] sm:$0xff]
      %v7452 = vld [vmem:[%s5 + $0x4c8] sm:$0xff]
      %v7453 = vld [vmem:[%s5 + $0x4d0] sm:$0xff]
      %v7454 = vld [vmem:[%s5 + $0x4d8] sm:$0xff]
      %v7455 = vld [vmem:[%s5 + $0x4e0] sm:$0xff]
      %v7456 = vld [vmem:[%s5 + $0x4e8] sm:$0xff]
      %v7457 = vld [vmem:[%s5 + $0x4f0] sm:$0xff]
      %v7458 = vld [vmem:[%s5 + $0x4f8] sm:$0xff]
      %v7459 = vld [vmem:[%s5 + $0x500] sm:$0xff]
      %v7460 = vld [vmem:[%s5 + $0x508] sm:$0xff]
      %v7461 = vld [vmem:[%s5 + $0x510] sm:$0xff]
      %v7462 = vld [vmem:[%s5 + $0x518] sm:$0xff]
      %v7463 = vld [vmem:[%s5 + $0x520] sm:$0xff]
      %v7464 = vld [vmem:[%s5 + $0x528] sm:$0xff]
      %v7465 = vld [vmem:[%s5 + $0x530] sm:$0xff]
      %v7466 = vld [vmem:[%s5 + $0x538] sm:$0xff]
      %v7467 = vld [vmem:[%s5 + $0x540] sm:$0xff]
      %v7468 = vld [vmem:[%s5 + $0x548] sm:$0xff]
      %v7469 = vld [vmem:[%s5 + $0x550] sm:$0xff]
      %v7470 = vld [vmem:[%s5 + $0x558] sm:$0xff]
      %v7471 = vld [vmem:[%s5 + $0x560] sm:$0xff]
      %v7472 = vld [vmem:[%s5 + $0x568] sm:$0xff]
      %v7473 = vld [vmem:[%s5 + $0x570] sm:$0xff]
      %v7474 = vld [vmem:[%s5 + $0x578] sm:$0xff]
      %v7475 = vld [vmem:[%s5 + $0x580] sm:$0xff]
      %v7476 = vld [vmem:[%s5 + $0x588] sm:$0xff]
      %v7477 = vld [vmem:[%s5 + $0x590] sm:$0xff]
      %v7478 = vld [vmem:[%s5 + $0x598] sm:$0xff]
      %v7479 = vld [vmem:[%s5 + $0x5a0] sm:$0xff]
      %v7480 = vld [vmem:[%s5 + $0x5a8] sm:$0xff]
      %v7481 = vld [vmem:[%s5 + $0x5b0] sm:$0xff]
      %v7482 = vld [vmem:[%s5 + $0x5b8] sm:$0xff]
      %v7483 = vld [vmem:[%s5 + $0x5c0] sm:$0xff]
      %v7484 = vld [vmem:[%s5 + $0x5c8] sm:$0xff]
      %v7485 = vld [vmem:[%s5 + $0x5d0] sm:$0xff]
      %v7486 = vld [vmem:[%s5 + $0x5d8] sm:$0xff]
      %v7487 = vld [vmem:[%s5 + $0x5e0] sm:$0xff]
      %v7488 = vld [vmem:[%s5 + $0x5e8] sm:$0xff]
      %v7489 = vld [vmem:[%s5 + $0x5f0] sm:$0xff]
      %v7490 = vld [vmem:[%s5 + $0x5f8] sm:$0xff]
      %v7491 = vld [vmem:[%s5 + $0x600] sm:$0xff]
      %v7492 = vld [vmem:[%s5 + $0x608] sm:$0xff]
      %v7493 = vld [vmem:[%s5 + $0x610] sm:$0xff]
      %v7494 = vld [vmem:[%s5 + $0x618] sm:$0xff]
      %v7495 = vld [vmem:[%s5 + $0x620] sm:$0xff]
      %v7496 = vld [vmem:[%s5 + $0x628] sm:$0xff]
      %v7497 = vld [vmem:[%s5 + $0x630] sm:$0xff]
      %v7498 = vld [vmem:[%s5 + $0x638] sm:$0xff]
      %v7499 = vld [vmem:[%s5 + $0x640] sm:$0xff]
      %v7500 = vld [vmem:[%s5 + $0x648] sm:$0xff]
      %v7501 = vld [vmem:[%s5 + $0x650] sm:$0xff]
      %v7502 = vld [vmem:[%s5 + $0x658] sm:$0xff]
      %v7503 = vld [vmem:[%s5 + $0x660] sm:$0xff]
      %v7504 = vld [vmem:[%s5 + $0x668] sm:$0xff]
      %v7505 = vld [vmem:[%s5 + $0x670] sm:$0xff]
      %v7506 = vld [vmem:[%s5 + $0x678] sm:$0xff]
      %v7507 = vld [vmem:[%s5 + $0x680] sm:$0xff]
      %v7508 = vld [vmem:[%s5 + $0x688] sm:$0xff]
      %v7509 = vld [vmem:[%s5 + $0x690] sm:$0xff]
      %v7510 = vld [vmem:[%s5 + $0x698] sm:$0xff]
      %v7511 = vld [vmem:[%s5 + $0x6a0] sm:$0xff]
      %v7512 = vld [vmem:[%s5 + $0x6a8] sm:$0xff]
      %v7513 = vld [vmem:[%s5 + $0x6b0] sm:$0xff]
      %v7514 = vld [vmem:[%s5 + $0x6b8] sm:$0xff]
      %v7515 = vld [vmem:[%s5 + $0x6c0] sm:$0xff]
      %v7516 = vld [vmem:[%s5 + $0x6c8] sm:$0xff]
      %v7517 = vld [vmem:[%s5 + $0x6d0] sm:$0xff]
      %v7518 = vld [vmem:[%s5 + $0x6d8] sm:$0xff]
      %v7519 = vld [vmem:[%s5 + $0x6e0] sm:$0xff]
      %v7520 = vld [vmem:[%s5 + $0x6e8] sm:$0xff]
      %v7521 = vld [vmem:[%s5 + $0x6f0] sm:$0xff]
      %v7522 = vld [vmem:[%s5 + $0x6f8] sm:$0xff]
      %v7523 = vld [vmem:[%s5 + $0x700] sm:$0xff]
      %v7524 = vld [vmem:[%s5 + $0x708] sm:$0xff]
      %v7525 = vld [vmem:[%s5 + $0x710] sm:$0xff]
      %v7526 = vld [vmem:[%s5 + $0x718] sm:$0xff]
      %v7527 = vld [vmem:[%s5 + $0x720] sm:$0xff]
      %v7528 = vld [vmem:[%s5 + $0x728] sm:$0xff]
      %v7529 = vld [vmem:[%s5 + $0x730] sm:$0xff]
      %v7530 = vld [vmem:[%s5 + $0x738] sm:$0xff]
      %v7531 = vld [vmem:[%s5 + $0x740] sm:$0xff]
      %v7532 = vld [vmem:[%s5 + $0x748] sm:$0xff]
      %v7533 = vld [vmem:[%s5 + $0x750] sm:$0xff]
      %v7534 = vld [vmem:[%s5 + $0x758] sm:$0xff]
      %v7535 = vld [vmem:[%s5 + $0x760] sm:$0xff]
      %v7536 = vld [vmem:[%s5 + $0x768] sm:$0xff]
      %v7537 = vld [vmem:[%s5 + $0x770] sm:$0xff]
      %v7538 = vld [vmem:[%s5 + $0x778] sm:$0xff]
      %v7539 = vld [vmem:[%s5 + $0x780] sm:$0xff]
      %v7540 = vld [vmem:[%s5 + $0x788] sm:$0xff]
      %v7541 = vld [vmem:[%s5 + $0x790] sm:$0xff]
      %v7542 = vld [vmem:[%s5 + $0x798] sm:$0xff]
      %v7543 = vld [vmem:[%s5 + $0x7a0] sm:$0xff]
      %v7544 = vld [vmem:[%s5 + $0x7a8] sm:$0xff]
      %v7545 = vld [vmem:[%s5 + $0x7b0] sm:$0xff]
      %v7546 = vld [vmem:[%s5 + $0x7b8] sm:$0xff]
      %v7547 = vld [vmem:[%s5 + $0x7c0] sm:$0xff]
      %v7548 = vld [vmem:[%s5 + $0x7c8] sm:$0xff]
      %v7549 = vld [vmem:[%s5 + $0x7d0] sm:$0xff]
      %v7550 = vld [vmem:[%s5 + $0x7d8] sm:$0xff]
      %v7551 = vld [vmem:[%s5 + $0x7e0] sm:$0xff]
      %v7552 = vld [vmem:[%s5 + $0x7e8] sm:$0xff]
      %v7553 = vld [vmem:[%s5 + $0x7f0] sm:$0xff]
      %v7554 = vld [vmem:[%s5 + $0x7f8] sm:$0xff]
      %7555 = vmatprep.subr.mxu0 %v7360
      %7556 = vmatpush1.msra.mxu0 %v7359
      %7557 = vmatprep.subr.mxu0 %v7356
      %7558 = vmatpush1.msra.mxu0 %v7355
      %7559 = vmatprep.subr.mxu0 %v7352
      %7560 = vmatpush1.msra.mxu0 %v7351
      %7561 = vmatprep.subr.mxu0 %v7348
      %7562 = vmatpush1.msra.mxu0 %v7347
      %7563 = vmatprep.subr.mxu0 %v7344
      %7564 = vmatpush1.msra.mxu0 %v7343
      %7565 = vmatprep.subr.mxu0 %v7340
      %7566 = vmatpush1.msra.mxu0 %v7339
      %7567 = vmatprep.subr.mxu0 %v7336
      %7568 = vmatpush1.msra.mxu0 %v7335
      %7569 = vmatprep.subr.mxu0 %v7332
      %7570 = vmatpush1.msra.mxu0 %v7331
      %7571 = vmatprep.subr.mxu0 %v7328
      %7572 = vmatpush1.msra.mxu0 %v7327
      %7573 = vmatprep.subr.mxu0 %v7324
      %7574 = vmatpush1.msra.mxu0 %v7323
      %7575 = vmatprep.subr.mxu0 %v7320
      %7576 = vmatpush1.msra.mxu0 %v7319
      %7577 = vmatprep.subr.mxu0 %v7316
      %7578 = vmatpush1.msra.mxu0 %v7315
      %7579 = vmatprep.subr.mxu0 %v7312
      %7580 = vmatpush1.msra.mxu0 %v7311
      %7581 = vmatprep.subr.mxu0 %v7308
      %7582 = vmatpush1.msra.mxu0 %v7307
      %7583 = vmatprep.subr.mxu0 %v7304
      %7584 = vmatpush1.msra.mxu0 %v7303
      %7585 = vmatprep.subr.mxu0 %v7300
      %7586 = vmatpush1.msra.mxu0 %v7299
      %7587 = vmatprep.subr.mxu0 %v7424
      %7588 = vmatpush2.msra.mxu0 %v7423
      %7589 = vmatprep.subr.mxu0 %v7420
      %7590 = vmatpush2.msra.mxu0 %v7419
      %7591 = vmatprep.subr.mxu0 %v7416
      %7592 = vmatpush2.msra.mxu0 %v7415
      %7593 = vmatprep.subr.mxu0 %v7412
      %7594 = vmatpush2.msra.mxu0 %v7411
      %7595 = vmatprep.subr.mxu0 %v7408
      %7596 = vmatpush2.msra.mxu0 %v7407
      %7597 = vmatprep.subr.mxu0 %v7404
      %7598 = vmatpush2.msra.mxu0 %v7403
      %7599 = vmatprep.subr.mxu0 %v7400
      %7600 = vmatpush2.msra.mxu0 %v7399
      %7601 = vmatprep.subr.mxu0 %v7396
      %7602 = vmatpush2.msra.mxu0 %v7395
      %7603 = vmatprep.subr.mxu0 %v7392
      %7604 = vmatpush2.msra.mxu0 %v7391
      %7605 = vmatprep.subr.mxu0 %v7388
      %7606 = vmatpush2.msra.mxu0 %v7387
      %7607 = vmatprep.subr.mxu0 %v7384
      %7608 = vmatpush2.msra.mxu0 %v7383
      %7609 = vmatprep.subr.mxu0 %v7380
      %7610 = vmatpush2.msra.mxu0 %v7379
      %7611 = vmatprep.subr.mxu0 %v7376
      %7612 = vmatpush2.msra.mxu0 %v7375
      %7613 = vmatprep.subr.mxu0 %v7372
      %7614 = vmatpush2.msra.mxu0 %v7371
      %7615 = vmatprep.subr.mxu0 %v7368
      %7616 = vmatpush2.msra.mxu0 %v7367
      %7617 = vmatprep.subr.mxu0 %v7364
      %7618 = vmatpush2.msra.mxu0 %v7363
      %7619 = vmatprep.mubr.f32.mxu0 %v7292
      %7620 = vmatmul.mubr.f32.gmra.mxu0 %v7291
      %v7621 = vpop.f32.mrf.mxu0
      %v7622 = vadd.f32 0.0, %v7621
      %v7623 = vpop.f32.mrf.mxu0
      %v7624 = vadd.f32 0.0, %v7623
      %7625 = vmatprep.mubr.f32.mxu0 %v7296
      %7626 = vmatmul.mubr.f32.gmra.mxu0 %v7295
      %v7627 = vpop.f32.mrf.mxu0
      %v7628 = vadd.f32 0.0, %v7627
      %v7629 = vpop.f32.mrf.mxu0
      %v7630 = vadd.f32 0.0, %v7629
      %7631 = vdwg.mxu0
      %7632 = vmatprep.subr.mxu0 %v7488
      %7633 = vmatpush1.msra.mxu0 %v7487
      %7634 = vmatprep.subr.mxu0 %v7484
      %7635 = vmatpush1.msra.mxu0 %v7483
      %7636 = vmatprep.subr.mxu0 %v7480
      %7637 = vmatpush1.msra.mxu0 %v7479
      %7638 = vmatprep.subr.mxu0 %v7476
      %7639 = vmatpush1.msra.mxu0 %v7475
      %7640 = vmatprep.subr.mxu0 %v7472
      %7641 = vmatpush1.msra.mxu0 %v7471
      %7642 = vmatprep.subr.mxu0 %v7468
      %7643 = vmatpush1.msra.mxu0 %v7467
      %7644 = vmatprep.subr.mxu0 %v7464
      %7645 = vmatpush1.msra.mxu0 %v7463
      %7646 = vmatprep.subr.mxu0 %v7460
      %7647 = vmatpush1.msra.mxu0 %v7459
      %7648 = vmatprep.subr.mxu0 %v7456
      %7649 = vmatpush1.msra.mxu0 %v7455
      %7650 = vmatprep.subr.mxu0 %v7452
      %7651 = vmatpush1.msra.mxu0 %v7451
      %7652 = vmatprep.subr.mxu0 %v7448
      %7653 = vmatpush1.msra.mxu0 %v7447
      %7654 = vmatprep.subr.mxu0 %v7444
      %7655 = vmatpush1.msra.mxu0 %v7443
      %7656 = vmatprep.subr.mxu0 %v7440
      %7657 = vmatpush1.msra.mxu0 %v7439
      %7658 = vmatprep.subr.mxu0 %v7436
      %7659 = vmatpush1.msra.mxu0 %v7435
      %7660 = vmatprep.subr.mxu0 %v7432
      %7661 = vmatpush1.msra.mxu0 %v7431
      %7662 = vmatprep.subr.mxu0 %v7428
      %7663 = vmatpush1.msra.mxu0 %v7427
      %7664 = vmatprep.subr.mxu0 %v7552
      %7665 = vmatpush2.msra.mxu0 %v7551
      %7666 = vmatprep.subr.mxu0 %v7548
      %7667 = vmatpush2.msra.mxu0 %v7547
      %7668 = vmatprep.subr.mxu0 %v7544
      %7669 = vmatpush2.msra.mxu0 %v7543
      %7670 = vmatprep.subr.mxu0 %v7540
      %7671 = vmatpush2.msra.mxu0 %v7539
      %7672 = vmatprep.subr.mxu0 %v7536
      %7673 = vmatpush2.msra.mxu0 %v7535
      %7674 = vmatprep.subr.mxu0 %v7532
      %7675 = vmatpush2.msra.mxu0 %v7531
      %7676 = vmatprep.subr.mxu0 %v7528
      %7677 = vmatpush2.msra.mxu0 %v7527
      %7678 = vmatprep.subr.mxu0 %v7524
      %7679 = vmatpush2.msra.mxu0 %v7523
      %7680 = vmatprep.subr.mxu0 %v7520
      %7681 = vmatpush2.msra.mxu0 %v7519
      %7682 = vmatprep.subr.mxu0 %v7516
      %7683 = vmatpush2.msra.mxu0 %v7515
      %7684 = vmatprep.subr.mxu0 %v7512
      %7685 = vmatpush2.msra.mxu0 %v7511
      %7686 = vmatprep.subr.mxu0 %v7508
      %7687 = vmatpush2.msra.mxu0 %v7507
      %7688 = vmatprep.subr.mxu0 %v7504
      %7689 = vmatpush2.msra.mxu0 %v7503
      %7690 = vmatprep.subr.mxu0 %v7500
      %7691 = vmatpush2.msra.mxu0 %v7499
      %7692 = vmatprep.subr.mxu0 %v7496
      %7693 = vmatpush2.msra.mxu0 %v7495
      %7694 = vmatprep.subr.mxu0 %v7492
      %7695 = vmatpush2.msra.mxu0 %v7491
      %7696 = vmatprep.mubr.f32.mxu0 %v7294
      %7697 = vmatmul.mubr.f32.gmra.mxu0 %v7293
      %v7698 = vpop.f32.mrf.mxu0
      %v7699 = vadd.f32 %v7622, %v7698
      %v7700 = vpop.f32.mrf.mxu0
      %v7701 = vadd.f32 %v7624, %v7700
      %7702 = vmatprep.mubr.f32.mxu0 %v7298
      %7703 = vmatmul.mubr.f32.gmra.mxu0 %v7297
      %v7704 = vpop.f32.mrf.mxu0
      %v7705 = vadd.f32 %v7628, %v7704
      %v7706 = vpop.f32.mrf.mxu0
      %v7707 = vadd.f32 %v7630, %v7706
      %7708 = vdwg.mxu0
      %7709 = vmatprep.subr.mxu0 %v7362
      %7710 = vmatpush1.msra.mxu0 %v7361
      %7711 = vmatprep.subr.mxu0 %v7358
      %7712 = vmatpush1.msra.mxu0 %v7357
      %7713 = vmatprep.subr.mxu0 %v7354
      %7714 = vmatpush1.msra.mxu0 %v7353
      %7715 = vmatprep.subr.mxu0 %v7350
      %7716 = vmatpush1.msra.mxu0 %v7349
      %7717 = vmatprep.subr.mxu0 %v7346
      %7718 = vmatpush1.msra.mxu0 %v7345
      %7719 = vmatprep.subr.mxu0 %v7342
      %7720 = vmatpush1.msra.mxu0 %v7341
      %7721 = vmatprep.subr.mxu0 %v7338
      %7722 = vmatpush1.msra.mxu0 %v7337
      %7723 = vmatprep.subr.mxu0 %v7334
      %7724 = vmatpush1.msra.mxu0 %v7333
      %7725 = vmatprep.subr.mxu0 %v7330
      %7726 = vmatpush1.msra.mxu0 %v7329
      %7727 = vmatprep.subr.mxu0 %v7326
      %7728 = vmatpush1.msra.mxu0 %v7325
      %7729 = vmatprep.subr.mxu0 %v7322
      %7730 = vmatpush1.msra.mxu0 %v7321
      %7731 = vmatprep.subr.mxu0 %v7318
      %7732 = vmatpush1.msra.mxu0 %v7317
      %7733 = vmatprep.subr.mxu0 %v7314
      %7734 = vmatpush1.msra.mxu0 %v7313
      %7735 = vmatprep.subr.mxu0 %v7310
      %7736 = vmatpush1.msra.mxu0 %v7309
      %7737 = vmatprep.subr.mxu0 %v7306
      %7738 = vmatpush1.msra.mxu0 %v7305
      %7739 = vmatprep.subr.mxu0 %v7302
      %7740 = vmatpush1.msra.mxu0 %v7301
      %7741 = vmatprep.subr.mxu0 %v7426
      %7742 = vmatpush2.msra.mxu0 %v7425
      %7743 = vmatprep.subr.mxu0 %v7422
      %7744 = vmatpush2.msra.mxu0 %v7421
      %7745 = vmatprep.subr.mxu0 %v7418
      %7746 = vmatpush2.msra.mxu0 %v7417
      %7747 = vmatprep.subr.mxu0 %v7414
      %7748 = vmatpush2.msra.mxu0 %v7413
      %7749 = vmatprep.subr.mxu0 %v7410
      %7750 = vmatpush2.msra.mxu0 %v7409
      %7751 = vmatprep.subr.mxu0 %v7406
      %7752 = vmatpush2.msra.mxu0 %v7405
      %7753 = vmatprep.subr.mxu0 %v7402
      %7754 = vmatpush2.msra.mxu0 %v7401
      %7755 = vmatprep.subr.mxu0 %v7398
      %7756 = vmatpush2.msra.mxu0 %v7397
      %7757 = vmatprep.subr.mxu0 %v7394
      %7758 = vmatpush2.msra.mxu0 %v7393
      %7759 = vmatprep.subr.mxu0 %v7390
      %7760 = vmatpush2.msra.mxu0 %v7389
      %7761 = vmatprep.subr.mxu0 %v7386
      %7762 = vmatpush2.msra.mxu0 %v7385
      %7763 = vmatprep.subr.mxu0 %v7382
      %7764 = vmatpush2.msra.mxu0 %v7381
      %7765 = vmatprep.subr.mxu0 %v7378
      %7766 = vmatpush2.msra.mxu0 %v7377
      %7767 = vmatprep.subr.mxu0 %v7374
      %7768 = vmatpush2.msra.mxu0 %v7373
      %7769 = vmatprep.subr.mxu0 %v7370
      %7770 = vmatpush2.msra.mxu0 %v7369
      %7771 = vmatprep.subr.mxu0 %v7366
      %7772 = vmatpush2.msra.mxu0 %v7365
      %7773 = vmatprep.mubr.f32.mxu0 %v7292
      %7774 = vmatmul.mubr.f32.gmra.mxu0 %v7291
      %v7775 = vpop.f32.mrf.mxu0
      %v7776 = vadd.f32 0.0, %v7775
      %v7777 = vpop.f32.mrf.mxu0
      %v7778 = vadd.f32 0.0, %v7777
      %7779 = vmatprep.mubr.f32.mxu0 %v7296
      %7780 = vmatmul.mubr.f32.gmra.mxu0 %v7295
      %v7781 = vpop.f32.mrf.mxu0
      %v7782 = vadd.f32 0.0, %v7781
      %v7783 = vpop.f32.mrf.mxu0
      %v7784 = vadd.f32 0.0, %v7783
      %7785 = vdwg.mxu0
      %7786 = vmatprep.subr.mxu0 %v7490
      %7787 = vmatpush1.msra.mxu0 %v7489
      %7788 = vmatprep.subr.mxu0 %v7486
      %7789 = vmatpush1.msra.mxu0 %v7485
      %7790 = vmatprep.subr.mxu0 %v7482
      %7791 = vmatpush1.msra.mxu0 %v7481
      %7792 = vmatprep.subr.mxu0 %v7478
      %7793 = vmatpush1.msra.mxu0 %v7477
      %7794 = vmatprep.subr.mxu0 %v7474
      %7795 = vmatpush1.msra.mxu0 %v7473
      %7796 = vmatprep.subr.mxu0 %v7470
      %7797 = vmatpush1.msra.mxu0 %v7469
      %7798 = vmatprep.subr.mxu0 %v7466
      %7799 = vmatpush1.msra.mxu0 %v7465
      %7800 = vmatprep.subr.mxu0 %v7462
      %7801 = vmatpush1.msra.mxu0 %v7461
      %7802 = vmatprep.subr.mxu0 %v7458
      %7803 = vmatpush1.msra.mxu0 %v7457
      %7804 = vmatprep.subr.mxu0 %v7454
      %7805 = vmatpush1.msra.mxu0 %v7453
      %7806 = vmatprep.subr.mxu0 %v7450
      %7807 = vmatpush1.msra.mxu0 %v7449
      %7808 = vmatprep.subr.mxu0 %v7446
      %7809 = vmatpush1.msra.mxu0 %v7445
      %7810 = vmatprep.subr.mxu0 %v7442
      %7811 = vmatpush1.msra.mxu0 %v7441
      %7812 = vmatprep.subr.mxu0 %v7438
      %7813 = vmatpush1.msra.mxu0 %v7437
      %7814 = vmatprep.subr.mxu0 %v7434
      %7815 = vmatpush1.msra.mxu0 %v7433
      %7816 = vmatprep.subr.mxu0 %v7430
      %7817 = vmatpush1.msra.mxu0 %v7429
      %7818 = vmatprep.subr.mxu0 %v7554
      %7819 = vmatpush2.msra.mxu0 %v7553
      %7820 = vmatprep.subr.mxu0 %v7550
      %7821 = vmatpush2.msra.mxu0 %v7549
      %7822 = vmatprep.subr.mxu0 %v7546
      %7823 = vmatpush2.msra.mxu0 %v7545
      %7824 = vmatprep.subr.mxu0 %v7542
      %7825 = vmatpush2.msra.mxu0 %v7541
      %7826 = vmatprep.subr.mxu0 %v7538
      %7827 = vmatpush2.msra.mxu0 %v7537
      %7828 = vmatprep.subr.mxu0 %v7534
      %7829 = vmatpush2.msra.mxu0 %v7533
      %7830 = vmatprep.subr.mxu0 %v7530
      %7831 = vmatpush2.msra.mxu0 %v7529
      %7832 = vmatprep.subr.mxu0 %v7526
      %7833 = vmatpush2.msra.mxu0 %v7525
      %7834 = vmatprep.subr.mxu0 %v7522
      %7835 = vmatpush2.msra.mxu0 %v7521
      %7836 = vmatprep.subr.mxu0 %v7518
      %7837 = vmatpush2.msra.mxu0 %v7517
      %7838 = vmatprep.subr.mxu0 %v7514
      %7839 = vmatpush2.msra.mxu0 %v7513
      %7840 = vmatprep.subr.mxu0 %v7510
      %7841 = vmatpush2.msra.mxu0 %v7509
      %7842 = vmatprep.subr.mxu0 %v7506
      %7843 = vmatpush2.msra.mxu0 %v7505
      %7844 = vmatprep.subr.mxu0 %v7502
      %7845 = vmatpush2.msra.mxu0 %v7501
      %7846 = vmatprep.subr.mxu0 %v7498
      %7847 = vmatpush2.msra.mxu0 %v7497
      %7848 = vmatprep.subr.mxu0 %v7494
      %7849 = vmatpush2.msra.mxu0 %v7493
      %7850 = vmatprep.mubr.f32.mxu0 %v7294
      %7851 = vmatmul.mubr.f32.gmra.mxu0 %v7293
      %v7852 = vpop.f32.mrf.mxu0
      %v7853 = vadd.f32 %v7776, %v7852
      %v7854 = vpop.f32.mrf.mxu0
      %v7855 = vadd.f32 %v7778, %v7854
      %7856 = vmatprep.mubr.f32.mxu0 %v7298
      %7857 = vmatmul.mubr.f32.gmra.mxu0 %v7297
      %v7858 = vpop.f32.mrf.mxu0
      %v7859 = vadd.f32 %v7782, %v7858
      %v7860 = vpop.f32.mrf.mxu0
      %v7861 = vadd.f32 %v7784, %v7860
      %7862 = vdwg.mxu0
      %7863 = vmatprep.subr.mxu0 0.0
      %7864 = vmatpush1.msra.mxu0 %v6022
      %7865 = vmatprep.subr.mxu0 0.0
      %7866 = vmatpush1.msra.mxu0 %v6017
      %7867 = vmatprep.subr.mxu0 0.0
      %7868 = vmatpush1.msra.mxu0 %v6012
      %7869 = vmatprep.subr.mxu0 0.0
      %7870 = vmatpush1.msra.mxu0 %v6007
      %7871 = vmatprep.subr.mxu0 0.0
      %7872 = vmatpush1.msra.mxu0 %v6002
      %7873 = vmatprep.subr.mxu0 0.0
      %7874 = vmatpush1.msra.mxu0 %v5997
      %7875 = vmatprep.subr.mxu0 0.0
      %7876 = vmatpush1.msra.mxu0 %v5992
      %7877 = vmatprep.subr.mxu0 0.0
      %7878 = vmatpush1.msra.mxu0 %v5987
      %7879 = vmatprep.subr.mxu0 0.0
      %7880 = vmatpush1.msra.mxu0 %v5982
      %7881 = vmatprep.subr.mxu0 0.0
      %7882 = vmatpush1.msra.mxu0 %v5977
      %7883 = vmatprep.subr.mxu0 0.0
      %7884 = vmatpush1.msra.mxu0 %v5972
      %7885 = vmatprep.subr.mxu0 0.0
      %7886 = vmatpush1.msra.mxu0 %v5967
      %7887 = vmatprep.subr.mxu0 0.0
      %7888 = vmatpush1.msra.mxu0 %v5962
      %7889 = vmatprep.subr.mxu0 0.0
      %7890 = vmatpush1.msra.mxu0 %v5957
      %7891 = vmatprep.subr.mxu0 0.0
      %7892 = vmatpush1.msra.mxu0 %v5952
      %7893 = vmatprep.subr.mxu0 0.0
      %7894 = vmatpush1.msra.mxu0 %v5947
      %7895 = vmatprep.subr.mxu0 0.0
      %7896 = vmatpush2.msra.mxu0 %v6102
      %7897 = vmatprep.subr.mxu0 0.0
      %7898 = vmatpush2.msra.mxu0 %v6097
      %7899 = vmatprep.subr.mxu0 0.0
      %7900 = vmatpush2.msra.mxu0 %v6092
      %7901 = vmatprep.subr.mxu0 0.0
      %7902 = vmatpush2.msra.mxu0 %v6087
      %7903 = vmatprep.subr.mxu0 0.0
      %7904 = vmatpush2.msra.mxu0 %v6082
      %7905 = vmatprep.subr.mxu0 0.0
      %7906 = vmatpush2.msra.mxu0 %v6077
      %7907 = vmatprep.subr.mxu0 0.0
      %7908 = vmatpush2.msra.mxu0 %v6072
      %7909 = vmatprep.subr.mxu0 0.0
      %7910 = vmatpush2.msra.mxu0 %v6067
      %7911 = vmatprep.subr.mxu0 0.0
      %7912 = vmatpush2.msra.mxu0 %v6062
      %7913 = vmatprep.subr.mxu0 0.0
      %7914 = vmatpush2.msra.mxu0 %v6057
      %7915 = vmatprep.subr.mxu0 0.0
      %7916 = vmatpush2.msra.mxu0 %v6052
      %7917 = vmatprep.subr.mxu0 0.0
      %7918 = vmatpush2.msra.mxu0 %v6047
      %7919 = vmatprep.subr.mxu0 0.0
      %7920 = vmatpush2.msra.mxu0 %v6042
      %7921 = vmatprep.subr.mxu0 0.0
      %7922 = vmatpush2.msra.mxu0 %v6037
      %7923 = vmatprep.subr.mxu0 0.0
      %7924 = vmatpush2.msra.mxu0 %v6032
      %7925 = vmatprep.subr.mxu0 0.0
      %7926 = vmatpush2.msra.mxu0 %v6027
      %7927 = vmatprep.mubr.f32.mxu0 %v7701
      %7928 = vmatmul.mubr.f32.gmra.mxu0 %v7699
      %v7929 = vpop.f32.mrf.mxu0
      %v7930 = vadd.f32 0.0, %v7929
      %v7931 = vpop.f32.mrf.mxu0
      %7932 = vmatprep.mubr.f32.mxu0 %v7707
      %7933 = vmatmul.mubr.f32.gmra.mxu0 %v7705
      %v7934 = vpop.f32.mrf.mxu0
      %v7935 = vadd.f32 0.0, %v7934
      %v7936 = vpop.f32.mrf.mxu0
      %7937 = vdwg.mxu0
      %7938 = vmatprep.subr.mxu0 0.0
      %7939 = vmatpush1.msra.mxu0 %v6182
      %7940 = vmatprep.subr.mxu0 0.0
      %7941 = vmatpush1.msra.mxu0 %v6177
      %7942 = vmatprep.subr.mxu0 0.0
      %7943 = vmatpush1.msra.mxu0 %v6172
      %7944 = vmatprep.subr.mxu0 0.0
      %7945 = vmatpush1.msra.mxu0 %v6167
      %7946 = vmatprep.subr.mxu0 0.0
      %7947 = vmatpush1.msra.mxu0 %v6162
      %7948 = vmatprep.subr.mxu0 0.0
      %7949 = vmatpush1.msra.mxu0 %v6157
      %7950 = vmatprep.subr.mxu0 0.0
      %7951 = vmatpush1.msra.mxu0 %v6152
      %7952 = vmatprep.subr.mxu0 0.0
      %7953 = vmatpush1.msra.mxu0 %v6147
      %7954 = vmatprep.subr.mxu0 0.0
      %7955 = vmatpush1.msra.mxu0 %v6142
      %7956 = vmatprep.subr.mxu0 0.0
      %7957 = vmatpush1.msra.mxu0 %v6137
      %7958 = vmatprep.subr.mxu0 0.0
      %7959 = vmatpush1.msra.mxu0 %v6132
      %7960 = vmatprep.subr.mxu0 0.0
      %7961 = vmatpush1.msra.mxu0 %v6127
      %7962 = vmatprep.subr.mxu0 0.0
      %7963 = vmatpush1.msra.mxu0 %v6122
      %7964 = vmatprep.subr.mxu0 0.0
      %7965 = vmatpush1.msra.mxu0 %v6117
      %7966 = vmatprep.subr.mxu0 0.0
      %7967 = vmatpush1.msra.mxu0 %v6112
      %7968 = vmatprep.subr.mxu0 0.0
      %7969 = vmatpush1.msra.mxu0 %v6107
      %7970 = vmatprep.subr.mxu0 0.0
      %7971 = vmatpush2.msra.mxu0 %v6262
      %7972 = vmatprep.subr.mxu0 0.0
      %7973 = vmatpush2.msra.mxu0 %v6257
      %7974 = vmatprep.subr.mxu0 0.0
      %7975 = vmatpush2.msra.mxu0 %v6252
      %7976 = vmatprep.subr.mxu0 0.0
      %7977 = vmatpush2.msra.mxu0 %v6247
      %7978 = vmatprep.subr.mxu0 0.0
      %7979 = vmatpush2.msra.mxu0 %v6242
      %7980 = vmatprep.subr.mxu0 0.0
      %7981 = vmatpush2.msra.mxu0 %v6237
      %7982 = vmatprep.subr.mxu0 0.0
      %7983 = vmatpush2.msra.mxu0 %v6232
      %7984 = vmatprep.subr.mxu0 0.0
      %7985 = vmatpush2.msra.mxu0 %v6227
      %7986 = vmatprep.subr.mxu0 0.0
      %7987 = vmatpush2.msra.mxu0 %v6222
      %7988 = vmatprep.subr.mxu0 0.0
      %7989 = vmatpush2.msra.mxu0 %v6217
      %7990 = vmatprep.subr.mxu0 0.0
      %7991 = vmatpush2.msra.mxu0 %v6212
      %7992 = vmatprep.subr.mxu0 0.0
      %7993 = vmatpush2.msra.mxu0 %v6207
      %7994 = vmatprep.subr.mxu0 0.0
      %7995 = vmatpush2.msra.mxu0 %v6202
      %7996 = vmatprep.subr.mxu0 0.0
      %7997 = vmatpush2.msra.mxu0 %v6197
      %7998 = vmatprep.subr.mxu0 0.0
      %7999 = vmatpush2.msra.mxu0 %v6192
      %8000 = vmatprep.subr.mxu0 0.0
      %8001 = vmatpush2.msra.mxu0 %v6187
      %8002 = vmatprep.mubr.f32.mxu0 %v7855
      %8003 = vmatmul.mubr.f32.gmra.mxu0 %v7853
      %v8004 = vpop.f32.mrf.mxu0
      %v8005 = vadd.f32 %v7930, %v8004
      %v8006 = vpop.f32.mrf.mxu0
      %8007 = vmatprep.mubr.f32.mxu0 %v7861
      %8008 = vmatmul.mubr.f32.gmra.mxu0 %v7859
      %v8009 = vpop.f32.mrf.mxu0
      %v8010 = vadd.f32 %v7935, %v8009
      %v8011 = vpop.f32.mrf.mxu0
      %8012 = vdwg.mxu0
      %v8013 = vmul.f32 %v8005, 0.044194173
      %v8014 = vmul.f32 %v8010, 0.044194173
      %v8015 = vlaneseq
      %v8016 = vshrl.u32 %v8015, 7
      %v8017 = vadd.s32 %v8016, 8
      %vm8018 = vcmp.lt.s32.totalorder %v8016, 10
      %vm8019 = vcmp.lt.s32.totalorder %v8017, 10
      %vm8020 = vcmp.gt.f32.partialorder %v616, 0.0
      %v8021 = vsel %vm8020, 1, 0
      %v8022 = vlaneseq
      %v8023 = vshrl.u32 %v8022, 7
      %v8024 = vsub.s32 0, %v8023
      %v8025 = vrot.slane %v8021, %v8024
      %vm8026 = vcmp.eq.s32.totalorder %v8025, 1
      %vm8027 = vmand %vm8018, %vm8026
      %vm8028 = vmand %vm8019, %vm8026
      %v8029 = vsel %vm8027, %v8013, -1e+30
      %v8030 = vsel %vm8028, %v8014, -1e+30
      %v8031 = vmax.f32 %v8029, %v8030
      %v8032 = vrot.slane %v8031, 4
      %v8033 = vmax.f32 %v8031, %v8032
      %v8034 = vrot.slane %v8033, 2
      %v8035 = vmax.f32 %v8033, %v8034
      %v8036 = vrot.slane %v8035, 1
      %v8037 = vmax.f32 %v8035, %v8036
      %v8038 = vsub.f32 %v8029, %v8037
      %v8039 = vsub.f32 %v8030, %v8037
      %v8040 = vmul.f32 %v8038, 1.442695
      %v8041 = vpow.pop %v8040
      %v8042 = vmul.f32 %v8039, 1.442695
      %v8043 = vpow.pop %v8042
      %v8044 = vadd.f32 %v8041, %v8043
      %v8045 = vrot.slane %v8044, 4
      %v8046 = vadd.f32 %v8044, %v8045
      %v8047 = vrot.slane %v8046, 2
      %v8048 = vadd.f32 %v8046, %v8047
      %v8049 = vrot.slane %v8048, 1
      %v8050 = vadd.f32 %v8048, %v8049
      %v8051 = vrcp.pop %v8050
      %v8052 = vmul.f32 %v8041, %v8051
      %v8053 = vmul.f32 %v8043, %v8051
      %v8054 = vmul.f32 %v8052, %v5109
      %v8055 = vmul.f32 %v8053, %v5109
      %8056 = vst [vmem:[%s354] sm:$0xff] %v8054
      %8057 = vst [vmem:[%s354 + $0x8] sm:$0xff] %v8055
      %8058 = vadd.xlane.f32.xlu0 %v8054
      %v8059 = vpop.xlane.xlu0 %8058
      %8060 = vadd.xlane.f32.xlu0 %v8055
      %v8061 = vpop.xlane.xlu0 %8060
      %v8062 = vadd.f32 %v8059, 1e-08
      %v8063 = vadd.f32 %v8061, 1e-08
      %v8064 = vrcp.pop %v8062
      %v8065 = vrcp.pop %v8063
      %v8066 = vmul.f32 %v8054, %v8064
      %v8067 = vmul.f32 %v8055, %v8065
      %8068 = vmatprep.subr.mxu0 0.0
      %8069 = vmatpush1.xpose.msra.mxu0 %v7048
      %8070 = vmatprep.subr.mxu0 0.0
      %8071 = vmatpush1.xpose.msra.mxu0 %v7043
      %8072 = vmatprep.subr.mxu0 0.0
      %8073 = vmatpush1.xpose.msra.mxu0 %v7038
      %8074 = vmatprep.subr.mxu0 0.0
      %8075 = vmatpush1.xpose.msra.mxu0 %v7033
      %8076 = vmatprep.subr.mxu0 0.0
      %8077 = vmatpush1.xpose.msra.mxu0 %v7028
      %8078 = vmatprep.subr.mxu0 0.0
      %8079 = vmatpush1.xpose.msra.mxu0 %v7023
      %8080 = vmatprep.subr.mxu0 0.0
      %8081 = vmatpush1.xpose.msra.mxu0 %v7018
      %8082 = vmatprep.subr.mxu0 0.0
      %8083 = vmatpush1.xpose.msra.mxu0 %v7013
      %8084 = vmatprep.subr.mxu0 0.0
      %8085 = vmatpush1.xpose.msra.mxu0 %v7008
      %8086 = vmatprep.subr.mxu0 0.0
      %8087 = vmatpush1.xpose.msra.mxu0 %v7003
      %8088 = vmatprep.subr.mxu0 0.0
      %8089 = vmatpush1.xpose.msra.mxu0 %v6998
      %8090 = vmatprep.subr.mxu0 0.0
      %8091 = vmatpush1.xpose.msra.mxu0 %v6993
      %8092 = vmatprep.subr.mxu0 0.0
      %8093 = vmatpush1.xpose.msra.mxu0 %v6988
      %8094 = vmatprep.subr.mxu0 0.0
      %8095 = vmatpush1.xpose.msra.mxu0 %v6983
      %8096 = vmatprep.subr.mxu0 0.0
      %8097 = vmatpush1.xpose.msra.mxu0 %v6978
      %8098 = vmatprep.subr.mxu0 0.0
      %8099 = vmatpush1.xpose.msra.mxu0 %v6973
      %8100 = vmatprep.subr.mxu0 0.0
      %8101 = vmatpush2.xpose.msra.mxu0 %v7128
      %8102 = vmatprep.subr.mxu0 0.0
      %8103 = vmatpush2.xpose.msra.mxu0 %v7123
      %8104 = vmatprep.subr.mxu0 0.0
      %8105 = vmatpush2.xpose.msra.mxu0 %v7118
      %8106 = vmatprep.subr.mxu0 0.0
      %8107 = vmatpush2.xpose.msra.mxu0 %v7113
      %8108 = vmatprep.subr.mxu0 0.0
      %8109 = vmatpush2.xpose.msra.mxu0 %v7108
      %8110 = vmatprep.subr.mxu0 0.0
      %8111 = vmatpush2.xpose.msra.mxu0 %v7103
      %8112 = vmatprep.subr.mxu0 0.0
      %8113 = vmatpush2.xpose.msra.mxu0 %v7098
      %8114 = vmatprep.subr.mxu0 0.0
      %8115 = vmatpush2.xpose.msra.mxu0 %v7093
      %8116 = vmatprep.subr.mxu0 0.0
      %8117 = vmatpush2.xpose.msra.mxu0 %v7088
      %8118 = vmatprep.subr.mxu0 0.0
      %8119 = vmatpush2.xpose.msra.mxu0 %v7083
      %8120 = vmatprep.subr.mxu0 0.0
      %8121 = vmatpush2.xpose.msra.mxu0 %v7078
      %8122 = vmatprep.subr.mxu0 0.0
      %8123 = vmatpush2.xpose.msra.mxu0 %v7073
      %8124 = vmatprep.subr.mxu0 0.0
      %8125 = vmatpush2.xpose.msra.mxu0 %v7068
      %8126 = vmatprep.subr.mxu0 0.0
      %8127 = vmatpush2.xpose.msra.mxu0 %v7063
      %8128 = vmatprep.subr.mxu0 0.0
      %8129 = vmatpush2.xpose.msra.mxu0 %v7058
      %8130 = vmatprep.subr.mxu0 0.0
      %8131 = vmatpush2.xpose.msra.mxu0 %v7053
      %8132 = vmatprep.mubr.f32.mxu0 0.0
      %8133 = vmatmul.mubr.f32.gmra.mxu0 %v8066
      %v8134 = vpop.f32.mrf.mxu0
      %v8135 = vadd.f32 0.0, %v8134
      %v8136 = vpop.f32.mrf.mxu0
      %v8137 = vadd.f32 0.0, %v8136
      %8138 = vmatprep.mubr.f32.mxu0 0.0
      %8139 = vmatmul.mubr.f32.gmra.mxu0 %v8067
      %v8140 = vpop.f32.mrf.mxu0
      %v8141 = vadd.f32 0.0, %v8140
      %v8142 = vpop.f32.mrf.mxu0
      %v8143 = vadd.f32 0.0, %v8142
      %8144 = vdwg.mxu0
      %8145 = vmatprep.subr.mxu0 0.0
      %8146 = vmatpush1.xpose.msra.mxu0 %v7208
      %8147 = vmatprep.subr.mxu0 0.0
      %8148 = vmatpush1.xpose.msra.mxu0 %v7203
      %8149 = vmatprep.subr.mxu0 0.0
      %8150 = vmatpush1.xpose.msra.mxu0 %v7198
      %8151 = vmatprep.subr.mxu0 0.0
      %8152 = vmatpush1.xpose.msra.mxu0 %v7193
      %8153 = vmatprep.subr.mxu0 0.0
      %8154 = vmatpush1.xpose.msra.mxu0 %v7188
      %8155 = vmatprep.subr.mxu0 0.0
      %8156 = vmatpush1.xpose.msra.mxu0 %v7183
      %8157 = vmatprep.subr.mxu0 0.0
      %8158 = vmatpush1.xpose.msra.mxu0 %v7178
      %8159 = vmatprep.subr.mxu0 0.0
      %8160 = vmatpush1.xpose.msra.mxu0 %v7173
      %8161 = vmatprep.subr.mxu0 0.0
      %8162 = vmatpush1.xpose.msra.mxu0 %v7168
      %8163 = vmatprep.subr.mxu0 0.0
      %8164 = vmatpush1.xpose.msra.mxu0 %v7163
      %8165 = vmatprep.subr.mxu0 0.0
      %8166 = vmatpush1.xpose.msra.mxu0 %v7158
      %8167 = vmatprep.subr.mxu0 0.0
      %8168 = vmatpush1.xpose.msra.mxu0 %v7153
      %8169 = vmatprep.subr.mxu0 0.0
      %8170 = vmatpush1.xpose.msra.mxu0 %v7148
      %8171 = vmatprep.subr.mxu0 0.0
      %8172 = vmatpush1.xpose.msra.mxu0 %v7143
      %8173 = vmatprep.subr.mxu0 0.0
      %8174 = vmatpush1.xpose.msra.mxu0 %v7138
      %8175 = vmatprep.subr.mxu0 0.0
      %8176 = vmatpush1.xpose.msra.mxu0 %v7133
      %8177 = vmatprep.subr.mxu0 0.0
      %8178 = vmatpush2.xpose.msra.mxu0 %v7288
      %8179 = vmatprep.subr.mxu0 0.0
      %8180 = vmatpush2.xpose.msra.mxu0 %v7283
      %8181 = vmatprep.subr.mxu0 0.0
      %8182 = vmatpush2.xpose.msra.mxu0 %v7278
      %8183 = vmatprep.subr.mxu0 0.0
      %8184 = vmatpush2.xpose.msra.mxu0 %v7273
      %8185 = vmatprep.subr.mxu0 0.0
      %8186 = vmatpush2.xpose.msra.mxu0 %v7268
      %8187 = vmatprep.subr.mxu0 0.0
      %8188 = vmatpush2.xpose.msra.mxu0 %v7263
      %8189 = vmatprep.subr.mxu0 0.0
      %8190 = vmatpush2.xpose.msra.mxu0 %v7258
      %8191 = vmatprep.subr.mxu0 0.0
      %8192 = vmatpush2.xpose.msra.mxu0 %v7253
      %8193 = vmatprep.subr.mxu0 0.0
      %8194 = vmatpush2.xpose.msra.mxu0 %v7248
      %8195 = vmatprep.subr.mxu0 0.0
      %8196 = vmatpush2.xpose.msra.mxu0 %v7243
      %8197 = vmatprep.subr.mxu0 0.0
      %8198 = vmatpush2.xpose.msra.mxu0 %v7238
      %8199 = vmatprep.subr.mxu0 0.0
      %8200 = vmatpush2.xpose.msra.mxu0 %v7233
      %8201 = vmatprep.subr.mxu0 0.0
      %8202 = vmatpush2.xpose.msra.mxu0 %v7228
      %8203 = vmatprep.subr.mxu0 0.0
      %8204 = vmatpush2.xpose.msra.mxu0 %v7223
      %8205 = vmatprep.subr.mxu0 0.0
      %8206 = vmatpush2.xpose.msra.mxu0 %v7218
      %8207 = vmatprep.subr.mxu0 0.0
      %8208 = vmatpush2.xpose.msra.mxu0 %v7213
      %8209 = vmatprep.mubr.f32.mxu0 0.0
      %8210 = vmatmul.mubr.f32.gmra.mxu0 %v8066
      %v8211 = vpop.f32.mrf.mxu0
      %v8212 = vadd.f32 0.0, %v8211
      %v8213 = vpop.f32.mrf.mxu0
      %v8214 = vadd.f32 0.0, %v8213
      %8215 = vmatprep.mubr.f32.mxu0 0.0
      %8216 = vmatmul.mubr.f32.gmra.mxu0 %v8067
      %v8217 = vpop.f32.mrf.mxu0
      %v8218 = vadd.f32 0.0, %v8217
      %v8219 = vpop.f32.mrf.mxu0
      %v8220 = vadd.f32 0.0, %v8219
      %8221 = vdwg.mxu0
      %8222 = vmatprep.subr.mxu0 0.0
      %8223 = vmatpush1.msra.mxu0 %v6022
      %8224 = vmatprep.subr.mxu0 0.0
      %8225 = vmatpush1.msra.mxu0 %v6017
      %8226 = vmatprep.subr.mxu0 0.0
      %8227 = vmatpush1.msra.mxu0 %v6012
      %8228 = vmatprep.subr.mxu0 0.0
      %8229 = vmatpush1.msra.mxu0 %v6007
      %8230 = vmatprep.subr.mxu0 0.0
      %8231 = vmatpush1.msra.mxu0 %v6002
      %8232 = vmatprep.subr.mxu0 0.0
      %8233 = vmatpush1.msra.mxu0 %v5997
      %8234 = vmatprep.subr.mxu0 0.0
      %8235 = vmatpush1.msra.mxu0 %v5992
      %8236 = vmatprep.subr.mxu0 0.0
      %8237 = vmatpush1.msra.mxu0 %v5987
      %8238 = vmatprep.subr.mxu0 0.0
      %8239 = vmatpush1.msra.mxu0 %v5982
      %8240 = vmatprep.subr.mxu0 0.0
      %8241 = vmatpush1.msra.mxu0 %v5977
      %8242 = vmatprep.subr.mxu0 0.0
      %8243 = vmatpush1.msra.mxu0 %v5972
      %8244 = vmatprep.subr.mxu0 0.0
      %8245 = vmatpush1.msra.mxu0 %v5967
      %8246 = vmatprep.subr.mxu0 0.0
      %8247 = vmatpush1.msra.mxu0 %v5962
      %8248 = vmatprep.subr.mxu0 0.0
      %8249 = vmatpush1.msra.mxu0 %v5957
      %8250 = vmatprep.subr.mxu0 0.0
      %8251 = vmatpush1.msra.mxu0 %v5952
      %8252 = vmatprep.subr.mxu0 0.0
      %8253 = vmatpush1.msra.mxu0 %v5947
      %8254 = vmatprep.subr.mxu0 0.0
      %8255 = vmatpush2.msra.mxu0 %v6102
      %8256 = vmatprep.subr.mxu0 0.0
      %8257 = vmatpush2.msra.mxu0 %v6097
      %8258 = vmatprep.subr.mxu0 0.0
      %8259 = vmatpush2.msra.mxu0 %v6092
      %8260 = vmatprep.subr.mxu0 0.0
      %8261 = vmatpush2.msra.mxu0 %v6087
      %8262 = vmatprep.subr.mxu0 0.0
      %8263 = vmatpush2.msra.mxu0 %v6082
      %8264 = vmatprep.subr.mxu0 0.0
      %8265 = vmatpush2.msra.mxu0 %v6077
      %8266 = vmatprep.subr.mxu0 0.0
      %8267 = vmatpush2.msra.mxu0 %v6072
      %8268 = vmatprep.subr.mxu0 0.0
      %8269 = vmatpush2.msra.mxu0 %v6067
      %8270 = vmatprep.subr.mxu0 0.0
      %8271 = vmatpush2.msra.mxu0 %v6062
      %8272 = vmatprep.subr.mxu0 0.0
      %8273 = vmatpush2.msra.mxu0 %v6057
      %8274 = vmatprep.subr.mxu0 0.0
      %8275 = vmatpush2.msra.mxu0 %v6052
      %8276 = vmatprep.subr.mxu0 0.0
      %8277 = vmatpush2.msra.mxu0 %v6047
      %8278 = vmatprep.subr.mxu0 0.0
      %8279 = vmatpush2.msra.mxu0 %v6042
      %8280 = vmatprep.subr.mxu0 0.0
      %8281 = vmatpush2.msra.mxu0 %v6037
      %8282 = vmatprep.subr.mxu0 0.0
      %8283 = vmatpush2.msra.mxu0 %v6032
      %8284 = vmatprep.subr.mxu0 0.0
      %8285 = vmatpush2.msra.mxu0 %v6027
      %8286 = vmatprep.mubr.f32.mxu0 %v8137
      %8287 = vmatmul.mubr.f32.gmra.mxu0 %v8135
      %v8288 = vpop.f32.mrf.mxu0
      %v8289 = vadd.f32 0.0, %v8288
      %v8290 = vpop.f32.mrf.mxu0
      %8291 = vmatprep.mubr.f32.mxu0 %v8143
      %8292 = vmatmul.mubr.f32.gmra.mxu0 %v8141
      %v8293 = vpop.f32.mrf.mxu0
      %v8294 = vadd.f32 0.0, %v8293
      %v8295 = vpop.f32.mrf.mxu0
      %8296 = vdwg.mxu0
      %8297 = vmatprep.subr.mxu0 0.0
      %8298 = vmatpush1.msra.mxu0 %v6182
      %8299 = vmatprep.subr.mxu0 0.0
      %8300 = vmatpush1.msra.mxu0 %v6177
      %8301 = vmatprep.subr.mxu0 0.0
      %8302 = vmatpush1.msra.mxu0 %v6172
      %8303 = vmatprep.subr.mxu0 0.0
      %8304 = vmatpush1.msra.mxu0 %v6167
      %8305 = vmatprep.subr.mxu0 0.0
      %8306 = vmatpush1.msra.mxu0 %v6162
      %8307 = vmatprep.subr.mxu0 0.0
      %8308 = vmatpush1.msra.mxu0 %v6157
      %8309 = vmatprep.subr.mxu0 0.0
      %8310 = vmatpush1.msra.mxu0 %v6152
      %8311 = vmatprep.subr.mxu0 0.0
      %8312 = vmatpush1.msra.mxu0 %v6147
      %8313 = vmatprep.subr.mxu0 0.0
      %8314 = vmatpush1.msra.mxu0 %v6142
      %8315 = vmatprep.subr.mxu0 0.0
      %8316 = vmatpush1.msra.mxu0 %v6137
      %8317 = vmatprep.subr.mxu0 0.0
      %8318 = vmatpush1.msra.mxu0 %v6132
      %8319 = vmatprep.subr.mxu0 0.0
      %8320 = vmatpush1.msra.mxu0 %v6127
      %8321 = vmatprep.subr.mxu0 0.0
      %8322 = vmatpush1.msra.mxu0 %v6122
      %8323 = vmatprep.subr.mxu0 0.0
      %8324 = vmatpush1.msra.mxu0 %v6117
      %8325 = vmatprep.subr.mxu0 0.0
      %8326 = vmatpush1.msra.mxu0 %v6112
      %8327 = vmatprep.subr.mxu0 0.0
      %8328 = vmatpush1.msra.mxu0 %v6107
      %8329 = vmatprep.subr.mxu0 0.0
      %8330 = vmatpush2.msra.mxu0 %v6262
      %8331 = vmatprep.subr.mxu0 0.0
      %8332 = vmatpush2.msra.mxu0 %v6257
      %8333 = vmatprep.subr.mxu0 0.0
      %8334 = vmatpush2.msra.mxu0 %v6252
      %8335 = vmatprep.subr.mxu0 0.0
      %8336 = vmatpush2.msra.mxu0 %v6247
      %8337 = vmatprep.subr.mxu0 0.0
      %8338 = vmatpush2.msra.mxu0 %v6242
      %8339 = vmatprep.subr.mxu0 0.0
      %8340 = vmatpush2.msra.mxu0 %v6237
      %8341 = vmatprep.subr.mxu0 0.0
      %8342 = vmatpush2.msra.mxu0 %v6232
      %8343 = vmatprep.subr.mxu0 0.0
      %8344 = vmatpush2.msra.mxu0 %v6227
      %8345 = vmatprep.subr.mxu0 0.0
      %8346 = vmatpush2.msra.mxu0 %v6222
      %8347 = vmatprep.subr.mxu0 0.0
      %8348 = vmatpush2.msra.mxu0 %v6217
      %8349 = vmatprep.subr.mxu0 0.0
      %8350 = vmatpush2.msra.mxu0 %v6212
      %8351 = vmatprep.subr.mxu0 0.0
      %8352 = vmatpush2.msra.mxu0 %v6207
      %8353 = vmatprep.subr.mxu0 0.0
      %8354 = vmatpush2.msra.mxu0 %v6202
      %8355 = vmatprep.subr.mxu0 0.0
      %8356 = vmatpush2.msra.mxu0 %v6197
      %8357 = vmatprep.subr.mxu0 0.0
      %8358 = vmatpush2.msra.mxu0 %v6192
      %8359 = vmatprep.subr.mxu0 0.0
      %8360 = vmatpush2.msra.mxu0 %v6187
      %8361 = vmatprep.mubr.f32.mxu0 %v8214
      %8362 = vmatmul.mubr.f32.gmra.mxu0 %v8212
      %v8363 = vpop.f32.mrf.mxu0
      %v8364 = vadd.f32 %v8289, %v8363
      %v8365 = vpop.f32.mrf.mxu0
      %8366 = vmatprep.mubr.f32.mxu0 %v8220
      %8367 = vmatmul.mubr.f32.gmra.mxu0 %v8218
      %v8368 = vpop.f32.mrf.mxu0
      %v8369 = vadd.f32 %v8294, %v8368
      %v8370 = vpop.f32.mrf.mxu0
      %8371 = vdwg.mxu0
      %v8372 = vmul.f32 %v8364, %v5109
      %v8373 = vmul.f32 %v8369, %v5109
      %8374 = vst [vmem:[%s359] sm:$0xff] %v8372
      %8375 = vst [vmem:[%s359 + $0x8] sm:$0xff] %v8373
      %p8376 = scmp.lt.s32.totalorder %s21, 1
      %s8377 = scalar_select %p8376, %s21, 1
      %s8378 = smul.addr %s8377, 2
      %s8379 = smul.addr %s8378, 8
      %s8380 = scalar_lea.vmem %s8, %s8379
      %p8381 = scmp.lt.s32.totalorder %s21, 1
      %s8382 = scalar_select %p8381, %s21, 1
      %s8383 = smul.addr %s8382, 2
      %s8384 = smul.addr %s8383, 8
      %s8385 = scalar_lea.vmem %s9, %s8384
      // Predicated region
      $region53: #{i3d_forward.1} parent=51 // pred_check
        %p8386 = pneg %p217
      $region54: #{i3d_forward.1} parent=51 // pred_check_branch
        %8388 = sbr.rel (%p8386) target = $region56
      $region55: #{i3d_forward.1} parent=51 // pred_region
        _
      $region56: #{i3d_forward.1} parent=51 // pred_fallthru
        _
      // Predicated region
      $region57: #{i3d_forward.1} parent=51 // pred_check
        %p8389 = pneg %p243
      $region58: #{i3d_forward.1} parent=51 // pred_check_branch
        %8391 = sbr.rel (%p8389) target = $region60
      $region59: #{i3d_forward.1} parent=51 // pred_region
        _
      $region60: #{i3d_forward.1} parent=51 // pred_fallthru
        _
    $region52: #{i3d_forward.1} parent=5 // pred_fallthru
      _
    %p8392 = scmp.le.s32.totalorder 2, %s16
    // Predicated region
    $region61: #{i3d_forward.1} parent=5 // pred_check
      %p8393 = pneg %p8392
    $region62: #{i3d_forward.1} parent=5 // pred_check_branch
      %8395 = sbr.rel (%p8393) target = $region64
    $region63: #{i3d_forward.1} parent=5 // pred_region
      %s8396 = ssub.s32 %s16, 2
      // Predicated region
      $region65: #{i3d_forward.1} parent=63 // pred_check
        %p8397 = pneg %p223
      $region66: #{i3d_forward.1} parent=63 // pred_check_branch
        %8399 = sbr.rel (%p8397) target = $region68
      $region67: #{i3d_forward.1} parent=63 // pred_region
        %p8400 = scmp.lt.s32.totalorder %s22, 1
        %s8401 = scalar_select %p8400, %s22, 1
        %s8402 = smul.addr %s8401, 2
        %s8403 = smul.addr %s8402, 8
        %s8404 = scalar_lea.vmem %s8, %s8403
      $region68: #{i3d_forward.1} parent=63 // pred_fallthru
        _
      // Predicated region
      $region69: #{i3d_forward.1} parent=63 // pred_check
        %p8405 = pneg %p249
      $region70: #{i3d_forward.1} parent=63 // pred_check_branch
        %8407 = sbr.rel (%p8405) target = $region72
      $region71: #{i3d_forward.1} parent=63 // pred_region
        %p8408 = scmp.lt.s32.totalorder %s22, 1
        %s8409 = scalar_select %p8408, %s22, 1
        %s8410 = smul.addr %s8409, 2
        %s8411 = smul.addr %s8410, 8
        %s8412 = scalar_lea.vmem %s9, %s8411
      $region72: #{i3d_forward.1} parent=63 // pred_fallthru
        _
    $region64: #{i3d_forward.1} parent=5 // pred_fallthru
      _
  $region6: #{i3d_forward.1} parent=0 // loop_footer
    %s20 = sadd.s32 1, %s16
  $region7: #{i3d_forward.1} parent=0 // loop_footer_branch
    %15 = sbr.rel target = $region3
  $region8: #{i3d_forward.1} parent=0 // loop_exit
    _

</llo_original>
